<compile_context>
chip_gen: v6e
topology: v6e:2x2x1
jax: 0.10.0
libtpu: 0.0.40
codegen_flags: <defaults>
</compile_context>

<pallas_src>
import functools

import jax
import jax.numpy as jnp
from jax.experimental import pallas as pl
from jax.experimental.pallas import tpu as pltpu


# ------------------------------ small helpers ------------------------------ #

def _round_up(x, m):
    return ((x + m - 1) // m) * m


@functools.lru_cache(maxsize=None)
def _vmem_limit_bytes():
    """min(physical VMEM / 2, 64 MiB): 32 MiB on v7x, 64 MiB on v5e/v6e."""
    cap = 128 * 1024 * 1024
    try:
        cap = int(pltpu.get_tpu_info().vmem_capacity_bytes)
    except Exception:
        pass
    return int(min(max(cap // 2, 16 * 1024 * 1024), 64 * 1024 * 1024))


def _pick_cout_tile(N, K, B, itemsize=2, w_budget=8 * 1024 * 1024):
    """Cout tile: full N when small / non-128-aligned (layout-legal full-dim
    block); otherwise a multiple of 128 that keeps the double-buffered weight
    slab under budget and gives >=2 grid tiles when the batch axis alone
    cannot feed both v7x TensorCores."""
    if N <= 128 or N % 128 != 0:
        return N
    tn = N
    while (tn > 128 and (tn // 2) % 128 == 0
           and (2 * itemsize * K * tn > w_budget or (B < 2 and tn == N))):
        tn //= 2
    return tn


# ------------------------------ Pallas kernel ------------------------------ #

def _conv2x2_lrelu_kernel(x_ref, w_ref, o_ref, *, ho, wo, c4, apply_lrelu,
                          neg_slope):
    """One (batch item, Cout tile) block of the fused stride-1 2x2 conv.

    x_ref : (1, ho+1, wo+1, c4) bf16  -- pad(1)+space-to-depth(2) image slab.
    w_ref : (4*c4, tn)          bf16  -- rows ordered (tap=(dh,dw), i, j, cin).
    o_ref : (1, ho*wo, tn)      bf16
    """
    x = x_ref[0]                                   # (ho+1, wo+1, c4)
    w = w_ref[...]                                 # (4*c4, tn)
    tn = w.shape[-1]
    acc = jnp.zeros((ho * wo, tn), jnp.float32)
    for dh in range(2):                            # 4 taps, unrolled
        for dw in range(2):
            tap = 2 * dh + dw
            xs = x[dh:dh + ho, dw:dw + wo, :].reshape(ho * wo, c4)
            acc = acc + jnp.dot(xs, w[tap * c4:(tap + 1) * c4, :],
                                preferred_element_type=jnp.float32)
    if apply_lrelu:
        acc = jnp.where(acc >= 0.0, acc, acc * neg_slope)
    o_ref[0] = acc.astype(o_ref.dtype)


def fused_conv4x4s2(x_nhwc, w_mat, *, apply_lrelu, neg_slope=0.2):
    """Conv2d(k=4, s=2, p=1, bias=False) [+ LeakyReLU(0.2)] as a fused kernel.

    x_nhwc : (B, H, W, C) bf16, C a multiple of 8 (zero-padded channels).
    w_mat  : (16*C, N)   bf16, rows ordered (tap=(dh,dw), i, j, cin).
    returns: (B, H//2, W//2, N) bf16.
    """
    B, H, W, C = x_nhwc.shape
    assert H % 2 == 0 and W % 2 == 0 and C % 8 == 0
    ho, wo, c4 = H // 2, W // 2, 4 * C
    K, N = w_mat.shape
    assert K == 4 * c4, (K, c4)

    # pad=1, then 2x2 space-to-depth: the stride-2 4x4 conv becomes a stride-1
    # 2x2 conv whose 4 taps are fused inside the kernel (no im2col in HBM).
    xp = jnp.pad(x_nhwc, ((0, 0), (1, 1), (1, 1), (0, 0)))
    xs2d = xp.reshape(B, ho + 1, 2, wo + 1, 2, C)
    xs2d = jnp.transpose(xs2d, (0, 1, 3, 2, 4, 5)).reshape(B, ho + 1, wo + 1, c4)

    tn = _pick_cout_tile(N, K, B)
    kernel = functools.partial(_conv2x2_lrelu_kernel, ho=ho, wo=wo, c4=c4,
                               apply_lrelu=apply_lrelu, neg_slope=neg_slope)

    out = pl.pallas_call(
        kernel,
        out_shape=jax.ShapeDtypeStruct((B, ho * wo, N), jnp.bfloat16),
        grid_spec=pltpu.PrefetchScalarGridSpec(
            num_scalar_prefetch=0,
            grid=(B, N // tn),
            in_specs=[
                # whole padded per-sample image: full-dim last two axes.
                pl.BlockSpec((1, ho + 1, wo + 1, c4), lambda b, j: (b, 0, 0, 0)),
                pl.BlockSpec((K, tn), lambda b, j: (0, j)),
            ],
            out_specs=pl.BlockSpec((1, ho * wo, tn), lambda b, j: (b, 0, j)),
        ),
        compiler_params=pltpu.CompilerParams(
            dimension_semantics=("parallel", "parallel"),
            vmem_limit_bytes=_vmem_limit_bytes(),
        ),
    )(xs2d, w_mat)
    return out.reshape(B, ho, wo, N)


# --------------------------------- model ----------------------------------- #

class DiscriminatorPallas:
    """Pallas re-implementation of the PyTorch Discriminator forward pass."""

    def __init__(self, key, image_shape=(3, 64, 64), df_dim=64):
        self.in_channel = image_shape[0]
        ksize = 4

        # (Cout, Cin) for the 4 stride-2 conv layers (all followed by LReLU).
        conv_cfg = [
            (df_dim,     self.in_channel),
            (df_dim * 2, df_dim),
            (df_dim * 4, df_dim * 2),
            (df_dim * 8, df_dim * 4),
        ]
        final_cin = df_dim * 8
        keys = jax.random.split(key, len(conv_cfg) + 1)

        # Channel padding to multiples of 8 only (lane-legal full-dim blocks;
        # padded channels carry exact zeros and have zero weight rows next).
        self.cin_pad0 = _round_up(self.in_channel, 8)
        cin_pad = self.cin_pad0

        self.layers = []          # list of w_mat bf16 (16*cin_pad, cout_pad)
        for k, (cout, cin) in zip(keys[:-1], conv_cfg):
            # Deterministic DCGAN-style init: N(0, 0.02).
            w = 0.02 * jax.random.normal(k, (cout, cin, ksize, ksize),
                                         dtype=jnp.float32)
            cout_pad = _round_up(cout, 8)
            wt = jnp.transpose(w, (2, 3, 1, 0))              # (kh, kw, ci, co)
            wt = jnp.pad(wt, ((0, 0), (0, 0),
                              (0, cin_pad - cin), (0, cout_pad - cout)))
            # (kh, kw) -> (dh, i), (dw, j); rows ordered (tap=(dh,dw), i, j, ci)
            # to match the space-to-depth channel order used at call time.
            w6 = wt.reshape(2, 2, 2, 2, cin_pad, cout_pad)   # (dh, i, dw, j, ci, co)
            w6 = jnp.transpose(w6, (0, 2, 1, 3, 4, 5))       # (dh, dw, i, j, ci, co)
            w_mat = w6.reshape(16 * cin_pad, cout_pad).astype(jnp.bfloat16)
            self.layers.append(w_mat)
            cin_pad = cout_pad

        # Final 4x4 'valid' conv (Cout=1): an N=1 Pallas output block would be
        # pure masked-store overhead, so it stays a plain dot in the wrapper.
        wf = 0.02 * jax.random.normal(keys[-1], (1, final_cin, ksize, ksize),
                                      dtype=jnp.float32)
        wf = jnp.transpose(wf, (2, 3, 1, 0))                 # (4, 4, ci, 1)
        wf = jnp.pad(wf, ((0, 0), (0, 0), (0, cin_pad - final_cin), (0, 0)))
        self.w_final = wf.reshape(16 * cin_pad).astype(jnp.bfloat16)

    def __call__(self, x_nchw):
        # NCHW -> NHWC (channels on the lane axis), bf16, pad input channels.
        x = jnp.transpose(x_nchw, (0, 2, 3, 1)).astype(jnp.bfloat16)
        x = jnp.pad(x, ((0, 0), (0, 0), (0, 0),
                        (0, self.cin_pad0 - x.shape[-1])))
        for w_mat in self.layers:
            x = fused_conv4x4s2(x, w_mat, apply_lrelu=True)
        # Final layer: (B, 4, 4, C_pad) -> one logit per sample (f32 acc).
        B = x.shape[0]
        logits = jnp.einsum('bk,k->b', x.reshape(B, -1), self.w_final,
                            preferred_element_type=jnp.float32)
        return logits.reshape(-1, 1)


# ---------------------------------- main ------------------------------------ #

if __name__ == "__main__":
    key = jax.random.PRNGKey(0)
    k_param, k_input = jax.random.split(key)

    # The architecture requires 64x64 spatial input (4 stride-2 convs -> 4x4,
    # then a 4x4 valid conv -> 1x1); keep batch and channel widths small.
    batch, df_dim = 2, 8
    model = DiscriminatorPallas(k_param, image_shape=(3, 64, 64), df_dim=df_dim)

    x = jax.random.normal(k_input, (batch, 3, 64, 64), dtype=jnp.float32)

    fwd = jax.jit(model.__call__)
    out = jax.block_until_ready(fwd(x))
    assert out.shape == (batch, 1), out.shape

    print("KERNEL_OK")
</pallas_src>

<mosaic_0001>
module attributes {stable_mosaic.version = 11 : i64} {
  func.func @_conv2x2_lrelu_kernel(%arg0: i32, %arg1: i32, %arg2: memref<1x33x33x32xbf16, #tpu.memory_space<vmem>>, %arg3: memref<128x8xbf16, #tpu.memory_space<vmem>>, %arg4: memref<1x1024x8xbf16, #tpu.memory_space<vmem>>) attributes {dimension_semantics = [#tpu.dimension_semantics<parallel>, #tpu.dimension_semantics<parallel>], iteration_bounds = array<i64: 2, 1>, scalar_prefetch = 0 : i64, scratch_operands = 0 : i64, tpu.core_type = #tpu.core_type<tc>, window_params = [{transform_indices = @transform_0, window_bounds = array<i64: 1, 33, 33, 32>}, {transform_indices = @transform_1, window_bounds = array<i64: 128, 8>}, {transform_indices = @transform_2, window_bounds = array<i64: 1, 1024, 8>}]} {
    %c0 = arith.constant 0 : index
    %c0_0 = arith.constant 0 : index
    %c0_1 = arith.constant 0 : index
    %c0_2 = arith.constant 0 : index
    %0 = vector.load %arg2[%c0, %c0_0, %c0_1, %c0_2] : memref<1x33x33x32xbf16, #tpu.memory_space<vmem>>, vector<1x33x33x32xbf16>
    %1 = vector.shape_cast %0 : vector<1x33x33x32xbf16> to vector<33x33x32xbf16>
    %c0_3 = arith.constant 0 : index
    %c0_4 = arith.constant 0 : index
    %2 = vector.load %arg3[%c0_3, %c0_4] : memref<128x8xbf16, #tpu.memory_space<vmem>>, vector<128x8xbf16>
    %cst = arith.constant 0.000000e+00 : f32
    %3 = vector.broadcast %cst : f32 to vector<1024x8xf32>
    %4 = vector.extract_strided_slice %1 {offsets = [0, 0, 0], sizes = [32, 32, 32], strides = [1, 1, 1]} : vector<33x33x32xbf16> to vector<32x32x32xbf16>
    %5 = vector.shape_cast %4 : vector<32x32x32xbf16> to vector<1024x32xbf16>
    %6 = vector.extract_strided_slice %2 {offsets = [0, 0], sizes = [32, 8], strides = [1, 1]} : vector<128x8xbf16> to vector<32x8xbf16>
    %cst_5 = arith.constant dense<0.000000e+00> : vector<1024x8xf32>
    %7 = tpu.matmul %5, %6, %cst_5 {dimension_numbers = #tpu.dot_dimension_numbers<[1], [0], [0], [1], [0, 0, 1, 1], [], []>} : vector<1024x32xbf16>, vector<32x8xbf16>, vector<1024x8xf32> -> vector<1024x8xf32>
    %8 = arith.addf %3, %7 : vector<1024x8xf32>
    %9 = vector.extract_strided_slice %1 {offsets = [0, 1, 0], sizes = [32, 32, 32], strides = [1, 1, 1]} : vector<33x33x32xbf16> to vector<32x32x32xbf16>
    %10 = vector.shape_cast %9 : vector<32x32x32xbf16> to vector<1024x32xbf16>
    %11 = vector.extract_strided_slice %2 {offsets = [32, 0], sizes = [32, 8], strides = [1, 1]} : vector<128x8xbf16> to vector<32x8xbf16>
    %cst_6 = arith.constant dense<0.000000e+00> : vector<1024x8xf32>
    %12 = tpu.matmul %10, %11, %cst_6 {dimension_numbers = #tpu.dot_dimension_numbers<[1], [0], [0], [1], [0, 0, 1, 1], [], []>} : vector<1024x32xbf16>, vector<32x8xbf16>, vector<1024x8xf32> -> vector<1024x8xf32>
    %13 = arith.addf %8, %12 : vector<1024x8xf32>
    %14 = vector.extract_strided_slice %1 {offsets = [1, 0, 0], sizes = [32, 32, 32], strides = [1, 1, 1]} : vector<33x33x32xbf16> to vector<32x32x32xbf16>
    %15 = vector.shape_cast %14 : vector<32x32x32xbf16> to vector<1024x32xbf16>
    %16 = vector.extract_strided_slice %2 {offsets = [64, 0], sizes = [32, 8], strides = [1, 1]} : vector<128x8xbf16> to vector<32x8xbf16>
    %cst_7 = arith.constant dense<0.000000e+00> : vector<1024x8xf32>
    %17 = tpu.matmul %15, %16, %cst_7 {dimension_numbers = #tpu.dot_dimension_numbers<[1], [0], [0], [1], [0, 0, 1, 1], [], []>} : vector<1024x32xbf16>, vector<32x8xbf16>, vector<1024x8xf32> -> vector<1024x8xf32>
    %18 = arith.addf %13, %17 : vector<1024x8xf32>
    %19 = vector.extract_strided_slice %1 {offsets = [1, 1, 0], sizes = [32, 32, 32], strides = [1, 1, 1]} : vector<33x33x32xbf16> to vector<32x32x32xbf16>
    %20 = vector.shape_cast %19 : vector<32x32x32xbf16> to vector<1024x32xbf16>
    %21 = vector.extract_strided_slice %2 {offsets = [96, 0], sizes = [32, 8], strides = [1, 1]} : vector<128x8xbf16> to vector<32x8xbf16>
    %cst_8 = arith.constant dense<0.000000e+00> : vector<1024x8xf32>
    %22 = tpu.matmul %20, %21, %cst_8 {dimension_numbers = #tpu.dot_dimension_numbers<[1], [0], [0], [1], [0, 0, 1, 1], [], []>} : vector<1024x32xbf16>, vector<32x8xbf16>, vector<1024x8xf32> -> vector<1024x8xf32>
    %23 = arith.addf %18, %22 : vector<1024x8xf32>
    %cst_9 = arith.constant 0.000000e+00 : f32
    %24 = vector.broadcast %cst_9 : f32 to vector<1024x8xf32>
    %25 = arith.cmpf oge, %23, %24 : vector<1024x8xf32>
    %cst_10 = arith.constant 2.000000e-01 : f32
    %26 = vector.broadcast %cst_10 : f32 to vector<1024x8xf32>
    %27 = arith.mulf %23, %26 : vector<1024x8xf32>
    %28 = arith.select %25, %23, %27 : vector<1024x8xi1>, vector<1024x8xf32>
    %29 = arith.truncf %28 : vector<1024x8xf32> to vector<1024x8xbf16>
    %c0_11 = arith.constant 0 : index
    %c0_12 = arith.constant 0 : index
    %c0_13 = arith.constant 0 : index
    %30 = vector.load %arg4[%c0_11, %c0_12, %c0_13] : memref<1x1024x8xbf16, #tpu.memory_space<vmem>>, vector<1x1024x8xbf16>
    %31 = vector.shape_cast %30 : vector<1x1024x8xbf16> to vector<1024x8xbf16>
    %32 = vector.shape_cast %29 : vector<1024x8xbf16> to vector<1x1024x8xbf16>
    tpu.vector_store %arg4[%c0_11, %c0_12, %c0_13], %32 {strides = array<i32>} : memref<1x1024x8xbf16, #tpu.memory_space<vmem>>, vector<1x1024x8xbf16>,
    return
  }
  func.func @transform_0(%arg0: i32, %arg1: i32) -> (i32, i32, i32, i32) {
    %c0_i32 = arith.constant 0 : i32
    %c0_i32_0 = arith.constant 0 : i32
    %c0_i32_1 = arith.constant 0 : i32
    %c0_i32_2 = arith.constant 0 : i32
    return %arg0, %c0_i32, %c0_i32_0, %c0_i32_1 : i32, i32, i32, i32
  }
  func.func @transform_1(%arg0: i32, %arg1: i32) -> (i32, i32) {
    %c0_i32 = arith.constant 0 : i32
    %c0_i32_0 = arith.constant 0 : i32
    return %c0_i32, %arg1 : i32, i32
  }
  func.func @transform_2(%arg0: i32, %arg1: i32) -> (i32, i32, i32) {
    %c0_i32 = arith.constant 0 : i32
    %c0_i32_0 = arith.constant 0 : i32
    return %arg0, %c0_i32, %arg1 : i32, i32, i32
  }
}

module attributes {stable_mosaic.version = 11 : i64} {
  func.func @_conv2x2_lrelu_kernel(%arg0: i32, %arg1: i32, %arg2: memref<1x17x17x32xbf16, #tpu.memory_space<vmem>>, %arg3: memref<128x16xbf16, #tpu.memory_space<vmem>>, %arg4: memref<1x256x16xbf16, #tpu.memory_space<vmem>>) attributes {dimension_semantics = [#tpu.dimension_semantics<parallel>, #tpu.dimension_semantics<parallel>], iteration_bounds = array<i64: 2, 1>, scalar_prefetch = 0 : i64, scratch_operands = 0 : i64, tpu.core_type = #tpu.core_type<tc>, window_params = [{transform_indices = @transform_0, window_bounds = array<i64: 1, 17, 17, 32>}, {transform_indices = @transform_1, window_bounds = array<i64: 128, 16>}, {transform_indices = @transform_2, window_bounds = array<i64: 1, 256, 16>}]} {
    %c0 = arith.constant 0 : index
    %c0_0 = arith.constant 0 : index
    %c0_1 = arith.constant 0 : index
    %c0_2 = arith.constant 0 : index
    %0 = vector.load %arg2[%c0, %c0_0, %c0_1, %c0_2] : memref<1x17x17x32xbf16, #tpu.memory_space<vmem>>, vector<1x17x17x32xbf16>
    %1 = vector.shape_cast %0 : vector<1x17x17x32xbf16> to vector<17x17x32xbf16>
    %c0_3 = arith.constant 0 : index
    %c0_4 = arith.constant 0 : index
    %2 = vector.load %arg3[%c0_3, %c0_4] : memref<128x16xbf16, #tpu.memory_space<vmem>>, vector<128x16xbf16>
    %cst = arith.constant 0.000000e+00 : f32
    %3 = vector.broadcast %cst : f32 to vector<256x16xf32>
    %4 = vector.extract_strided_slice %1 {offsets = [0, 0, 0], sizes = [16, 16, 32], strides = [1, 1, 1]} : vector<17x17x32xbf16> to vector<16x16x32xbf16>
    %5 = vector.shape_cast %4 : vector<16x16x32xbf16> to vector<256x32xbf16>
    %6 = vector.extract_strided_slice %2 {offsets = [0, 0], sizes = [32, 16], strides = [1, 1]} : vector<128x16xbf16> to vector<32x16xbf16>
    %cst_5 = arith.constant dense<0.000000e+00> : vector<256x16xf32>
    %7 = tpu.matmul %5, %6, %cst_5 {dimension_numbers = #tpu.dot_dimension_numbers<[1], [0], [0], [1], [0, 0, 1, 1], [], []>} : vector<256x32xbf16>, vector<32x16xbf16>, vector<256x16xf32> -> vector<256x16xf32>
    %8 = arith.addf %3, %7 : vector<256x16xf32>
    %9 = vector.extract_strided_slice %1 {offsets = [0, 1, 0], sizes = [16, 16, 32], strides = [1, 1, 1]} : vector<17x17x32xbf16> to vector<16x16x32xbf16>
    %10 = vector.shape_cast %9 : vector<16x16x32xbf16> to vector<256x32xbf16>
    %11 = vector.extract_strided_slice %2 {offsets = [32, 0], sizes = [32, 16], strides = [1, 1]} : vector<128x16xbf16> to vector<32x16xbf16>
    %cst_6 = arith.constant dense<0.000000e+00> : vector<256x16xf32>
    %12 = tpu.matmul %10, %11, %cst_6 {dimension_numbers = #tpu.dot_dimension_numbers<[1], [0], [0], [1], [0, 0, 1, 1], [], []>} : vector<256x32xbf16>, vector<32x16xbf16>, vector<256x16xf32> -> vector<256x16xf32>
    %13 = arith.addf %8, %12 : vector<256x16xf32>
    %14 = vector.extract_strided_slice %1 {offsets = [1, 0, 0], sizes = [16, 16, 32], strides = [1, 1, 1]} : vector<17x17x32xbf16> to vector<16x16x32xbf16>
    %15 = vector.shape_cast %14 : vector<16x16x32xbf16> to vector<256x32xbf16>
    %16 = vector.extract_strided_slice %2 {offsets = [64, 0], sizes = [32, 16], strides = [1, 1]} : vector<128x16xbf16> to vector<32x16xbf16>
    %cst_7 = arith.constant dense<0.000000e+00> : vector<256x16xf32>
    %17 = tpu.matmul %15, %16, %cst_7 {dimension_numbers = #tpu.dot_dimension_numbers<[1], [0], [0], [1], [0, 0, 1, 1], [], []>} : vector<256x32xbf16>, vector<32x16xbf16>, vector<256x16xf32> -> vector<256x16xf32>
    %18 = arith.addf %13, %17 : vector<256x16xf32>
    %19 = vector.extract_strided_slice %1 {offsets = [1, 1, 0], sizes = [16, 16, 32], strides = [1, 1, 1]} : vector<17x17x32xbf16> to vector<16x16x32xbf16>
    %20 = vector.shape_cast %19 : vector<16x16x32xbf16> to vector<256x32xbf16>
    %21 = vector.extract_strided_slice %2 {offsets = [96, 0], sizes = [32, 16], strides = [1, 1]} : vector<128x16xbf16> to vector<32x16xbf16>
    %cst_8 = arith.constant dense<0.000000e+00> : vector<256x16xf32>
    %22 = tpu.matmul %20, %21, %cst_8 {dimension_numbers = #tpu.dot_dimension_numbers<[1], [0], [0], [1], [0, 0, 1, 1], [], []>} : vector<256x32xbf16>, vector<32x16xbf16>, vector<256x16xf32> -> vector<256x16xf32>
    %23 = arith.addf %18, %22 : vector<256x16xf32>
    %cst_9 = arith.constant 0.000000e+00 : f32
    %24 = vector.broadcast %cst_9 : f32 to vector<256x16xf32>
    %25 = arith.cmpf oge, %23, %24 : vector<256x16xf32>
    %cst_10 = arith.constant 2.000000e-01 : f32
    %26 = vector.broadcast %cst_10 : f32 to vector<256x16xf32>
    %27 = arith.mulf %23, %26 : vector<256x16xf32>
    %28 = arith.select %25, %23, %27 : vector<256x16xi1>, vector<256x16xf32>
    %29 = arith.truncf %28 : vector<256x16xf32> to vector<256x16xbf16>
    %c0_11 = arith.constant 0 : index
    %c0_12 = arith.constant 0 : index
    %c0_13 = arith.constant 0 : index
    %30 = vector.load %arg4[%c0_11, %c0_12, %c0_13] : memref<1x256x16xbf16, #tpu.memory_space<vmem>>, vector<1x256x16xbf16>
    %31 = vector.shape_cast %30 : vector<1x256x16xbf16> to vector<256x16xbf16>
    %32 = vector.shape_cast %29 : vector<256x16xbf16> to vector<1x256x16xbf16>
    tpu.vector_store %arg4[%c0_11, %c0_12, %c0_13], %32 {strides = array<i32>} : memref<1x256x16xbf16, #tpu.memory_space<vmem>>, vector<1x256x16xbf16>,
    return
  }
  func.func @transform_0(%arg0: i32, %arg1: i32) -> (i32, i32, i32, i32) {
    %c0_i32 = arith.constant 0 : i32
    %c0_i32_0 = arith.constant 0 : i32
    %c0_i32_1 = arith.constant 0 : i32
    %c0_i32_2 = arith.constant 0 : i32
    return %arg0, %c0_i32, %c0_i32_0, %c0_i32_1 : i32, i32, i32, i32
  }
  func.func @transform_1(%arg0: i32, %arg1: i32) -> (i32, i32) {
    %c0_i32 = arith.constant 0 : i32
    %c0_i32_0 = arith.constant 0 : i32
    return %c0_i32, %arg1 : i32, i32
  }
  func.func @transform_2(%arg0: i32, %arg1: i32) -> (i32, i32, i32) {
    %c0_i32 = arith.constant 0 : i32
    %c0_i32_0 = arith.constant 0 : i32
    return %arg0, %c0_i32, %arg1 : i32, i32, i32
  }
}

module attributes {stable_mosaic.version = 11 : i64} {
  func.func @_conv2x2_lrelu_kernel(%arg0: i32, %arg1: i32, %arg2: memref<1x9x9x64xbf16, #tpu.memory_space<vmem>>, %arg3: memref<256x32xbf16, #tpu.memory_space<vmem>>, %arg4: memref<1x64x32xbf16, #tpu.memory_space<vmem>>) attributes {dimension_semantics = [#tpu.dimension_semantics<parallel>, #tpu.dimension_semantics<parallel>], iteration_bounds = array<i64: 2, 1>, scalar_prefetch = 0 : i64, scratch_operands = 0 : i64, tpu.core_type = #tpu.core_type<tc>, window_params = [{transform_indices = @transform_0, window_bounds = array<i64: 1, 9, 9, 64>}, {transform_indices = @transform_1, window_bounds = array<i64: 256, 32>}, {transform_indices = @transform_2, window_bounds = array<i64: 1, 64, 32>}]} {
    %c0 = arith.constant 0 : index
    %c0_0 = arith.constant 0 : index
    %c0_1 = arith.constant 0 : index
    %c0_2 = arith.constant 0 : index
    %0 = vector.load %arg2[%c0, %c0_0, %c0_1, %c0_2] : memref<1x9x9x64xbf16, #tpu.memory_space<vmem>>, vector<1x9x9x64xbf16>
    %1 = vector.shape_cast %0 : vector<1x9x9x64xbf16> to vector<9x9x64xbf16>
    %c0_3 = arith.constant 0 : index
    %c0_4 = arith.constant 0 : index
    %2 = vector.load %arg3[%c0_3, %c0_4] : memref<256x32xbf16, #tpu.memory_space<vmem>>, vector<256x32xbf16>
    %cst = arith.constant 0.000000e+00 : f32
    %3 = vector.broadcast %cst : f32 to vector<64x32xf32>
    %4 = vector.extract_strided_slice %1 {offsets = [0, 0, 0], sizes = [8, 8, 64], strides = [1, 1, 1]} : vector<9x9x64xbf16> to vector<8x8x64xbf16>
    %5 = vector.shape_cast %4 : vector<8x8x64xbf16> to vector<64x64xbf16>
    %6 = vector.extract_strided_slice %2 {offsets = [0, 0], sizes = [64, 32], strides = [1, 1]} : vector<256x32xbf16> to vector<64x32xbf16>
    %cst_5 = arith.constant dense<0.000000e+00> : vector<64x32xf32>
    %7 = tpu.matmul %5, %6, %cst_5 {dimension_numbers = #tpu.dot_dimension_numbers<[1], [0], [0], [1], [0, 0, 1, 1], [], []>} : vector<64x64xbf16>, vector<64x32xbf16>, vector<64x32xf32> -> vector<64x32xf32>
    %8 = arith.addf %3, %7 : vector<64x32xf32>
    %9 = vector.extract_strided_slice %1 {offsets = [0, 1, 0], sizes = [8, 8, 64], strides = [1, 1, 1]} : vector<9x9x64xbf16> to vector<8x8x64xbf16>
    %10 = vector.shape_cast %9 : vector<8x8x64xbf16> to vector<64x64xbf16>
    %11 = vector.extract_strided_slice %2 {offsets = [64, 0], sizes = [64, 32], strides = [1, 1]} : vector<256x32xbf16> to vector<64x32xbf16>
    %cst_6 = arith.constant dense<0.000000e+00> : vector<64x32xf32>
    %12 = tpu.matmul %10, %11, %cst_6 {dimension_numbers = #tpu.dot_dimension_numbers<[1], [0], [0], [1], [0, 0, 1, 1], [], []>} : vector<64x64xbf16>, vector<64x32xbf16>, vector<64x32xf32> -> vector<64x32xf32>
    %13 = arith.addf %8, %12 : vector<64x32xf32>
    %14 = vector.extract_strided_slice %1 {offsets = [1, 0, 0], sizes = [8, 8, 64], strides = [1, 1, 1]} : vector<9x9x64xbf16> to vector<8x8x64xbf16>
    %15 = vector.shape_cast %14 : vector<8x8x64xbf16> to vector<64x64xbf16>
    %16 = vector.extract_strided_slice %2 {offsets = [128, 0], sizes = [64, 32], strides = [1, 1]} : vector<256x32xbf16> to vector<64x32xbf16>
    %cst_7 = arith.constant dense<0.000000e+00> : vector<64x32xf32>
    %17 = tpu.matmul %15, %16, %cst_7 {dimension_numbers = #tpu.dot_dimension_numbers<[1], [0], [0], [1], [0, 0, 1, 1], [], []>} : vector<64x64xbf16>, vector<64x32xbf16>, vector<64x32xf32> -> vector<64x32xf32>
    %18 = arith.addf %13, %17 : vector<64x32xf32>
    %19 = vector.extract_strided_slice %1 {offsets = [1, 1, 0], sizes = [8, 8, 64], strides = [1, 1, 1]} : vector<9x9x64xbf16> to vector<8x8x64xbf16>
    %20 = vector.shape_cast %19 : vector<8x8x64xbf16> to vector<64x64xbf16>
    %21 = vector.extract_strided_slice %2 {offsets = [192, 0], sizes = [64, 32], strides = [1, 1]} : vector<256x32xbf16> to vector<64x32xbf16>
    %cst_8 = arith.constant dense<0.000000e+00> : vector<64x32xf32>
    %22 = tpu.matmul %20, %21, %cst_8 {dimension_numbers = #tpu.dot_dimension_numbers<[1], [0], [0], [1], [0, 0, 1, 1], [], []>} : vector<64x64xbf16>, vector<64x32xbf16>, vector<64x32xf32> -> vector<64x32xf32>
    %23 = arith.addf %18, %22 : vector<64x32xf32>
    %cst_9 = arith.constant 0.000000e+00 : f32
    %24 = vector.broadcast %cst_9 : f32 to vector<64x32xf32>
    %25 = arith.cmpf oge, %23, %24 : vector<64x32xf32>
    %cst_10 = arith.constant 2.000000e-01 : f32
    %26 = vector.broadcast %cst_10 : f32 to vector<64x32xf32>
    %27 = arith.mulf %23, %26 : vector<64x32xf32>
    %28 = arith.select %25, %23, %27 : vector<64x32xi1>, vector<64x32xf32>
    %29 = arith.truncf %28 : vector<64x32xf32> to vector<64x32xbf16>
    %c0_11 = arith.constant 0 : index
    %c0_12 = arith.constant 0 : index
    %c0_13 = arith.constant 0 : index
    %30 = vector.load %arg4[%c0_11, %c0_12, %c0_13] : memref<1x64x32xbf16, #tpu.memory_space<vmem>>, vector<1x64x32xbf16>
    %31 = vector.shape_cast %30 : vector<1x64x32xbf16> to vector<64x32xbf16>
    %32 = vector.shape_cast %29 : vector<64x32xbf16> to vector<1x64x32xbf16>
    tpu.vector_store %arg4[%c0_11, %c0_12, %c0_13], %32 {strides = array<i32>} : memref<1x64x32xbf16, #tpu.memory_space<vmem>>, vector<1x64x32xbf16>,
    return
  }
  func.func @transform_0(%arg0: i32, %arg1: i32) -> (i32, i32, i32, i32) {
    %c0_i32 = arith.constant 0 : i32
    %c0_i32_0 = arith.constant 0 : i32
    %c0_i32_1 = arith.constant 0 : i32
    %c0_i32_2 = arith.constant 0 : i32
    return %arg0, %c0_i32, %c0_i32_0, %c0_i32_1 : i32, i32, i32, i32
  }
  func.func @transform_1(%arg0: i32, %arg1: i32) -> (i32, i32) {
    %c0_i32 = arith.constant 0 : i32
    %c0_i32_0 = arith.constant 0 : i32
    return %c0_i32, %arg1 : i32, i32
  }
  func.func @transform_2(%arg0: i32, %arg1: i32) -> (i32, i32, i32) {
    %c0_i32 = arith.constant 0 : i32
    %c0_i32_0 = arith.constant 0 : i32
    return %arg0, %c0_i32, %arg1 : i32, i32, i32
  }
}

module attributes {stable_mosaic.version = 11 : i64} {
  func.func @_conv2x2_lrelu_kernel(%arg0: i32, %arg1: i32, %arg2: memref<1x5x5x128xbf16, #tpu.memory_space<vmem>>, %arg3: memref<512x64xbf16, #tpu.memory_space<vmem>>, %arg4: memref<1x16x64xbf16, #tpu.memory_space<vmem>>) attributes {dimension_semantics = [#tpu.dimension_semantics<parallel>, #tpu.dimension_semantics<parallel>], iteration_bounds = array<i64: 2, 1>, scalar_prefetch = 0 : i64, scratch_operands = 0 : i64, tpu.core_type = #tpu.core_type<tc>, window_params = [{transform_indices = @transform_0, window_bounds = array<i64: 1, 5, 5, 128>}, {transform_indices = @transform_1, window_bounds = array<i64: 512, 64>}, {transform_indices = @transform_2, window_bounds = array<i64: 1, 16, 64>}]} {
    %c0 = arith.constant 0 : index
    %c0_0 = arith.constant 0 : index
    %c0_1 = arith.constant 0 : index
    %c0_2 = arith.constant 0 : index
    %0 = vector.load %arg2[%c0, %c0_0, %c0_1, %c0_2] : memref<1x5x5x128xbf16, #tpu.memory_space<vmem>>, vector<1x5x5x128xbf16>
    %1 = vector.shape_cast %0 : vector<1x5x5x128xbf16> to vector<5x5x128xbf16>
    %c0_3 = arith.constant 0 : index
    %c0_4 = arith.constant 0 : index
    %2 = vector.load %arg3[%c0_3, %c0_4] : memref<512x64xbf16, #tpu.memory_space<vmem>>, vector<512x64xbf16>
    %cst = arith.constant 0.000000e+00 : f32
    %3 = vector.broadcast %cst : f32 to vector<16x64xf32>
    %4 = vector.extract_strided_slice %1 {offsets = [0, 0, 0], sizes = [4, 4, 128], strides = [1, 1, 1]} : vector<5x5x128xbf16> to vector<4x4x128xbf16>
    %5 = vector.shape_cast %4 : vector<4x4x128xbf16> to vector<16x128xbf16>
    %6 = vector.extract_strided_slice %2 {offsets = [0, 0], sizes = [128, 64], strides = [1, 1]} : vector<512x64xbf16> to vector<128x64xbf16>
    %cst_5 = arith.constant dense<0.000000e+00> : vector<16x64xf32>
    %7 = tpu.matmul %5, %6, %cst_5 {dimension_numbers = #tpu.dot_dimension_numbers<[1], [0], [0], [1], [0, 0, 1, 1], [], []>} : vector<16x128xbf16>, vector<128x64xbf16>, vector<16x64xf32> -> vector<16x64xf32>
    %8 = arith.addf %3, %7 : vector<16x64xf32>
    %9 = vector.extract_strided_slice %1 {offsets = [0, 1, 0], sizes = [4, 4, 128], strides = [1, 1, 1]} : vector<5x5x128xbf16> to vector<4x4x128xbf16>
    %10 = vector.shape_cast %9 : vector<4x4x128xbf16> to vector<16x128xbf16>
    %11 = vector.extract_strided_slice %2 {offsets = [128, 0], sizes = [128, 64], strides = [1, 1]} : vector<512x64xbf16> to vector<128x64xbf16>
    %cst_6 = arith.constant dense<0.000000e+00> : vector<16x64xf32>
    %12 = tpu.matmul %10, %11, %cst_6 {dimension_numbers = #tpu.dot_dimension_numbers<[1], [0], [0], [1], [0, 0, 1, 1], [], []>} : vector<16x128xbf16>, vector<128x64xbf16>, vector<16x64xf32> -> vector<16x64xf32>
    %13 = arith.addf %8, %12 : vector<16x64xf32>
    %14 = vector.extract_strided_slice %1 {offsets = [1, 0, 0], sizes = [4, 4, 128], strides = [1, 1, 1]} : vector<5x5x128xbf16> to vector<4x4x128xbf16>
    %15 = vector.shape_cast %14 : vector<4x4x128xbf16> to vector<16x128xbf16>
    %16 = vector.extract_strided_slice %2 {offsets = [256, 0], sizes = [128, 64], strides = [1, 1]} : vector<512x64xbf16> to vector<128x64xbf16>
    %cst_7 = arith.constant dense<0.000000e+00> : vector<16x64xf32>
    %17 = tpu.matmul %15, %16, %cst_7 {dimension_numbers = #tpu.dot_dimension_numbers<[1], [0], [0], [1], [0, 0, 1, 1], [], []>} : vector<16x128xbf16>, vector<128x64xbf16>, vector<16x64xf32> -> vector<16x64xf32>
    %18 = arith.addf %13, %17 : vector<16x64xf32>
    %19 = vector.extract_strided_slice %1 {offsets = [1, 1, 0], sizes = [4, 4, 128], strides = [1, 1, 1]} : vector<5x5x128xbf16> to vector<4x4x128xbf16>
    %20 = vector.shape_cast %19 : vector<4x4x128xbf16> to vector<16x128xbf16>
    %21 = vector.extract_strided_slice %2 {offsets = [384, 0], sizes = [128, 64], strides = [1, 1]} : vector<512x64xbf16> to vector<128x64xbf16>
    %cst_8 = arith.constant dense<0.000000e+00> : vector<16x64xf32>
    %22 = tpu.matmul %20, %21, %cst_8 {dimension_numbers = #tpu.dot_dimension_numbers<[1], [0], [0], [1], [0, 0, 1, 1], [], []>} : vector<16x128xbf16>, vector<128x64xbf16>, vector<16x64xf32> -> vector<16x64xf32>
    %23 = arith.addf %18, %22 : vector<16x64xf32>
    %cst_9 = arith.constant 0.000000e+00 : f32
    %24 = vector.broadcast %cst_9 : f32 to vector<16x64xf32>
    %25 = arith.cmpf oge, %23, %24 : vector<16x64xf32>
    %cst_10 = arith.constant 2.000000e-01 : f32
    %26 = vector.broadcast %cst_10 : f32 to vector<16x64xf32>
    %27 = arith.mulf %23, %26 : vector<16x64xf32>
    %28 = arith.select %25, %23, %27 : vector<16x64xi1>, vector<16x64xf32>
    %29 = arith.truncf %28 : vector<16x64xf32> to vector<16x64xbf16>
    %c0_11 = arith.constant 0 : index
    %c0_12 = arith.constant 0 : index
    %c0_13 = arith.constant 0 : index
    %30 = vector.load %arg4[%c0_11, %c0_12, %c0_13] : memref<1x16x64xbf16, #tpu.memory_space<vmem>>, vector<1x16x64xbf16>
    %31 = vector.shape_cast %30 : vector<1x16x64xbf16> to vector<16x64xbf16>
    %32 = vector.shape_cast %29 : vector<16x64xbf16> to vector<1x16x64xbf16>
    tpu.vector_store %arg4[%c0_11, %c0_12, %c0_13], %32 {strides = array<i32>} : memref<1x16x64xbf16, #tpu.memory_space<vmem>>, vector<1x16x64xbf16>,
    return
  }
  func.func @transform_0(%arg0: i32, %arg1: i32) -> (i32, i32, i32, i32) {
    %c0_i32 = arith.constant 0 : i32
    %c0_i32_0 = arith.constant 0 : i32
    %c0_i32_1 = arith.constant 0 : i32
    %c0_i32_2 = arith.constant 0 : i32
    return %arg0, %c0_i32, %c0_i32_0, %c0_i32_1 : i32, i32, i32, i32
  }
  func.func @transform_1(%arg0: i32, %arg1: i32) -> (i32, i32) {
    %c0_i32 = arith.constant 0 : i32
    %c0_i32_0 = arith.constant 0 : i32
    return %c0_i32, %arg1 : i32, i32
  }
  func.func @transform_2(%arg0: i32, %arg1: i32) -> (i32, i32, i32) {
    %c0_i32 = arith.constant 0 : i32
    %c0_i32_0 = arith.constant 0 : i32
    return %arg0, %c0_i32, %arg1 : i32, i32, i32
  }
}

</mosaic_0001>

<llo_original>
// kernel: a_call__.4
$region0: #{a_call__.4}
  #allocation0 [shape = 'u32[]', space=smem, size = 0x4, offset = 0x4, fixed_abs, tag = 'smem constant byte address 0x4 - core index']
  #allocation1 [shape = 'u32[144,128]{1,0:T(1,128)}', space=vmem, size = 0x12000, scoped, tag = 'internal scratch']
  %s0 = inlined_call_operand.vmem [shape: bf16[2,33,33,32], index: 0, kind: input, shape index: {}]
  %s1 = inlined_call_operand.vmem [shape: bf16[128,8], index: 1, kind: input, shape index: {}]
  %s2 = inlined_call_operand.vmem [shape: bf16[2,1024,8], index: 2, kind: output, shape index: {}]
  %s3 = sld [smem:[#allocation0]]
  $region41: #{a_call__.4} parent=0
    _
  %s5 = ssub.s32 1, %s3
  %s6 = scalar_select 0, %s5, %s3
  loop: start=0, step=1, limit=4
  $region2: #{a_call__.4} parent=0 // loop_pre_header
    _
  $region3: #{a_call__.4} parent=0 // loop_header
    %s8 = sphi 0, %s12
    %p9 = scmp.ge.s32.totalorder %s8, 4
    %s15 = sphi 0, %s27
    %s16 = sphi 0, %s23
    %s17 = sphi 0, %s15
    %s18 = sphi 0, %s16
    %s19 = sphi 0, %s17
    %s20 = sphi 0, %s18
    %s30 = sphi 0, %s32
    %s33 = sphi 0, %s30
    %s34 = sphi 0, %s33
    %s50 = sphi 0, %s34
    %s56 = sphi 0, %s58
    %s59 = sphi 0, %s56
    %s60 = sphi 0, %s59
    %s76 = sphi 0, %s60
    %s84 = sphi 0, %s86
    %s87 = sphi 0, %s84
    %s88 = sphi 0, %s87
    %s104 = sphi 0, %s88
  $region4: #{a_call__.4} parent=0 // loop_header_branch
    %11 = sbr.rel (%p9) target = $region8
  $region5: #{a_call__.4} parent=0 // loop_body
    %s13 = ssub.s32 %s8, 1
    %s14 = ssub.s32 %s8, 2
    %s21 = sadd.s32 1, %s16
    %p22 = scmp.ge.s32.totalorder %s21, 1
    %s23 = scalar_select %p22, 0, %s21
    %s24 = sadd.s32 1, %s15
    %s25 = scalar_select %p22, %s24, %s15
    %p26 = scmp.ge.s32.totalorder %s25, 2
    %s27 = scalar_select %p26, 0, %s25
    %s28 = ssub.s32 %s15, %s27
    %p29 = scmp.eq.s32.totalorder %s28, 0
    %s31 = sadd.s32 %s30, 1
    %s32 = scalar_select %p29, %s30, %s31
    %p35 = pneg %p29
    %p36 = scmp.eq.s32.totalorder %s8, 1
    %p37 = por %p35, %p36
    %p38 = scmp.ne.s32.totalorder %s30, %s33
    %p39 = scmp.eq.s32.totalorder %s8, 0
    %p40 = por %p38, %p39
    %p41 = scmp.ne.s32.totalorder %s30, %s33
    %p42 = scmp.eq.s32.totalorder %s13, 1
    %p43 = por %p41, %p42
    %p44 = scmp.ne.s32.totalorder %s33, %s34
    %p45 = scmp.eq.s32.totalorder %s13, 0
    %p46 = por %p44, %p45
    %p47 = scmp.ne.s32.totalorder %s33, %s34
    %p48 = scmp.eq.s32.totalorder %s14, 1
    %p49 = por %p47, %p48
    %p51 = scmp.ne.s32.totalorder %s34, %s50
    %p52 = scmp.eq.s32.totalorder %s14, 0
    %p53 = por %p51, %p52
    %s54 = ssub.s32 %s16, %s23
    %p55 = scmp.eq.s32.totalorder %s54, 0
    %s57 = sadd.s32 %s56, 1
    %s58 = scalar_select %p55, %s56, %s57
    %p61 = pneg %p55
    %p62 = scmp.eq.s32.totalorder %s8, 1
    %p63 = por %p61, %p62
    %p64 = scmp.ne.s32.totalorder %s56, %s59
    %p65 = scmp.eq.s32.totalorder %s8, 0
    %p66 = por %p64, %p65
    %p67 = scmp.ne.s32.totalorder %s56, %s59
    %p68 = scmp.eq.s32.totalorder %s13, 1
    %p69 = por %p67, %p68
    %p70 = scmp.ne.s32.totalorder %s59, %s60
    %p71 = scmp.eq.s32.totalorder %s13, 0
    %p72 = por %p70, %p71
    %p73 = scmp.ne.s32.totalorder %s59, %s60
    %p74 = scmp.eq.s32.totalorder %s14, 1
    %p75 = por %p73, %p74
    %p77 = scmp.ne.s32.totalorder %s60, %s76
    %p78 = scmp.eq.s32.totalorder %s14, 0
    %p79 = por %p77, %p78
    %s80 = ssub.s32 %s15, %s27
    %s81 = ssub.s32 %s16, %s23
    %s82 = sor.u32 %s80, %s81
    %p83 = scmp.eq.s32.totalorder %s82, 0
    %s85 = sadd.s32 %s84, 1
    %s86 = scalar_select %p83, %s84, %s85
    %p89 = pneg %p83
    %p90 = scmp.eq.s32.totalorder %s8, 1
    %p91 = por %p89, %p90
    %p92 = scmp.ne.s32.totalorder %s84, %s87
    %p93 = scmp.eq.s32.totalorder %s8, 0
    %p94 = por %p92, %p93
    %p95 = scmp.ne.s32.totalorder %s84, %s87
    %p96 = scmp.eq.s32.totalorder %s13, 1
    %p97 = por %p95, %p96
    %p98 = scmp.ne.s32.totalorder %s87, %s88
    %p99 = scmp.eq.s32.totalorder %s13, 0
    %p100 = por %p98, %p99
    %p101 = scmp.ne.s32.totalorder %s87, %s88
    %p102 = scmp.eq.s32.totalorder %s14, 1
    %p103 = por %p101, %p102
    %p105 = scmp.ne.s32.totalorder %s88, %s104
    %p106 = scmp.eq.s32.totalorder %s14, 0
    %p107 = por %p105, %p106
    %p108 = scmp.le.s32.totalorder 1, %s8
    %p109 = scmp.lt.s32.totalorder %s8, 3
    %p110 = pnand %p108, %p109
    %p111 = pneg %p110
    // Predicated region
    $region9: #{a_call__.4} parent=5 // pred_check
      _
    $region10: #{a_call__.4} parent=5 // pred_check_branch
      %113 = sbr.rel (%p110) target = $region12
    $region11: #{a_call__.4} parent=5 // pred_region
      %s114 = ssub.s32 %s8, 1
      // Predicated region
      $region13: #{a_call__.4} parent=11 // pred_check
        %p115 = pneg %p72
      $region14: #{a_call__.4} parent=11 // pred_check_branch
        %117 = sbr.rel (%p115) target = $region16
      $region15: #{a_call__.4} parent=11 // pred_region
        %p118 = scmp.lt.s32.totalorder %s18, 0
        %s119 = scalar_select %p118, %s18, 0
        %s120 = smul.addr %s119, 4
        %s121 = scalar_lea.vmem %s1, %s120
      $region16: #{a_call__.4} parent=11 // pred_fallthru
        _
    $region12: #{a_call__.4} parent=5 // pred_fallthru
      _
    %p122 = scmp.lt.s32.totalorder %s8, 2
    // Predicated region
    $region17: #{a_call__.4} parent=5 // pred_check
      %p123 = pneg %p122
    $region18: #{a_call__.4} parent=5 // pred_check_branch
      %125 = sbr.rel (%p123) target = $region20
    $region19: #{a_call__.4} parent=5 // pred_region
      // Predicated region
      $region21: #{a_call__.4} parent=19 // pred_check
        %p126 = pneg %p40
      $region22: #{a_call__.4} parent=19 // pred_check_branch
        %128 = sbr.rel (%p126) target = $region24
      $region23: #{a_call__.4} parent=19 // pred_region
        %p129 = scmp.lt.s32.totalorder %s15, 1
        %s130 = scalar_select %p129, %s15, 1
        %s131 = smul.addr %s130, 165
        %s132 = smul.addr %s131, 4
        %s133 = scalar_lea.vmem %s0, %s132
      $region24: #{a_call__.4} parent=19 // pred_fallthru
        _
    $region20: #{a_call__.4} parent=5 // pred_fallthru
      _
    %p134 = scmp.le.s32.totalorder 1, %s8
    %p135 = scmp.lt.s32.totalorder %s8, 3
    %p136 = pnand %p134, %p135
    %p137 = pneg %p136
    // Predicated region
    $region25: #{a_call__.4} parent=5 // pred_check
      _
    $region26: #{a_call__.4} parent=5 // pred_check_branch
      %139 = sbr.rel (%p136) target = $region28
    $region27: #{a_call__.4} parent=5 // pred_region
      %s140 = ssub.s32 %s8, 1
      %p141 = scmp.lt.s32.totalorder %s17, 1
      %s142 = scalar_select %p141, %s17, 1
      %s143 = smul.addr %s142, 165
      %s144 = smul.addr %s143, 4
      %s145 = scalar_lea.vmem %s0, %s144
      %p146 = pneg %p46
      %p147 = pneg %p43
      %p148 = scmp.lt.s32.totalorder %s18, 0
      %s149 = scalar_select %p148, %s18, 0
      %s150 = smul.addr %s149, 4
      %s151 = scalar_lea.vmem %s1, %s150
      %p152 = pneg %p72
      %p153 = pneg %p69
      %p154 = pneg %p100
      %p155 = pneg %p97
      %p156 = scmp.lt.s32.totalorder %s17, 1
      %s157 = scalar_select %p156, %s17, 1
      %p158 = scmp.lt.s32.totalorder %s18, 0
      %s159 = scalar_select %p158, %s18, 0
      %s160 = smul.addr %s157, 128
      %s161 = sadd.s32 %s159, %s160
      %s162 = smul.addr %s161, 4
      %s163 = scalar_lea.vmem %s2, %s162
      %p164 = scmp.lt.s32.totalorder %s17, 1
      %s165 = scalar_select %p164, %s17, 1
      %s166 = smul.addr %s165, 165
      %s167 = smul.addr %s166, 4
      %s168 = scalar_lea.vmem %s0, %s167
      %p169 = scmp.lt.s32.totalorder %s18, 0
      %s170 = scalar_select %p169, %s18, 0
      %s171 = smul.addr %s170, 4
      %s172 = scalar_lea.vmem %s1, %s171
      %p173 = scmp.lt.s32.totalorder %s17, 1
      %s174 = scalar_select %p173, %s17, 1
      %p175 = scmp.lt.s32.totalorder %s18, 0
      %s176 = scalar_select %p175, %s18, 0
      %s177 = smul.addr %s174, 128
      %s178 = sadd.s32 %s176, %s177
      %s179 = smul.addr %s178, 4
      %s180 = scalar_lea.vmem %s2, %s179
      %v182 = vld [vmem:[%s168] sm:$0xf]
      %v183 = vld [vmem:[%s168 + $0x4] sm:$0xf]
      %v184 = vld [vmem:[%s168 + $0x8] sm:$0xf]
      %v185 = vld [vmem:[%s168 + $0xc] sm:$0xf]
      %v186 = vld [vmem:[%s168 + $0x10] sm:$0x1]
      %v187 = vld [vmem:[%s168 + $0x14] sm:$0xf]
      %v188 = vld [vmem:[%s168 + $0x18] sm:$0xf]
      %v189 = vld [vmem:[%s168 + $0x1c] sm:$0xf]
      %v190 = vld [vmem:[%s168 + $0x20] sm:$0xf]
      %v191 = vld [vmem:[%s168 + $0x24] sm:$0x1]
      %v192 = vld [vmem:[%s168 + $0x28] sm:$0xf]
      %v193 = vld [vmem:[%s168 + $0x2c] sm:$0xf]
      %v194 = vld [vmem:[%s168 + $0x30] sm:$0xf]
      %v195 = vld [vmem:[%s168 + $0x34] sm:$0xf]
      %v196 = vld [vmem:[%s168 + $0x38] sm:$0x1]
      %v197 = vld [vmem:[%s168 + $0x3c] sm:$0xf]
      %v198 = vld [vmem:[%s168 + $0x40] sm:$0xf]
      %v199 = vld [vmem:[%s168 + $0x44] sm:$0xf]
      %v200 = vld [vmem:[%s168 + $0x48] sm:$0xf]
      %v201 = vld [vmem:[%s168 + $0x4c] sm:$0x1]
      %v202 = vld [vmem:[%s168 + $0x50] sm:$0xf]
      %v203 = vld [vmem:[%s168 + $0x54] sm:$0xf]
      %v204 = vld [vmem:[%s168 + $0x58] sm:$0xf]
      %v205 = vld [vmem:[%s168 + $0x5c] sm:$0xf]
      %v206 = vld [vmem:[%s168 + $0x60] sm:$0x1]
      %v207 = vld [vmem:[%s168 + $0x64] sm:$0xf]
      %v208 = vld [vmem:[%s168 + $0x68] sm:$0xf]
      %v209 = vld [vmem:[%s168 + $0x6c] sm:$0xf]
      %v210 = vld [vmem:[%s168 + $0x70] sm:$0xf]
      %v211 = vld [vmem:[%s168 + $0x74] sm:$0x1]
      %v212 = vld [vmem:[%s168 + $0x78] sm:$0xf]
      %v213 = vld [vmem:[%s168 + $0x7c] sm:$0xf]
      %v214 = vld [vmem:[%s168 + $0x80] sm:$0xf]
      %v215 = vld [vmem:[%s168 + $0x84] sm:$0xf]
      %v216 = vld [vmem:[%s168 + $0x88] sm:$0x1]
      %v217 = vld [vmem:[%s168 + $0x8c] sm:$0xf]
      %v218 = vld [vmem:[%s168 + $0x90] sm:$0xf]
      %v219 = vld [vmem:[%s168 + $0x94] sm:$0xf]
      %v220 = vld [vmem:[%s168 + $0x98] sm:$0xf]
      %v221 = vld [vmem:[%s168 + $0x9c] sm:$0x1]
      %v222 = vld [vmem:[%s168 + $0xa0] sm:$0xf]
      %v223 = vld [vmem:[%s168 + $0xa4] sm:$0xf]
      %v224 = vld [vmem:[%s168 + $0xa8] sm:$0xf]
      %v225 = vld [vmem:[%s168 + $0xac] sm:$0xf]
      %v226 = vld [vmem:[%s168 + $0xb0] sm:$0x1]
      %v227 = vld [vmem:[%s168 + $0xb4] sm:$0xf]
      %v228 = vld [vmem:[%s168 + $0xb8] sm:$0xf]
      %v229 = vld [vmem:[%s168 + $0xbc] sm:$0xf]
      %v230 = vld [vmem:[%s168 + $0xc0] sm:$0xf]
      %v231 = vld [vmem:[%s168 + $0xc4] sm:$0x1]
      %v232 = vld [vmem:[%s168 + $0xc8] sm:$0xf]
      %v233 = vld [vmem:[%s168 + $0xcc] sm:$0xf]
      %v234 = vld [vmem:[%s168 + $0xd0] sm:$0xf]
      %v235 = vld [vmem:[%s168 + $0xd4] sm:$0xf]
      %v236 = vld [vmem:[%s168 + $0xd8] sm:$0x1]
      %v237 = vld [vmem:[%s168 + $0xdc] sm:$0xf]
      %v238 = vld [vmem:[%s168 + $0xe0] sm:$0xf]
      %v239 = vld [vmem:[%s168 + $0xe4] sm:$0xf]
      %v240 = vld [vmem:[%s168 + $0xe8] sm:$0xf]
      %v241 = vld [vmem:[%s168 + $0xec] sm:$0x1]
      %v242 = vld [vmem:[%s168 + $0xf0] sm:$0xf]
      %v243 = vld [vmem:[%s168 + $0xf4] sm:$0xf]
      %v244 = vld [vmem:[%s168 + $0xf8] sm:$0xf]
      %v245 = vld [vmem:[%s168 + $0xfc] sm:$0xf]
      %v246 = vld [vmem:[%s168 + $0x100] sm:$0x1]
      %v247 = vld [vmem:[%s168 + $0x104] sm:$0xf]
      %v248 = vld [vmem:[%s168 + $0x108] sm:$0xf]
      %v249 = vld [vmem:[%s168 + $0x10c] sm:$0xf]
      %v250 = vld [vmem:[%s168 + $0x110] sm:$0xf]
      %v251 = vld [vmem:[%s168 + $0x114] sm:$0x1]
      %v252 = vld [vmem:[%s168 + $0x118] sm:$0xf]
      %v253 = vld [vmem:[%s168 + $0x11c] sm:$0xf]
      %v254 = vld [vmem:[%s168 + $0x120] sm:$0xf]
      %v255 = vld [vmem:[%s168 + $0x124] sm:$0xf]
      %v256 = vld [vmem:[%s168 + $0x128] sm:$0x1]
      %v257 = vld [vmem:[%s168 + $0x12c] sm:$0xf]
      %v258 = vld [vmem:[%s168 + $0x130] sm:$0xf]
      %v259 = vld [vmem:[%s168 + $0x134] sm:$0xf]
      %v260 = vld [vmem:[%s168 + $0x138] sm:$0xf]
      %v261 = vld [vmem:[%s168 + $0x13c] sm:$0x1]
      %v262 = vld [vmem:[%s168 + $0x140] sm:$0xf]
      %v263 = vld [vmem:[%s168 + $0x144] sm:$0xf]
      %v264 = vld [vmem:[%s168 + $0x148] sm:$0xf]
      %v265 = vld [vmem:[%s168 + $0x14c] sm:$0xf]
      %v266 = vld [vmem:[%s168 + $0x150] sm:$0x1]
      %v267 = vld [vmem:[%s168 + $0x154] sm:$0xf]
      %v268 = vld [vmem:[%s168 + $0x158] sm:$0xf]
      %v269 = vld [vmem:[%s168 + $0x15c] sm:$0xf]
      %v270 = vld [vmem:[%s168 + $0x160] sm:$0xf]
      %v271 = vld [vmem:[%s168 + $0x164] sm:$0x1]
      %v272 = vld [vmem:[%s168 + $0x168] sm:$0xf]
      %v273 = vld [vmem:[%s168 + $0x16c] sm:$0xf]
      %v274 = vld [vmem:[%s168 + $0x170] sm:$0xf]
      %v275 = vld [vmem:[%s168 + $0x174] sm:$0xf]
      %v276 = vld [vmem:[%s168 + $0x178] sm:$0x1]
      %v277 = vld [vmem:[%s168 + $0x17c] sm:$0xf]
      %v278 = vld [vmem:[%s168 + $0x180] sm:$0xf]
      %v279 = vld [vmem:[%s168 + $0x184] sm:$0xf]
      %v280 = vld [vmem:[%s168 + $0x188] sm:$0xf]
      %v281 = vld [vmem:[%s168 + $0x18c] sm:$0x1]
      %v282 = vld [vmem:[%s168 + $0x190] sm:$0xf]
      %v283 = vld [vmem:[%s168 + $0x194] sm:$0xf]
      %v284 = vld [vmem:[%s168 + $0x198] sm:$0xf]
      %v285 = vld [vmem:[%s168 + $0x19c] sm:$0xf]
      %v286 = vld [vmem:[%s168 + $0x1a0] sm:$0x1]
      %v287 = vld [vmem:[%s168 + $0x1a4] sm:$0xf]
      %v288 = vld [vmem:[%s168 + $0x1a8] sm:$0xf]
      %v289 = vld [vmem:[%s168 + $0x1ac] sm:$0xf]
      %v290 = vld [vmem:[%s168 + $0x1b0] sm:$0xf]
      %v291 = vld [vmem:[%s168 + $0x1b4] sm:$0x1]
      %v292 = vld [vmem:[%s168 + $0x1b8] sm:$0xf]
      %v293 = vld [vmem:[%s168 + $0x1bc] sm:$0xf]
      %v294 = vld [vmem:[%s168 + $0x1c0] sm:$0xf]
      %v295 = vld [vmem:[%s168 + $0x1c4] sm:$0xf]
      %v296 = vld [vmem:[%s168 + $0x1c8] sm:$0x1]
      %v297 = vld [vmem:[%s168 + $0x1cc] sm:$0xf]
      %v298 = vld [vmem:[%s168 + $0x1d0] sm:$0xf]
      %v299 = vld [vmem:[%s168 + $0x1d4] sm:$0xf]
      %v300 = vld [vmem:[%s168 + $0x1d8] sm:$0xf]
      %v301 = vld [vmem:[%s168 + $0x1dc] sm:$0x1]
      %v302 = vld [vmem:[%s168 + $0x1e0] sm:$0xf]
      %v303 = vld [vmem:[%s168 + $0x1e4] sm:$0xf]
      %v304 = vld [vmem:[%s168 + $0x1e8] sm:$0xf]
      %v305 = vld [vmem:[%s168 + $0x1ec] sm:$0xf]
      %v306 = vld [vmem:[%s168 + $0x1f0] sm:$0x1]
      %v307 = vld [vmem:[%s168 + $0x1f4] sm:$0xf]
      %v308 = vld [vmem:[%s168 + $0x1f8] sm:$0xf]
      %v309 = vld [vmem:[%s168 + $0x1fc] sm:$0xf]
      %v310 = vld [vmem:[%s168 + $0x200] sm:$0xf]
      %v311 = vld [vmem:[%s168 + $0x204] sm:$0x1]
      %v312 = vld [vmem:[%s168 + $0x208] sm:$0xf]
      %v313 = vld [vmem:[%s168 + $0x20c] sm:$0xf]
      %v314 = vld [vmem:[%s168 + $0x210] sm:$0xf]
      %v315 = vld [vmem:[%s168 + $0x214] sm:$0xf]
      %v316 = vld [vmem:[%s168 + $0x218] sm:$0x1]
      %v317 = vld [vmem:[%s168 + $0x21c] sm:$0xf]
      %v318 = vld [vmem:[%s168 + $0x220] sm:$0xf]
      %v319 = vld [vmem:[%s168 + $0x224] sm:$0xf]
      %v320 = vld [vmem:[%s168 + $0x228] sm:$0xf]
      %v321 = vld [vmem:[%s168 + $0x22c] sm:$0x1]
      %v322 = vld [vmem:[%s168 + $0x230] sm:$0xf]
      %v323 = vld [vmem:[%s168 + $0x234] sm:$0xf]
      %v324 = vld [vmem:[%s168 + $0x238] sm:$0xf]
      %v325 = vld [vmem:[%s168 + $0x23c] sm:$0xf]
      %v326 = vld [vmem:[%s168 + $0x240] sm:$0x1]
      %v327 = vld [vmem:[%s168 + $0x244] sm:$0xf]
      %v328 = vld [vmem:[%s168 + $0x248] sm:$0xf]
      %v329 = vld [vmem:[%s168 + $0x24c] sm:$0xf]
      %v330 = vld [vmem:[%s168 + $0x250] sm:$0xf]
      %v331 = vld [vmem:[%s168 + $0x254] sm:$0x1]
      %v332 = vld [vmem:[%s168 + $0x258] sm:$0xf]
      %v333 = vld [vmem:[%s168 + $0x25c] sm:$0xf]
      %v334 = vld [vmem:[%s168 + $0x260] sm:$0xf]
      %v335 = vld [vmem:[%s168 + $0x264] sm:$0xf]
      %v336 = vld [vmem:[%s168 + $0x268] sm:$0x1]
      %v337 = vld [vmem:[%s168 + $0x26c] sm:$0xf]
      %v338 = vld [vmem:[%s168 + $0x270] sm:$0xf]
      %v339 = vld [vmem:[%s168 + $0x274] sm:$0xf]
      %v340 = vld [vmem:[%s168 + $0x278] sm:$0xf]
      %v341 = vld [vmem:[%s168 + $0x27c] sm:$0x1]
      %v342 = vld [vmem:[%s168 + $0x280] sm:$0xf]
      %v343 = vld [vmem:[%s168 + $0x284] sm:$0xf]
      %v344 = vld [vmem:[%s168 + $0x288] sm:$0xf]
      %v345 = vld [vmem:[%s168 + $0x28c] sm:$0xf]
      %v346 = vld [vmem:[%s168 + $0x290] sm:$0x1]
      %v347 = vld [vmem:[%s172] sm:$0xf]
      %v348 = vld [vmem:[%s172 + $0x4] sm:$0xf]
      %v349 = vld [vmem:[%s172 + $0x8] sm:$0xf]
      %v350 = vld [vmem:[%s172 + $0xc] sm:$0xf]
      %v351 = vld [vmem:[%s172 + $0x10] sm:$0xf]
      %v352 = vld [vmem:[%s172 + $0x14] sm:$0xf]
      %v353 = vld [vmem:[%s172 + $0x18] sm:$0xf]
      %v354 = vld [vmem:[%s172 + $0x1c] sm:$0xf]
      %v355 = vld [vmem:[%s172 + $0x20] sm:$0xf]
      %v356 = vld [vmem:[%s172 + $0x24] sm:$0xf]
      %v357 = vld [vmem:[%s172 + $0x28] sm:$0xf]
      %v358 = vld [vmem:[%s172 + $0x2c] sm:$0xf]
      %v359 = vld [vmem:[%s172 + $0x30] sm:$0xf]
      %v360 = vld [vmem:[%s172 + $0x34] sm:$0xf]
      %v361 = vld [vmem:[%s172 + $0x38] sm:$0xf]
      %v362 = vld [vmem:[%s172 + $0x3c] sm:$0xf]
      %vm363 = vsmask.f32 3328
      %vm364 = vsmask.f32 7440
      %vm365 = vmor %vm363, %vm364
      %v367 = vshrl.u32 %v182, 16
      %v369 = vrot.slane %v367, 4
      %v370 = vshll.u32 %v182, 16
      %v372 = vrot.slane %v370, 5
      %v373 = vor.u32 %v369, %v372
      %v374 = vrot.slane %v373, 4
      %v376 = vshll.u32 %v183, 16
      %v378 = vrot.slane %v376, 5
      %v379 = vsel %vm365, %v374, %v378
      %v380 = vshrl.u32 %v183, 16
      %v382 = vrot.slane %v380, 4
      %v383 = vor.u32 %v382, %v378
      %v384 = vrot.slane %v383, 4
      %v386 = vshll.u32 %v184, 16
      %v388 = vrot.slane %v386, 5
      %v389 = vsel %vm365, %v384, %v388
      %v390 = vshrl.u32 %v184, 16
      %v392 = vrot.slane %v390, 4
      %v393 = vor.u32 %v392, %v388
      %v394 = vrot.slane %v393, 4
      %v396 = vshll.u32 %v185, 16
      %v398 = vrot.slane %v396, 5
      %v399 = vsel %vm365, %v394, %v398
      %v400 = vshrl.u32 %v185, 16
      %v402 = vrot.slane %v400, 4
      %v403 = vor.u32 %v402, %v398
      %v404 = vrot.slane %v403, 4
      %v406 = vshll.u32 %v186, 16
      %v408 = vrot.slane %v406, 5
      %v409 = vsel %vm365, %v404, %v408
      %v411 = vshrl.u32 %v187, 16
      %v413 = vrot.slane %v411, 4
      %v414 = vshll.u32 %v187, 16
      %v416 = vrot.slane %v414, 5
      %v417 = vor.u32 %v413, %v416
      %v418 = vrot.slane %v417, 4
      %v420 = vshll.u32 %v188, 16
      %v422 = vrot.slane %v420, 5
      %v423 = vsel %vm365, %v418, %v422
      %v424 = vshrl.u32 %v188, 16
      %v426 = vrot.slane %v424, 4
      %v427 = vor.u32 %v426, %v422
      %v428 = vrot.slane %v427, 4
      %v430 = vshll.u32 %v189, 16
      %v432 = vrot.slane %v430, 5
      %v433 = vsel %vm365, %v428, %v432
      %v434 = vshrl.u32 %v189, 16
      %v436 = vrot.slane %v434, 4
      %v437 = vor.u32 %v436, %v432
      %v438 = vrot.slane %v437, 4
      %v440 = vshll.u32 %v190, 16
      %v442 = vrot.slane %v440, 5
      %v443 = vsel %vm365, %v438, %v442
      %v444 = vshrl.u32 %v190, 16
      %v446 = vrot.slane %v444, 4
      %v447 = vor.u32 %v446, %v442
      %v448 = vrot.slane %v447, 4
      %v450 = vshll.u32 %v191, 16
      %v452 = vrot.slane %v450, 5
      %v453 = vsel %vm365, %v448, %v452
      %v455 = vshrl.u32 %v192, 16
      %v457 = vrot.slane %v455, 4
      %v458 = vshll.u32 %v192, 16
      %v460 = vrot.slane %v458, 5
      %v461 = vor.u32 %v457, %v460
      %v462 = vrot.slane %v461, 4
      %v464 = vshll.u32 %v193, 16
      %v466 = vrot.slane %v464, 5
      %v467 = vsel %vm365, %v462, %v466
      %v468 = vshrl.u32 %v193, 16
      %v470 = vrot.slane %v468, 4
      %v471 = vor.u32 %v470, %v466
      %v472 = vrot.slane %v471, 4
      %v474 = vshll.u32 %v194, 16
      %v476 = vrot.slane %v474, 5
      %v477 = vsel %vm365, %v472, %v476
      %v478 = vshrl.u32 %v194, 16
      %v480 = vrot.slane %v478, 4
      %v481 = vor.u32 %v480, %v476
      %v482 = vrot.slane %v481, 4
      %v484 = vshll.u32 %v195, 16
      %v486 = vrot.slane %v484, 5
      %v487 = vsel %vm365, %v482, %v486
      %v488 = vshrl.u32 %v195, 16
      %v490 = vrot.slane %v488, 4
      %v491 = vor.u32 %v490, %v486
      %v492 = vrot.slane %v491, 4
      %v494 = vshll.u32 %v196, 16
      %v496 = vrot.slane %v494, 5
      %v497 = vsel %vm365, %v492, %v496
      %v499 = vshrl.u32 %v197, 16
      %v501 = vrot.slane %v499, 4
      %v502 = vshll.u32 %v197, 16
      %v504 = vrot.slane %v502, 5
      %v505 = vor.u32 %v501, %v504
      %v506 = vrot.slane %v505, 4
      %v508 = vshll.u32 %v198, 16
      %v510 = vrot.slane %v508, 5
      %v511 = vsel %vm365, %v506, %v510
      %v512 = vshrl.u32 %v198, 16
      %v514 = vrot.slane %v512, 4
      %v515 = vor.u32 %v514, %v510
      %v516 = vrot.slane %v515, 4
      %v518 = vshll.u32 %v199, 16
      %v520 = vrot.slane %v518, 5
      %v521 = vsel %vm365, %v516, %v520
      %v522 = vshrl.u32 %v199, 16
      %v524 = vrot.slane %v522, 4
      %v525 = vor.u32 %v524, %v520
      %v526 = vrot.slane %v525, 4
      %v528 = vshll.u32 %v200, 16
      %v530 = vrot.slane %v528, 5
      %v531 = vsel %vm365, %v526, %v530
      %v532 = vshrl.u32 %v200, 16
      %v534 = vrot.slane %v532, 4
      %v535 = vor.u32 %v534, %v530
      %v536 = vrot.slane %v535, 4
      %v538 = vshll.u32 %v201, 16
      %v540 = vrot.slane %v538, 5
      %v541 = vsel %vm365, %v536, %v540
      %v543 = vshrl.u32 %v202, 16
      %v545 = vrot.slane %v543, 4
      %v546 = vshll.u32 %v202, 16
      %v548 = vrot.slane %v546, 5
      %v549 = vor.u32 %v545, %v548
      %v550 = vrot.slane %v549, 4
      %v552 = vshll.u32 %v203, 16
      %v554 = vrot.slane %v552, 5
      %v555 = vsel %vm365, %v550, %v554
      %v556 = vshrl.u32 %v203, 16
      %v558 = vrot.slane %v556, 4
      %v559 = vor.u32 %v558, %v554
      %v560 = vrot.slane %v559, 4
      %v562 = vshll.u32 %v204, 16
      %v564 = vrot.slane %v562, 5
      %v565 = vsel %vm365, %v560, %v564
      %v566 = vshrl.u32 %v204, 16
      %v568 = vrot.slane %v566, 4
      %v569 = vor.u32 %v568, %v564
      %v570 = vrot.slane %v569, 4
      %v572 = vshll.u32 %v205, 16
      %v574 = vrot.slane %v572, 5
      %v575 = vsel %vm365, %v570, %v574
      %v576 = vshrl.u32 %v205, 16
      %v578 = vrot.slane %v576, 4
      %v579 = vor.u32 %v578, %v574
      %v580 = vrot.slane %v579, 4
      %v582 = vshll.u32 %v206, 16
      %v584 = vrot.slane %v582, 5
      %v585 = vsel %vm365, %v580, %v584
      %v587 = vshrl.u32 %v207, 16
      %v589 = vrot.slane %v587, 4
      %v590 = vshll.u32 %v207, 16
      %v592 = vrot.slane %v590, 5
      %v593 = vor.u32 %v589, %v592
      %v594 = vrot.slane %v593, 4
      %v596 = vshll.u32 %v208, 16
      %v598 = vrot.slane %v596, 5
      %v599 = vsel %vm365, %v594, %v598
      %v600 = vshrl.u32 %v208, 16
      %v602 = vrot.slane %v600, 4
      %v603 = vor.u32 %v602, %v598
      %v604 = vrot.slane %v603, 4
      %v606 = vshll.u32 %v209, 16
      %v608 = vrot.slane %v606, 5
      %v609 = vsel %vm365, %v604, %v608
      %v610 = vshrl.u32 %v209, 16
      %v612 = vrot.slane %v610, 4
      %v613 = vor.u32 %v612, %v608
      %v614 = vrot.slane %v613, 4
      %v616 = vshll.u32 %v210, 16
      %v618 = vrot.slane %v616, 5
      %v619 = vsel %vm365, %v614, %v618
      %v620 = vshrl.u32 %v210, 16
      %v622 = vrot.slane %v620, 4
      %v623 = vor.u32 %v622, %v618
      %v624 = vrot.slane %v623, 4
      %v626 = vshll.u32 %v211, 16
      %v628 = vrot.slane %v626, 5
      %v629 = vsel %vm365, %v624, %v628
      %v631 = vshrl.u32 %v212, 16
      %v633 = vrot.slane %v631, 4
      %v634 = vshll.u32 %v212, 16
      %v636 = vrot.slane %v634, 5
      %v637 = vor.u32 %v633, %v636
      %v638 = vrot.slane %v637, 4
      %v640 = vshll.u32 %v213, 16
      %v642 = vrot.slane %v640, 5
      %v643 = vsel %vm365, %v638, %v642
      %v644 = vshrl.u32 %v213, 16
      %v646 = vrot.slane %v644, 4
      %v647 = vor.u32 %v646, %v642
      %v648 = vrot.slane %v647, 4
      %v650 = vshll.u32 %v214, 16
      %v652 = vrot.slane %v650, 5
      %v653 = vsel %vm365, %v648, %v652
      %v654 = vshrl.u32 %v214, 16
      %v656 = vrot.slane %v654, 4
      %v657 = vor.u32 %v656, %v652
      %v658 = vrot.slane %v657, 4
      %v660 = vshll.u32 %v215, 16
      %v662 = vrot.slane %v660, 5
      %v663 = vsel %vm365, %v658, %v662
      %v664 = vshrl.u32 %v215, 16
      %v666 = vrot.slane %v664, 4
      %v667 = vor.u32 %v666, %v662
      %v668 = vrot.slane %v667, 4
      %v670 = vshll.u32 %v216, 16
      %v672 = vrot.slane %v670, 5
      %v673 = vsel %vm365, %v668, %v672
      %v675 = vshrl.u32 %v217, 16
      %v677 = vrot.slane %v675, 4
      %v678 = vshll.u32 %v217, 16
      %v680 = vrot.slane %v678, 5
      %v681 = vor.u32 %v677, %v680
      %v682 = vrot.slane %v681, 4
      %v684 = vshll.u32 %v218, 16
      %v686 = vrot.slane %v684, 5
      %v687 = vsel %vm365, %v682, %v686
      %v688 = vshrl.u32 %v218, 16
      %v690 = vrot.slane %v688, 4
      %v691 = vor.u32 %v690, %v686
      %v692 = vrot.slane %v691, 4
      %v694 = vshll.u32 %v219, 16
      %v696 = vrot.slane %v694, 5
      %v697 = vsel %vm365, %v692, %v696
      %v698 = vshrl.u32 %v219, 16
      %v700 = vrot.slane %v698, 4
      %v701 = vor.u32 %v700, %v696
      %v702 = vrot.slane %v701, 4
      %v704 = vshll.u32 %v220, 16
      %v706 = vrot.slane %v704, 5
      %v707 = vsel %vm365, %v702, %v706
      %v708 = vshrl.u32 %v220, 16
      %v710 = vrot.slane %v708, 4
      %v711 = vor.u32 %v710, %v706
      %v712 = vrot.slane %v711, 4
      %v714 = vshll.u32 %v221, 16
      %v716 = vrot.slane %v714, 5
      %v717 = vsel %vm365, %v712, %v716
      %v719 = vshrl.u32 %v222, 16
      %v721 = vrot.slane %v719, 4
      %v722 = vshll.u32 %v222, 16
      %v724 = vrot.slane %v722, 5
      %v725 = vor.u32 %v721, %v724
      %v726 = vrot.slane %v725, 4
      %v728 = vshll.u32 %v223, 16
      %v730 = vrot.slane %v728, 5
      %v731 = vsel %vm365, %v726, %v730
      %v732 = vshrl.u32 %v223, 16
      %v734 = vrot.slane %v732, 4
      %v735 = vor.u32 %v734, %v730
      %v736 = vrot.slane %v735, 4
      %v738 = vshll.u32 %v224, 16
      %v740 = vrot.slane %v738, 5
      %v741 = vsel %vm365, %v736, %v740
      %v742 = vshrl.u32 %v224, 16
      %v744 = vrot.slane %v742, 4
      %v745 = vor.u32 %v744, %v740
      %v746 = vrot.slane %v745, 4
      %v748 = vshll.u32 %v225, 16
      %v750 = vrot.slane %v748, 5
      %v751 = vsel %vm365, %v746, %v750
      %v752 = vshrl.u32 %v225, 16
      %v754 = vrot.slane %v752, 4
      %v755 = vor.u32 %v754, %v750
      %v756 = vrot.slane %v755, 4
      %v758 = vshll.u32 %v226, 16
      %v760 = vrot.slane %v758, 5
      %v761 = vsel %vm365, %v756, %v760
      %v763 = vshrl.u32 %v227, 16
      %v765 = vrot.slane %v763, 4
      %v766 = vshll.u32 %v227, 16
      %v768 = vrot.slane %v766, 5
      %v769 = vor.u32 %v765, %v768
      %v770 = vrot.slane %v769, 4
      %v772 = vshll.u32 %v228, 16
      %v774 = vrot.slane %v772, 5
      %v775 = vsel %vm365, %v770, %v774
      %v776 = vshrl.u32 %v228, 16
      %v778 = vrot.slane %v776, 4
      %v779 = vor.u32 %v778, %v774
      %v780 = vrot.slane %v779, 4
      %v782 = vshll.u32 %v229, 16
      %v784 = vrot.slane %v782, 5
      %v785 = vsel %vm365, %v780, %v784
      %v786 = vshrl.u32 %v229, 16
      %v788 = vrot.slane %v786, 4
      %v789 = vor.u32 %v788, %v784
      %v790 = vrot.slane %v789, 4
      %v792 = vshll.u32 %v230, 16
      %v794 = vrot.slane %v792, 5
      %v795 = vsel %vm365, %v790, %v794
      %v796 = vshrl.u32 %v230, 16
      %v798 = vrot.slane %v796, 4
      %v799 = vor.u32 %v798, %v794
      %v800 = vrot.slane %v799, 4
      %v802 = vshll.u32 %v231, 16
      %v804 = vrot.slane %v802, 5
      %v805 = vsel %vm365, %v800, %v804
      %v807 = vshrl.u32 %v232, 16
      %v809 = vrot.slane %v807, 4
      %v810 = vshll.u32 %v232, 16
      %v812 = vrot.slane %v810, 5
      %v813 = vor.u32 %v809, %v812
      %v814 = vrot.slane %v813, 4
      %v816 = vshll.u32 %v233, 16
      %v818 = vrot.slane %v816, 5
      %v819 = vsel %vm365, %v814, %v818
      %v820 = vshrl.u32 %v233, 16
      %v822 = vrot.slane %v820, 4
      %v823 = vor.u32 %v822, %v818
      %v824 = vrot.slane %v823, 4
      %v826 = vshll.u32 %v234, 16
      %v828 = vrot.slane %v826, 5
      %v829 = vsel %vm365, %v824, %v828
      %v830 = vshrl.u32 %v234, 16
      %v832 = vrot.slane %v830, 4
      %v833 = vor.u32 %v832, %v828
      %v834 = vrot.slane %v833, 4
      %v836 = vshll.u32 %v235, 16
      %v838 = vrot.slane %v836, 5
      %v839 = vsel %vm365, %v834, %v838
      %v840 = vshrl.u32 %v235, 16
      %v842 = vrot.slane %v840, 4
      %v843 = vor.u32 %v842, %v838
      %v844 = vrot.slane %v843, 4
      %v846 = vshll.u32 %v236, 16
      %v848 = vrot.slane %v846, 5
      %v849 = vsel %vm365, %v844, %v848
      %v851 = vshrl.u32 %v237, 16
      %v853 = vrot.slane %v851, 4
      %v854 = vshll.u32 %v237, 16
      %v856 = vrot.slane %v854, 5
      %v857 = vor.u32 %v853, %v856
      %v858 = vrot.slane %v857, 4
      %v860 = vshll.u32 %v238, 16
      %v862 = vrot.slane %v860, 5
      %v863 = vsel %vm365, %v858, %v862
      %v864 = vshrl.u32 %v238, 16
      %v866 = vrot.slane %v864, 4
      %v867 = vor.u32 %v866, %v862
      %v868 = vrot.slane %v867, 4
      %v870 = vshll.u32 %v239, 16
      %v872 = vrot.slane %v870, 5
      %v873 = vsel %vm365, %v868, %v872
      %v874 = vshrl.u32 %v239, 16
      %v876 = vrot.slane %v874, 4
      %v877 = vor.u32 %v876, %v872
      %v878 = vrot.slane %v877, 4
      %v880 = vshll.u32 %v240, 16
      %v882 = vrot.slane %v880, 5
      %v883 = vsel %vm365, %v878, %v882
      %v884 = vshrl.u32 %v240, 16
      %v886 = vrot.slane %v884, 4
      %v887 = vor.u32 %v886, %v882
      %v888 = vrot.slane %v887, 4
      %v890 = vshll.u32 %v241, 16
      %v892 = vrot.slane %v890, 5
      %v893 = vsel %vm365, %v888, %v892
      %v895 = vshrl.u32 %v242, 16
      %v897 = vrot.slane %v895, 4
      %v898 = vshll.u32 %v242, 16
      %v900 = vrot.slane %v898, 5
      %v901 = vor.u32 %v897, %v900
      %v902 = vrot.slane %v901, 4
      %v904 = vshll.u32 %v243, 16
      %v906 = vrot.slane %v904, 5
      %v907 = vsel %vm365, %v902, %v906
      %v908 = vshrl.u32 %v243, 16
      %v910 = vrot.slane %v908, 4
      %v911 = vor.u32 %v910, %v906
      %v912 = vrot.slane %v911, 4
      %v914 = vshll.u32 %v244, 16
      %v916 = vrot.slane %v914, 5
      %v917 = vsel %vm365, %v912, %v916
      %v918 = vshrl.u32 %v244, 16
      %v920 = vrot.slane %v918, 4
      %v921 = vor.u32 %v920, %v916
      %v922 = vrot.slane %v921, 4
      %v924 = vshll.u32 %v245, 16
      %v926 = vrot.slane %v924, 5
      %v927 = vsel %vm365, %v922, %v926
      %v928 = vshrl.u32 %v245, 16
      %v930 = vrot.slane %v928, 4
      %v931 = vor.u32 %v930, %v926
      %v932 = vrot.slane %v931, 4
      %v934 = vshll.u32 %v246, 16
      %v936 = vrot.slane %v934, 5
      %v937 = vsel %vm365, %v932, %v936
      %v939 = vshrl.u32 %v247, 16
      %v941 = vrot.slane %v939, 4
      %v942 = vshll.u32 %v247, 16
      %v944 = vrot.slane %v942, 5
      %v945 = vor.u32 %v941, %v944
      %v946 = vrot.slane %v945, 4
      %v948 = vshll.u32 %v248, 16
      %v950 = vrot.slane %v948, 5
      %v951 = vsel %vm365, %v946, %v950
      %v952 = vshrl.u32 %v248, 16
      %v954 = vrot.slane %v952, 4
      %v955 = vor.u32 %v954, %v950
      %v956 = vrot.slane %v955, 4
      %v958 = vshll.u32 %v249, 16
      %v960 = vrot.slane %v958, 5
      %v961 = vsel %vm365, %v956, %v960
      %v962 = vshrl.u32 %v249, 16
      %v964 = vrot.slane %v962, 4
      %v965 = vor.u32 %v964, %v960
      %v966 = vrot.slane %v965, 4
      %v968 = vshll.u32 %v250, 16
      %v970 = vrot.slane %v968, 5
      %v971 = vsel %vm365, %v966, %v970
      %v972 = vshrl.u32 %v250, 16
      %v974 = vrot.slane %v972, 4
      %v975 = vor.u32 %v974, %v970
      %v976 = vrot.slane %v975, 4
      %v978 = vshll.u32 %v251, 16
      %v980 = vrot.slane %v978, 5
      %v981 = vsel %vm365, %v976, %v980
      %v983 = vshrl.u32 %v252, 16
      %v985 = vrot.slane %v983, 4
      %v986 = vshll.u32 %v252, 16
      %v988 = vrot.slane %v986, 5
      %v989 = vor.u32 %v985, %v988
      %v990 = vrot.slane %v989, 4
      %v992 = vshll.u32 %v253, 16
      %v994 = vrot.slane %v992, 5
      %v995 = vsel %vm365, %v990, %v994
      %v996 = vshrl.u32 %v253, 16
      %v998 = vrot.slane %v996, 4
      %v999 = vor.u32 %v998, %v994
      %v1000 = vrot.slane %v999, 4
      %v1002 = vshll.u32 %v254, 16
      %v1004 = vrot.slane %v1002, 5
      %v1005 = vsel %vm365, %v1000, %v1004
      %v1006 = vshrl.u32 %v254, 16
      %v1008 = vrot.slane %v1006, 4
      %v1009 = vor.u32 %v1008, %v1004
      %v1010 = vrot.slane %v1009, 4
      %v1012 = vshll.u32 %v255, 16
      %v1014 = vrot.slane %v1012, 5
      %v1015 = vsel %vm365, %v1010, %v1014
      %v1016 = vshrl.u32 %v255, 16
      %v1018 = vrot.slane %v1016, 4
      %v1019 = vor.u32 %v1018, %v1014
      %v1020 = vrot.slane %v1019, 4
      %v1022 = vshll.u32 %v256, 16
      %v1024 = vrot.slane %v1022, 5
      %v1025 = vsel %vm365, %v1020, %v1024
      %v1027 = vshrl.u32 %v257, 16
      %v1029 = vrot.slane %v1027, 4
      %v1030 = vshll.u32 %v257, 16
      %v1032 = vrot.slane %v1030, 5
      %v1033 = vor.u32 %v1029, %v1032
      %v1034 = vrot.slane %v1033, 4
      %v1036 = vshll.u32 %v258, 16
      %v1038 = vrot.slane %v1036, 5
      %v1039 = vsel %vm365, %v1034, %v1038
      %v1040 = vshrl.u32 %v258, 16
      %v1042 = vrot.slane %v1040, 4
      %v1043 = vor.u32 %v1042, %v1038
      %v1044 = vrot.slane %v1043, 4
      %v1046 = vshll.u32 %v259, 16
      %v1048 = vrot.slane %v1046, 5
      %v1049 = vsel %vm365, %v1044, %v1048
      %v1050 = vshrl.u32 %v259, 16
      %v1052 = vrot.slane %v1050, 4
      %v1053 = vor.u32 %v1052, %v1048
      %v1054 = vrot.slane %v1053, 4
      %v1056 = vshll.u32 %v260, 16
      %v1058 = vrot.slane %v1056, 5
      %v1059 = vsel %vm365, %v1054, %v1058
      %v1060 = vshrl.u32 %v260, 16
      %v1062 = vrot.slane %v1060, 4
      %v1063 = vor.u32 %v1062, %v1058
      %v1064 = vrot.slane %v1063, 4
      %v1066 = vshll.u32 %v261, 16
      %v1068 = vrot.slane %v1066, 5
      %v1069 = vsel %vm365, %v1064, %v1068
      %v1071 = vshrl.u32 %v262, 16
      %v1073 = vrot.slane %v1071, 4
      %v1074 = vshll.u32 %v262, 16
      %v1076 = vrot.slane %v1074, 5
      %v1077 = vor.u32 %v1073, %v1076
      %v1078 = vrot.slane %v1077, 4
      %v1080 = vshll.u32 %v263, 16
      %v1082 = vrot.slane %v1080, 5
      %v1083 = vsel %vm365, %v1078, %v1082
      %v1084 = vshrl.u32 %v263, 16
      %v1086 = vrot.slane %v1084, 4
      %v1087 = vor.u32 %v1086, %v1082
      %v1088 = vrot.slane %v1087, 4
      %v1090 = vshll.u32 %v264, 16
      %v1092 = vrot.slane %v1090, 5
      %v1093 = vsel %vm365, %v1088, %v1092
      %v1094 = vshrl.u32 %v264, 16
      %v1096 = vrot.slane %v1094, 4
      %v1097 = vor.u32 %v1096, %v1092
      %v1098 = vrot.slane %v1097, 4
      %v1100 = vshll.u32 %v265, 16
      %v1102 = vrot.slane %v1100, 5
      %v1103 = vsel %vm365, %v1098, %v1102
      %v1104 = vshrl.u32 %v265, 16
      %v1106 = vrot.slane %v1104, 4
      %v1107 = vor.u32 %v1106, %v1102
      %v1108 = vrot.slane %v1107, 4
      %v1110 = vshll.u32 %v266, 16
      %v1112 = vrot.slane %v1110, 5
      %v1113 = vsel %vm365, %v1108, %v1112
      %v1115 = vshrl.u32 %v267, 16
      %v1117 = vrot.slane %v1115, 4
      %v1118 = vshll.u32 %v267, 16
      %v1120 = vrot.slane %v1118, 5
      %v1121 = vor.u32 %v1117, %v1120
      %v1122 = vrot.slane %v1121, 4
      %v1124 = vshll.u32 %v268, 16
      %v1126 = vrot.slane %v1124, 5
      %v1127 = vsel %vm365, %v1122, %v1126
      %v1128 = vshrl.u32 %v268, 16
      %v1130 = vrot.slane %v1128, 4
      %v1131 = vor.u32 %v1130, %v1126
      %v1132 = vrot.slane %v1131, 4
      %v1134 = vshll.u32 %v269, 16
      %v1136 = vrot.slane %v1134, 5
      %v1137 = vsel %vm365, %v1132, %v1136
      %v1138 = vshrl.u32 %v269, 16
      %v1140 = vrot.slane %v1138, 4
      %v1141 = vor.u32 %v1140, %v1136
      %v1142 = vrot.slane %v1141, 4
      %v1144 = vshll.u32 %v270, 16
      %v1146 = vrot.slane %v1144, 5
      %v1147 = vsel %vm365, %v1142, %v1146
      %v1148 = vshrl.u32 %v270, 16
      %v1150 = vrot.slane %v1148, 4
      %v1151 = vor.u32 %v1150, %v1146
      %v1152 = vrot.slane %v1151, 4
      %v1154 = vshll.u32 %v271, 16
      %v1156 = vrot.slane %v1154, 5
      %v1157 = vsel %vm365, %v1152, %v1156
      %v1159 = vshrl.u32 %v272, 16
      %v1161 = vrot.slane %v1159, 4
      %v1162 = vshll.u32 %v272, 16
      %v1164 = vrot.slane %v1162, 5
      %v1165 = vor.u32 %v1161, %v1164
      %v1166 = vrot.slane %v1165, 4
      %v1168 = vshll.u32 %v273, 16
      %v1170 = vrot.slane %v1168, 5
      %v1171 = vsel %vm365, %v1166, %v1170
      %v1172 = vshrl.u32 %v273, 16
      %v1174 = vrot.slane %v1172, 4
      %v1175 = vor.u32 %v1174, %v1170
      %v1176 = vrot.slane %v1175, 4
      %v1178 = vshll.u32 %v274, 16
      %v1180 = vrot.slane %v1178, 5
      %v1181 = vsel %vm365, %v1176, %v1180
      %v1182 = vshrl.u32 %v274, 16
      %v1184 = vrot.slane %v1182, 4
      %v1185 = vor.u32 %v1184, %v1180
      %v1186 = vrot.slane %v1185, 4
      %v1188 = vshll.u32 %v275, 16
      %v1190 = vrot.slane %v1188, 5
      %v1191 = vsel %vm365, %v1186, %v1190
      %v1192 = vshrl.u32 %v275, 16
      %v1194 = vrot.slane %v1192, 4
      %v1195 = vor.u32 %v1194, %v1190
      %v1196 = vrot.slane %v1195, 4
      %v1198 = vshll.u32 %v276, 16
      %v1200 = vrot.slane %v1198, 5
      %v1201 = vsel %vm365, %v1196, %v1200
      %v1203 = vshrl.u32 %v277, 16
      %v1205 = vrot.slane %v1203, 4
      %v1206 = vshll.u32 %v277, 16
      %v1208 = vrot.slane %v1206, 5
      %v1209 = vor.u32 %v1205, %v1208
      %v1210 = vrot.slane %v1209, 4
      %v1212 = vshll.u32 %v278, 16
      %v1214 = vrot.slane %v1212, 5
      %v1215 = vsel %vm365, %v1210, %v1214
      %v1216 = vshrl.u32 %v278, 16
      %v1218 = vrot.slane %v1216, 4
      %v1219 = vor.u32 %v1218, %v1214
      %v1220 = vrot.slane %v1219, 4
      %v1222 = vshll.u32 %v279, 16
      %v1224 = vrot.slane %v1222, 5
      %v1225 = vsel %vm365, %v1220, %v1224
      %v1226 = vshrl.u32 %v279, 16
      %v1228 = vrot.slane %v1226, 4
      %v1229 = vor.u32 %v1228, %v1224
      %v1230 = vrot.slane %v1229, 4
      %v1232 = vshll.u32 %v280, 16
      %v1234 = vrot.slane %v1232, 5
      %v1235 = vsel %vm365, %v1230, %v1234
      %v1236 = vshrl.u32 %v280, 16
      %v1238 = vrot.slane %v1236, 4
      %v1239 = vor.u32 %v1238, %v1234
      %v1240 = vrot.slane %v1239, 4
      %v1242 = vshll.u32 %v281, 16
      %v1244 = vrot.slane %v1242, 5
      %v1245 = vsel %vm365, %v1240, %v1244
      %v1247 = vshrl.u32 %v282, 16
      %v1249 = vrot.slane %v1247, 4
      %v1250 = vshll.u32 %v282, 16
      %v1252 = vrot.slane %v1250, 5
      %v1253 = vor.u32 %v1249, %v1252
      %v1254 = vrot.slane %v1253, 4
      %v1256 = vshll.u32 %v283, 16
      %v1258 = vrot.slane %v1256, 5
      %v1259 = vsel %vm365, %v1254, %v1258
      %v1260 = vshrl.u32 %v283, 16
      %v1262 = vrot.slane %v1260, 4
      %v1263 = vor.u32 %v1262, %v1258
      %v1264 = vrot.slane %v1263, 4
      %v1266 = vshll.u32 %v284, 16
      %v1268 = vrot.slane %v1266, 5
      %v1269 = vsel %vm365, %v1264, %v1268
      %v1270 = vshrl.u32 %v284, 16
      %v1272 = vrot.slane %v1270, 4
      %v1273 = vor.u32 %v1272, %v1268
      %v1274 = vrot.slane %v1273, 4
      %v1276 = vshll.u32 %v285, 16
      %v1278 = vrot.slane %v1276, 5
      %v1279 = vsel %vm365, %v1274, %v1278
      %v1280 = vshrl.u32 %v285, 16
      %v1282 = vrot.slane %v1280, 4
      %v1283 = vor.u32 %v1282, %v1278
      %v1284 = vrot.slane %v1283, 4
      %v1286 = vshll.u32 %v286, 16
      %v1288 = vrot.slane %v1286, 5
      %v1289 = vsel %vm365, %v1284, %v1288
      %v1291 = vshrl.u32 %v287, 16
      %v1293 = vrot.slane %v1291, 4
      %v1294 = vshll.u32 %v287, 16
      %v1296 = vrot.slane %v1294, 5
      %v1297 = vor.u32 %v1293, %v1296
      %v1298 = vrot.slane %v1297, 4
      %v1300 = vshll.u32 %v288, 16
      %v1302 = vrot.slane %v1300, 5
      %v1303 = vsel %vm365, %v1298, %v1302
      %v1304 = vshrl.u32 %v288, 16
      %v1306 = vrot.slane %v1304, 4
      %v1307 = vor.u32 %v1306, %v1302
      %v1308 = vrot.slane %v1307, 4
      %v1310 = vshll.u32 %v289, 16
      %v1312 = vrot.slane %v1310, 5
      %v1313 = vsel %vm365, %v1308, %v1312
      %v1314 = vshrl.u32 %v289, 16
      %v1316 = vrot.slane %v1314, 4
      %v1317 = vor.u32 %v1316, %v1312
      %v1318 = vrot.slane %v1317, 4
      %v1320 = vshll.u32 %v290, 16
      %v1322 = vrot.slane %v1320, 5
      %v1323 = vsel %vm365, %v1318, %v1322
      %v1324 = vshrl.u32 %v290, 16
      %v1326 = vrot.slane %v1324, 4
      %v1327 = vor.u32 %v1326, %v1322
      %v1328 = vrot.slane %v1327, 4
      %v1330 = vshll.u32 %v291, 16
      %v1332 = vrot.slane %v1330, 5
      %v1333 = vsel %vm365, %v1328, %v1332
      %v1335 = vshrl.u32 %v292, 16
      %v1337 = vrot.slane %v1335, 4
      %v1338 = vshll.u32 %v292, 16
      %v1340 = vrot.slane %v1338, 5
      %v1341 = vor.u32 %v1337, %v1340
      %v1342 = vrot.slane %v1341, 4
      %v1344 = vshll.u32 %v293, 16
      %v1346 = vrot.slane %v1344, 5
      %v1347 = vsel %vm365, %v1342, %v1346
      %v1348 = vshrl.u32 %v293, 16
      %v1350 = vrot.slane %v1348, 4
      %v1351 = vor.u32 %v1350, %v1346
      %v1352 = vrot.slane %v1351, 4
      %v1354 = vshll.u32 %v294, 16
      %v1356 = vrot.slane %v1354, 5
      %v1357 = vsel %vm365, %v1352, %v1356
      %v1358 = vshrl.u32 %v294, 16
      %v1360 = vrot.slane %v1358, 4
      %v1361 = vor.u32 %v1360, %v1356
      %v1362 = vrot.slane %v1361, 4
      %v1364 = vshll.u32 %v295, 16
      %v1366 = vrot.slane %v1364, 5
      %v1367 = vsel %vm365, %v1362, %v1366
      %v1368 = vshrl.u32 %v295, 16
      %v1370 = vrot.slane %v1368, 4
      %v1371 = vor.u32 %v1370, %v1366
      %v1372 = vrot.slane %v1371, 4
      %v1374 = vshll.u32 %v296, 16
      %v1376 = vrot.slane %v1374, 5
      %v1377 = vsel %vm365, %v1372, %v1376
      %v1379 = vshrl.u32 %v297, 16
      %v1381 = vrot.slane %v1379, 4
      %v1382 = vshll.u32 %v297, 16
      %v1384 = vrot.slane %v1382, 5
      %v1385 = vor.u32 %v1381, %v1384
      %v1386 = vrot.slane %v1385, 4
      %v1388 = vshll.u32 %v298, 16
      %v1390 = vrot.slane %v1388, 5
      %v1391 = vsel %vm365, %v1386, %v1390
      %v1392 = vshrl.u32 %v298, 16
      %v1394 = vrot.slane %v1392, 4
      %v1395 = vor.u32 %v1394, %v1390
      %v1396 = vrot.slane %v1395, 4
      %v1398 = vshll.u32 %v299, 16
      %v1400 = vrot.slane %v1398, 5
      %v1401 = vsel %vm365, %v1396, %v1400
      %v1402 = vshrl.u32 %v299, 16
      %v1404 = vrot.slane %v1402, 4
      %v1405 = vor.u32 %v1404, %v1400
      %v1406 = vrot.slane %v1405, 4
      %v1408 = vshll.u32 %v300, 16
      %v1410 = vrot.slane %v1408, 5
      %v1411 = vsel %vm365, %v1406, %v1410
      %v1412 = vshrl.u32 %v300, 16
      %v1414 = vrot.slane %v1412, 4
      %v1415 = vor.u32 %v1414, %v1410
      %v1416 = vrot.slane %v1415, 4
      %v1418 = vshll.u32 %v301, 16
      %v1420 = vrot.slane %v1418, 5
      %v1421 = vsel %vm365, %v1416, %v1420
      %v1423 = vshrl.u32 %v302, 16
      %v1425 = vrot.slane %v1423, 4
      %v1426 = vshll.u32 %v302, 16
      %v1428 = vrot.slane %v1426, 5
      %v1429 = vor.u32 %v1425, %v1428
      %v1430 = vrot.slane %v1429, 4
      %v1432 = vshll.u32 %v303, 16
      %v1434 = vrot.slane %v1432, 5
      %v1435 = vsel %vm365, %v1430, %v1434
      %v1436 = vshrl.u32 %v303, 16
      %v1438 = vrot.slane %v1436, 4
      %v1439 = vor.u32 %v1438, %v1434
      %v1440 = vrot.slane %v1439, 4
      %v1442 = vshll.u32 %v304, 16
      %v1444 = vrot.slane %v1442, 5
      %v1445 = vsel %vm365, %v1440, %v1444
      %v1446 = vshrl.u32 %v304, 16
      %v1448 = vrot.slane %v1446, 4
      %v1449 = vor.u32 %v1448, %v1444
      %v1450 = vrot.slane %v1449, 4
      %v1452 = vshll.u32 %v305, 16
      %v1454 = vrot.slane %v1452, 5
      %v1455 = vsel %vm365, %v1450, %v1454
      %v1456 = vshrl.u32 %v305, 16
      %v1458 = vrot.slane %v1456, 4
      %v1459 = vor.u32 %v1458, %v1454
      %v1460 = vrot.slane %v1459, 4
      %v1462 = vshll.u32 %v306, 16
      %v1464 = vrot.slane %v1462, 5
      %v1465 = vsel %vm365, %v1460, %v1464
      %v1467 = vshrl.u32 %v307, 16
      %v1469 = vrot.slane %v1467, 4
      %v1470 = vshll.u32 %v307, 16
      %v1472 = vrot.slane %v1470, 5
      %v1473 = vor.u32 %v1469, %v1472
      %v1474 = vrot.slane %v1473, 4
      %v1476 = vshll.u32 %v308, 16
      %v1478 = vrot.slane %v1476, 5
      %v1479 = vsel %vm365, %v1474, %v1478
      %v1480 = vshrl.u32 %v308, 16
      %v1482 = vrot.slane %v1480, 4
      %v1483 = vor.u32 %v1482, %v1478
      %v1484 = vrot.slane %v1483, 4
      %v1486 = vshll.u32 %v309, 16
      %v1488 = vrot.slane %v1486, 5
      %v1489 = vsel %vm365, %v1484, %v1488
      %v1490 = vshrl.u32 %v309, 16
      %v1492 = vrot.slane %v1490, 4
      %v1493 = vor.u32 %v1492, %v1488
      %v1494 = vrot.slane %v1493, 4
      %v1496 = vshll.u32 %v310, 16
      %v1498 = vrot.slane %v1496, 5
      %v1499 = vsel %vm365, %v1494, %v1498
      %v1500 = vshrl.u32 %v310, 16
      %v1502 = vrot.slane %v1500, 4
      %v1503 = vor.u32 %v1502, %v1498
      %v1504 = vrot.slane %v1503, 4
      %v1506 = vshll.u32 %v311, 16
      %v1508 = vrot.slane %v1506, 5
      %v1509 = vsel %vm365, %v1504, %v1508
      %v1511 = vshrl.u32 %v312, 16
      %v1513 = vrot.slane %v1511, 4
      %v1514 = vshll.u32 %v312, 16
      %v1516 = vrot.slane %v1514, 5
      %v1517 = vor.u32 %v1513, %v1516
      %v1518 = vrot.slane %v1517, 4
      %v1520 = vshll.u32 %v313, 16
      %v1522 = vrot.slane %v1520, 5
      %v1523 = vsel %vm365, %v1518, %v1522
      %v1524 = vshrl.u32 %v313, 16
      %v1526 = vrot.slane %v1524, 4
      %v1527 = vor.u32 %v1526, %v1522
      %v1528 = vrot.slane %v1527, 4
      %v1530 = vshll.u32 %v314, 16
      %v1532 = vrot.slane %v1530, 5
      %v1533 = vsel %vm365, %v1528, %v1532
      %v1534 = vshrl.u32 %v314, 16
      %v1536 = vrot.slane %v1534, 4
      %v1537 = vor.u32 %v1536, %v1532
      %v1538 = vrot.slane %v1537, 4
      %v1540 = vshll.u32 %v315, 16
      %v1542 = vrot.slane %v1540, 5
      %v1543 = vsel %vm365, %v1538, %v1542
      %v1544 = vshrl.u32 %v315, 16
      %v1546 = vrot.slane %v1544, 4
      %v1547 = vor.u32 %v1546, %v1542
      %v1548 = vrot.slane %v1547, 4
      %v1550 = vshll.u32 %v316, 16
      %v1552 = vrot.slane %v1550, 5
      %v1553 = vsel %vm365, %v1548, %v1552
      %v1555 = vshrl.u32 %v317, 16
      %v1557 = vrot.slane %v1555, 4
      %v1558 = vshll.u32 %v317, 16
      %v1560 = vrot.slane %v1558, 5
      %v1561 = vor.u32 %v1557, %v1560
      %v1562 = vrot.slane %v1561, 4
      %v1564 = vshll.u32 %v318, 16
      %v1566 = vrot.slane %v1564, 5
      %v1567 = vsel %vm365, %v1562, %v1566
      %v1568 = vshrl.u32 %v318, 16
      %v1570 = vrot.slane %v1568, 4
      %v1571 = vor.u32 %v1570, %v1566
      %v1572 = vrot.slane %v1571, 4
      %v1574 = vshll.u32 %v319, 16
      %v1576 = vrot.slane %v1574, 5
      %v1577 = vsel %vm365, %v1572, %v1576
      %v1578 = vshrl.u32 %v319, 16
      %v1580 = vrot.slane %v1578, 4
      %v1581 = vor.u32 %v1580, %v1576
      %v1582 = vrot.slane %v1581, 4
      %v1584 = vshll.u32 %v320, 16
      %v1586 = vrot.slane %v1584, 5
      %v1587 = vsel %vm365, %v1582, %v1586
      %v1588 = vshrl.u32 %v320, 16
      %v1590 = vrot.slane %v1588, 4
      %v1591 = vor.u32 %v1590, %v1586
      %v1592 = vrot.slane %v1591, 4
      %v1594 = vshll.u32 %v321, 16
      %v1596 = vrot.slane %v1594, 5
      %v1597 = vsel %vm365, %v1592, %v1596
      %v1599 = vshrl.u32 %v322, 16
      %v1601 = vrot.slane %v1599, 4
      %v1602 = vshll.u32 %v322, 16
      %v1604 = vrot.slane %v1602, 5
      %v1605 = vor.u32 %v1601, %v1604
      %v1606 = vrot.slane %v1605, 4
      %v1608 = vshll.u32 %v323, 16
      %v1610 = vrot.slane %v1608, 5
      %v1611 = vsel %vm365, %v1606, %v1610
      %v1612 = vshrl.u32 %v323, 16
      %v1614 = vrot.slane %v1612, 4
      %v1615 = vor.u32 %v1614, %v1610
      %v1616 = vrot.slane %v1615, 4
      %v1618 = vshll.u32 %v324, 16
      %v1620 = vrot.slane %v1618, 5
      %v1621 = vsel %vm365, %v1616, %v1620
      %v1622 = vshrl.u32 %v324, 16
      %v1624 = vrot.slane %v1622, 4
      %v1625 = vor.u32 %v1624, %v1620
      %v1626 = vrot.slane %v1625, 4
      %v1628 = vshll.u32 %v325, 16
      %v1630 = vrot.slane %v1628, 5
      %v1631 = vsel %vm365, %v1626, %v1630
      %v1632 = vshrl.u32 %v325, 16
      %v1634 = vrot.slane %v1632, 4
      %v1635 = vor.u32 %v1634, %v1630
      %v1636 = vrot.slane %v1635, 4
      %v1638 = vshll.u32 %v326, 16
      %v1640 = vrot.slane %v1638, 5
      %v1641 = vsel %vm365, %v1636, %v1640
      %v1643 = vshrl.u32 %v327, 16
      %v1645 = vrot.slane %v1643, 4
      %v1646 = vshll.u32 %v327, 16
      %v1648 = vrot.slane %v1646, 5
      %v1649 = vor.u32 %v1645, %v1648
      %v1650 = vrot.slane %v1649, 4
      %v1652 = vshll.u32 %v328, 16
      %v1654 = vrot.slane %v1652, 5
      %v1655 = vsel %vm365, %v1650, %v1654
      %v1656 = vshrl.u32 %v328, 16
      %v1658 = vrot.slane %v1656, 4
      %v1659 = vor.u32 %v1658, %v1654
      %v1660 = vrot.slane %v1659, 4
      %v1662 = vshll.u32 %v329, 16
      %v1664 = vrot.slane %v1662, 5
      %v1665 = vsel %vm365, %v1660, %v1664
      %v1666 = vshrl.u32 %v329, 16
      %v1668 = vrot.slane %v1666, 4
      %v1669 = vor.u32 %v1668, %v1664
      %v1670 = vrot.slane %v1669, 4
      %v1672 = vshll.u32 %v330, 16
      %v1674 = vrot.slane %v1672, 5
      %v1675 = vsel %vm365, %v1670, %v1674
      %v1676 = vshrl.u32 %v330, 16
      %v1678 = vrot.slane %v1676, 4
      %v1679 = vor.u32 %v1678, %v1674
      %v1680 = vrot.slane %v1679, 4
      %v1682 = vshll.u32 %v331, 16
      %v1684 = vrot.slane %v1682, 5
      %v1685 = vsel %vm365, %v1680, %v1684
      %v1687 = vshrl.u32 %v332, 16
      %v1689 = vrot.slane %v1687, 4
      %v1690 = vshll.u32 %v332, 16
      %v1692 = vrot.slane %v1690, 5
      %v1693 = vor.u32 %v1689, %v1692
      %v1694 = vrot.slane %v1693, 4
      %v1696 = vshll.u32 %v333, 16
      %v1698 = vrot.slane %v1696, 5
      %v1699 = vsel %vm365, %v1694, %v1698
      %v1700 = vshrl.u32 %v333, 16
      %v1702 = vrot.slane %v1700, 4
      %v1703 = vor.u32 %v1702, %v1698
      %v1704 = vrot.slane %v1703, 4
      %v1706 = vshll.u32 %v334, 16
      %v1708 = vrot.slane %v1706, 5
      %v1709 = vsel %vm365, %v1704, %v1708
      %v1710 = vshrl.u32 %v334, 16
      %v1712 = vrot.slane %v1710, 4
      %v1713 = vor.u32 %v1712, %v1708
      %v1714 = vrot.slane %v1713, 4
      %v1716 = vshll.u32 %v335, 16
      %v1718 = vrot.slane %v1716, 5
      %v1719 = vsel %vm365, %v1714, %v1718
      %v1720 = vshrl.u32 %v335, 16
      %v1722 = vrot.slane %v1720, 4
      %v1723 = vor.u32 %v1722, %v1718
      %v1724 = vrot.slane %v1723, 4
      %v1726 = vshll.u32 %v336, 16
      %v1728 = vrot.slane %v1726, 5
      %v1729 = vsel %vm365, %v1724, %v1728
      %v1731 = vshrl.u32 %v337, 16
      %v1733 = vrot.slane %v1731, 4
      %v1734 = vshll.u32 %v337, 16
      %v1736 = vrot.slane %v1734, 5
      %v1737 = vor.u32 %v1733, %v1736
      %v1738 = vrot.slane %v1737, 4
      %v1740 = vshll.u32 %v338, 16
      %v1742 = vrot.slane %v1740, 5
      %v1743 = vsel %vm365, %v1738, %v1742
      %v1744 = vshrl.u32 %v338, 16
      %v1746 = vrot.slane %v1744, 4
      %v1747 = vor.u32 %v1746, %v1742
      %v1748 = vrot.slane %v1747, 4
      %v1750 = vshll.u32 %v339, 16
      %v1752 = vrot.slane %v1750, 5
      %v1753 = vsel %vm365, %v1748, %v1752
      %v1754 = vshrl.u32 %v339, 16
      %v1756 = vrot.slane %v1754, 4
      %v1757 = vor.u32 %v1756, %v1752
      %v1758 = vrot.slane %v1757, 4
      %v1760 = vshll.u32 %v340, 16
      %v1762 = vrot.slane %v1760, 5
      %v1763 = vsel %vm365, %v1758, %v1762
      %v1764 = vshrl.u32 %v340, 16
      %v1766 = vrot.slane %v1764, 4
      %v1767 = vor.u32 %v1766, %v1762
      %v1768 = vrot.slane %v1767, 4
      %v1770 = vshll.u32 %v341, 16
      %v1772 = vrot.slane %v1770, 5
      %v1773 = vsel %vm365, %v1768, %v1772
      %v1774 = vunpack.c.l.b16 %v379
      %v1775 = vunpack.c.l.b16 %v389
      %v1776 = vunpack.c.l.b16 %v399
      %v1777 = vunpack.c.l.b16 %v409
      %v1778 = vunpack.c.l.b16 %v423
      %v1779 = vunpack.c.l.b16 %v433
      %v1780 = vunpack.c.l.b16 %v443
      %v1781 = vunpack.c.l.b16 %v453
      %v1782 = vunpack.c.l.b16 %v467
      %v1783 = vunpack.c.l.b16 %v477
      %v1784 = vunpack.c.l.b16 %v487
      %v1785 = vunpack.c.l.b16 %v497
      %v1786 = vunpack.c.l.b16 %v511
      %v1787 = vunpack.c.l.b16 %v521
      %v1788 = vunpack.c.l.b16 %v531
      %v1789 = vunpack.c.l.b16 %v541
      %v1790 = vunpack.c.l.b16 %v555
      %v1791 = vunpack.c.l.b16 %v565
      %v1792 = vunpack.c.l.b16 %v575
      %v1793 = vunpack.c.l.b16 %v585
      %v1794 = vunpack.c.l.b16 %v599
      %v1795 = vunpack.c.l.b16 %v609
      %v1796 = vunpack.c.l.b16 %v619
      %v1797 = vunpack.c.l.b16 %v629
      %v1798 = vunpack.c.l.b16 %v643
      %v1799 = vunpack.c.l.b16 %v653
      %v1800 = vunpack.c.l.b16 %v663
      %v1801 = vunpack.c.l.b16 %v673
      %v1802 = vunpack.c.l.b16 %v687
      %v1803 = vunpack.c.l.b16 %v697
      %v1804 = vunpack.c.l.b16 %v707
      %v1805 = vunpack.c.l.b16 %v717
      %v1806 = vunpack.c.l.b16 %v731
      %v1807 = vunpack.c.l.b16 %v741
      %v1808 = vunpack.c.l.b16 %v751
      %v1809 = vunpack.c.l.b16 %v761
      %v1810 = vunpack.c.l.b16 %v775
      %v1811 = vunpack.c.l.b16 %v785
      %v1812 = vunpack.c.l.b16 %v795
      %v1813 = vunpack.c.l.b16 %v805
      %v1814 = vunpack.c.l.b16 %v819
      %v1815 = vunpack.c.l.b16 %v829
      %v1816 = vunpack.c.l.b16 %v839
      %v1817 = vunpack.c.l.b16 %v849
      %v1818 = vunpack.c.l.b16 %v863
      %v1819 = vunpack.c.l.b16 %v873
      %v1820 = vunpack.c.l.b16 %v883
      %v1821 = vunpack.c.l.b16 %v893
      %v1822 = vunpack.c.l.b16 %v907
      %v1823 = vunpack.c.l.b16 %v917
      %v1824 = vunpack.c.l.b16 %v927
      %v1825 = vunpack.c.l.b16 %v937
      %v1826 = vunpack.c.l.b16 %v951
      %v1827 = vunpack.c.l.b16 %v961
      %v1828 = vunpack.c.l.b16 %v971
      %v1829 = vunpack.c.l.b16 %v981
      %v1830 = vunpack.c.l.b16 %v995
      %v1831 = vunpack.c.l.b16 %v1005
      %v1832 = vunpack.c.l.b16 %v1015
      %v1833 = vunpack.c.l.b16 %v1025
      %v1834 = vunpack.c.l.b16 %v1039
      %v1835 = vunpack.c.l.b16 %v1049
      %v1836 = vunpack.c.l.b16 %v1059
      %v1837 = vunpack.c.l.b16 %v1069
      %v1838 = vunpack.c.l.b16 %v1083
      %v1839 = vunpack.c.l.b16 %v1093
      %v1840 = vunpack.c.l.b16 %v1103
      %v1841 = vunpack.c.l.b16 %v1113
      %v1842 = vunpack.c.l.b16 %v1127
      %v1843 = vunpack.c.l.b16 %v1137
      %v1844 = vunpack.c.l.b16 %v1147
      %v1845 = vunpack.c.l.b16 %v1157
      %v1846 = vunpack.c.l.b16 %v1171
      %v1847 = vunpack.c.l.b16 %v1181
      %v1848 = vunpack.c.l.b16 %v1191
      %v1849 = vunpack.c.l.b16 %v1201
      %v1850 = vunpack.c.l.b16 %v1215
      %v1851 = vunpack.c.l.b16 %v1225
      %v1852 = vunpack.c.l.b16 %v1235
      %v1853 = vunpack.c.l.b16 %v1245
      %v1854 = vunpack.c.l.b16 %v1259
      %v1855 = vunpack.c.l.b16 %v1269
      %v1856 = vunpack.c.l.b16 %v1279
      %v1857 = vunpack.c.l.b16 %v1289
      %v1858 = vunpack.c.l.b16 %v1303
      %v1859 = vunpack.c.l.b16 %v1313
      %v1860 = vunpack.c.l.b16 %v1323
      %v1861 = vunpack.c.l.b16 %v1333
      %v1862 = vunpack.c.l.b16 %v1347
      %v1863 = vunpack.c.l.b16 %v1357
      %v1864 = vunpack.c.l.b16 %v1367
      %v1865 = vunpack.c.l.b16 %v1377
      %v1866 = vunpack.c.l.b16 %v1391
      %v1867 = vunpack.c.l.b16 %v1401
      %v1868 = vunpack.c.l.b16 %v1411
      %v1869 = vunpack.c.l.b16 %v1421
      %v1870 = vunpack.c.l.b16 %v1435
      %v1871 = vunpack.c.l.b16 %v1445
      %v1872 = vunpack.c.l.b16 %v1455
      %v1873 = vunpack.c.l.b16 %v1465
      %v1874 = vunpack.c.l.b16 %v1479
      %v1875 = vunpack.c.l.b16 %v1489
      %v1876 = vunpack.c.l.b16 %v1499
      %v1877 = vunpack.c.l.b16 %v1509
      %v1878 = vunpack.c.l.b16 %v1523
      %v1879 = vunpack.c.l.b16 %v1533
      %v1880 = vunpack.c.l.b16 %v1543
      %v1881 = vunpack.c.l.b16 %v1553
      %v1882 = vunpack.c.l.b16 %v1567
      %v1883 = vunpack.c.l.b16 %v1577
      %v1884 = vunpack.c.l.b16 %v1587
      %v1885 = vunpack.c.l.b16 %v1597
      %v1886 = vunpack.c.l.b16 %v1611
      %v1887 = vunpack.c.l.b16 %v1621
      %v1888 = vunpack.c.l.b16 %v1631
      %v1889 = vunpack.c.l.b16 %v1641
      %v1890 = vunpack.c.l.b16 %v1655
      %v1891 = vunpack.c.l.b16 %v1665
      %v1892 = vunpack.c.l.b16 %v1675
      %v1893 = vunpack.c.l.b16 %v1685
      %v1894 = vunpack.c.l.b16 %v1699
      %v1895 = vunpack.c.l.b16 %v1709
      %v1896 = vunpack.c.l.b16 %v1719
      %v1897 = vunpack.c.l.b16 %v1729
      %v1898 = vunpack.c.l.b16 %v1743
      %v1899 = vunpack.c.l.b16 %v1753
      %v1900 = vunpack.c.l.b16 %v1763
      %v1901 = vunpack.c.l.b16 %v1773
      %v1902 = vpack.c.b16 %v1775, %v1774
      %v1903 = vpack.c.b16 %v1777, %v1776
      %v1904 = vpack.c.b16 %v1779, %v1778
      %v1905 = vpack.c.b16 %v1781, %v1780
      %v1906 = vpack.c.b16 %v1783, %v1782
      %v1907 = vpack.c.b16 %v1785, %v1784
      %v1908 = vpack.c.b16 %v1787, %v1786
      %v1909 = vpack.c.b16 %v1789, %v1788
      %v1910 = vpack.c.b16 %v1791, %v1790
      %v1911 = vpack.c.b16 %v1793, %v1792
      %v1912 = vpack.c.b16 %v1795, %v1794
      %v1913 = vpack.c.b16 %v1797, %v1796
      %v1914 = vpack.c.b16 %v1799, %v1798
      %v1915 = vpack.c.b16 %v1801, %v1800
      %v1916 = vpack.c.b16 %v1803, %v1802
      %v1917 = vpack.c.b16 %v1805, %v1804
      %v1918 = vpack.c.b16 %v1807, %v1806
      %v1919 = vpack.c.b16 %v1809, %v1808
      %v1920 = vpack.c.b16 %v1811, %v1810
      %v1921 = vpack.c.b16 %v1813, %v1812
      %v1922 = vpack.c.b16 %v1815, %v1814
      %v1923 = vpack.c.b16 %v1817, %v1816
      %v1924 = vpack.c.b16 %v1819, %v1818
      %v1925 = vpack.c.b16 %v1821, %v1820
      %v1926 = vpack.c.b16 %v1823, %v1822
      %v1927 = vpack.c.b16 %v1825, %v1824
      %v1928 = vpack.c.b16 %v1827, %v1826
      %v1929 = vpack.c.b16 %v1829, %v1828
      %v1930 = vpack.c.b16 %v1831, %v1830
      %v1931 = vpack.c.b16 %v1833, %v1832
      %v1932 = vpack.c.b16 %v1835, %v1834
      %v1933 = vpack.c.b16 %v1837, %v1836
      %v1934 = vpack.c.b16 %v1839, %v1838
      %v1935 = vpack.c.b16 %v1841, %v1840
      %v1936 = vpack.c.b16 %v1843, %v1842
      %v1937 = vpack.c.b16 %v1845, %v1844
      %v1938 = vpack.c.b16 %v1847, %v1846
      %v1939 = vpack.c.b16 %v1849, %v1848
      %v1940 = vpack.c.b16 %v1851, %v1850
      %v1941 = vpack.c.b16 %v1853, %v1852
      %v1942 = vpack.c.b16 %v1855, %v1854
      %v1943 = vpack.c.b16 %v1857, %v1856
      %v1944 = vpack.c.b16 %v1859, %v1858
      %v1945 = vpack.c.b16 %v1861, %v1860
      %v1946 = vpack.c.b16 %v1863, %v1862
      %v1947 = vpack.c.b16 %v1865, %v1864
      %v1948 = vpack.c.b16 %v1867, %v1866
      %v1949 = vpack.c.b16 %v1869, %v1868
      %v1950 = vpack.c.b16 %v1871, %v1870
      %v1951 = vpack.c.b16 %v1873, %v1872
      %v1952 = vpack.c.b16 %v1875, %v1874
      %v1953 = vpack.c.b16 %v1877, %v1876
      %v1954 = vpack.c.b16 %v1879, %v1878
      %v1955 = vpack.c.b16 %v1881, %v1880
      %v1956 = vpack.c.b16 %v1883, %v1882
      %v1957 = vpack.c.b16 %v1885, %v1884
      %v1958 = vpack.c.b16 %v1887, %v1886
      %v1959 = vpack.c.b16 %v1889, %v1888
      %v1960 = vpack.c.b16 %v1891, %v1890
      %v1961 = vpack.c.b16 %v1893, %v1892
      %v1962 = vpack.c.b16 %v1895, %v1894
      %v1963 = vpack.c.b16 %v1897, %v1896
      %v1964 = vpack.c.b16 %v1899, %v1898
      %v1965 = vpack.c.b16 %v1901, %v1900
      %v1970 = vunpack.c.l.b16 %v351
      %v1971 = vunpack.c.l.b16 %v352
      %v1972 = vunpack.c.l.b16 %v353
      %v1973 = vunpack.c.l.b16 %v354
      %v1974 = vpack.c.b16 %v1971, %v1970
      %v1975 = vpack.c.b16 %v1973, %v1972
      %vm1978 = vcmask 261120
      %v1980 = vsel %vm1978, %v1902, 0
      %v1983 = vsel %vm1978, %v1903, 0
      %v1986 = vsel %vm1978, %v1904, 0
      %v1989 = vsel %vm1978, %v1905, 0
      %v1992 = vsel %vm1978, %v1906, 0
      %v1995 = vsel %vm1978, %v1907, 0
      %v1998 = vsel %vm1978, %v1908, 0
      %v2001 = vsel %vm1978, %v1909, 0
      %v2004 = vsel %vm1978, %v1910, 0
      %v2007 = vsel %vm1978, %v1911, 0
      %v2010 = vsel %vm1978, %v1912, 0
      %v2013 = vsel %vm1978, %v1913, 0
      %v2016 = vsel %vm1978, %v1914, 0
      %v2019 = vsel %vm1978, %v1915, 0
      %v2022 = vsel %vm1978, %v1916, 0
      %v2025 = vsel %vm1978, %v1917, 0
      %v2028 = vsel %vm1978, %v1918, 0
      %v2031 = vsel %vm1978, %v1919, 0
      %v2034 = vsel %vm1978, %v1920, 0
      %v2037 = vsel %vm1978, %v1921, 0
      %v2040 = vsel %vm1978, %v1922, 0
      %v2043 = vsel %vm1978, %v1923, 0
      %v2046 = vsel %vm1978, %v1924, 0
      %v2049 = vsel %vm1978, %v1925, 0
      %v2052 = vsel %vm1978, %v1926, 0
      %v2055 = vsel %vm1978, %v1927, 0
      %v2058 = vsel %vm1978, %v1928, 0
      %v2061 = vsel %vm1978, %v1929, 0
      %v2064 = vsel %vm1978, %v1930, 0
      %v2067 = vsel %vm1978, %v1931, 0
      %v2070 = vsel %vm1978, %v1932, 0
      %v2073 = vsel %vm1978, %v1933, 0
      %v2076 = vsel %vm1978, %v1934, 0
      %v2079 = vsel %vm1978, %v1935, 0
      %v2082 = vsel %vm1978, %v1936, 0
      %v2085 = vsel %vm1978, %v1937, 0
      %v2088 = vsel %vm1978, %v1938, 0
      %v2091 = vsel %vm1978, %v1939, 0
      %v2094 = vsel %vm1978, %v1940, 0
      %v2097 = vsel %vm1978, %v1941, 0
      %v2100 = vsel %vm1978, %v1942, 0
      %v2103 = vsel %vm1978, %v1943, 0
      %v2106 = vsel %vm1978, %v1944, 0
      %v2109 = vsel %vm1978, %v1945, 0
      %v2112 = vsel %vm1978, %v1946, 0
      %v2115 = vsel %vm1978, %v1947, 0
      %v2118 = vsel %vm1978, %v1948, 0
      %v2121 = vsel %vm1978, %v1949, 0
      %v2124 = vsel %vm1978, %v1950, 0
      %v2127 = vsel %vm1978, %v1951, 0
      %v2130 = vsel %vm1978, %v1952, 0
      %v2133 = vsel %vm1978, %v1953, 0
      %v2136 = vsel %vm1978, %v1954, 0
      %v2139 = vsel %vm1978, %v1955, 0
      %v2142 = vsel %vm1978, %v1956, 0
      %v2145 = vsel %vm1978, %v1957, 0
      %v2148 = vsel %vm1978, %v1958, 0
      %v2151 = vsel %vm1978, %v1959, 0
      %v2154 = vsel %vm1978, %v1960, 0
      %v2157 = vsel %vm1978, %v1961, 0
      %v2160 = vsel %vm1978, %v1962, 0
      %v2163 = vsel %vm1978, %v1963, 0
      %v2166 = vsel %vm1978, %v1964, 0
      %v2169 = vsel %vm1978, %v1965, 0
      %2171 = vmatprep.subr.bf16.mxu0 0
      %2172 = vmatpush1.bf16.msra.mxu0 0
      %2173 = vmatprep.subr.bf16.mxu0 0
      %2174 = vmatpush1.bf16.msra.mxu0 0
      %2175 = vmatprep.subr.bf16.mxu0 0
      %2176 = vmatpush1.bf16.msra.mxu0 0
      %2177 = vmatprep.subr.bf16.mxu0 0
      %2178 = vmatpush1.bf16.msra.mxu0 0
      %2179 = vmatprep.subr.bf16.mxu0 0
      %2180 = vmatpush1.bf16.msra.mxu0 0
      %2181 = vmatprep.subr.bf16.mxu0 0
      %2182 = vmatpush1.bf16.msra.mxu0 0
      %2183 = vmatprep.subr.bf16.mxu0 0
      %2184 = vmatpush1.bf16.msra.mxu0 %v1975
      %2185 = vmatprep.subr.bf16.mxu0 0
      %2186 = vmatpush1.bf16.msra.mxu0 %v1974
      %2187 = vmatprep.subr.bf16.mxu0 0
      %2188 = vmatpush2.bf16.msra.mxu0 0
      %2189 = vmatprep.subr.bf16.mxu0 0
      %2190 = vmatpush2.bf16.msra.mxu0 0
      %2191 = vmatprep.subr.bf16.mxu0 0
      %2192 = vmatpush2.bf16.msra.mxu0 0
      %2193 = vmatprep.subr.bf16.mxu0 0
      %2194 = vmatpush2.bf16.msra.mxu0 0
      %2195 = vmatprep.subr.bf16.mxu0 0
      %2196 = vmatpush2.bf16.msra.mxu0 0
      %2197 = vmatprep.subr.bf16.mxu0 0
      %2198 = vmatpush2.bf16.msra.mxu0 0
      %2199 = vmatprep.subr.bf16.mxu0 0
      %2200 = vmatpush2.bf16.msra.mxu0 0
      %2201 = vmatprep.subr.bf16.mxu0 0
      %2202 = vmatpush2.bf16.msra.mxu0 0
      %2203 = vmatprep.mubr.bf16.mxu0 0
      %2204 = vmatmul.mubr.bf16.gmra.mxu0 %v1980
      %v2205 = vpop.f32.mrf.mxu0
      %v2206 = vadd.f32 0.0, %v2205
      %v2207 = vpop.f32.mrf.mxu0
      %v2208 = vpop.f32.mrf.mxu0
      %v2209 = vadd.f32 0.0, %v2208
      %v2210 = vpop.f32.mrf.mxu0
      %2211 = vmatprep.mubr.bf16.mxu0 0
      %2212 = vmatmul.mubr.bf16.gmra.mxu0 %v1983
      %v2213 = vpop.f32.mrf.mxu0
      %v2214 = vadd.f32 0.0, %v2213
      %v2215 = vpop.f32.mrf.mxu0
      %v2216 = vpop.f32.mrf.mxu0
      %v2217 = vadd.f32 0.0, %v2216
      %v2218 = vpop.f32.mrf.mxu0
      %2219 = vmatprep.mubr.bf16.mxu0 0
      %2220 = vmatmul.mubr.bf16.gmra.mxu0 %v1986
      %v2221 = vpop.f32.mrf.mxu0
      %v2222 = vadd.f32 0.0, %v2221
      %v2223 = vpop.f32.mrf.mxu0
      %v2224 = vpop.f32.mrf.mxu0
      %v2225 = vadd.f32 0.0, %v2224
      %v2226 = vpop.f32.mrf.mxu0
      %2227 = vmatprep.mubr.bf16.mxu0 0
      %2228 = vmatmul.mubr.bf16.gmra.mxu0 %v1989
      %v2229 = vpop.f32.mrf.mxu0
      %v2230 = vadd.f32 0.0, %v2229
      %v2231 = vpop.f32.mrf.mxu0
      %v2232 = vpop.f32.mrf.mxu0
      %v2233 = vadd.f32 0.0, %v2232
      %v2234 = vpop.f32.mrf.mxu0
      %2235 = vmatprep.mubr.bf16.mxu0 0
      %2236 = vmatmul.mubr.bf16.gmra.mxu0 %v1992
      %v2237 = vpop.f32.mrf.mxu0
      %v2238 = vadd.f32 0.0, %v2237
      %v2239 = vpop.f32.mrf.mxu0
      %v2240 = vpop.f32.mrf.mxu0
      %v2241 = vadd.f32 0.0, %v2240
      %v2242 = vpop.f32.mrf.mxu0
      %2243 = vmatprep.mubr.bf16.mxu0 0
      %2244 = vmatmul.mubr.bf16.gmra.mxu0 %v1995
      %v2245 = vpop.f32.mrf.mxu0
      %v2246 = vadd.f32 0.0, %v2245
      %v2247 = vpop.f32.mrf.mxu0
      %v2248 = vpop.f32.mrf.mxu0
      %v2249 = vadd.f32 0.0, %v2248
      %v2250 = vpop.f32.mrf.mxu0
      %2251 = vmatprep.mubr.bf16.mxu0 0
      %2252 = vmatmul.mubr.bf16.gmra.mxu0 %v1998
      %v2253 = vpop.f32.mrf.mxu0
      %v2254 = vadd.f32 0.0, %v2253
      %v2255 = vpop.f32.mrf.mxu0
      %v2256 = vpop.f32.mrf.mxu0
      %v2257 = vadd.f32 0.0, %v2256
      %v2258 = vpop.f32.mrf.mxu0
      %2259 = vmatprep.mubr.bf16.mxu0 0
      %2260 = vmatmul.mubr.bf16.gmra.mxu0 %v2001
      %v2261 = vpop.f32.mrf.mxu0
      %v2262 = vadd.f32 0.0, %v2261
      %v2263 = vpop.f32.mrf.mxu0
      %v2264 = vpop.f32.mrf.mxu0
      %v2265 = vadd.f32 0.0, %v2264
      %v2266 = vpop.f32.mrf.mxu0
      %2267 = vmatprep.mubr.bf16.mxu0 0
      %2268 = vmatmul.mubr.bf16.gmra.mxu0 %v2004
      %v2269 = vpop.f32.mrf.mxu0
      %v2270 = vadd.f32 0.0, %v2269
      %v2271 = vpop.f32.mrf.mxu0
      %v2272 = vpop.f32.mrf.mxu0
      %v2273 = vadd.f32 0.0, %v2272
      %v2274 = vpop.f32.mrf.mxu0
      %2275 = vmatprep.mubr.bf16.mxu0 0
      %2276 = vmatmul.mubr.bf16.gmra.mxu0 %v2007
      %v2277 = vpop.f32.mrf.mxu0
      %v2278 = vadd.f32 0.0, %v2277
      %v2279 = vpop.f32.mrf.mxu0
      %v2280 = vpop.f32.mrf.mxu0
      %v2281 = vadd.f32 0.0, %v2280
      %v2282 = vpop.f32.mrf.mxu0
      %2283 = vmatprep.mubr.bf16.mxu0 0
      %2284 = vmatmul.mubr.bf16.gmra.mxu0 %v2010
      %v2285 = vpop.f32.mrf.mxu0
      %v2286 = vadd.f32 0.0, %v2285
      %v2287 = vpop.f32.mrf.mxu0
      %v2288 = vpop.f32.mrf.mxu0
      %v2289 = vadd.f32 0.0, %v2288
      %v2290 = vpop.f32.mrf.mxu0
      %2291 = vmatprep.mubr.bf16.mxu0 0
      %2292 = vmatmul.mubr.bf16.gmra.mxu0 %v2013
      %v2293 = vpop.f32.mrf.mxu0
      %v2294 = vadd.f32 0.0, %v2293
      %v2295 = vpop.f32.mrf.mxu0
      %v2296 = vpop.f32.mrf.mxu0
      %v2297 = vadd.f32 0.0, %v2296
      %v2298 = vpop.f32.mrf.mxu0
      %2299 = vmatprep.mubr.bf16.mxu0 0
      %2300 = vmatmul.mubr.bf16.gmra.mxu0 %v2016
      %v2301 = vpop.f32.mrf.mxu0
      %v2302 = vadd.f32 0.0, %v2301
      %v2303 = vpop.f32.mrf.mxu0
      %v2304 = vpop.f32.mrf.mxu0
      %v2305 = vadd.f32 0.0, %v2304
      %v2306 = vpop.f32.mrf.mxu0
      %2307 = vmatprep.mubr.bf16.mxu0 0
      %2308 = vmatmul.mubr.bf16.gmra.mxu0 %v2019
      %v2309 = vpop.f32.mrf.mxu0
      %v2310 = vadd.f32 0.0, %v2309
      %v2311 = vpop.f32.mrf.mxu0
      %v2312 = vpop.f32.mrf.mxu0
      %v2313 = vadd.f32 0.0, %v2312
      %v2314 = vpop.f32.mrf.mxu0
      %2315 = vmatprep.mubr.bf16.mxu0 0
      %2316 = vmatmul.mubr.bf16.gmra.mxu0 %v2022
      %v2317 = vpop.f32.mrf.mxu0
      %v2318 = vadd.f32 0.0, %v2317
      %v2319 = vpop.f32.mrf.mxu0
      %v2320 = vpop.f32.mrf.mxu0
      %v2321 = vadd.f32 0.0, %v2320
      %v2322 = vpop.f32.mrf.mxu0
      %2323 = vmatprep.mubr.bf16.mxu0 0
      %2324 = vmatmul.mubr.bf16.gmra.mxu0 %v2025
      %v2325 = vpop.f32.mrf.mxu0
      %v2326 = vadd.f32 0.0, %v2325
      %v2327 = vpop.f32.mrf.mxu0
      %v2328 = vpop.f32.mrf.mxu0
      %v2329 = vadd.f32 0.0, %v2328
      %v2330 = vpop.f32.mrf.mxu0
      %2331 = vmatprep.mubr.bf16.mxu0 0
      %2332 = vmatmul.mubr.bf16.gmra.mxu0 %v2028
      %v2333 = vpop.f32.mrf.mxu0
      %v2334 = vadd.f32 0.0, %v2333
      %v2335 = vpop.f32.mrf.mxu0
      %v2336 = vpop.f32.mrf.mxu0
      %v2337 = vadd.f32 0.0, %v2336
      %v2338 = vpop.f32.mrf.mxu0
      %2339 = vmatprep.mubr.bf16.mxu0 0
      %2340 = vmatmul.mubr.bf16.gmra.mxu0 %v2031
      %v2341 = vpop.f32.mrf.mxu0
      %v2342 = vadd.f32 0.0, %v2341
      %v2343 = vpop.f32.mrf.mxu0
      %v2344 = vpop.f32.mrf.mxu0
      %v2345 = vadd.f32 0.0, %v2344
      %v2346 = vpop.f32.mrf.mxu0
      %2347 = vmatprep.mubr.bf16.mxu0 0
      %2348 = vmatmul.mubr.bf16.gmra.mxu0 %v2034
      %v2349 = vpop.f32.mrf.mxu0
      %v2350 = vadd.f32 0.0, %v2349
      %v2351 = vpop.f32.mrf.mxu0
      %v2352 = vpop.f32.mrf.mxu0
      %v2353 = vadd.f32 0.0, %v2352
      %v2354 = vpop.f32.mrf.mxu0
      %2355 = vmatprep.mubr.bf16.mxu0 0
      %2356 = vmatmul.mubr.bf16.gmra.mxu0 %v2037
      %v2357 = vpop.f32.mrf.mxu0
      %v2358 = vadd.f32 0.0, %v2357
      %v2359 = vpop.f32.mrf.mxu0
      %v2360 = vpop.f32.mrf.mxu0
      %v2361 = vadd.f32 0.0, %v2360
      %v2362 = vpop.f32.mrf.mxu0
      %2363 = vmatprep.mubr.bf16.mxu0 0
      %2364 = vmatmul.mubr.bf16.gmra.mxu0 %v2040
      %v2365 = vpop.f32.mrf.mxu0
      %v2366 = vadd.f32 0.0, %v2365
      %v2367 = vpop.f32.mrf.mxu0
      %v2368 = vpop.f32.mrf.mxu0
      %v2369 = vadd.f32 0.0, %v2368
      %v2370 = vpop.f32.mrf.mxu0
      %2371 = vmatprep.mubr.bf16.mxu0 0
      %2372 = vmatmul.mubr.bf16.gmra.mxu0 %v2043
      %v2373 = vpop.f32.mrf.mxu0
      %v2374 = vadd.f32 0.0, %v2373
      %v2375 = vpop.f32.mrf.mxu0
      %v2376 = vpop.f32.mrf.mxu0
      %v2377 = vadd.f32 0.0, %v2376
      %v2378 = vpop.f32.mrf.mxu0
      %2379 = vmatprep.mubr.bf16.mxu0 0
      %2380 = vmatmul.mubr.bf16.gmra.mxu0 %v2046
      %v2381 = vpop.f32.mrf.mxu0
      %v2382 = vadd.f32 0.0, %v2381
      %v2383 = vpop.f32.mrf.mxu0
      %v2384 = vpop.f32.mrf.mxu0
      %v2385 = vadd.f32 0.0, %v2384
      %v2386 = vpop.f32.mrf.mxu0
      %2387 = vmatprep.mubr.bf16.mxu0 0
      %2388 = vmatmul.mubr.bf16.gmra.mxu0 %v2049
      %v2389 = vpop.f32.mrf.mxu0
      %v2390 = vadd.f32 0.0, %v2389
      %v2391 = vpop.f32.mrf.mxu0
      %v2392 = vpop.f32.mrf.mxu0
      %v2393 = vadd.f32 0.0, %v2392
      %v2394 = vpop.f32.mrf.mxu0
      %2395 = vmatprep.mubr.bf16.mxu0 0
      %2396 = vmatmul.mubr.bf16.gmra.mxu0 %v2052
      %v2397 = vpop.f32.mrf.mxu0
      %v2398 = vadd.f32 0.0, %v2397
      %v2399 = vpop.f32.mrf.mxu0
      %v2400 = vpop.f32.mrf.mxu0
      %v2401 = vadd.f32 0.0, %v2400
      %v2402 = vpop.f32.mrf.mxu0
      %2403 = vmatprep.mubr.bf16.mxu0 0
      %2404 = vmatmul.mubr.bf16.gmra.mxu0 %v2055
      %v2405 = vpop.f32.mrf.mxu0
      %v2406 = vadd.f32 0.0, %v2405
      %v2407 = vpop.f32.mrf.mxu0
      %v2408 = vpop.f32.mrf.mxu0
      %v2409 = vadd.f32 0.0, %v2408
      %v2410 = vpop.f32.mrf.mxu0
      %2411 = vmatprep.mubr.bf16.mxu0 0
      %2412 = vmatmul.mubr.bf16.gmra.mxu0 %v2058
      %v2413 = vpop.f32.mrf.mxu0
      %v2414 = vadd.f32 0.0, %v2413
      %v2415 = vpop.f32.mrf.mxu0
      %v2416 = vpop.f32.mrf.mxu0
      %v2417 = vadd.f32 0.0, %v2416
      %v2418 = vpop.f32.mrf.mxu0
      %2419 = vmatprep.mubr.bf16.mxu0 0
      %2420 = vmatmul.mubr.bf16.gmra.mxu0 %v2061
      %v2421 = vpop.f32.mrf.mxu0
      %v2422 = vadd.f32 0.0, %v2421
      %v2423 = vpop.f32.mrf.mxu0
      %v2424 = vpop.f32.mrf.mxu0
      %v2425 = vadd.f32 0.0, %v2424
      %v2426 = vpop.f32.mrf.mxu0
      %2427 = vmatprep.mubr.bf16.mxu0 0
      %2428 = vmatmul.mubr.bf16.gmra.mxu0 %v2064
      %v2429 = vpop.f32.mrf.mxu0
      %v2430 = vadd.f32 0.0, %v2429
      %v2431 = vpop.f32.mrf.mxu0
      %v2432 = vpop.f32.mrf.mxu0
      %v2433 = vadd.f32 0.0, %v2432
      %v2434 = vpop.f32.mrf.mxu0
      %2435 = vmatprep.mubr.bf16.mxu0 0
      %2436 = vmatmul.mubr.bf16.gmra.mxu0 %v2067
      %v2437 = vpop.f32.mrf.mxu0
      %v2438 = vadd.f32 0.0, %v2437
      %v2439 = vpop.f32.mrf.mxu0
      %v2440 = vpop.f32.mrf.mxu0
      %v2441 = vadd.f32 0.0, %v2440
      %v2442 = vpop.f32.mrf.mxu0
      %2443 = vmatprep.mubr.bf16.mxu0 0
      %2444 = vmatmul.mubr.bf16.gmra.mxu0 %v2070
      %v2445 = vpop.f32.mrf.mxu0
      %v2446 = vadd.f32 0.0, %v2445
      %v2447 = vpop.f32.mrf.mxu0
      %v2448 = vpop.f32.mrf.mxu0
      %v2449 = vadd.f32 0.0, %v2448
      %v2450 = vpop.f32.mrf.mxu0
      %2451 = vmatprep.mubr.bf16.mxu0 0
      %2452 = vmatmul.mubr.bf16.gmra.mxu0 %v2073
      %v2453 = vpop.f32.mrf.mxu0
      %v2454 = vadd.f32 0.0, %v2453
      %v2455 = vpop.f32.mrf.mxu0
      %v2456 = vpop.f32.mrf.mxu0
      %v2457 = vadd.f32 0.0, %v2456
      %v2458 = vpop.f32.mrf.mxu0
      %2459 = vmatprep.mubr.bf16.mxu0 0
      %2460 = vmatmul.mubr.bf16.gmra.mxu0 %v2076
      %v2461 = vpop.f32.mrf.mxu0
      %v2462 = vadd.f32 0.0, %v2461
      %v2463 = vpop.f32.mrf.mxu0
      %v2464 = vpop.f32.mrf.mxu0
      %v2465 = vadd.f32 0.0, %v2464
      %v2466 = vpop.f32.mrf.mxu0
      %2467 = vmatprep.mubr.bf16.mxu0 0
      %2468 = vmatmul.mubr.bf16.gmra.mxu0 %v2079
      %v2469 = vpop.f32.mrf.mxu0
      %v2470 = vadd.f32 0.0, %v2469
      %v2471 = vpop.f32.mrf.mxu0
      %v2472 = vpop.f32.mrf.mxu0
      %v2473 = vadd.f32 0.0, %v2472
      %v2474 = vpop.f32.mrf.mxu0
      %2475 = vmatprep.mubr.bf16.mxu0 0
      %2476 = vmatmul.mubr.bf16.gmra.mxu0 %v2082
      %v2477 = vpop.f32.mrf.mxu0
      %v2478 = vadd.f32 0.0, %v2477
      %v2479 = vpop.f32.mrf.mxu0
      %v2480 = vpop.f32.mrf.mxu0
      %v2481 = vadd.f32 0.0, %v2480
      %v2482 = vpop.f32.mrf.mxu0
      %2483 = vmatprep.mubr.bf16.mxu0 0
      %2484 = vmatmul.mubr.bf16.gmra.mxu0 %v2085
      %v2485 = vpop.f32.mrf.mxu0
      %v2486 = vadd.f32 0.0, %v2485
      %v2487 = vpop.f32.mrf.mxu0
      %v2488 = vpop.f32.mrf.mxu0
      %v2489 = vadd.f32 0.0, %v2488
      %v2490 = vpop.f32.mrf.mxu0
      %2491 = vmatprep.mubr.bf16.mxu0 0
      %2492 = vmatmul.mubr.bf16.gmra.mxu0 %v2088
      %v2493 = vpop.f32.mrf.mxu0
      %v2494 = vadd.f32 0.0, %v2493
      %v2495 = vpop.f32.mrf.mxu0
      %v2496 = vpop.f32.mrf.mxu0
      %v2497 = vadd.f32 0.0, %v2496
      %v2498 = vpop.f32.mrf.mxu0
      %2499 = vmatprep.mubr.bf16.mxu0 0
      %2500 = vmatmul.mubr.bf16.gmra.mxu0 %v2091
      %v2501 = vpop.f32.mrf.mxu0
      %v2502 = vadd.f32 0.0, %v2501
      %v2503 = vpop.f32.mrf.mxu0
      %v2504 = vpop.f32.mrf.mxu0
      %v2505 = vadd.f32 0.0, %v2504
      %v2506 = vpop.f32.mrf.mxu0
      %2507 = vmatprep.mubr.bf16.mxu0 0
      %2508 = vmatmul.mubr.bf16.gmra.mxu0 %v2094
      %v2509 = vpop.f32.mrf.mxu0
      %v2510 = vadd.f32 0.0, %v2509
      %v2511 = vpop.f32.mrf.mxu0
      %v2512 = vpop.f32.mrf.mxu0
      %v2513 = vadd.f32 0.0, %v2512
      %v2514 = vpop.f32.mrf.mxu0
      %2515 = vmatprep.mubr.bf16.mxu0 0
      %2516 = vmatmul.mubr.bf16.gmra.mxu0 %v2097
      %v2517 = vpop.f32.mrf.mxu0
      %v2518 = vadd.f32 0.0, %v2517
      %v2519 = vpop.f32.mrf.mxu0
      %v2520 = vpop.f32.mrf.mxu0
      %v2521 = vadd.f32 0.0, %v2520
      %v2522 = vpop.f32.mrf.mxu0
      %2523 = vmatprep.mubr.bf16.mxu0 0
      %2524 = vmatmul.mubr.bf16.gmra.mxu0 %v2100
      %v2525 = vpop.f32.mrf.mxu0
      %v2526 = vadd.f32 0.0, %v2525
      %v2527 = vpop.f32.mrf.mxu0
      %v2528 = vpop.f32.mrf.mxu0
      %v2529 = vadd.f32 0.0, %v2528
      %v2530 = vpop.f32.mrf.mxu0
      %2531 = vmatprep.mubr.bf16.mxu0 0
      %2532 = vmatmul.mubr.bf16.gmra.mxu0 %v2103
      %v2533 = vpop.f32.mrf.mxu0
      %v2534 = vadd.f32 0.0, %v2533
      %v2535 = vpop.f32.mrf.mxu0
      %v2536 = vpop.f32.mrf.mxu0
      %v2537 = vadd.f32 0.0, %v2536
      %v2538 = vpop.f32.mrf.mxu0
      %2539 = vmatprep.mubr.bf16.mxu0 0
      %2540 = vmatmul.mubr.bf16.gmra.mxu0 %v2106
      %v2541 = vpop.f32.mrf.mxu0
      %v2542 = vadd.f32 0.0, %v2541
      %v2543 = vpop.f32.mrf.mxu0
      %v2544 = vpop.f32.mrf.mxu0
      %v2545 = vadd.f32 0.0, %v2544
      %v2546 = vpop.f32.mrf.mxu0
      %2547 = vmatprep.mubr.bf16.mxu0 0
      %2548 = vmatmul.mubr.bf16.gmra.mxu0 %v2109
      %v2549 = vpop.f32.mrf.mxu0
      %v2550 = vadd.f32 0.0, %v2549
      %v2551 = vpop.f32.mrf.mxu0
      %v2552 = vpop.f32.mrf.mxu0
      %v2553 = vadd.f32 0.0, %v2552
      %v2554 = vpop.f32.mrf.mxu0
      %2555 = vmatprep.mubr.bf16.mxu0 0
      %2556 = vmatmul.mubr.bf16.gmra.mxu0 %v2112
      %v2557 = vpop.f32.mrf.mxu0
      %v2558 = vadd.f32 0.0, %v2557
      %v2559 = vpop.f32.mrf.mxu0
      %v2560 = vpop.f32.mrf.mxu0
      %v2561 = vadd.f32 0.0, %v2560
      %v2562 = vpop.f32.mrf.mxu0
      %2563 = vmatprep.mubr.bf16.mxu0 0
      %2564 = vmatmul.mubr.bf16.gmra.mxu0 %v2115
      %v2565 = vpop.f32.mrf.mxu0
      %v2566 = vadd.f32 0.0, %v2565
      %v2567 = vpop.f32.mrf.mxu0
      %v2568 = vpop.f32.mrf.mxu0
      %v2569 = vadd.f32 0.0, %v2568
      %v2570 = vpop.f32.mrf.mxu0
      %2571 = vmatprep.mubr.bf16.mxu0 0
      %2572 = vmatmul.mubr.bf16.gmra.mxu0 %v2118
      %v2573 = vpop.f32.mrf.mxu0
      %v2574 = vadd.f32 0.0, %v2573
      %v2575 = vpop.f32.mrf.mxu0
      %v2576 = vpop.f32.mrf.mxu0
      %v2577 = vadd.f32 0.0, %v2576
      %v2578 = vpop.f32.mrf.mxu0
      %2579 = vmatprep.mubr.bf16.mxu0 0
      %2580 = vmatmul.mubr.bf16.gmra.mxu0 %v2121
      %v2581 = vpop.f32.mrf.mxu0
      %v2582 = vadd.f32 0.0, %v2581
      %v2583 = vpop.f32.mrf.mxu0
      %v2584 = vpop.f32.mrf.mxu0
      %v2585 = vadd.f32 0.0, %v2584
      %v2586 = vpop.f32.mrf.mxu0
      %2587 = vmatprep.mubr.bf16.mxu0 0
      %2588 = vmatmul.mubr.bf16.gmra.mxu0 %v2124
      %v2589 = vpop.f32.mrf.mxu0
      %v2590 = vadd.f32 0.0, %v2589
      %v2591 = vpop.f32.mrf.mxu0
      %v2592 = vpop.f32.mrf.mxu0
      %v2593 = vadd.f32 0.0, %v2592
      %v2594 = vpop.f32.mrf.mxu0
      %2595 = vmatprep.mubr.bf16.mxu0 0
      %2596 = vmatmul.mubr.bf16.gmra.mxu0 %v2127
      %v2597 = vpop.f32.mrf.mxu0
      %v2598 = vadd.f32 0.0, %v2597
      %v2599 = vpop.f32.mrf.mxu0
      %v2600 = vpop.f32.mrf.mxu0
      %v2601 = vadd.f32 0.0, %v2600
      %v2602 = vpop.f32.mrf.mxu0
      %2603 = vmatprep.mubr.bf16.mxu0 0
      %2604 = vmatmul.mubr.bf16.gmra.mxu0 %v2130
      %v2605 = vpop.f32.mrf.mxu0
      %v2606 = vadd.f32 0.0, %v2605
      %v2607 = vpop.f32.mrf.mxu0
      %v2608 = vpop.f32.mrf.mxu0
      %v2609 = vadd.f32 0.0, %v2608
      %v2610 = vpop.f32.mrf.mxu0
      %2611 = vmatprep.mubr.bf16.mxu0 0
      %2612 = vmatmul.mubr.bf16.gmra.mxu0 %v2133
      %v2613 = vpop.f32.mrf.mxu0
      %v2614 = vadd.f32 0.0, %v2613
      %v2615 = vpop.f32.mrf.mxu0
      %v2616 = vpop.f32.mrf.mxu0
      %v2617 = vadd.f32 0.0, %v2616
      %v2618 = vpop.f32.mrf.mxu0
      %2619 = vmatprep.mubr.bf16.mxu0 0
      %2620 = vmatmul.mubr.bf16.gmra.mxu0 %v2136
      %v2621 = vpop.f32.mrf.mxu0
      %v2622 = vadd.f32 0.0, %v2621
      %v2623 = vpop.f32.mrf.mxu0
      %v2624 = vpop.f32.mrf.mxu0
      %v2625 = vadd.f32 0.0, %v2624
      %v2626 = vpop.f32.mrf.mxu0
      %2627 = vmatprep.mubr.bf16.mxu0 0
      %2628 = vmatmul.mubr.bf16.gmra.mxu0 %v2139
      %v2629 = vpop.f32.mrf.mxu0
      %v2630 = vadd.f32 0.0, %v2629
      %v2631 = vpop.f32.mrf.mxu0
      %v2632 = vpop.f32.mrf.mxu0
      %v2633 = vadd.f32 0.0, %v2632
      %v2634 = vpop.f32.mrf.mxu0
      %2635 = vmatprep.mubr.bf16.mxu0 0
      %2636 = vmatmul.mubr.bf16.gmra.mxu0 %v2142
      %v2637 = vpop.f32.mrf.mxu0
      %v2638 = vadd.f32 0.0, %v2637
      %v2639 = vpop.f32.mrf.mxu0
      %v2640 = vpop.f32.mrf.mxu0
      %v2641 = vadd.f32 0.0, %v2640
      %v2642 = vpop.f32.mrf.mxu0
      %2643 = vmatprep.mubr.bf16.mxu0 0
      %2644 = vmatmul.mubr.bf16.gmra.mxu0 %v2145
      %v2645 = vpop.f32.mrf.mxu0
      %v2646 = vadd.f32 0.0, %v2645
      %v2647 = vpop.f32.mrf.mxu0
      %v2648 = vpop.f32.mrf.mxu0
      %v2649 = vadd.f32 0.0, %v2648
      %v2650 = vpop.f32.mrf.mxu0
      %2651 = vmatprep.mubr.bf16.mxu0 0
      %2652 = vmatmul.mubr.bf16.gmra.mxu0 %v2148
      %v2653 = vpop.f32.mrf.mxu0
      %v2654 = vadd.f32 0.0, %v2653
      %v2655 = vpop.f32.mrf.mxu0
      %v2656 = vpop.f32.mrf.mxu0
      %v2657 = vadd.f32 0.0, %v2656
      %v2658 = vpop.f32.mrf.mxu0
      %2659 = vmatprep.mubr.bf16.mxu0 0
      %2660 = vmatmul.mubr.bf16.gmra.mxu0 %v2151
      %v2661 = vpop.f32.mrf.mxu0
      %v2662 = vadd.f32 0.0, %v2661
      %v2663 = vpop.f32.mrf.mxu0
      %v2664 = vpop.f32.mrf.mxu0
      %v2665 = vadd.f32 0.0, %v2664
      %v2666 = vpop.f32.mrf.mxu0
      %2667 = vmatprep.mubr.bf16.mxu0 0
      %2668 = vmatmul.mubr.bf16.gmra.mxu0 %v2154
      %v2669 = vpop.f32.mrf.mxu0
      %v2670 = vadd.f32 0.0, %v2669
      %v2671 = vpop.f32.mrf.mxu0
      %v2672 = vpop.f32.mrf.mxu0
      %v2673 = vadd.f32 0.0, %v2672
      %v2674 = vpop.f32.mrf.mxu0
      %2675 = vmatprep.mubr.bf16.mxu0 0
      %2676 = vmatmul.mubr.bf16.gmra.mxu0 %v2157
      %v2677 = vpop.f32.mrf.mxu0
      %v2678 = vadd.f32 0.0, %v2677
      %v2679 = vpop.f32.mrf.mxu0
      %v2680 = vpop.f32.mrf.mxu0
      %v2681 = vadd.f32 0.0, %v2680
      %v2682 = vpop.f32.mrf.mxu0
      %2683 = vmatprep.mubr.bf16.mxu0 0
      %2684 = vmatmul.mubr.bf16.gmra.mxu0 %v2160
      %v2685 = vpop.f32.mrf.mxu0
      %v2686 = vadd.f32 0.0, %v2685
      %v2687 = vpop.f32.mrf.mxu0
      %v2688 = vpop.f32.mrf.mxu0
      %v2689 = vadd.f32 0.0, %v2688
      %v2690 = vpop.f32.mrf.mxu0
      %2691 = vmatprep.mubr.bf16.mxu0 0
      %2692 = vmatmul.mubr.bf16.gmra.mxu0 %v2163
      %v2693 = vpop.f32.mrf.mxu0
      %v2694 = vadd.f32 0.0, %v2693
      %v2695 = vpop.f32.mrf.mxu0
      %v2696 = vpop.f32.mrf.mxu0
      %v2697 = vadd.f32 0.0, %v2696
      %v2698 = vpop.f32.mrf.mxu0
      %2699 = vmatprep.mubr.bf16.mxu0 0
      %2700 = vmatmul.mubr.bf16.gmra.mxu0 %v2166
      %v2701 = vpop.f32.mrf.mxu0
      %v2702 = vadd.f32 0.0, %v2701
      %v2703 = vpop.f32.mrf.mxu0
      %v2704 = vpop.f32.mrf.mxu0
      %v2705 = vadd.f32 0.0, %v2704
      %v2706 = vpop.f32.mrf.mxu0
      %2707 = vmatprep.mubr.bf16.mxu0 0
      %2708 = vmatmul.mubr.bf16.gmra.mxu0 %v2169
      %v2709 = vpop.f32.mrf.mxu0
      %v2710 = vadd.f32 0.0, %v2709
      %v2711 = vpop.f32.mrf.mxu0
      %v2712 = vpop.f32.mrf.mxu0
      %v2713 = vadd.f32 0.0, %v2712
      %v2714 = vpop.f32.mrf.mxu0
      %2715 = vdwg.mxu0
      %v2844 = vunpack.c.l.b16 %v182
      %v2845 = vunpack.c.l.b16 %v183
      %v2846 = vunpack.c.l.b16 %v184
      %v2847 = vunpack.c.l.b16 %v185
      %v2848 = vunpack.c.l.b16 %v187
      %v2849 = vunpack.c.l.b16 %v188
      %v2850 = vunpack.c.l.b16 %v189
      %v2851 = vunpack.c.l.b16 %v190
      %v2852 = vunpack.c.l.b16 %v192
      %v2853 = vunpack.c.l.b16 %v193
      %v2854 = vunpack.c.l.b16 %v194
      %v2855 = vunpack.c.l.b16 %v195
      %v2856 = vunpack.c.l.b16 %v197
      %v2857 = vunpack.c.l.b16 %v198
      %v2858 = vunpack.c.l.b16 %v199
      %v2859 = vunpack.c.l.b16 %v200
      %v2860 = vunpack.c.l.b16 %v202
      %v2861 = vunpack.c.l.b16 %v203
      %v2862 = vunpack.c.l.b16 %v204
      %v2863 = vunpack.c.l.b16 %v205
      %v2864 = vunpack.c.l.b16 %v207
      %v2865 = vunpack.c.l.b16 %v208
      %v2866 = vunpack.c.l.b16 %v209
      %v2867 = vunpack.c.l.b16 %v210
      %v2868 = vunpack.c.l.b16 %v212
      %v2869 = vunpack.c.l.b16 %v213
      %v2870 = vunpack.c.l.b16 %v214
      %v2871 = vunpack.c.l.b16 %v215
      %v2872 = vunpack.c.l.b16 %v217
      %v2873 = vunpack.c.l.b16 %v218
      %v2874 = vunpack.c.l.b16 %v219
      %v2875 = vunpack.c.l.b16 %v220
      %v2876 = vunpack.c.l.b16 %v222
      %v2877 = vunpack.c.l.b16 %v223
      %v2878 = vunpack.c.l.b16 %v224
      %v2879 = vunpack.c.l.b16 %v225
      %v2880 = vunpack.c.l.b16 %v227
      %v2881 = vunpack.c.l.b16 %v228
      %v2882 = vunpack.c.l.b16 %v229
      %v2883 = vunpack.c.l.b16 %v230
      %v2884 = vunpack.c.l.b16 %v232
      %v2885 = vunpack.c.l.b16 %v233
      %v2886 = vunpack.c.l.b16 %v234
      %v2887 = vunpack.c.l.b16 %v235
      %v2888 = vunpack.c.l.b16 %v237
      %v2889 = vunpack.c.l.b16 %v238
      %v2890 = vunpack.c.l.b16 %v239
      %v2891 = vunpack.c.l.b16 %v240
      %v2892 = vunpack.c.l.b16 %v242
      %v2893 = vunpack.c.l.b16 %v243
      %v2894 = vunpack.c.l.b16 %v244
      %v2895 = vunpack.c.l.b16 %v245
      %v2896 = vunpack.c.l.b16 %v247
      %v2897 = vunpack.c.l.b16 %v248
      %v2898 = vunpack.c.l.b16 %v249
      %v2899 = vunpack.c.l.b16 %v250
      %v2900 = vunpack.c.l.b16 %v252
      %v2901 = vunpack.c.l.b16 %v253
      %v2902 = vunpack.c.l.b16 %v254
      %v2903 = vunpack.c.l.b16 %v255
      %v2904 = vunpack.c.l.b16 %v257
      %v2905 = vunpack.c.l.b16 %v258
      %v2906 = vunpack.c.l.b16 %v259
      %v2907 = vunpack.c.l.b16 %v260
      %v2908 = vunpack.c.l.b16 %v262
      %v2909 = vunpack.c.l.b16 %v263
      %v2910 = vunpack.c.l.b16 %v264
      %v2911 = vunpack.c.l.b16 %v265
      %v2912 = vunpack.c.l.b16 %v267
      %v2913 = vunpack.c.l.b16 %v268
      %v2914 = vunpack.c.l.b16 %v269
      %v2915 = vunpack.c.l.b16 %v270
      %v2916 = vunpack.c.l.b16 %v272
      %v2917 = vunpack.c.l.b16 %v273
      %v2918 = vunpack.c.l.b16 %v274
      %v2919 = vunpack.c.l.b16 %v275
      %v2920 = vunpack.c.l.b16 %v277
      %v2921 = vunpack.c.l.b16 %v278
      %v2922 = vunpack.c.l.b16 %v279
      %v2923 = vunpack.c.l.b16 %v280
      %v2924 = vunpack.c.l.b16 %v282
      %v2925 = vunpack.c.l.b16 %v283
      %v2926 = vunpack.c.l.b16 %v284
      %v2927 = vunpack.c.l.b16 %v285
      %v2928 = vunpack.c.l.b16 %v287
      %v2929 = vunpack.c.l.b16 %v288
      %v2930 = vunpack.c.l.b16 %v289
      %v2931 = vunpack.c.l.b16 %v290
      %v2932 = vunpack.c.l.b16 %v292
      %v2933 = vunpack.c.l.b16 %v293
      %v2934 = vunpack.c.l.b16 %v294
      %v2935 = vunpack.c.l.b16 %v295
      %v2936 = vunpack.c.l.b16 %v297
      %v2937 = vunpack.c.l.b16 %v298
      %v2938 = vunpack.c.l.b16 %v299
      %v2939 = vunpack.c.l.b16 %v300
      %v2940 = vunpack.c.l.b16 %v302
      %v2941 = vunpack.c.l.b16 %v303
      %v2942 = vunpack.c.l.b16 %v304
      %v2943 = vunpack.c.l.b16 %v305
      %v2944 = vunpack.c.l.b16 %v307
      %v2945 = vunpack.c.l.b16 %v308
      %v2946 = vunpack.c.l.b16 %v309
      %v2947 = vunpack.c.l.b16 %v310
      %v2948 = vunpack.c.l.b16 %v312
      %v2949 = vunpack.c.l.b16 %v313
      %v2950 = vunpack.c.l.b16 %v314
      %v2951 = vunpack.c.l.b16 %v315
      %v2952 = vunpack.c.l.b16 %v317
      %v2953 = vunpack.c.l.b16 %v318
      %v2954 = vunpack.c.l.b16 %v319
      %v2955 = vunpack.c.l.b16 %v320
      %v2956 = vunpack.c.l.b16 %v322
      %v2957 = vunpack.c.l.b16 %v323
      %v2958 = vunpack.c.l.b16 %v324
      %v2959 = vunpack.c.l.b16 %v325
      %v2960 = vunpack.c.l.b16 %v327
      %v2961 = vunpack.c.l.b16 %v328
      %v2962 = vunpack.c.l.b16 %v329
      %v2963 = vunpack.c.l.b16 %v330
      %v2964 = vunpack.c.l.b16 %v332
      %v2965 = vunpack.c.l.b16 %v333
      %v2966 = vunpack.c.l.b16 %v334
      %v2967 = vunpack.c.l.b16 %v335
      %v2968 = vunpack.c.l.b16 %v337
      %v2969 = vunpack.c.l.b16 %v338
      %v2970 = vunpack.c.l.b16 %v339
      %v2971 = vunpack.c.l.b16 %v340
      %v2972 = vpack.c.b16 %v2845, %v2844
      %v2973 = vpack.c.b16 %v2847, %v2846
      %v2974 = vpack.c.b16 %v2849, %v2848
      %v2975 = vpack.c.b16 %v2851, %v2850
      %v2976 = vpack.c.b16 %v2853, %v2852
      %v2977 = vpack.c.b16 %v2855, %v2854
      %v2978 = vpack.c.b16 %v2857, %v2856
      %v2979 = vpack.c.b16 %v2859, %v2858
      %v2980 = vpack.c.b16 %v2861, %v2860
      %v2981 = vpack.c.b16 %v2863, %v2862
      %v2982 = vpack.c.b16 %v2865, %v2864
      %v2983 = vpack.c.b16 %v2867, %v2866
      %v2984 = vpack.c.b16 %v2869, %v2868
      %v2985 = vpack.c.b16 %v2871, %v2870
      %v2986 = vpack.c.b16 %v2873, %v2872
      %v2987 = vpack.c.b16 %v2875, %v2874
      %v2988 = vpack.c.b16 %v2877, %v2876
      %v2989 = vpack.c.b16 %v2879, %v2878
      %v2990 = vpack.c.b16 %v2881, %v2880
      %v2991 = vpack.c.b16 %v2883, %v2882
      %v2992 = vpack.c.b16 %v2885, %v2884
      %v2993 = vpack.c.b16 %v2887, %v2886
      %v2994 = vpack.c.b16 %v2889, %v2888
      %v2995 = vpack.c.b16 %v2891, %v2890
      %v2996 = vpack.c.b16 %v2893, %v2892
      %v2997 = vpack.c.b16 %v2895, %v2894
      %v2998 = vpack.c.b16 %v2897, %v2896
      %v2999 = vpack.c.b16 %v2899, %v2898
      %v3000 = vpack.c.b16 %v2901, %v2900
      %v3001 = vpack.c.b16 %v2903, %v2902
      %v3002 = vpack.c.b16 %v2905, %v2904
      %v3003 = vpack.c.b16 %v2907, %v2906
      %v3004 = vpack.c.b16 %v2909, %v2908
      %v3005 = vpack.c.b16 %v2911, %v2910
      %v3006 = vpack.c.b16 %v2913, %v2912
      %v3007 = vpack.c.b16 %v2915, %v2914
      %v3008 = vpack.c.b16 %v2917, %v2916
      %v3009 = vpack.c.b16 %v2919, %v2918
      %v3010 = vpack.c.b16 %v2921, %v2920
      %v3011 = vpack.c.b16 %v2923, %v2922
      %v3012 = vpack.c.b16 %v2925, %v2924
      %v3013 = vpack.c.b16 %v2927, %v2926
      %v3014 = vpack.c.b16 %v2929, %v2928
      %v3015 = vpack.c.b16 %v2931, %v2930
      %v3016 = vpack.c.b16 %v2933, %v2932
      %v3017 = vpack.c.b16 %v2935, %v2934
      %v3018 = vpack.c.b16 %v2937, %v2936
      %v3019 = vpack.c.b16 %v2939, %v2938
      %v3020 = vpack.c.b16 %v2941, %v2940
      %v3021 = vpack.c.b16 %v2943, %v2942
      %v3022 = vpack.c.b16 %v2945, %v2944
      %v3023 = vpack.c.b16 %v2947, %v2946
      %v3024 = vpack.c.b16 %v2949, %v2948
      %v3025 = vpack.c.b16 %v2951, %v2950
      %v3026 = vpack.c.b16 %v2953, %v2952
      %v3027 = vpack.c.b16 %v2955, %v2954
      %v3028 = vpack.c.b16 %v2957, %v2956
      %v3029 = vpack.c.b16 %v2959, %v2958
      %v3030 = vpack.c.b16 %v2961, %v2960
      %v3031 = vpack.c.b16 %v2963, %v2962
      %v3032 = vpack.c.b16 %v2965, %v2964
      %v3033 = vpack.c.b16 %v2967, %v2966
      %v3034 = vpack.c.b16 %v2969, %v2968
      %v3035 = vpack.c.b16 %v2971, %v2970
      %v3040 = vunpack.c.l.b16 %v347
      %v3041 = vunpack.c.l.b16 %v348
      %v3042 = vunpack.c.l.b16 %v349
      %v3043 = vunpack.c.l.b16 %v350
      %v3044 = vpack.c.b16 %v3041, %v3040
      %v3045 = vpack.c.b16 %v3043, %v3042
      %v3049 = vsel %vm1978, %v2972, 0
      %v3052 = vsel %vm1978, %v2973, 0
      %v3055 = vsel %vm1978, %v2974, 0
      %v3058 = vsel %vm1978, %v2975, 0
      %v3061 = vsel %vm1978, %v2976, 0
      %v3064 = vsel %vm1978, %v2977, 0
      %v3067 = vsel %vm1978, %v2978, 0
      %v3070 = vsel %vm1978, %v2979, 0
      %v3073 = vsel %vm1978, %v2980, 0
      %v3076 = vsel %vm1978, %v2981, 0
      %v3079 = vsel %vm1978, %v2982, 0
      %v3082 = vsel %vm1978, %v2983, 0
      %v3085 = vsel %vm1978, %v2984, 0
      %v3088 = vsel %vm1978, %v2985, 0
      %v3091 = vsel %vm1978, %v2986, 0
      %v3094 = vsel %vm1978, %v2987, 0
      %v3097 = vsel %vm1978, %v2988, 0
      %v3100 = vsel %vm1978, %v2989, 0
      %v3103 = vsel %vm1978, %v2990, 0
      %v3106 = vsel %vm1978, %v2991, 0
      %v3109 = vsel %vm1978, %v2992, 0
      %v3112 = vsel %vm1978, %v2993, 0
      %v3115 = vsel %vm1978, %v2994, 0
      %v3118 = vsel %vm1978, %v2995, 0
      %v3121 = vsel %vm1978, %v2996, 0
      %v3124 = vsel %vm1978, %v2997, 0
      %v3127 = vsel %vm1978, %v2998, 0
      %v3130 = vsel %vm1978, %v2999, 0
      %v3133 = vsel %vm1978, %v3000, 0
      %v3136 = vsel %vm1978, %v3001, 0
      %v3139 = vsel %vm1978, %v3002, 0
      %v3142 = vsel %vm1978, %v3003, 0
      %v3145 = vsel %vm1978, %v3004, 0
      %v3148 = vsel %vm1978, %v3005, 0
      %v3151 = vsel %vm1978, %v3006, 0
      %v3154 = vsel %vm1978, %v3007, 0
      %v3157 = vsel %vm1978, %v3008, 0
      %v3160 = vsel %vm1978, %v3009, 0
      %v3163 = vsel %vm1978, %v3010, 0
      %v3166 = vsel %vm1978, %v3011, 0
      %v3169 = vsel %vm1978, %v3012, 0
      %v3172 = vsel %vm1978, %v3013, 0
      %v3175 = vsel %vm1978, %v3014, 0
      %v3178 = vsel %vm1978, %v3015, 0
      %v3181 = vsel %vm1978, %v3016, 0
      %v3184 = vsel %vm1978, %v3017, 0
      %v3187 = vsel %vm1978, %v3018, 0
      %v3190 = vsel %vm1978, %v3019, 0
      %v3193 = vsel %vm1978, %v3020, 0
      %v3196 = vsel %vm1978, %v3021, 0
      %v3199 = vsel %vm1978, %v3022, 0
      %v3202 = vsel %vm1978, %v3023, 0
      %v3205 = vsel %vm1978, %v3024, 0
      %v3208 = vsel %vm1978, %v3025, 0
      %v3211 = vsel %vm1978, %v3026, 0
      %v3214 = vsel %vm1978, %v3027, 0
      %v3217 = vsel %vm1978, %v3028, 0
      %v3220 = vsel %vm1978, %v3029, 0
      %v3223 = vsel %vm1978, %v3030, 0
      %v3226 = vsel %vm1978, %v3031, 0
      %v3229 = vsel %vm1978, %v3032, 0
      %v3232 = vsel %vm1978, %v3033, 0
      %v3235 = vsel %vm1978, %v3034, 0
      %v3238 = vsel %vm1978, %v3035, 0
      %3240 = vmatprep.subr.bf16.mxu0 0
      %3241 = vmatpush1.bf16.msra.mxu0 0
      %3242 = vmatprep.subr.bf16.mxu0 0
      %3243 = vmatpush1.bf16.msra.mxu0 0
      %3244 = vmatprep.subr.bf16.mxu0 0
      %3245 = vmatpush1.bf16.msra.mxu0 0
      %3246 = vmatprep.subr.bf16.mxu0 0
      %3247 = vmatpush1.bf16.msra.mxu0 0
      %3248 = vmatprep.subr.bf16.mxu0 0
      %3249 = vmatpush1.bf16.msra.mxu0 0
      %3250 = vmatprep.subr.bf16.mxu0 0
      %3251 = vmatpush1.bf16.msra.mxu0 0
      %3252 = vmatprep.subr.bf16.mxu0 0
      %3253 = vmatpush1.bf16.msra.mxu0 %v3045
      %3254 = vmatprep.subr.bf16.mxu0 0
      %3255 = vmatpush1.bf16.msra.mxu0 %v3044
      %3256 = vmatprep.subr.bf16.mxu0 0
      %3257 = vmatpush2.bf16.msra.mxu0 0
      %3258 = vmatprep.subr.bf16.mxu0 0
      %3259 = vmatpush2.bf16.msra.mxu0 0
      %3260 = vmatprep.subr.bf16.mxu0 0
      %3261 = vmatpush2.bf16.msra.mxu0 0
      %3262 = vmatprep.subr.bf16.mxu0 0
      %3263 = vmatpush2.bf16.msra.mxu0 0
      %3264 = vmatprep.subr.bf16.mxu0 0
      %3265 = vmatpush2.bf16.msra.mxu0 0
      %3266 = vmatprep.subr.bf16.mxu0 0
      %3267 = vmatpush2.bf16.msra.mxu0 0
      %3268 = vmatprep.subr.bf16.mxu0 0
      %3269 = vmatpush2.bf16.msra.mxu0 0
      %3270 = vmatprep.subr.bf16.mxu0 0
      %3271 = vmatpush2.bf16.msra.mxu0 0
      %3272 = vmatprep.mubr.bf16.mxu0 0
      %3273 = vmatmul.mubr.bf16.gmra.mxu0 %v3049
      %v3274 = vpop.f32.mrf.mxu0
      %v3275 = vadd.f32 %v2206, %v3274
      %v3276 = vpop.f32.mrf.mxu0
      %v3277 = vpop.f32.mrf.mxu0
      %v3278 = vadd.f32 %v2209, %v3277
      %v3279 = vpop.f32.mrf.mxu0
      %3280 = vmatprep.mubr.bf16.mxu0 0
      %3281 = vmatmul.mubr.bf16.gmra.mxu0 %v3052
      %v3282 = vpop.f32.mrf.mxu0
      %v3283 = vadd.f32 %v2214, %v3282
      %v3284 = vpop.f32.mrf.mxu0
      %v3285 = vpop.f32.mrf.mxu0
      %v3286 = vadd.f32 %v2217, %v3285
      %v3287 = vpop.f32.mrf.mxu0
      %3288 = vmatprep.mubr.bf16.mxu0 0
      %3289 = vmatmul.mubr.bf16.gmra.mxu0 %v3055
      %v3290 = vpop.f32.mrf.mxu0
      %v3291 = vadd.f32 %v2222, %v3290
      %v3292 = vpop.f32.mrf.mxu0
      %v3293 = vpop.f32.mrf.mxu0
      %v3294 = vadd.f32 %v2225, %v3293
      %v3295 = vpop.f32.mrf.mxu0
      %3296 = vmatprep.mubr.bf16.mxu0 0
      %3297 = vmatmul.mubr.bf16.gmra.mxu0 %v3058
      %v3298 = vpop.f32.mrf.mxu0
      %v3299 = vadd.f32 %v2230, %v3298
      %v3300 = vpop.f32.mrf.mxu0
      %v3301 = vpop.f32.mrf.mxu0
      %v3302 = vadd.f32 %v2233, %v3301
      %v3303 = vpop.f32.mrf.mxu0
      %3304 = vmatprep.mubr.bf16.mxu0 0
      %3305 = vmatmul.mubr.bf16.gmra.mxu0 %v3061
      %v3306 = vpop.f32.mrf.mxu0
      %v3307 = vadd.f32 %v2238, %v3306
      %v3308 = vpop.f32.mrf.mxu0
      %v3309 = vpop.f32.mrf.mxu0
      %v3310 = vadd.f32 %v2241, %v3309
      %v3311 = vpop.f32.mrf.mxu0
      %3312 = vmatprep.mubr.bf16.mxu0 0
      %3313 = vmatmul.mubr.bf16.gmra.mxu0 %v3064
      %v3314 = vpop.f32.mrf.mxu0
      %v3315 = vadd.f32 %v2246, %v3314
      %v3316 = vpop.f32.mrf.mxu0
      %v3317 = vpop.f32.mrf.mxu0
      %v3318 = vadd.f32 %v2249, %v3317
      %v3319 = vpop.f32.mrf.mxu0
      %3320 = vmatprep.mubr.bf16.mxu0 0
      %3321 = vmatmul.mubr.bf16.gmra.mxu0 %v3067
      %v3322 = vpop.f32.mrf.mxu0
      %v3323 = vadd.f32 %v2254, %v3322
      %v3324 = vpop.f32.mrf.mxu0
      %v3325 = vpop.f32.mrf.mxu0
      %v3326 = vadd.f32 %v2257, %v3325
      %v3327 = vpop.f32.mrf.mxu0
      %3328 = vmatprep.mubr.bf16.mxu0 0
      %3329 = vmatmul.mubr.bf16.gmra.mxu0 %v3070
      %v3330 = vpop.f32.mrf.mxu0
      %v3331 = vadd.f32 %v2262, %v3330
      %v3332 = vpop.f32.mrf.mxu0
      %v3333 = vpop.f32.mrf.mxu0
      %v3334 = vadd.f32 %v2265, %v3333
      %v3335 = vpop.f32.mrf.mxu0
      %3336 = vmatprep.mubr.bf16.mxu0 0
      %3337 = vmatmul.mubr.bf16.gmra.mxu0 %v3073
      %v3338 = vpop.f32.mrf.mxu0
      %v3339 = vadd.f32 %v2270, %v3338
      %v3340 = vpop.f32.mrf.mxu0
      %v3341 = vpop.f32.mrf.mxu0
      %v3342 = vadd.f32 %v2273, %v3341
      %v3343 = vpop.f32.mrf.mxu0
      %3344 = vmatprep.mubr.bf16.mxu0 0
      %3345 = vmatmul.mubr.bf16.gmra.mxu0 %v3076
      %v3346 = vpop.f32.mrf.mxu0
      %v3347 = vadd.f32 %v2278, %v3346
      %v3348 = vpop.f32.mrf.mxu0
      %v3349 = vpop.f32.mrf.mxu0
      %v3350 = vadd.f32 %v2281, %v3349
      %v3351 = vpop.f32.mrf.mxu0
      %3352 = vmatprep.mubr.bf16.mxu0 0
      %3353 = vmatmul.mubr.bf16.gmra.mxu0 %v3079
      %v3354 = vpop.f32.mrf.mxu0
      %v3355 = vadd.f32 %v2286, %v3354
      %v3356 = vpop.f32.mrf.mxu0
      %v3357 = vpop.f32.mrf.mxu0
      %v3358 = vadd.f32 %v2289, %v3357
      %v3359 = vpop.f32.mrf.mxu0
      %3360 = vmatprep.mubr.bf16.mxu0 0
      %3361 = vmatmul.mubr.bf16.gmra.mxu0 %v3082
      %v3362 = vpop.f32.mrf.mxu0
      %v3363 = vadd.f32 %v2294, %v3362
      %v3364 = vpop.f32.mrf.mxu0
      %v3365 = vpop.f32.mrf.mxu0
      %v3366 = vadd.f32 %v2297, %v3365
      %v3367 = vpop.f32.mrf.mxu0
      %3368 = vmatprep.mubr.bf16.mxu0 0
      %3369 = vmatmul.mubr.bf16.gmra.mxu0 %v3085
      %v3370 = vpop.f32.mrf.mxu0
      %v3371 = vadd.f32 %v2302, %v3370
      %v3372 = vpop.f32.mrf.mxu0
      %v3373 = vpop.f32.mrf.mxu0
      %v3374 = vadd.f32 %v2305, %v3373
      %v3375 = vpop.f32.mrf.mxu0
      %3376 = vmatprep.mubr.bf16.mxu0 0
      %3377 = vmatmul.mubr.bf16.gmra.mxu0 %v3088
      %v3378 = vpop.f32.mrf.mxu0
      %v3379 = vadd.f32 %v2310, %v3378
      %v3380 = vpop.f32.mrf.mxu0
      %v3381 = vpop.f32.mrf.mxu0
      %v3382 = vadd.f32 %v2313, %v3381
      %v3383 = vpop.f32.mrf.mxu0
      %3384 = vmatprep.mubr.bf16.mxu0 0
      %3385 = vmatmul.mubr.bf16.gmra.mxu0 %v3091
      %v3386 = vpop.f32.mrf.mxu0
      %v3387 = vadd.f32 %v2318, %v3386
      %v3388 = vpop.f32.mrf.mxu0
      %v3389 = vpop.f32.mrf.mxu0
      %v3390 = vadd.f32 %v2321, %v3389
      %v3391 = vpop.f32.mrf.mxu0
      %3392 = vmatprep.mubr.bf16.mxu0 0
      %3393 = vmatmul.mubr.bf16.gmra.mxu0 %v3094
      %v3394 = vpop.f32.mrf.mxu0
      %v3395 = vadd.f32 %v2326, %v3394
      %v3396 = vpop.f32.mrf.mxu0
      %v3397 = vpop.f32.mrf.mxu0
      %v3398 = vadd.f32 %v2329, %v3397
      %v3399 = vpop.f32.mrf.mxu0
      %3400 = vmatprep.mubr.bf16.mxu0 0
      %3401 = vmatmul.mubr.bf16.gmra.mxu0 %v3097
      %v3402 = vpop.f32.mrf.mxu0
      %v3403 = vadd.f32 %v2334, %v3402
      %v3404 = vpop.f32.mrf.mxu0
      %v3405 = vpop.f32.mrf.mxu0
      %v3406 = vadd.f32 %v2337, %v3405
      %v3407 = vpop.f32.mrf.mxu0
      %3408 = vmatprep.mubr.bf16.mxu0 0
      %3409 = vmatmul.mubr.bf16.gmra.mxu0 %v3100
      %v3410 = vpop.f32.mrf.mxu0
      %v3411 = vadd.f32 %v2342, %v3410
      %v3412 = vpop.f32.mrf.mxu0
      %v3413 = vpop.f32.mrf.mxu0
      %v3414 = vadd.f32 %v2345, %v3413
      %v3415 = vpop.f32.mrf.mxu0
      %3416 = vmatprep.mubr.bf16.mxu0 0
      %3417 = vmatmul.mubr.bf16.gmra.mxu0 %v3103
      %v3418 = vpop.f32.mrf.mxu0
      %v3419 = vadd.f32 %v2350, %v3418
      %v3420 = vpop.f32.mrf.mxu0
      %v3421 = vpop.f32.mrf.mxu0
      %v3422 = vadd.f32 %v2353, %v3421
      %v3423 = vpop.f32.mrf.mxu0
      %3424 = vmatprep.mubr.bf16.mxu0 0
      %3425 = vmatmul.mubr.bf16.gmra.mxu0 %v3106
      %v3426 = vpop.f32.mrf.mxu0
      %v3427 = vadd.f32 %v2358, %v3426
      %v3428 = vpop.f32.mrf.mxu0
      %v3429 = vpop.f32.mrf.mxu0
      %v3430 = vadd.f32 %v2361, %v3429
      %v3431 = vpop.f32.mrf.mxu0
      %3432 = vmatprep.mubr.bf16.mxu0 0
      %3433 = vmatmul.mubr.bf16.gmra.mxu0 %v3109
      %v3434 = vpop.f32.mrf.mxu0
      %v3435 = vadd.f32 %v2366, %v3434
      %v3436 = vpop.f32.mrf.mxu0
      %v3437 = vpop.f32.mrf.mxu0
      %v3438 = vadd.f32 %v2369, %v3437
      %v3439 = vpop.f32.mrf.mxu0
      %3440 = vmatprep.mubr.bf16.mxu0 0
      %3441 = vmatmul.mubr.bf16.gmra.mxu0 %v3112
      %v3442 = vpop.f32.mrf.mxu0
      %v3443 = vadd.f32 %v2374, %v3442
      %v3444 = vpop.f32.mrf.mxu0
      %v3445 = vpop.f32.mrf.mxu0
      %v3446 = vadd.f32 %v2377, %v3445
      %v3447 = vpop.f32.mrf.mxu0
      %3448 = vmatprep.mubr.bf16.mxu0 0
      %3449 = vmatmul.mubr.bf16.gmra.mxu0 %v3115
      %v3450 = vpop.f32.mrf.mxu0
      %v3451 = vadd.f32 %v2382, %v3450
      %v3452 = vpop.f32.mrf.mxu0
      %v3453 = vpop.f32.mrf.mxu0
      %v3454 = vadd.f32 %v2385, %v3453
      %v3455 = vpop.f32.mrf.mxu0
      %3456 = vmatprep.mubr.bf16.mxu0 0
      %3457 = vmatmul.mubr.bf16.gmra.mxu0 %v3118
      %v3458 = vpop.f32.mrf.mxu0
      %v3459 = vadd.f32 %v2390, %v3458
      %v3460 = vpop.f32.mrf.mxu0
      %v3461 = vpop.f32.mrf.mxu0
      %v3462 = vadd.f32 %v2393, %v3461
      %v3463 = vpop.f32.mrf.mxu0
      %3464 = vmatprep.mubr.bf16.mxu0 0
      %3465 = vmatmul.mubr.bf16.gmra.mxu0 %v3121
      %v3466 = vpop.f32.mrf.mxu0
      %v3467 = vadd.f32 %v2398, %v3466
      %v3468 = vpop.f32.mrf.mxu0
      %v3469 = vpop.f32.mrf.mxu0
      %v3470 = vadd.f32 %v2401, %v3469
      %v3471 = vpop.f32.mrf.mxu0
      %3472 = vmatprep.mubr.bf16.mxu0 0
      %3473 = vmatmul.mubr.bf16.gmra.mxu0 %v3124
      %v3474 = vpop.f32.mrf.mxu0
      %v3475 = vadd.f32 %v2406, %v3474
      %v3476 = vpop.f32.mrf.mxu0
      %v3477 = vpop.f32.mrf.mxu0
      %v3478 = vadd.f32 %v2409, %v3477
      %v3479 = vpop.f32.mrf.mxu0
      %3480 = vmatprep.mubr.bf16.mxu0 0
      %3481 = vmatmul.mubr.bf16.gmra.mxu0 %v3127
      %v3482 = vpop.f32.mrf.mxu0
      %v3483 = vadd.f32 %v2414, %v3482
      %v3484 = vpop.f32.mrf.mxu0
      %v3485 = vpop.f32.mrf.mxu0
      %v3486 = vadd.f32 %v2417, %v3485
      %v3487 = vpop.f32.mrf.mxu0
      %3488 = vmatprep.mubr.bf16.mxu0 0
      %3489 = vmatmul.mubr.bf16.gmra.mxu0 %v3130
      %v3490 = vpop.f32.mrf.mxu0
      %v3491 = vadd.f32 %v2422, %v3490
      %v3492 = vpop.f32.mrf.mxu0
      %v3493 = vpop.f32.mrf.mxu0
      %v3494 = vadd.f32 %v2425, %v3493
      %v3495 = vpop.f32.mrf.mxu0
      %3496 = vmatprep.mubr.bf16.mxu0 0
      %3497 = vmatmul.mubr.bf16.gmra.mxu0 %v3133
      %v3498 = vpop.f32.mrf.mxu0
      %v3499 = vadd.f32 %v2430, %v3498
      %v3500 = vpop.f32.mrf.mxu0
      %v3501 = vpop.f32.mrf.mxu0
      %v3502 = vadd.f32 %v2433, %v3501
      %v3503 = vpop.f32.mrf.mxu0
      %3504 = vmatprep.mubr.bf16.mxu0 0
      %3505 = vmatmul.mubr.bf16.gmra.mxu0 %v3136
      %v3506 = vpop.f32.mrf.mxu0
      %v3507 = vadd.f32 %v2438, %v3506
      %v3508 = vpop.f32.mrf.mxu0
      %v3509 = vpop.f32.mrf.mxu0
      %v3510 = vadd.f32 %v2441, %v3509
      %v3511 = vpop.f32.mrf.mxu0
      %3512 = vmatprep.mubr.bf16.mxu0 0
      %3513 = vmatmul.mubr.bf16.gmra.mxu0 %v3139
      %v3514 = vpop.f32.mrf.mxu0
      %v3515 = vadd.f32 %v2446, %v3514
      %v3516 = vpop.f32.mrf.mxu0
      %v3517 = vpop.f32.mrf.mxu0
      %v3518 = vadd.f32 %v2449, %v3517
      %v3519 = vpop.f32.mrf.mxu0
      %3520 = vmatprep.mubr.bf16.mxu0 0
      %3521 = vmatmul.mubr.bf16.gmra.mxu0 %v3142
      %v3522 = vpop.f32.mrf.mxu0
      %v3523 = vadd.f32 %v2454, %v3522
      %v3524 = vpop.f32.mrf.mxu0
      %v3525 = vpop.f32.mrf.mxu0
      %v3526 = vadd.f32 %v2457, %v3525
      %v3527 = vpop.f32.mrf.mxu0
      %3528 = vmatprep.mubr.bf16.mxu0 0
      %3529 = vmatmul.mubr.bf16.gmra.mxu0 %v3145
      %v3530 = vpop.f32.mrf.mxu0
      %v3531 = vadd.f32 %v2462, %v3530
      %v3532 = vpop.f32.mrf.mxu0
      %v3533 = vpop.f32.mrf.mxu0
      %v3534 = vadd.f32 %v2465, %v3533
      %v3535 = vpop.f32.mrf.mxu0
      %3536 = vmatprep.mubr.bf16.mxu0 0
      %3537 = vmatmul.mubr.bf16.gmra.mxu0 %v3148
      %v3538 = vpop.f32.mrf.mxu0
      %v3539 = vadd.f32 %v2470, %v3538
      %v3540 = vpop.f32.mrf.mxu0
      %v3541 = vpop.f32.mrf.mxu0
      %v3542 = vadd.f32 %v2473, %v3541
      %v3543 = vpop.f32.mrf.mxu0
      %3544 = vmatprep.mubr.bf16.mxu0 0
      %3545 = vmatmul.mubr.bf16.gmra.mxu0 %v3151
      %v3546 = vpop.f32.mrf.mxu0
      %v3547 = vadd.f32 %v2478, %v3546
      %v3548 = vpop.f32.mrf.mxu0
      %v3549 = vpop.f32.mrf.mxu0
      %v3550 = vadd.f32 %v2481, %v3549
      %v3551 = vpop.f32.mrf.mxu0
      %3552 = vmatprep.mubr.bf16.mxu0 0
      %3553 = vmatmul.mubr.bf16.gmra.mxu0 %v3154
      %v3554 = vpop.f32.mrf.mxu0
      %v3555 = vadd.f32 %v2486, %v3554
      %v3556 = vpop.f32.mrf.mxu0
      %v3557 = vpop.f32.mrf.mxu0
      %v3558 = vadd.f32 %v2489, %v3557
      %v3559 = vpop.f32.mrf.mxu0
      %3560 = vmatprep.mubr.bf16.mxu0 0
      %3561 = vmatmul.mubr.bf16.gmra.mxu0 %v3157
      %v3562 = vpop.f32.mrf.mxu0
      %v3563 = vadd.f32 %v2494, %v3562
      %v3564 = vpop.f32.mrf.mxu0
      %v3565 = vpop.f32.mrf.mxu0
      %v3566 = vadd.f32 %v2497, %v3565
      %v3567 = vpop.f32.mrf.mxu0
      %3568 = vmatprep.mubr.bf16.mxu0 0
      %3569 = vmatmul.mubr.bf16.gmra.mxu0 %v3160
      %v3570 = vpop.f32.mrf.mxu0
      %v3571 = vadd.f32 %v2502, %v3570
      %v3572 = vpop.f32.mrf.mxu0
      %v3573 = vpop.f32.mrf.mxu0
      %v3574 = vadd.f32 %v2505, %v3573
      %v3575 = vpop.f32.mrf.mxu0
      %3576 = vmatprep.mubr.bf16.mxu0 0
      %3577 = vmatmul.mubr.bf16.gmra.mxu0 %v3163
      %v3578 = vpop.f32.mrf.mxu0
      %v3579 = vadd.f32 %v2510, %v3578
      %v3580 = vpop.f32.mrf.mxu0
      %v3581 = vpop.f32.mrf.mxu0
      %v3582 = vadd.f32 %v2513, %v3581
      %v3583 = vpop.f32.mrf.mxu0
      %3584 = vmatprep.mubr.bf16.mxu0 0
      %3585 = vmatmul.mubr.bf16.gmra.mxu0 %v3166
      %v3586 = vpop.f32.mrf.mxu0
      %v3587 = vadd.f32 %v2518, %v3586
      %v3588 = vpop.f32.mrf.mxu0
      %v3589 = vpop.f32.mrf.mxu0
      %v3590 = vadd.f32 %v2521, %v3589
      %v3591 = vpop.f32.mrf.mxu0
      %3592 = vmatprep.mubr.bf16.mxu0 0
      %3593 = vmatmul.mubr.bf16.gmra.mxu0 %v3169
      %v3594 = vpop.f32.mrf.mxu0
      %v3595 = vadd.f32 %v2526, %v3594
      %v3596 = vpop.f32.mrf.mxu0
      %v3597 = vpop.f32.mrf.mxu0
      %v3598 = vadd.f32 %v2529, %v3597
      %v3599 = vpop.f32.mrf.mxu0
      %3600 = vmatprep.mubr.bf16.mxu0 0
      %3601 = vmatmul.mubr.bf16.gmra.mxu0 %v3172
      %v3602 = vpop.f32.mrf.mxu0
      %v3603 = vadd.f32 %v2534, %v3602
      %v3604 = vpop.f32.mrf.mxu0
      %v3605 = vpop.f32.mrf.mxu0
      %v3606 = vadd.f32 %v2537, %v3605
      %v3607 = vpop.f32.mrf.mxu0
      %3608 = vmatprep.mubr.bf16.mxu0 0
      %3609 = vmatmul.mubr.bf16.gmra.mxu0 %v3175
      %v3610 = vpop.f32.mrf.mxu0
      %v3611 = vadd.f32 %v2542, %v3610
      %v3612 = vpop.f32.mrf.mxu0
      %v3613 = vpop.f32.mrf.mxu0
      %v3614 = vadd.f32 %v2545, %v3613
      %v3615 = vpop.f32.mrf.mxu0
      %3616 = vmatprep.mubr.bf16.mxu0 0
      %3617 = vmatmul.mubr.bf16.gmra.mxu0 %v3178
      %v3618 = vpop.f32.mrf.mxu0
      %v3619 = vadd.f32 %v2550, %v3618
      %v3620 = vpop.f32.mrf.mxu0
      %v3621 = vpop.f32.mrf.mxu0
      %v3622 = vadd.f32 %v2553, %v3621
      %v3623 = vpop.f32.mrf.mxu0
      %3624 = vmatprep.mubr.bf16.mxu0 0
      %3625 = vmatmul.mubr.bf16.gmra.mxu0 %v3181
      %v3626 = vpop.f32.mrf.mxu0
      %v3627 = vadd.f32 %v2558, %v3626
      %v3628 = vpop.f32.mrf.mxu0
      %v3629 = vpop.f32.mrf.mxu0
      %v3630 = vadd.f32 %v2561, %v3629
      %v3631 = vpop.f32.mrf.mxu0
      %3632 = vmatprep.mubr.bf16.mxu0 0
      %3633 = vmatmul.mubr.bf16.gmra.mxu0 %v3184
      %v3634 = vpop.f32.mrf.mxu0
      %v3635 = vadd.f32 %v2566, %v3634
      %v3636 = vpop.f32.mrf.mxu0
      %v3637 = vpop.f32.mrf.mxu0
      %v3638 = vadd.f32 %v2569, %v3637
      %v3639 = vpop.f32.mrf.mxu0
      %3640 = vmatprep.mubr.bf16.mxu0 0
      %3641 = vmatmul.mubr.bf16.gmra.mxu0 %v3187
      %v3642 = vpop.f32.mrf.mxu0
      %v3643 = vadd.f32 %v2574, %v3642
      %v3644 = vpop.f32.mrf.mxu0
      %v3645 = vpop.f32.mrf.mxu0
      %v3646 = vadd.f32 %v2577, %v3645
      %v3647 = vpop.f32.mrf.mxu0
      %3648 = vmatprep.mubr.bf16.mxu0 0
      %3649 = vmatmul.mubr.bf16.gmra.mxu0 %v3190
      %v3650 = vpop.f32.mrf.mxu0
      %v3651 = vadd.f32 %v2582, %v3650
      %v3652 = vpop.f32.mrf.mxu0
      %v3653 = vpop.f32.mrf.mxu0
      %v3654 = vadd.f32 %v2585, %v3653
      %v3655 = vpop.f32.mrf.mxu0
      %3656 = vmatprep.mubr.bf16.mxu0 0
      %3657 = vmatmul.mubr.bf16.gmra.mxu0 %v3193
      %v3658 = vpop.f32.mrf.mxu0
      %v3659 = vadd.f32 %v2590, %v3658
      %v3660 = vpop.f32.mrf.mxu0
      %v3661 = vpop.f32.mrf.mxu0
      %v3662 = vadd.f32 %v2593, %v3661
      %v3663 = vpop.f32.mrf.mxu0
      %3664 = vmatprep.mubr.bf16.mxu0 0
      %3665 = vmatmul.mubr.bf16.gmra.mxu0 %v3196
      %v3666 = vpop.f32.mrf.mxu0
      %v3667 = vadd.f32 %v2598, %v3666
      %v3668 = vpop.f32.mrf.mxu0
      %v3669 = vpop.f32.mrf.mxu0
      %v3670 = vadd.f32 %v2601, %v3669
      %v3671 = vpop.f32.mrf.mxu0
      %3672 = vmatprep.mubr.bf16.mxu0 0
      %3673 = vmatmul.mubr.bf16.gmra.mxu0 %v3199
      %v3674 = vpop.f32.mrf.mxu0
      %v3675 = vadd.f32 %v2606, %v3674
      %v3676 = vpop.f32.mrf.mxu0
      %v3677 = vpop.f32.mrf.mxu0
      %v3678 = vadd.f32 %v2609, %v3677
      %v3679 = vpop.f32.mrf.mxu0
      %3680 = vmatprep.mubr.bf16.mxu0 0
      %3681 = vmatmul.mubr.bf16.gmra.mxu0 %v3202
      %v3682 = vpop.f32.mrf.mxu0
      %v3683 = vadd.f32 %v2614, %v3682
      %v3684 = vpop.f32.mrf.mxu0
      %v3685 = vpop.f32.mrf.mxu0
      %v3686 = vadd.f32 %v2617, %v3685
      %v3687 = vpop.f32.mrf.mxu0
      %3688 = vmatprep.mubr.bf16.mxu0 0
      %3689 = vmatmul.mubr.bf16.gmra.mxu0 %v3205
      %v3690 = vpop.f32.mrf.mxu0
      %v3691 = vadd.f32 %v2622, %v3690
      %v3692 = vpop.f32.mrf.mxu0
      %v3693 = vpop.f32.mrf.mxu0
      %v3694 = vadd.f32 %v2625, %v3693
      %v3695 = vpop.f32.mrf.mxu0
      %3696 = vmatprep.mubr.bf16.mxu0 0
      %3697 = vmatmul.mubr.bf16.gmra.mxu0 %v3208
      %v3698 = vpop.f32.mrf.mxu0
      %v3699 = vadd.f32 %v2630, %v3698
      %v3700 = vpop.f32.mrf.mxu0
      %v3701 = vpop.f32.mrf.mxu0
      %v3702 = vadd.f32 %v2633, %v3701
      %v3703 = vpop.f32.mrf.mxu0
      %3704 = vmatprep.mubr.bf16.mxu0 0
      %3705 = vmatmul.mubr.bf16.gmra.mxu0 %v3211
      %v3706 = vpop.f32.mrf.mxu0
      %v3707 = vadd.f32 %v2638, %v3706
      %v3708 = vpop.f32.mrf.mxu0
      %v3709 = vpop.f32.mrf.mxu0
      %v3710 = vadd.f32 %v2641, %v3709
      %v3711 = vpop.f32.mrf.mxu0
      %3712 = vmatprep.mubr.bf16.mxu0 0
      %3713 = vmatmul.mubr.bf16.gmra.mxu0 %v3214
      %v3714 = vpop.f32.mrf.mxu0
      %v3715 = vadd.f32 %v2646, %v3714
      %v3716 = vpop.f32.mrf.mxu0
      %v3717 = vpop.f32.mrf.mxu0
      %v3718 = vadd.f32 %v2649, %v3717
      %v3719 = vpop.f32.mrf.mxu0
      %3720 = vmatprep.mubr.bf16.mxu0 0
      %3721 = vmatmul.mubr.bf16.gmra.mxu0 %v3217
      %v3722 = vpop.f32.mrf.mxu0
      %v3723 = vadd.f32 %v2654, %v3722
      %v3724 = vpop.f32.mrf.mxu0
      %v3725 = vpop.f32.mrf.mxu0
      %v3726 = vadd.f32 %v2657, %v3725
      %v3727 = vpop.f32.mrf.mxu0
      %3728 = vmatprep.mubr.bf16.mxu0 0
      %3729 = vmatmul.mubr.bf16.gmra.mxu0 %v3220
      %v3730 = vpop.f32.mrf.mxu0
      %v3731 = vadd.f32 %v2662, %v3730
      %v3732 = vpop.f32.mrf.mxu0
      %v3733 = vpop.f32.mrf.mxu0
      %v3734 = vadd.f32 %v2665, %v3733
      %v3735 = vpop.f32.mrf.mxu0
      %3736 = vmatprep.mubr.bf16.mxu0 0
      %3737 = vmatmul.mubr.bf16.gmra.mxu0 %v3223
      %v3738 = vpop.f32.mrf.mxu0
      %v3739 = vadd.f32 %v2670, %v3738
      %v3740 = vpop.f32.mrf.mxu0
      %v3741 = vpop.f32.mrf.mxu0
      %v3742 = vadd.f32 %v2673, %v3741
      %v3743 = vpop.f32.mrf.mxu0
      %3744 = vmatprep.mubr.bf16.mxu0 0
      %3745 = vmatmul.mubr.bf16.gmra.mxu0 %v3226
      %v3746 = vpop.f32.mrf.mxu0
      %v3747 = vadd.f32 %v2678, %v3746
      %v3748 = vpop.f32.mrf.mxu0
      %v3749 = vpop.f32.mrf.mxu0
      %v3750 = vadd.f32 %v2681, %v3749
      %v3751 = vpop.f32.mrf.mxu0
      %3752 = vmatprep.mubr.bf16.mxu0 0
      %3753 = vmatmul.mubr.bf16.gmra.mxu0 %v3229
      %v3754 = vpop.f32.mrf.mxu0
      %v3755 = vadd.f32 %v2686, %v3754
      %v3756 = vpop.f32.mrf.mxu0
      %v3757 = vpop.f32.mrf.mxu0
      %v3758 = vadd.f32 %v2689, %v3757
      %v3759 = vpop.f32.mrf.mxu0
      %3760 = vmatprep.mubr.bf16.mxu0 0
      %3761 = vmatmul.mubr.bf16.gmra.mxu0 %v3232
      %v3762 = vpop.f32.mrf.mxu0
      %v3763 = vadd.f32 %v2694, %v3762
      %v3764 = vpop.f32.mrf.mxu0
      %v3765 = vpop.f32.mrf.mxu0
      %v3766 = vadd.f32 %v2697, %v3765
      %v3767 = vpop.f32.mrf.mxu0
      %3768 = vmatprep.mubr.bf16.mxu0 0
      %3769 = vmatmul.mubr.bf16.gmra.mxu0 %v3235
      %v3770 = vpop.f32.mrf.mxu0
      %v3771 = vadd.f32 %v2702, %v3770
      %v3772 = vpop.f32.mrf.mxu0
      %v3773 = vpop.f32.mrf.mxu0
      %v3774 = vadd.f32 %v2705, %v3773
      %v3775 = vpop.f32.mrf.mxu0
      %3776 = vmatprep.mubr.bf16.mxu0 0
      %3777 = vmatmul.mubr.bf16.gmra.mxu0 %v3238
      %v3778 = vpop.f32.mrf.mxu0
      %v3779 = vadd.f32 %v2710, %v3778
      %v3780 = vpop.f32.mrf.mxu0
      %v3781 = vpop.f32.mrf.mxu0
      %v3782 = vadd.f32 %v2713, %v3781
      %v3783 = vpop.f32.mrf.mxu0
      %3784 = vdwg.mxu0
      %v3789 = vunpack.c.l.b16 %v342
      %v3790 = vunpack.c.l.b16 %v343
      %v3791 = vunpack.c.l.b16 %v344
      %v3792 = vunpack.c.l.b16 %v345
      %v3793 = vpack.c.b16 %v3790, %v3789
      %v3794 = vpack.c.b16 %v3792, %v3791
      %v3799 = vunpack.c.l.b16 %v355
      %v3800 = vunpack.c.l.b16 %v356
      %v3801 = vunpack.c.l.b16 %v357
      %v3802 = vunpack.c.l.b16 %v358
      %v3803 = vpack.c.b16 %v3800, %v3799
      %v3804 = vpack.c.b16 %v3802, %v3801
      %v3808 = vsel %vm1978, %v3793, 0
      %v3811 = vsel %vm1978, %v3794, 0
      %3813 = vmatprep.subr.bf16.mxu0 0
      %3814 = vmatpush1.bf16.msra.mxu0 0
      %3815 = vmatprep.subr.bf16.mxu0 0
      %3816 = vmatpush1.bf16.msra.mxu0 0
      %3817 = vmatprep.subr.bf16.mxu0 0
      %3818 = vmatpush1.bf16.msra.mxu0 0
      %3819 = vmatprep.subr.bf16.mxu0 0
      %3820 = vmatpush1.bf16.msra.mxu0 0
      %3821 = vmatprep.subr.bf16.mxu0 0
      %3822 = vmatpush1.bf16.msra.mxu0 0
      %3823 = vmatprep.subr.bf16.mxu0 0
      %3824 = vmatpush1.bf16.msra.mxu0 0
      %3825 = vmatprep.subr.bf16.mxu0 0
      %3826 = vmatpush1.bf16.msra.mxu0 %v3804
      %3827 = vmatprep.subr.bf16.mxu0 0
      %3828 = vmatpush1.bf16.msra.mxu0 %v3803
      %3829 = vmatprep.subr.bf16.mxu0 0
      %3830 = vmatpush2.bf16.msra.mxu0 0
      %3831 = vmatprep.subr.bf16.mxu0 0
      %3832 = vmatpush2.bf16.msra.mxu0 0
      %3833 = vmatprep.subr.bf16.mxu0 0
      %3834 = vmatpush2.bf16.msra.mxu0 0
      %3835 = vmatprep.subr.bf16.mxu0 0
      %3836 = vmatpush2.bf16.msra.mxu0 0
      %3837 = vmatprep.subr.bf16.mxu0 0
      %3838 = vmatpush2.bf16.msra.mxu0 0
      %3839 = vmatprep.subr.bf16.mxu0 0
      %3840 = vmatpush2.bf16.msra.mxu0 0
      %3841 = vmatprep.subr.bf16.mxu0 0
      %3842 = vmatpush2.bf16.msra.mxu0 0
      %3843 = vmatprep.subr.bf16.mxu0 0
      %3844 = vmatpush2.bf16.msra.mxu0 0
      %3845 = vmatprep.mubr.bf16.mxu0 0
      %3846 = vmatmul.mubr.bf16.gmra.mxu0 %v3055
      %v3847 = vpop.f32.mrf.mxu0
      %v3848 = vadd.f32 0.0, %v3847
      %v3849 = vpop.f32.mrf.mxu0
      %v3850 = vpop.f32.mrf.mxu0
      %v3851 = vadd.f32 0.0, %v3850
      %v3852 = vpop.f32.mrf.mxu0
      %3853 = vmatprep.mubr.bf16.mxu0 0
      %3854 = vmatmul.mubr.bf16.gmra.mxu0 %v3058
      %v3855 = vpop.f32.mrf.mxu0
      %v3856 = vadd.f32 0.0, %v3855
      %v3857 = vpop.f32.mrf.mxu0
      %v3858 = vpop.f32.mrf.mxu0
      %v3859 = vadd.f32 0.0, %v3858
      %v3860 = vpop.f32.mrf.mxu0
      %3861 = vmatprep.mubr.bf16.mxu0 0
      %3862 = vmatmul.mubr.bf16.gmra.mxu0 %v3061
      %v3863 = vpop.f32.mrf.mxu0
      %v3864 = vadd.f32 0.0, %v3863
      %v3865 = vpop.f32.mrf.mxu0
      %v3866 = vpop.f32.mrf.mxu0
      %v3867 = vadd.f32 0.0, %v3866
      %v3868 = vpop.f32.mrf.mxu0
      %3869 = vmatprep.mubr.bf16.mxu0 0
      %3870 = vmatmul.mubr.bf16.gmra.mxu0 %v3064
      %v3871 = vpop.f32.mrf.mxu0
      %v3872 = vadd.f32 0.0, %v3871
      %v3873 = vpop.f32.mrf.mxu0
      %v3874 = vpop.f32.mrf.mxu0
      %v3875 = vadd.f32 0.0, %v3874
      %v3876 = vpop.f32.mrf.mxu0
      %3877 = vmatprep.mubr.bf16.mxu0 0
      %3878 = vmatmul.mubr.bf16.gmra.mxu0 %v3067
      %v3879 = vpop.f32.mrf.mxu0
      %v3880 = vadd.f32 0.0, %v3879
      %v3881 = vpop.f32.mrf.mxu0
      %v3882 = vpop.f32.mrf.mxu0
      %v3883 = vadd.f32 0.0, %v3882
      %v3884 = vpop.f32.mrf.mxu0
      %3885 = vmatprep.mubr.bf16.mxu0 0
      %3886 = vmatmul.mubr.bf16.gmra.mxu0 %v3070
      %v3887 = vpop.f32.mrf.mxu0
      %v3888 = vadd.f32 0.0, %v3887
      %v3889 = vpop.f32.mrf.mxu0
      %v3890 = vpop.f32.mrf.mxu0
      %v3891 = vadd.f32 0.0, %v3890
      %v3892 = vpop.f32.mrf.mxu0
      %3893 = vmatprep.mubr.bf16.mxu0 0
      %3894 = vmatmul.mubr.bf16.gmra.mxu0 %v3073
      %v3895 = vpop.f32.mrf.mxu0
      %v3896 = vadd.f32 0.0, %v3895
      %v3897 = vpop.f32.mrf.mxu0
      %v3898 = vpop.f32.mrf.mxu0
      %v3899 = vadd.f32 0.0, %v3898
      %v3900 = vpop.f32.mrf.mxu0
      %3901 = vmatprep.mubr.bf16.mxu0 0
      %3902 = vmatmul.mubr.bf16.gmra.mxu0 %v3076
      %v3903 = vpop.f32.mrf.mxu0
      %v3904 = vadd.f32 0.0, %v3903
      %v3905 = vpop.f32.mrf.mxu0
      %v3906 = vpop.f32.mrf.mxu0
      %v3907 = vadd.f32 0.0, %v3906
      %v3908 = vpop.f32.mrf.mxu0
      %3909 = vmatprep.mubr.bf16.mxu0 0
      %3910 = vmatmul.mubr.bf16.gmra.mxu0 %v3079
      %v3911 = vpop.f32.mrf.mxu0
      %v3912 = vadd.f32 0.0, %v3911
      %v3913 = vpop.f32.mrf.mxu0
      %v3914 = vpop.f32.mrf.mxu0
      %v3915 = vadd.f32 0.0, %v3914
      %v3916 = vpop.f32.mrf.mxu0
      %3917 = vmatprep.mubr.bf16.mxu0 0
      %3918 = vmatmul.mubr.bf16.gmra.mxu0 %v3082
      %v3919 = vpop.f32.mrf.mxu0
      %v3920 = vadd.f32 0.0, %v3919
      %v3921 = vpop.f32.mrf.mxu0
      %v3922 = vpop.f32.mrf.mxu0
      %v3923 = vadd.f32 0.0, %v3922
      %v3924 = vpop.f32.mrf.mxu0
      %3925 = vmatprep.mubr.bf16.mxu0 0
      %3926 = vmatmul.mubr.bf16.gmra.mxu0 %v3085
      %v3927 = vpop.f32.mrf.mxu0
      %v3928 = vadd.f32 0.0, %v3927
      %v3929 = vpop.f32.mrf.mxu0
      %v3930 = vpop.f32.mrf.mxu0
      %v3931 = vadd.f32 0.0, %v3930
      %v3932 = vpop.f32.mrf.mxu0
      %3933 = vmatprep.mubr.bf16.mxu0 0
      %3934 = vmatmul.mubr.bf16.gmra.mxu0 %v3088
      %v3935 = vpop.f32.mrf.mxu0
      %v3936 = vadd.f32 0.0, %v3935
      %v3937 = vpop.f32.mrf.mxu0
      %v3938 = vpop.f32.mrf.mxu0
      %v3939 = vadd.f32 0.0, %v3938
      %v3940 = vpop.f32.mrf.mxu0
      %3941 = vmatprep.mubr.bf16.mxu0 0
      %3942 = vmatmul.mubr.bf16.gmra.mxu0 %v3091
      %v3943 = vpop.f32.mrf.mxu0
      %v3944 = vadd.f32 0.0, %v3943
      %v3945 = vpop.f32.mrf.mxu0
      %v3946 = vpop.f32.mrf.mxu0
      %v3947 = vadd.f32 0.0, %v3946
      %v3948 = vpop.f32.mrf.mxu0
      %3949 = vmatprep.mubr.bf16.mxu0 0
      %3950 = vmatmul.mubr.bf16.gmra.mxu0 %v3094
      %v3951 = vpop.f32.mrf.mxu0
      %v3952 = vadd.f32 0.0, %v3951
      %v3953 = vpop.f32.mrf.mxu0
      %v3954 = vpop.f32.mrf.mxu0
      %v3955 = vadd.f32 0.0, %v3954
      %v3956 = vpop.f32.mrf.mxu0
      %3957 = vmatprep.mubr.bf16.mxu0 0
      %3958 = vmatmul.mubr.bf16.gmra.mxu0 %v3097
      %v3959 = vpop.f32.mrf.mxu0
      %v3960 = vadd.f32 0.0, %v3959
      %v3961 = vpop.f32.mrf.mxu0
      %v3962 = vpop.f32.mrf.mxu0
      %v3963 = vadd.f32 0.0, %v3962
      %v3964 = vpop.f32.mrf.mxu0
      %3965 = vmatprep.mubr.bf16.mxu0 0
      %3966 = vmatmul.mubr.bf16.gmra.mxu0 %v3100
      %v3967 = vpop.f32.mrf.mxu0
      %v3968 = vadd.f32 0.0, %v3967
      %v3969 = vpop.f32.mrf.mxu0
      %v3970 = vpop.f32.mrf.mxu0
      %v3971 = vadd.f32 0.0, %v3970
      %v3972 = vpop.f32.mrf.mxu0
      %3973 = vmatprep.mubr.bf16.mxu0 0
      %3974 = vmatmul.mubr.bf16.gmra.mxu0 %v3103
      %v3975 = vpop.f32.mrf.mxu0
      %v3976 = vadd.f32 0.0, %v3975
      %v3977 = vpop.f32.mrf.mxu0
      %v3978 = vpop.f32.mrf.mxu0
      %v3979 = vadd.f32 0.0, %v3978
      %v3980 = vpop.f32.mrf.mxu0
      %3981 = vmatprep.mubr.bf16.mxu0 0
      %3982 = vmatmul.mubr.bf16.gmra.mxu0 %v3106
      %v3983 = vpop.f32.mrf.mxu0
      %v3984 = vadd.f32 0.0, %v3983
      %v3985 = vpop.f32.mrf.mxu0
      %v3986 = vpop.f32.mrf.mxu0
      %v3987 = vadd.f32 0.0, %v3986
      %v3988 = vpop.f32.mrf.mxu0
      %3989 = vmatprep.mubr.bf16.mxu0 0
      %3990 = vmatmul.mubr.bf16.gmra.mxu0 %v3109
      %v3991 = vpop.f32.mrf.mxu0
      %v3992 = vadd.f32 0.0, %v3991
      %v3993 = vpop.f32.mrf.mxu0
      %v3994 = vpop.f32.mrf.mxu0
      %v3995 = vadd.f32 0.0, %v3994
      %v3996 = vpop.f32.mrf.mxu0
      %3997 = vmatprep.mubr.bf16.mxu0 0
      %3998 = vmatmul.mubr.bf16.gmra.mxu0 %v3112
      %v3999 = vpop.f32.mrf.mxu0
      %v4000 = vadd.f32 0.0, %v3999
      %v4001 = vpop.f32.mrf.mxu0
      %v4002 = vpop.f32.mrf.mxu0
      %v4003 = vadd.f32 0.0, %v4002
      %v4004 = vpop.f32.mrf.mxu0
      %4005 = vmatprep.mubr.bf16.mxu0 0
      %4006 = vmatmul.mubr.bf16.gmra.mxu0 %v3115
      %v4007 = vpop.f32.mrf.mxu0
      %v4008 = vadd.f32 0.0, %v4007
      %v4009 = vpop.f32.mrf.mxu0
      %v4010 = vpop.f32.mrf.mxu0
      %v4011 = vadd.f32 0.0, %v4010
      %v4012 = vpop.f32.mrf.mxu0
      %4013 = vmatprep.mubr.bf16.mxu0 0
      %4014 = vmatmul.mubr.bf16.gmra.mxu0 %v3118
      %v4015 = vpop.f32.mrf.mxu0
      %v4016 = vadd.f32 0.0, %v4015
      %v4017 = vpop.f32.mrf.mxu0
      %v4018 = vpop.f32.mrf.mxu0
      %v4019 = vadd.f32 0.0, %v4018
      %v4020 = vpop.f32.mrf.mxu0
      %4021 = vmatprep.mubr.bf16.mxu0 0
      %4022 = vmatmul.mubr.bf16.gmra.mxu0 %v3121
      %v4023 = vpop.f32.mrf.mxu0
      %v4024 = vadd.f32 0.0, %v4023
      %v4025 = vpop.f32.mrf.mxu0
      %v4026 = vpop.f32.mrf.mxu0
      %v4027 = vadd.f32 0.0, %v4026
      %v4028 = vpop.f32.mrf.mxu0
      %4029 = vmatprep.mubr.bf16.mxu0 0
      %4030 = vmatmul.mubr.bf16.gmra.mxu0 %v3124
      %v4031 = vpop.f32.mrf.mxu0
      %v4032 = vadd.f32 0.0, %v4031
      %v4033 = vpop.f32.mrf.mxu0
      %v4034 = vpop.f32.mrf.mxu0
      %v4035 = vadd.f32 0.0, %v4034
      %v4036 = vpop.f32.mrf.mxu0
      %4037 = vmatprep.mubr.bf16.mxu0 0
      %4038 = vmatmul.mubr.bf16.gmra.mxu0 %v3127
      %v4039 = vpop.f32.mrf.mxu0
      %v4040 = vadd.f32 0.0, %v4039
      %v4041 = vpop.f32.mrf.mxu0
      %v4042 = vpop.f32.mrf.mxu0
      %v4043 = vadd.f32 0.0, %v4042
      %v4044 = vpop.f32.mrf.mxu0
      %4045 = vmatprep.mubr.bf16.mxu0 0
      %4046 = vmatmul.mubr.bf16.gmra.mxu0 %v3130
      %v4047 = vpop.f32.mrf.mxu0
      %v4048 = vadd.f32 0.0, %v4047
      %v4049 = vpop.f32.mrf.mxu0
      %v4050 = vpop.f32.mrf.mxu0
      %v4051 = vadd.f32 0.0, %v4050
      %v4052 = vpop.f32.mrf.mxu0
      %4053 = vmatprep.mubr.bf16.mxu0 0
      %4054 = vmatmul.mubr.bf16.gmra.mxu0 %v3133
      %v4055 = vpop.f32.mrf.mxu0
      %v4056 = vadd.f32 0.0, %v4055
      %v4057 = vpop.f32.mrf.mxu0
      %v4058 = vpop.f32.mrf.mxu0
      %v4059 = vadd.f32 0.0, %v4058
      %v4060 = vpop.f32.mrf.mxu0
      %4061 = vmatprep.mubr.bf16.mxu0 0
      %4062 = vmatmul.mubr.bf16.gmra.mxu0 %v3136
      %v4063 = vpop.f32.mrf.mxu0
      %v4064 = vadd.f32 0.0, %v4063
      %v4065 = vpop.f32.mrf.mxu0
      %v4066 = vpop.f32.mrf.mxu0
      %v4067 = vadd.f32 0.0, %v4066
      %v4068 = vpop.f32.mrf.mxu0
      %4069 = vmatprep.mubr.bf16.mxu0 0
      %4070 = vmatmul.mubr.bf16.gmra.mxu0 %v3139
      %v4071 = vpop.f32.mrf.mxu0
      %v4072 = vadd.f32 0.0, %v4071
      %v4073 = vpop.f32.mrf.mxu0
      %v4074 = vpop.f32.mrf.mxu0
      %v4075 = vadd.f32 0.0, %v4074
      %v4076 = vpop.f32.mrf.mxu0
      %4077 = vmatprep.mubr.bf16.mxu0 0
      %4078 = vmatmul.mubr.bf16.gmra.mxu0 %v3142
      %v4079 = vpop.f32.mrf.mxu0
      %v4080 = vadd.f32 0.0, %v4079
      %v4081 = vpop.f32.mrf.mxu0
      %v4082 = vpop.f32.mrf.mxu0
      %v4083 = vadd.f32 0.0, %v4082
      %v4084 = vpop.f32.mrf.mxu0
      %4085 = vmatprep.mubr.bf16.mxu0 0
      %4086 = vmatmul.mubr.bf16.gmra.mxu0 %v3145
      %v4087 = vpop.f32.mrf.mxu0
      %v4088 = vadd.f32 0.0, %v4087
      %v4089 = vpop.f32.mrf.mxu0
      %v4090 = vpop.f32.mrf.mxu0
      %v4091 = vadd.f32 0.0, %v4090
      %v4092 = vpop.f32.mrf.mxu0
      %4093 = vmatprep.mubr.bf16.mxu0 0
      %4094 = vmatmul.mubr.bf16.gmra.mxu0 %v3148
      %v4095 = vpop.f32.mrf.mxu0
      %v4096 = vadd.f32 0.0, %v4095
      %v4097 = vpop.f32.mrf.mxu0
      %v4098 = vpop.f32.mrf.mxu0
      %v4099 = vadd.f32 0.0, %v4098
      %v4100 = vpop.f32.mrf.mxu0
      %4101 = vmatprep.mubr.bf16.mxu0 0
      %4102 = vmatmul.mubr.bf16.gmra.mxu0 %v3151
      %v4103 = vpop.f32.mrf.mxu0
      %v4104 = vadd.f32 0.0, %v4103
      %v4105 = vpop.f32.mrf.mxu0
      %v4106 = vpop.f32.mrf.mxu0
      %v4107 = vadd.f32 0.0, %v4106
      %v4108 = vpop.f32.mrf.mxu0
      %4109 = vmatprep.mubr.bf16.mxu0 0
      %4110 = vmatmul.mubr.bf16.gmra.mxu0 %v3154
      %v4111 = vpop.f32.mrf.mxu0
      %v4112 = vadd.f32 0.0, %v4111
      %v4113 = vpop.f32.mrf.mxu0
      %v4114 = vpop.f32.mrf.mxu0
      %v4115 = vadd.f32 0.0, %v4114
      %v4116 = vpop.f32.mrf.mxu0
      %4117 = vmatprep.mubr.bf16.mxu0 0
      %4118 = vmatmul.mubr.bf16.gmra.mxu0 %v3157
      %v4119 = vpop.f32.mrf.mxu0
      %v4120 = vadd.f32 0.0, %v4119
      %v4121 = vpop.f32.mrf.mxu0
      %v4122 = vpop.f32.mrf.mxu0
      %v4123 = vadd.f32 0.0, %v4122
      %v4124 = vpop.f32.mrf.mxu0
      %4125 = vmatprep.mubr.bf16.mxu0 0
      %4126 = vmatmul.mubr.bf16.gmra.mxu0 %v3160
      %v4127 = vpop.f32.mrf.mxu0
      %v4128 = vadd.f32 0.0, %v4127
      %v4129 = vpop.f32.mrf.mxu0
      %v4130 = vpop.f32.mrf.mxu0
      %v4131 = vadd.f32 0.0, %v4130
      %v4132 = vpop.f32.mrf.mxu0
      %4133 = vmatprep.mubr.bf16.mxu0 0
      %4134 = vmatmul.mubr.bf16.gmra.mxu0 %v3163
      %v4135 = vpop.f32.mrf.mxu0
      %v4136 = vadd.f32 0.0, %v4135
      %v4137 = vpop.f32.mrf.mxu0
      %v4138 = vpop.f32.mrf.mxu0
      %v4139 = vadd.f32 0.0, %v4138
      %v4140 = vpop.f32.mrf.mxu0
      %4141 = vmatprep.mubr.bf16.mxu0 0
      %4142 = vmatmul.mubr.bf16.gmra.mxu0 %v3166
      %v4143 = vpop.f32.mrf.mxu0
      %v4144 = vadd.f32 0.0, %v4143
      %v4145 = vpop.f32.mrf.mxu0
      %v4146 = vpop.f32.mrf.mxu0
      %v4147 = vadd.f32 0.0, %v4146
      %v4148 = vpop.f32.mrf.mxu0
      %4149 = vmatprep.mubr.bf16.mxu0 0
      %4150 = vmatmul.mubr.bf16.gmra.mxu0 %v3169
      %v4151 = vpop.f32.mrf.mxu0
      %v4152 = vadd.f32 0.0, %v4151
      %v4153 = vpop.f32.mrf.mxu0
      %v4154 = vpop.f32.mrf.mxu0
      %v4155 = vadd.f32 0.0, %v4154
      %v4156 = vpop.f32.mrf.mxu0
      %4157 = vmatprep.mubr.bf16.mxu0 0
      %4158 = vmatmul.mubr.bf16.gmra.mxu0 %v3172
      %v4159 = vpop.f32.mrf.mxu0
      %v4160 = vadd.f32 0.0, %v4159
      %v4161 = vpop.f32.mrf.mxu0
      %v4162 = vpop.f32.mrf.mxu0
      %v4163 = vadd.f32 0.0, %v4162
      %v4164 = vpop.f32.mrf.mxu0
      %4165 = vmatprep.mubr.bf16.mxu0 0
      %4166 = vmatmul.mubr.bf16.gmra.mxu0 %v3175
      %v4167 = vpop.f32.mrf.mxu0
      %v4168 = vadd.f32 0.0, %v4167
      %v4169 = vpop.f32.mrf.mxu0
      %v4170 = vpop.f32.mrf.mxu0
      %v4171 = vadd.f32 0.0, %v4170
      %v4172 = vpop.f32.mrf.mxu0
      %4173 = vmatprep.mubr.bf16.mxu0 0
      %4174 = vmatmul.mubr.bf16.gmra.mxu0 %v3178
      %v4175 = vpop.f32.mrf.mxu0
      %v4176 = vadd.f32 0.0, %v4175
      %v4177 = vpop.f32.mrf.mxu0
      %v4178 = vpop.f32.mrf.mxu0
      %v4179 = vadd.f32 0.0, %v4178
      %v4180 = vpop.f32.mrf.mxu0
      %4181 = vmatprep.mubr.bf16.mxu0 0
      %4182 = vmatmul.mubr.bf16.gmra.mxu0 %v3181
      %v4183 = vpop.f32.mrf.mxu0
      %v4184 = vadd.f32 0.0, %v4183
      %v4185 = vpop.f32.mrf.mxu0
      %v4186 = vpop.f32.mrf.mxu0
      %v4187 = vadd.f32 0.0, %v4186
      %v4188 = vpop.f32.mrf.mxu0
      %4189 = vmatprep.mubr.bf16.mxu0 0
      %4190 = vmatmul.mubr.bf16.gmra.mxu0 %v3184
      %v4191 = vpop.f32.mrf.mxu0
      %v4192 = vadd.f32 0.0, %v4191
      %v4193 = vpop.f32.mrf.mxu0
      %v4194 = vpop.f32.mrf.mxu0
      %v4195 = vadd.f32 0.0, %v4194
      %v4196 = vpop.f32.mrf.mxu0
      %4197 = vmatprep.mubr.bf16.mxu0 0
      %4198 = vmatmul.mubr.bf16.gmra.mxu0 %v3187
      %v4199 = vpop.f32.mrf.mxu0
      %v4200 = vadd.f32 0.0, %v4199
      %v4201 = vpop.f32.mrf.mxu0
      %v4202 = vpop.f32.mrf.mxu0
      %v4203 = vadd.f32 0.0, %v4202
      %v4204 = vpop.f32.mrf.mxu0
      %4205 = vmatprep.mubr.bf16.mxu0 0
      %4206 = vmatmul.mubr.bf16.gmra.mxu0 %v3190
      %v4207 = vpop.f32.mrf.mxu0
      %v4208 = vadd.f32 0.0, %v4207
      %v4209 = vpop.f32.mrf.mxu0
      %v4210 = vpop.f32.mrf.mxu0
      %v4211 = vadd.f32 0.0, %v4210
      %v4212 = vpop.f32.mrf.mxu0
      %4213 = vmatprep.mubr.bf16.mxu0 0
      %4214 = vmatmul.mubr.bf16.gmra.mxu0 %v3193
      %v4215 = vpop.f32.mrf.mxu0
      %v4216 = vadd.f32 0.0, %v4215
      %v4217 = vpop.f32.mrf.mxu0
      %v4218 = vpop.f32.mrf.mxu0
      %v4219 = vadd.f32 0.0, %v4218
      %v4220 = vpop.f32.mrf.mxu0
      %4221 = vmatprep.mubr.bf16.mxu0 0
      %4222 = vmatmul.mubr.bf16.gmra.mxu0 %v3196
      %v4223 = vpop.f32.mrf.mxu0
      %v4224 = vadd.f32 0.0, %v4223
      %v4225 = vpop.f32.mrf.mxu0
      %v4226 = vpop.f32.mrf.mxu0
      %v4227 = vadd.f32 0.0, %v4226
      %v4228 = vpop.f32.mrf.mxu0
      %4229 = vmatprep.mubr.bf16.mxu0 0
      %4230 = vmatmul.mubr.bf16.gmra.mxu0 %v3199
      %v4231 = vpop.f32.mrf.mxu0
      %v4232 = vadd.f32 0.0, %v4231
      %v4233 = vpop.f32.mrf.mxu0
      %v4234 = vpop.f32.mrf.mxu0
      %v4235 = vadd.f32 0.0, %v4234
      %v4236 = vpop.f32.mrf.mxu0
      %4237 = vmatprep.mubr.bf16.mxu0 0
      %4238 = vmatmul.mubr.bf16.gmra.mxu0 %v3202
      %v4239 = vpop.f32.mrf.mxu0
      %v4240 = vadd.f32 0.0, %v4239
      %v4241 = vpop.f32.mrf.mxu0
      %v4242 = vpop.f32.mrf.mxu0
      %v4243 = vadd.f32 0.0, %v4242
      %v4244 = vpop.f32.mrf.mxu0
      %4245 = vmatprep.mubr.bf16.mxu0 0
      %4246 = vmatmul.mubr.bf16.gmra.mxu0 %v3205
      %v4247 = vpop.f32.mrf.mxu0
      %v4248 = vadd.f32 0.0, %v4247
      %v4249 = vpop.f32.mrf.mxu0
      %v4250 = vpop.f32.mrf.mxu0
      %v4251 = vadd.f32 0.0, %v4250
      %v4252 = vpop.f32.mrf.mxu0
      %4253 = vmatprep.mubr.bf16.mxu0 0
      %4254 = vmatmul.mubr.bf16.gmra.mxu0 %v3208
      %v4255 = vpop.f32.mrf.mxu0
      %v4256 = vadd.f32 0.0, %v4255
      %v4257 = vpop.f32.mrf.mxu0
      %v4258 = vpop.f32.mrf.mxu0
      %v4259 = vadd.f32 0.0, %v4258
      %v4260 = vpop.f32.mrf.mxu0
      %4261 = vmatprep.mubr.bf16.mxu0 0
      %4262 = vmatmul.mubr.bf16.gmra.mxu0 %v3211
      %v4263 = vpop.f32.mrf.mxu0
      %v4264 = vadd.f32 0.0, %v4263
      %v4265 = vpop.f32.mrf.mxu0
      %v4266 = vpop.f32.mrf.mxu0
      %v4267 = vadd.f32 0.0, %v4266
      %v4268 = vpop.f32.mrf.mxu0
      %4269 = vmatprep.mubr.bf16.mxu0 0
      %4270 = vmatmul.mubr.bf16.gmra.mxu0 %v3214
      %v4271 = vpop.f32.mrf.mxu0
      %v4272 = vadd.f32 0.0, %v4271
      %v4273 = vpop.f32.mrf.mxu0
      %v4274 = vpop.f32.mrf.mxu0
      %v4275 = vadd.f32 0.0, %v4274
      %v4276 = vpop.f32.mrf.mxu0
      %4277 = vmatprep.mubr.bf16.mxu0 0
      %4278 = vmatmul.mubr.bf16.gmra.mxu0 %v3217
      %v4279 = vpop.f32.mrf.mxu0
      %v4280 = vadd.f32 0.0, %v4279
      %v4281 = vpop.f32.mrf.mxu0
      %v4282 = vpop.f32.mrf.mxu0
      %v4283 = vadd.f32 0.0, %v4282
      %v4284 = vpop.f32.mrf.mxu0
      %4285 = vmatprep.mubr.bf16.mxu0 0
      %4286 = vmatmul.mubr.bf16.gmra.mxu0 %v3220
      %v4287 = vpop.f32.mrf.mxu0
      %v4288 = vadd.f32 0.0, %v4287
      %v4289 = vpop.f32.mrf.mxu0
      %v4290 = vpop.f32.mrf.mxu0
      %v4291 = vadd.f32 0.0, %v4290
      %v4292 = vpop.f32.mrf.mxu0
      %4293 = vmatprep.mubr.bf16.mxu0 0
      %4294 = vmatmul.mubr.bf16.gmra.mxu0 %v3223
      %v4295 = vpop.f32.mrf.mxu0
      %v4296 = vadd.f32 0.0, %v4295
      %v4297 = vpop.f32.mrf.mxu0
      %v4298 = vpop.f32.mrf.mxu0
      %v4299 = vadd.f32 0.0, %v4298
      %v4300 = vpop.f32.mrf.mxu0
      %4301 = vmatprep.mubr.bf16.mxu0 0
      %4302 = vmatmul.mubr.bf16.gmra.mxu0 %v3226
      %v4303 = vpop.f32.mrf.mxu0
      %v4304 = vadd.f32 0.0, %v4303
      %v4305 = vpop.f32.mrf.mxu0
      %v4306 = vpop.f32.mrf.mxu0
      %v4307 = vadd.f32 0.0, %v4306
      %v4308 = vpop.f32.mrf.mxu0
      %4309 = vmatprep.mubr.bf16.mxu0 0
      %4310 = vmatmul.mubr.bf16.gmra.mxu0 %v3229
      %v4311 = vpop.f32.mrf.mxu0
      %v4312 = vadd.f32 0.0, %v4311
      %v4313 = vpop.f32.mrf.mxu0
      %v4314 = vpop.f32.mrf.mxu0
      %v4315 = vadd.f32 0.0, %v4314
      %v4316 = vpop.f32.mrf.mxu0
      %4317 = vmatprep.mubr.bf16.mxu0 0
      %4318 = vmatmul.mubr.bf16.gmra.mxu0 %v3232
      %v4319 = vpop.f32.mrf.mxu0
      %v4320 = vadd.f32 0.0, %v4319
      %v4321 = vpop.f32.mrf.mxu0
      %v4322 = vpop.f32.mrf.mxu0
      %v4323 = vadd.f32 0.0, %v4322
      %v4324 = vpop.f32.mrf.mxu0
      %4325 = vmatprep.mubr.bf16.mxu0 0
      %4326 = vmatmul.mubr.bf16.gmra.mxu0 %v3235
      %v4327 = vpop.f32.mrf.mxu0
      %v4328 = vadd.f32 0.0, %v4327
      %v4329 = vpop.f32.mrf.mxu0
      %v4330 = vpop.f32.mrf.mxu0
      %v4331 = vadd.f32 0.0, %v4330
      %v4332 = vpop.f32.mrf.mxu0
      %4333 = vmatprep.mubr.bf16.mxu0 0
      %4334 = vmatmul.mubr.bf16.gmra.mxu0 %v3238
      %v4335 = vpop.f32.mrf.mxu0
      %v4336 = vadd.f32 0.0, %v4335
      %v4337 = vpop.f32.mrf.mxu0
      %v4338 = vpop.f32.mrf.mxu0
      %v4339 = vadd.f32 0.0, %v4338
      %v4340 = vpop.f32.mrf.mxu0
      %4341 = vmatprep.mubr.bf16.mxu0 0
      %4342 = vmatmul.mubr.bf16.gmra.mxu0 %v3808
      %v4343 = vpop.f32.mrf.mxu0
      %v4344 = vadd.f32 0.0, %v4343
      %v4345 = vpop.f32.mrf.mxu0
      %v4346 = vpop.f32.mrf.mxu0
      %v4347 = vadd.f32 0.0, %v4346
      %v4348 = vpop.f32.mrf.mxu0
      %4349 = vmatprep.mubr.bf16.mxu0 0
      %4350 = vmatmul.mubr.bf16.gmra.mxu0 %v3811
      %v4351 = vpop.f32.mrf.mxu0
      %v4352 = vadd.f32 0.0, %v4351
      %v4353 = vpop.f32.mrf.mxu0
      %v4354 = vpop.f32.mrf.mxu0
      %v4355 = vadd.f32 0.0, %v4354
      %v4356 = vpop.f32.mrf.mxu0
      %4357 = vdwg.mxu0
      %v4358 = vadd.f32 %v3275, %v3848
      %v4359 = vadd.f32 %v3278, %v3851
      %v4360 = vadd.f32 %v3283, %v3856
      %v4361 = vadd.f32 %v3286, %v3859
      %v4362 = vadd.f32 %v3291, %v3864
      %v4363 = vadd.f32 %v3294, %v3867
      %v4364 = vadd.f32 %v3299, %v3872
      %v4365 = vadd.f32 %v3302, %v3875
      %v4366 = vadd.f32 %v3307, %v3880
      %v4367 = vadd.f32 %v3310, %v3883
      %v4368 = vadd.f32 %v3315, %v3888
      %v4369 = vadd.f32 %v3318, %v3891
      %v4370 = vadd.f32 %v3323, %v3896
      %v4371 = vadd.f32 %v3326, %v3899
      %v4372 = vadd.f32 %v3331, %v3904
      %v4373 = vadd.f32 %v3334, %v3907
      %v4374 = vadd.f32 %v3339, %v3912
      %v4375 = vadd.f32 %v3342, %v3915
      %v4376 = vadd.f32 %v3347, %v3920
      %v4377 = vadd.f32 %v3350, %v3923
      %v4378 = vadd.f32 %v3355, %v3928
      %v4379 = vadd.f32 %v3358, %v3931
      %v4380 = vadd.f32 %v3363, %v3936
      %v4381 = vadd.f32 %v3366, %v3939
      %v4382 = vadd.f32 %v3371, %v3944
      %v4383 = vadd.f32 %v3374, %v3947
      %v4384 = vadd.f32 %v3379, %v3952
      %v4385 = vadd.f32 %v3382, %v3955
      %v4386 = vadd.f32 %v3387, %v3960
      %v4387 = vadd.f32 %v3390, %v3963
      %v4388 = vadd.f32 %v3395, %v3968
      %v4389 = vadd.f32 %v3398, %v3971
      %v4390 = vadd.f32 %v3403, %v3976
      %v4391 = vadd.f32 %v3406, %v3979
      %v4392 = vadd.f32 %v3411, %v3984
      %v4393 = vadd.f32 %v3414, %v3987
      %v4394 = vadd.f32 %v3419, %v3992
      %v4395 = vadd.f32 %v3422, %v3995
      %v4396 = vadd.f32 %v3427, %v4000
      %v4397 = vadd.f32 %v3430, %v4003
      %v4398 = vadd.f32 %v3435, %v4008
      %v4399 = vadd.f32 %v3438, %v4011
      %v4400 = vadd.f32 %v3443, %v4016
      %v4401 = vadd.f32 %v3446, %v4019
      %v4402 = vadd.f32 %v3451, %v4024
      %v4403 = vadd.f32 %v3454, %v4027
      %v4404 = vadd.f32 %v3459, %v4032
      %v4405 = vadd.f32 %v3462, %v4035
      %v4406 = vadd.f32 %v3467, %v4040
      %v4407 = vadd.f32 %v3470, %v4043
      %v4408 = vadd.f32 %v3475, %v4048
      %v4409 = vadd.f32 %v3478, %v4051
      %v4410 = vadd.f32 %v3483, %v4056
      %v4411 = vadd.f32 %v3486, %v4059
      %v4412 = vadd.f32 %v3491, %v4064
      %v4413 = vadd.f32 %v3494, %v4067
      %v4414 = vadd.f32 %v3499, %v4072
      %v4415 = vadd.f32 %v3502, %v4075
      %v4416 = vadd.f32 %v3507, %v4080
      %v4417 = vadd.f32 %v3510, %v4083
      %v4418 = vadd.f32 %v3515, %v4088
      %v4419 = vadd.f32 %v3518, %v4091
      %v4420 = vadd.f32 %v3523, %v4096
      %v4421 = vadd.f32 %v3526, %v4099
      %v4422 = vadd.f32 %v3531, %v4104
      %v4423 = vadd.f32 %v3534, %v4107
      %v4424 = vadd.f32 %v3539, %v4112
      %v4425 = vadd.f32 %v3542, %v4115
      %v4426 = vadd.f32 %v3547, %v4120
      %v4427 = vadd.f32 %v3550, %v4123
      %v4428 = vadd.f32 %v3555, %v4128
      %v4429 = vadd.f32 %v3558, %v4131
      %v4430 = vadd.f32 %v3563, %v4136
      %v4431 = vadd.f32 %v3566, %v4139
      %v4432 = vadd.f32 %v3571, %v4144
      %v4433 = vadd.f32 %v3574, %v4147
      %v4434 = vadd.f32 %v3579, %v4152
      %v4435 = vadd.f32 %v3582, %v4155
      %v4436 = vadd.f32 %v3587, %v4160
      %v4437 = vadd.f32 %v3590, %v4163
      %v4438 = vadd.f32 %v3595, %v4168
      %v4439 = vadd.f32 %v3598, %v4171
      %v4440 = vadd.f32 %v3603, %v4176
      %v4441 = vadd.f32 %v3606, %v4179
      %v4442 = vadd.f32 %v3611, %v4184
      %v4443 = vadd.f32 %v3614, %v4187
      %v4444 = vadd.f32 %v3619, %v4192
      %v4445 = vadd.f32 %v3622, %v4195
      %v4446 = vadd.f32 %v3627, %v4200
      %v4447 = vadd.f32 %v3630, %v4203
      %v4448 = vadd.f32 %v3635, %v4208
      %v4449 = vadd.f32 %v3638, %v4211
      %v4450 = vadd.f32 %v3643, %v4216
      %v4451 = vadd.f32 %v3646, %v4219
      %v4452 = vadd.f32 %v3651, %v4224
      %v4453 = vadd.f32 %v3654, %v4227
      %v4454 = vadd.f32 %v3659, %v4232
      %v4455 = vadd.f32 %v3662, %v4235
      %v4456 = vadd.f32 %v3667, %v4240
      %v4457 = vadd.f32 %v3670, %v4243
      %v4458 = vadd.f32 %v3675, %v4248
      %v4459 = vadd.f32 %v3678, %v4251
      %v4460 = vadd.f32 %v3683, %v4256
      %v4461 = vadd.f32 %v3686, %v4259
      %v4462 = vadd.f32 %v3691, %v4264
      %v4463 = vadd.f32 %v3694, %v4267
      %v4464 = vadd.f32 %v3699, %v4272
      %v4465 = vadd.f32 %v3702, %v4275
      %v4466 = vadd.f32 %v3707, %v4280
      %v4467 = vadd.f32 %v3710, %v4283
      %v4468 = vadd.f32 %v3715, %v4288
      %v4469 = vadd.f32 %v3718, %v4291
      %v4470 = vadd.f32 %v3723, %v4296
      %v4471 = vadd.f32 %v3726, %v4299
      %v4472 = vadd.f32 %v3731, %v4304
      %v4473 = vadd.f32 %v3734, %v4307
      %v4474 = vadd.f32 %v3739, %v4312
      %v4475 = vadd.f32 %v3742, %v4315
      %v4476 = vadd.f32 %v3747, %v4320
      %v4477 = vadd.f32 %v3750, %v4323
      %v4478 = vadd.f32 %v3755, %v4328
      %v4479 = vadd.f32 %v3758, %v4331
      %v4480 = vadd.f32 %v3763, %v4336
      %v4481 = vadd.f32 %v3766, %v4339
      %v4482 = vadd.f32 %v3771, %v4344
      %v4483 = vadd.f32 %v3774, %v4347
      %v4484 = vadd.f32 %v3779, %v4352
      %v4485 = vadd.f32 %v3782, %v4355
      %v4487 = vshrl.u32 %v342, 16
      %v4489 = vrot.slane %v4487, 4
      %v4490 = vshll.u32 %v342, 16
      %v4492 = vrot.slane %v4490, 5
      %v4493 = vor.u32 %v4489, %v4492
      %v4494 = vrot.slane %v4493, 4
      %v4496 = vshll.u32 %v343, 16
      %v4498 = vrot.slane %v4496, 5
      %v4499 = vsel %vm365, %v4494, %v4498
      %v4500 = vshrl.u32 %v343, 16
      %v4502 = vrot.slane %v4500, 4
      %v4503 = vor.u32 %v4502, %v4498
      %v4504 = vrot.slane %v4503, 4
      %v4506 = vshll.u32 %v344, 16
      %v4508 = vrot.slane %v4506, 5
      %v4509 = vsel %vm365, %v4504, %v4508
      %v4510 = vshrl.u32 %v344, 16
      %v4512 = vrot.slane %v4510, 4
      %v4513 = vor.u32 %v4512, %v4508
      %v4514 = vrot.slane %v4513, 4
      %v4516 = vshll.u32 %v345, 16
      %v4518 = vrot.slane %v4516, 5
      %v4519 = vsel %vm365, %v4514, %v4518
      %v4520 = vshrl.u32 %v345, 16
      %v4522 = vrot.slane %v4520, 4
      %v4523 = vor.u32 %v4522, %v4518
      %v4524 = vrot.slane %v4523, 4
      %v4526 = vshll.u32 %v346, 16
      %v4528 = vrot.slane %v4526, 5
      %v4529 = vsel %vm365, %v4524, %v4528
      %v4530 = vunpack.c.l.b16 %v4499
      %v4531 = vunpack.c.l.b16 %v4509
      %v4532 = vunpack.c.l.b16 %v4519
      %v4533 = vunpack.c.l.b16 %v4529
      %v4534 = vpack.c.b16 %v4531, %v4530
      %v4535 = vpack.c.b16 %v4533, %v4532
      %v4540 = vunpack.c.l.b16 %v359
      %v4541 = vunpack.c.l.b16 %v360
      %v4542 = vunpack.c.l.b16 %v361
      %v4543 = vunpack.c.l.b16 %v362
      %v4544 = vpack.c.b16 %v4541, %v4540
      %v4545 = vpack.c.b16 %v4543, %v4542
      %v4549 = vsel %vm1978, %v4534, 0
      %v4552 = vsel %vm1978, %v4535, 0
      %4554 = vmatprep.subr.bf16.mxu0 0
      %4555 = vmatpush1.bf16.msra.mxu0 0
      %4556 = vmatprep.subr.bf16.mxu0 0
      %4557 = vmatpush1.bf16.msra.mxu0 0
      %4558 = vmatprep.subr.bf16.mxu0 0
      %4559 = vmatpush1.bf16.msra.mxu0 0
      %4560 = vmatprep.subr.bf16.mxu0 0
      %4561 = vmatpush1.bf16.msra.mxu0 0
      %4562 = vmatprep.subr.bf16.mxu0 0
      %4563 = vmatpush1.bf16.msra.mxu0 0
      %4564 = vmatprep.subr.bf16.mxu0 0
      %4565 = vmatpush1.bf16.msra.mxu0 0
      %4566 = vmatprep.subr.bf16.mxu0 0
      %4567 = vmatpush1.bf16.msra.mxu0 %v4545
      %4568 = vmatprep.subr.bf16.mxu0 0
      %4569 = vmatpush1.bf16.msra.mxu0 %v4544
      %4570 = vmatprep.subr.bf16.mxu0 0
      %4571 = vmatpush2.bf16.msra.mxu0 0
      %4572 = vmatprep.subr.bf16.mxu0 0
      %4573 = vmatpush2.bf16.msra.mxu0 0
      %4574 = vmatprep.subr.bf16.mxu0 0
      %4575 = vmatpush2.bf16.msra.mxu0 0
      %4576 = vmatprep.subr.bf16.mxu0 0
      %4577 = vmatpush2.bf16.msra.mxu0 0
      %4578 = vmatprep.subr.bf16.mxu0 0
      %4579 = vmatpush2.bf16.msra.mxu0 0
      %4580 = vmatprep.subr.bf16.mxu0 0
      %4581 = vmatpush2.bf16.msra.mxu0 0
      %4582 = vmatprep.subr.bf16.mxu0 0
      %4583 = vmatpush2.bf16.msra.mxu0 0
      %4584 = vmatprep.subr.bf16.mxu0 0
      %4585 = vmatpush2.bf16.msra.mxu0 0
      %4586 = vmatprep.mubr.bf16.mxu0 0
      %4587 = vmatmul.mubr.bf16.gmra.mxu0 %v1986
      %v4588 = vpop.f32.mrf.mxu0
      %v4589 = vadd.f32 0.0, %v4588
      %v4590 = vpop.f32.mrf.mxu0
      %v4591 = vpop.f32.mrf.mxu0
      %v4592 = vadd.f32 0.0, %v4591
      %v4593 = vpop.f32.mrf.mxu0
      %4594 = vmatprep.mubr.bf16.mxu0 0
      %4595 = vmatmul.mubr.bf16.gmra.mxu0 %v1989
      %v4596 = vpop.f32.mrf.mxu0
      %v4597 = vadd.f32 0.0, %v4596
      %v4598 = vpop.f32.mrf.mxu0
      %v4599 = vpop.f32.mrf.mxu0
      %v4600 = vadd.f32 0.0, %v4599
      %v4601 = vpop.f32.mrf.mxu0
      %4602 = vmatprep.mubr.bf16.mxu0 0
      %4603 = vmatmul.mubr.bf16.gmra.mxu0 %v1992
      %v4604 = vpop.f32.mrf.mxu0
      %v4605 = vadd.f32 0.0, %v4604
      %v4606 = vpop.f32.mrf.mxu0
      %v4607 = vpop.f32.mrf.mxu0
      %v4608 = vadd.f32 0.0, %v4607
      %v4609 = vpop.f32.mrf.mxu0
      %4610 = vmatprep.mubr.bf16.mxu0 0
      %4611 = vmatmul.mubr.bf16.gmra.mxu0 %v1995
      %v4612 = vpop.f32.mrf.mxu0
      %v4613 = vadd.f32 0.0, %v4612
      %v4614 = vpop.f32.mrf.mxu0
      %v4615 = vpop.f32.mrf.mxu0
      %v4616 = vadd.f32 0.0, %v4615
      %v4617 = vpop.f32.mrf.mxu0
      %4618 = vmatprep.mubr.bf16.mxu0 0
      %4619 = vmatmul.mubr.bf16.gmra.mxu0 %v1998
      %v4620 = vpop.f32.mrf.mxu0
      %v4621 = vadd.f32 0.0, %v4620
      %v4622 = vpop.f32.mrf.mxu0
      %v4623 = vpop.f32.mrf.mxu0
      %v4624 = vadd.f32 0.0, %v4623
      %v4625 = vpop.f32.mrf.mxu0
      %4626 = vmatprep.mubr.bf16.mxu0 0
      %4627 = vmatmul.mubr.bf16.gmra.mxu0 %v2001
      %v4628 = vpop.f32.mrf.mxu0
      %v4629 = vadd.f32 0.0, %v4628
      %v4630 = vpop.f32.mrf.mxu0
      %v4631 = vpop.f32.mrf.mxu0
      %v4632 = vadd.f32 0.0, %v4631
      %v4633 = vpop.f32.mrf.mxu0
      %4634 = vmatprep.mubr.bf16.mxu0 0
      %4635 = vmatmul.mubr.bf16.gmra.mxu0 %v2004
      %v4636 = vpop.f32.mrf.mxu0
      %v4637 = vadd.f32 0.0, %v4636
      %v4638 = vpop.f32.mrf.mxu0
      %v4639 = vpop.f32.mrf.mxu0
      %v4640 = vadd.f32 0.0, %v4639
      %v4641 = vpop.f32.mrf.mxu0
      %4642 = vmatprep.mubr.bf16.mxu0 0
      %4643 = vmatmul.mubr.bf16.gmra.mxu0 %v2007
      %v4644 = vpop.f32.mrf.mxu0
      %v4645 = vadd.f32 0.0, %v4644
      %v4646 = vpop.f32.mrf.mxu0
      %v4647 = vpop.f32.mrf.mxu0
      %v4648 = vadd.f32 0.0, %v4647
      %v4649 = vpop.f32.mrf.mxu0
      %4650 = vmatprep.mubr.bf16.mxu0 0
      %4651 = vmatmul.mubr.bf16.gmra.mxu0 %v2010
      %v4652 = vpop.f32.mrf.mxu0
      %v4653 = vadd.f32 0.0, %v4652
      %v4654 = vpop.f32.mrf.mxu0
      %v4655 = vpop.f32.mrf.mxu0
      %v4656 = vadd.f32 0.0, %v4655
      %v4657 = vpop.f32.mrf.mxu0
      %4658 = vmatprep.mubr.bf16.mxu0 0
      %4659 = vmatmul.mubr.bf16.gmra.mxu0 %v2013
      %v4660 = vpop.f32.mrf.mxu0
      %v4661 = vadd.f32 0.0, %v4660
      %v4662 = vpop.f32.mrf.mxu0
      %v4663 = vpop.f32.mrf.mxu0
      %v4664 = vadd.f32 0.0, %v4663
      %v4665 = vpop.f32.mrf.mxu0
      %4666 = vmatprep.mubr.bf16.mxu0 0
      %4667 = vmatmul.mubr.bf16.gmra.mxu0 %v2016
      %v4668 = vpop.f32.mrf.mxu0
      %v4669 = vadd.f32 0.0, %v4668
      %v4670 = vpop.f32.mrf.mxu0
      %v4671 = vpop.f32.mrf.mxu0
      %v4672 = vadd.f32 0.0, %v4671
      %v4673 = vpop.f32.mrf.mxu0
      %4674 = vmatprep.mubr.bf16.mxu0 0
      %4675 = vmatmul.mubr.bf16.gmra.mxu0 %v2019
      %v4676 = vpop.f32.mrf.mxu0
      %v4677 = vadd.f32 0.0, %v4676
      %v4678 = vpop.f32.mrf.mxu0
      %v4679 = vpop.f32.mrf.mxu0
      %v4680 = vadd.f32 0.0, %v4679
      %v4681 = vpop.f32.mrf.mxu0
      %4682 = vmatprep.mubr.bf16.mxu0 0
      %4683 = vmatmul.mubr.bf16.gmra.mxu0 %v2022
      %v4684 = vpop.f32.mrf.mxu0
      %v4685 = vadd.f32 0.0, %v4684
      %v4686 = vpop.f32.mrf.mxu0
      %v4687 = vpop.f32.mrf.mxu0
      %v4688 = vadd.f32 0.0, %v4687
      %v4689 = vpop.f32.mrf.mxu0
      %4690 = vmatprep.mubr.bf16.mxu0 0
      %4691 = vmatmul.mubr.bf16.gmra.mxu0 %v2025
      %v4692 = vpop.f32.mrf.mxu0
      %v4693 = vadd.f32 0.0, %v4692
      %v4694 = vpop.f32.mrf.mxu0
      %v4695 = vpop.f32.mrf.mxu0
      %v4696 = vadd.f32 0.0, %v4695
      %v4697 = vpop.f32.mrf.mxu0
      %4698 = vmatprep.mubr.bf16.mxu0 0
      %4699 = vmatmul.mubr.bf16.gmra.mxu0 %v2028
      %v4700 = vpop.f32.mrf.mxu0
      %v4701 = vadd.f32 0.0, %v4700
      %v4702 = vpop.f32.mrf.mxu0
      %v4703 = vpop.f32.mrf.mxu0
      %v4704 = vadd.f32 0.0, %v4703
      %v4705 = vpop.f32.mrf.mxu0
      %4706 = vmatprep.mubr.bf16.mxu0 0
      %4707 = vmatmul.mubr.bf16.gmra.mxu0 %v2031
      %v4708 = vpop.f32.mrf.mxu0
      %v4709 = vadd.f32 0.0, %v4708
      %v4710 = vpop.f32.mrf.mxu0
      %v4711 = vpop.f32.mrf.mxu0
      %v4712 = vadd.f32 0.0, %v4711
      %v4713 = vpop.f32.mrf.mxu0
      %4714 = vmatprep.mubr.bf16.mxu0 0
      %4715 = vmatmul.mubr.bf16.gmra.mxu0 %v2034
      %v4716 = vpop.f32.mrf.mxu0
      %v4717 = vadd.f32 0.0, %v4716
      %v4718 = vpop.f32.mrf.mxu0
      %v4719 = vpop.f32.mrf.mxu0
      %v4720 = vadd.f32 0.0, %v4719
      %v4721 = vpop.f32.mrf.mxu0
      %4722 = vmatprep.mubr.bf16.mxu0 0
      %4723 = vmatmul.mubr.bf16.gmra.mxu0 %v2037
      %v4724 = vpop.f32.mrf.mxu0
      %v4725 = vadd.f32 0.0, %v4724
      %v4726 = vpop.f32.mrf.mxu0
      %v4727 = vpop.f32.mrf.mxu0
      %v4728 = vadd.f32 0.0, %v4727
      %v4729 = vpop.f32.mrf.mxu0
      %4730 = vmatprep.mubr.bf16.mxu0 0
      %4731 = vmatmul.mubr.bf16.gmra.mxu0 %v2040
      %v4732 = vpop.f32.mrf.mxu0
      %v4733 = vadd.f32 0.0, %v4732
      %v4734 = vpop.f32.mrf.mxu0
      %v4735 = vpop.f32.mrf.mxu0
      %v4736 = vadd.f32 0.0, %v4735
      %v4737 = vpop.f32.mrf.mxu0
      %4738 = vmatprep.mubr.bf16.mxu0 0
      %4739 = vmatmul.mubr.bf16.gmra.mxu0 %v2043
      %v4740 = vpop.f32.mrf.mxu0
      %v4741 = vadd.f32 0.0, %v4740
      %v4742 = vpop.f32.mrf.mxu0
      %v4743 = vpop.f32.mrf.mxu0
      %v4744 = vadd.f32 0.0, %v4743
      %v4745 = vpop.f32.mrf.mxu0
      %4746 = vmatprep.mubr.bf16.mxu0 0
      %4747 = vmatmul.mubr.bf16.gmra.mxu0 %v2046
      %v4748 = vpop.f32.mrf.mxu0
      %v4749 = vadd.f32 0.0, %v4748
      %v4750 = vpop.f32.mrf.mxu0
      %v4751 = vpop.f32.mrf.mxu0
      %v4752 = vadd.f32 0.0, %v4751
      %v4753 = vpop.f32.mrf.mxu0
      %4754 = vmatprep.mubr.bf16.mxu0 0
      %4755 = vmatmul.mubr.bf16.gmra.mxu0 %v2049
      %v4756 = vpop.f32.mrf.mxu0
      %v4757 = vadd.f32 0.0, %v4756
      %v4758 = vpop.f32.mrf.mxu0
      %v4759 = vpop.f32.mrf.mxu0
      %v4760 = vadd.f32 0.0, %v4759
      %v4761 = vpop.f32.mrf.mxu0
      %4762 = vmatprep.mubr.bf16.mxu0 0
      %4763 = vmatmul.mubr.bf16.gmra.mxu0 %v2052
      %v4764 = vpop.f32.mrf.mxu0
      %v4765 = vadd.f32 0.0, %v4764
      %v4766 = vpop.f32.mrf.mxu0
      %v4767 = vpop.f32.mrf.mxu0
      %v4768 = vadd.f32 0.0, %v4767
      %v4769 = vpop.f32.mrf.mxu0
      %4770 = vmatprep.mubr.bf16.mxu0 0
      %4771 = vmatmul.mubr.bf16.gmra.mxu0 %v2055
      %v4772 = vpop.f32.mrf.mxu0
      %v4773 = vadd.f32 0.0, %v4772
      %v4774 = vpop.f32.mrf.mxu0
      %v4775 = vpop.f32.mrf.mxu0
      %v4776 = vadd.f32 0.0, %v4775
      %v4777 = vpop.f32.mrf.mxu0
      %4778 = vmatprep.mubr.bf16.mxu0 0
      %4779 = vmatmul.mubr.bf16.gmra.mxu0 %v2058
      %v4780 = vpop.f32.mrf.mxu0
      %v4781 = vadd.f32 0.0, %v4780
      %v4782 = vpop.f32.mrf.mxu0
      %v4783 = vpop.f32.mrf.mxu0
      %v4784 = vadd.f32 0.0, %v4783
      %v4785 = vpop.f32.mrf.mxu0
      %4786 = vmatprep.mubr.bf16.mxu0 0
      %4787 = vmatmul.mubr.bf16.gmra.mxu0 %v2061
      %v4788 = vpop.f32.mrf.mxu0
      %v4789 = vadd.f32 0.0, %v4788
      %v4790 = vpop.f32.mrf.mxu0
      %v4791 = vpop.f32.mrf.mxu0
      %v4792 = vadd.f32 0.0, %v4791
      %v4793 = vpop.f32.mrf.mxu0
      %4794 = vmatprep.mubr.bf16.mxu0 0
      %4795 = vmatmul.mubr.bf16.gmra.mxu0 %v2064
      %v4796 = vpop.f32.mrf.mxu0
      %v4797 = vadd.f32 0.0, %v4796
      %v4798 = vpop.f32.mrf.mxu0
      %v4799 = vpop.f32.mrf.mxu0
      %v4800 = vadd.f32 0.0, %v4799
      %v4801 = vpop.f32.mrf.mxu0
      %4802 = vmatprep.mubr.bf16.mxu0 0
      %4803 = vmatmul.mubr.bf16.gmra.mxu0 %v2067
      %v4804 = vpop.f32.mrf.mxu0
      %v4805 = vadd.f32 0.0, %v4804
      %v4806 = vpop.f32.mrf.mxu0
      %v4807 = vpop.f32.mrf.mxu0
      %v4808 = vadd.f32 0.0, %v4807
      %v4809 = vpop.f32.mrf.mxu0
      %4810 = vmatprep.mubr.bf16.mxu0 0
      %4811 = vmatmul.mubr.bf16.gmra.mxu0 %v2070
      %v4812 = vpop.f32.mrf.mxu0
      %v4813 = vadd.f32 0.0, %v4812
      %v4814 = vpop.f32.mrf.mxu0
      %v4815 = vpop.f32.mrf.mxu0
      %v4816 = vadd.f32 0.0, %v4815
      %v4817 = vpop.f32.mrf.mxu0
      %4818 = vmatprep.mubr.bf16.mxu0 0
      %4819 = vmatmul.mubr.bf16.gmra.mxu0 %v2073
      %v4820 = vpop.f32.mrf.mxu0
      %v4821 = vadd.f32 0.0, %v4820
      %v4822 = vpop.f32.mrf.mxu0
      %v4823 = vpop.f32.mrf.mxu0
      %v4824 = vadd.f32 0.0, %v4823
      %v4825 = vpop.f32.mrf.mxu0
      %4826 = vmatprep.mubr.bf16.mxu0 0
      %4827 = vmatmul.mubr.bf16.gmra.mxu0 %v2076
      %v4828 = vpop.f32.mrf.mxu0
      %v4829 = vadd.f32 0.0, %v4828
      %v4830 = vpop.f32.mrf.mxu0
      %v4831 = vpop.f32.mrf.mxu0
      %v4832 = vadd.f32 0.0, %v4831
      %v4833 = vpop.f32.mrf.mxu0
      %4834 = vmatprep.mubr.bf16.mxu0 0
      %4835 = vmatmul.mubr.bf16.gmra.mxu0 %v2079
      %v4836 = vpop.f32.mrf.mxu0
      %v4837 = vadd.f32 0.0, %v4836
      %v4838 = vpop.f32.mrf.mxu0
      %v4839 = vpop.f32.mrf.mxu0
      %v4840 = vadd.f32 0.0, %v4839
      %v4841 = vpop.f32.mrf.mxu0
      %4842 = vmatprep.mubr.bf16.mxu0 0
      %4843 = vmatmul.mubr.bf16.gmra.mxu0 %v2082
      %v4844 = vpop.f32.mrf.mxu0
      %v4845 = vadd.f32 0.0, %v4844
      %v4846 = vpop.f32.mrf.mxu0
      %v4847 = vpop.f32.mrf.mxu0
      %v4848 = vadd.f32 0.0, %v4847
      %v4849 = vpop.f32.mrf.mxu0
      %4850 = vmatprep.mubr.bf16.mxu0 0
      %4851 = vmatmul.mubr.bf16.gmra.mxu0 %v2085
      %v4852 = vpop.f32.mrf.mxu0
      %v4853 = vadd.f32 0.0, %v4852
      %v4854 = vpop.f32.mrf.mxu0
      %v4855 = vpop.f32.mrf.mxu0
      %v4856 = vadd.f32 0.0, %v4855
      %v4857 = vpop.f32.mrf.mxu0
      %4858 = vmatprep.mubr.bf16.mxu0 0
      %4859 = vmatmul.mubr.bf16.gmra.mxu0 %v2088
      %v4860 = vpop.f32.mrf.mxu0
      %v4861 = vadd.f32 0.0, %v4860
      %v4862 = vpop.f32.mrf.mxu0
      %v4863 = vpop.f32.mrf.mxu0
      %v4864 = vadd.f32 0.0, %v4863
      %v4865 = vpop.f32.mrf.mxu0
      %4866 = vmatprep.mubr.bf16.mxu0 0
      %4867 = vmatmul.mubr.bf16.gmra.mxu0 %v2091
      %v4868 = vpop.f32.mrf.mxu0
      %v4869 = vadd.f32 0.0, %v4868
      %v4870 = vpop.f32.mrf.mxu0
      %v4871 = vpop.f32.mrf.mxu0
      %v4872 = vadd.f32 0.0, %v4871
      %v4873 = vpop.f32.mrf.mxu0
      %4874 = vmatprep.mubr.bf16.mxu0 0
      %4875 = vmatmul.mubr.bf16.gmra.mxu0 %v2094
      %v4876 = vpop.f32.mrf.mxu0
      %v4877 = vadd.f32 0.0, %v4876
      %v4878 = vpop.f32.mrf.mxu0
      %v4879 = vpop.f32.mrf.mxu0
      %v4880 = vadd.f32 0.0, %v4879
      %v4881 = vpop.f32.mrf.mxu0
      %4882 = vmatprep.mubr.bf16.mxu0 0
      %4883 = vmatmul.mubr.bf16.gmra.mxu0 %v2097
      %v4884 = vpop.f32.mrf.mxu0
      %v4885 = vadd.f32 0.0, %v4884
      %v4886 = vpop.f32.mrf.mxu0
      %v4887 = vpop.f32.mrf.mxu0
      %v4888 = vadd.f32 0.0, %v4887
      %v4889 = vpop.f32.mrf.mxu0
      %4890 = vmatprep.mubr.bf16.mxu0 0
      %4891 = vmatmul.mubr.bf16.gmra.mxu0 %v2100
      %v4892 = vpop.f32.mrf.mxu0
      %v4893 = vadd.f32 0.0, %v4892
      %v4894 = vpop.f32.mrf.mxu0
      %v4895 = vpop.f32.mrf.mxu0
      %v4896 = vadd.f32 0.0, %v4895
      %v4897 = vpop.f32.mrf.mxu0
      %4898 = vmatprep.mubr.bf16.mxu0 0
      %4899 = vmatmul.mubr.bf16.gmra.mxu0 %v2103
      %v4900 = vpop.f32.mrf.mxu0
      %v4901 = vadd.f32 0.0, %v4900
      %v4902 = vpop.f32.mrf.mxu0
      %v4903 = vpop.f32.mrf.mxu0
      %v4904 = vadd.f32 0.0, %v4903
      %v4905 = vpop.f32.mrf.mxu0
      %4906 = vmatprep.mubr.bf16.mxu0 0
      %4907 = vmatmul.mubr.bf16.gmra.mxu0 %v2106
      %v4908 = vpop.f32.mrf.mxu0
      %v4909 = vadd.f32 0.0, %v4908
      %v4910 = vpop.f32.mrf.mxu0
      %v4911 = vpop.f32.mrf.mxu0
      %v4912 = vadd.f32 0.0, %v4911
      %v4913 = vpop.f32.mrf.mxu0
      %4914 = vmatprep.mubr.bf16.mxu0 0
      %4915 = vmatmul.mubr.bf16.gmra.mxu0 %v2109
      %v4916 = vpop.f32.mrf.mxu0
      %v4917 = vadd.f32 0.0, %v4916
      %v4918 = vpop.f32.mrf.mxu0
      %v4919 = vpop.f32.mrf.mxu0
      %v4920 = vadd.f32 0.0, %v4919
      %v4921 = vpop.f32.mrf.mxu0
      %4922 = vmatprep.mubr.bf16.mxu0 0
      %4923 = vmatmul.mubr.bf16.gmra.mxu0 %v2112
      %v4924 = vpop.f32.mrf.mxu0
      %v4925 = vadd.f32 0.0, %v4924
      %v4926 = vpop.f32.mrf.mxu0
      %v4927 = vpop.f32.mrf.mxu0
      %v4928 = vadd.f32 0.0, %v4927
      %v4929 = vpop.f32.mrf.mxu0
      %4930 = vmatprep.mubr.bf16.mxu0 0
      %4931 = vmatmul.mubr.bf16.gmra.mxu0 %v2115
      %v4932 = vpop.f32.mrf.mxu0
      %v4933 = vadd.f32 0.0, %v4932
      %v4934 = vpop.f32.mrf.mxu0
      %v4935 = vpop.f32.mrf.mxu0
      %v4936 = vadd.f32 0.0, %v4935
      %v4937 = vpop.f32.mrf.mxu0
      %4938 = vmatprep.mubr.bf16.mxu0 0
      %4939 = vmatmul.mubr.bf16.gmra.mxu0 %v2118
      %v4940 = vpop.f32.mrf.mxu0
      %v4941 = vadd.f32 0.0, %v4940
      %v4942 = vpop.f32.mrf.mxu0
      %v4943 = vpop.f32.mrf.mxu0
      %v4944 = vadd.f32 0.0, %v4943
      %v4945 = vpop.f32.mrf.mxu0
      %4946 = vmatprep.mubr.bf16.mxu0 0
      %4947 = vmatmul.mubr.bf16.gmra.mxu0 %v2121
      %v4948 = vpop.f32.mrf.mxu0
      %v4949 = vadd.f32 0.0, %v4948
      %v4950 = vpop.f32.mrf.mxu0
      %v4951 = vpop.f32.mrf.mxu0
      %v4952 = vadd.f32 0.0, %v4951
      %v4953 = vpop.f32.mrf.mxu0
      %4954 = vmatprep.mubr.bf16.mxu0 0
      %4955 = vmatmul.mubr.bf16.gmra.mxu0 %v2124
      %v4956 = vpop.f32.mrf.mxu0
      %v4957 = vadd.f32 0.0, %v4956
      %v4958 = vpop.f32.mrf.mxu0
      %v4959 = vpop.f32.mrf.mxu0
      %v4960 = vadd.f32 0.0, %v4959
      %v4961 = vpop.f32.mrf.mxu0
      %4962 = vmatprep.mubr.bf16.mxu0 0
      %4963 = vmatmul.mubr.bf16.gmra.mxu0 %v2127
      %v4964 = vpop.f32.mrf.mxu0
      %v4965 = vadd.f32 0.0, %v4964
      %v4966 = vpop.f32.mrf.mxu0
      %v4967 = vpop.f32.mrf.mxu0
      %v4968 = vadd.f32 0.0, %v4967
      %v4969 = vpop.f32.mrf.mxu0
      %4970 = vmatprep.mubr.bf16.mxu0 0
      %4971 = vmatmul.mubr.bf16.gmra.mxu0 %v2130
      %v4972 = vpop.f32.mrf.mxu0
      %v4973 = vadd.f32 0.0, %v4972
      %v4974 = vpop.f32.mrf.mxu0
      %v4975 = vpop.f32.mrf.mxu0
      %v4976 = vadd.f32 0.0, %v4975
      %v4977 = vpop.f32.mrf.mxu0
      %4978 = vmatprep.mubr.bf16.mxu0 0
      %4979 = vmatmul.mubr.bf16.gmra.mxu0 %v2133
      %v4980 = vpop.f32.mrf.mxu0
      %v4981 = vadd.f32 0.0, %v4980
      %v4982 = vpop.f32.mrf.mxu0
      %v4983 = vpop.f32.mrf.mxu0
      %v4984 = vadd.f32 0.0, %v4983
      %v4985 = vpop.f32.mrf.mxu0
      %4986 = vmatprep.mubr.bf16.mxu0 0
      %4987 = vmatmul.mubr.bf16.gmra.mxu0 %v2136
      %v4988 = vpop.f32.mrf.mxu0
      %v4989 = vadd.f32 0.0, %v4988
      %v4990 = vpop.f32.mrf.mxu0
      %v4991 = vpop.f32.mrf.mxu0
      %v4992 = vadd.f32 0.0, %v4991
      %v4993 = vpop.f32.mrf.mxu0
      %4994 = vmatprep.mubr.bf16.mxu0 0
      %4995 = vmatmul.mubr.bf16.gmra.mxu0 %v2139
      %v4996 = vpop.f32.mrf.mxu0
      %v4997 = vadd.f32 0.0, %v4996
      %v4998 = vpop.f32.mrf.mxu0
      %v4999 = vpop.f32.mrf.mxu0
      %v5000 = vadd.f32 0.0, %v4999
      %v5001 = vpop.f32.mrf.mxu0
      %5002 = vmatprep.mubr.bf16.mxu0 0
      %5003 = vmatmul.mubr.bf16.gmra.mxu0 %v2142
      %v5004 = vpop.f32.mrf.mxu0
      %v5005 = vadd.f32 0.0, %v5004
      %v5006 = vpop.f32.mrf.mxu0
      %v5007 = vpop.f32.mrf.mxu0
      %v5008 = vadd.f32 0.0, %v5007
      %v5009 = vpop.f32.mrf.mxu0
      %5010 = vmatprep.mubr.bf16.mxu0 0
      %5011 = vmatmul.mubr.bf16.gmra.mxu0 %v2145
      %v5012 = vpop.f32.mrf.mxu0
      %v5013 = vadd.f32 0.0, %v5012
      %v5014 = vpop.f32.mrf.mxu0
      %v5015 = vpop.f32.mrf.mxu0
      %v5016 = vadd.f32 0.0, %v5015
      %v5017 = vpop.f32.mrf.mxu0
      %5018 = vmatprep.mubr.bf16.mxu0 0
      %5019 = vmatmul.mubr.bf16.gmra.mxu0 %v2148
      %v5020 = vpop.f32.mrf.mxu0
      %v5021 = vadd.f32 0.0, %v5020
      %v5022 = vpop.f32.mrf.mxu0
      %v5023 = vpop.f32.mrf.mxu0
      %v5024 = vadd.f32 0.0, %v5023
      %v5025 = vpop.f32.mrf.mxu0
      %5026 = vmatprep.mubr.bf16.mxu0 0
      %5027 = vmatmul.mubr.bf16.gmra.mxu0 %v2151
      %v5028 = vpop.f32.mrf.mxu0
      %v5029 = vadd.f32 0.0, %v5028
      %v5030 = vpop.f32.mrf.mxu0
      %v5031 = vpop.f32.mrf.mxu0
      %v5032 = vadd.f32 0.0, %v5031
      %v5033 = vpop.f32.mrf.mxu0
      %5034 = vmatprep.mubr.bf16.mxu0 0
      %5035 = vmatmul.mubr.bf16.gmra.mxu0 %v2154
      %v5036 = vpop.f32.mrf.mxu0
      %v5037 = vadd.f32 0.0, %v5036
      %v5038 = vpop.f32.mrf.mxu0
      %v5039 = vpop.f32.mrf.mxu0
      %v5040 = vadd.f32 0.0, %v5039
      %v5041 = vpop.f32.mrf.mxu0
      %5042 = vmatprep.mubr.bf16.mxu0 0
      %5043 = vmatmul.mubr.bf16.gmra.mxu0 %v2157
      %v5044 = vpop.f32.mrf.mxu0
      %v5045 = vadd.f32 0.0, %v5044
      %v5046 = vpop.f32.mrf.mxu0
      %v5047 = vpop.f32.mrf.mxu0
      %v5048 = vadd.f32 0.0, %v5047
      %v5049 = vpop.f32.mrf.mxu0
      %5050 = vmatprep.mubr.bf16.mxu0 0
      %5051 = vmatmul.mubr.bf16.gmra.mxu0 %v2160
      %v5052 = vpop.f32.mrf.mxu0
      %v5053 = vadd.f32 0.0, %v5052
      %v5054 = vpop.f32.mrf.mxu0
      %v5055 = vpop.f32.mrf.mxu0
      %v5056 = vadd.f32 0.0, %v5055
      %v5057 = vpop.f32.mrf.mxu0
      %5058 = vmatprep.mubr.bf16.mxu0 0
      %5059 = vmatmul.mubr.bf16.gmra.mxu0 %v2163
      %v5060 = vpop.f32.mrf.mxu0
      %v5061 = vadd.f32 0.0, %v5060
      %v5062 = vpop.f32.mrf.mxu0
      %v5063 = vpop.f32.mrf.mxu0
      %v5064 = vadd.f32 0.0, %v5063
      %v5065 = vpop.f32.mrf.mxu0
      %5066 = vmatprep.mubr.bf16.mxu0 0
      %5067 = vmatmul.mubr.bf16.gmra.mxu0 %v2166
      %v5068 = vpop.f32.mrf.mxu0
      %v5069 = vadd.f32 0.0, %v5068
      %v5070 = vpop.f32.mrf.mxu0
      %v5071 = vpop.f32.mrf.mxu0
      %v5072 = vadd.f32 0.0, %v5071
      %v5073 = vpop.f32.mrf.mxu0
      %5074 = vmatprep.mubr.bf16.mxu0 0
      %5075 = vmatmul.mubr.bf16.gmra.mxu0 %v2169
      %v5076 = vpop.f32.mrf.mxu0
      %v5077 = vadd.f32 0.0, %v5076
      %v5078 = vpop.f32.mrf.mxu0
      %v5079 = vpop.f32.mrf.mxu0
      %v5080 = vadd.f32 0.0, %v5079
      %v5081 = vpop.f32.mrf.mxu0
      %5082 = vmatprep.mubr.bf16.mxu0 0
      %5083 = vmatmul.mubr.bf16.gmra.mxu0 %v4549
      %v5084 = vpop.f32.mrf.mxu0
      %v5085 = vadd.f32 0.0, %v5084
      %v5086 = vpop.f32.mrf.mxu0
      %v5087 = vpop.f32.mrf.mxu0
      %v5088 = vadd.f32 0.0, %v5087
      %v5089 = vpop.f32.mrf.mxu0
      %5090 = vmatprep.mubr.bf16.mxu0 0
      %5091 = vmatmul.mubr.bf16.gmra.mxu0 %v4552
      %v5092 = vpop.f32.mrf.mxu0
      %v5093 = vadd.f32 0.0, %v5092
      %v5094 = vpop.f32.mrf.mxu0
      %v5095 = vpop.f32.mrf.mxu0
      %v5096 = vadd.f32 0.0, %v5095
      %v5097 = vpop.f32.mrf.mxu0
      %5098 = vdwg.mxu0
      %v5099 = vadd.f32 %v4358, %v4589
      %v5100 = vadd.f32 %v4359, %v4592
      %v5101 = vadd.f32 %v4360, %v4597
      %v5102 = vadd.f32 %v4361, %v4600
      %v5103 = vadd.f32 %v4362, %v4605
      %v5104 = vadd.f32 %v4363, %v4608
      %v5105 = vadd.f32 %v4364, %v4613
      %v5106 = vadd.f32 %v4365, %v4616
      %v5107 = vadd.f32 %v4366, %v4621
      %v5108 = vadd.f32 %v4367, %v4624
      %v5109 = vadd.f32 %v4368, %v4629
      %v5110 = vadd.f32 %v4369, %v4632
      %v5111 = vadd.f32 %v4370, %v4637
      %v5112 = vadd.f32 %v4371, %v4640
      %v5113 = vadd.f32 %v4372, %v4645
      %v5114 = vadd.f32 %v4373, %v4648
      %v5115 = vadd.f32 %v4374, %v4653
      %v5116 = vadd.f32 %v4375, %v4656
      %v5117 = vadd.f32 %v4376, %v4661
      %v5118 = vadd.f32 %v4377, %v4664
      %v5119 = vadd.f32 %v4378, %v4669
      %v5120 = vadd.f32 %v4379, %v4672
      %v5121 = vadd.f32 %v4380, %v4677
      %v5122 = vadd.f32 %v4381, %v4680
      %v5123 = vadd.f32 %v4382, %v4685
      %v5124 = vadd.f32 %v4383, %v4688
      %v5125 = vadd.f32 %v4384, %v4693
      %v5126 = vadd.f32 %v4385, %v4696
      %v5127 = vadd.f32 %v4386, %v4701
      %v5128 = vadd.f32 %v4387, %v4704
      %v5129 = vadd.f32 %v4388, %v4709
      %v5130 = vadd.f32 %v4389, %v4712
      %v5131 = vadd.f32 %v4390, %v4717
      %v5132 = vadd.f32 %v4391, %v4720
      %v5133 = vadd.f32 %v4392, %v4725
      %v5134 = vadd.f32 %v4393, %v4728
      %v5135 = vadd.f32 %v4394, %v4733
      %v5136 = vadd.f32 %v4395, %v4736
      %v5137 = vadd.f32 %v4396, %v4741
      %v5138 = vadd.f32 %v4397, %v4744
      %v5139 = vadd.f32 %v4398, %v4749
      %v5140 = vadd.f32 %v4399, %v4752
      %v5141 = vadd.f32 %v4400, %v4757
      %v5142 = vadd.f32 %v4401, %v4760
      %v5143 = vadd.f32 %v4402, %v4765
      %v5144 = vadd.f32 %v4403, %v4768
      %v5145 = vadd.f32 %v4404, %v4773
      %v5146 = vadd.f32 %v4405, %v4776
      %v5147 = vadd.f32 %v4406, %v4781
      %v5148 = vadd.f32 %v4407, %v4784
      %v5149 = vadd.f32 %v4408, %v4789
      %v5150 = vadd.f32 %v4409, %v4792
      %v5151 = vadd.f32 %v4410, %v4797
      %v5152 = vadd.f32 %v4411, %v4800
      %v5153 = vadd.f32 %v4412, %v4805
      %v5154 = vadd.f32 %v4413, %v4808
      %v5155 = vadd.f32 %v4414, %v4813
      %v5156 = vadd.f32 %v4415, %v4816
      %v5157 = vadd.f32 %v4416, %v4821
      %v5158 = vadd.f32 %v4417, %v4824
      %v5159 = vadd.f32 %v4418, %v4829
      %v5160 = vadd.f32 %v4419, %v4832
      %v5161 = vadd.f32 %v4420, %v4837
      %v5162 = vadd.f32 %v4421, %v4840
      %v5163 = vadd.f32 %v4422, %v4845
      %v5164 = vadd.f32 %v4423, %v4848
      %v5165 = vadd.f32 %v4424, %v4853
      %v5166 = vadd.f32 %v4425, %v4856
      %v5167 = vadd.f32 %v4426, %v4861
      %v5168 = vadd.f32 %v4427, %v4864
      %v5169 = vadd.f32 %v4428, %v4869
      %v5170 = vadd.f32 %v4429, %v4872
      %v5171 = vadd.f32 %v4430, %v4877
      %v5172 = vadd.f32 %v4431, %v4880
      %v5173 = vadd.f32 %v4432, %v4885
      %v5174 = vadd.f32 %v4433, %v4888
      %v5175 = vadd.f32 %v4434, %v4893
      %v5176 = vadd.f32 %v4435, %v4896
      %v5177 = vadd.f32 %v4436, %v4901
      %v5178 = vadd.f32 %v4437, %v4904
      %v5179 = vadd.f32 %v4438, %v4909
      %v5180 = vadd.f32 %v4439, %v4912
      %v5181 = vadd.f32 %v4440, %v4917
      %v5182 = vadd.f32 %v4441, %v4920
      %v5183 = vadd.f32 %v4442, %v4925
      %v5184 = vadd.f32 %v4443, %v4928
      %v5185 = vadd.f32 %v4444, %v4933
      %v5186 = vadd.f32 %v4445, %v4936
      %v5187 = vadd.f32 %v4446, %v4941
      %v5188 = vadd.f32 %v4447, %v4944
      %v5189 = vadd.f32 %v4448, %v4949
      %v5190 = vadd.f32 %v4449, %v4952
      %v5191 = vadd.f32 %v4450, %v4957
      %v5192 = vadd.f32 %v4451, %v4960
      %v5193 = vadd.f32 %v4452, %v4965
      %v5194 = vadd.f32 %v4453, %v4968
      %v5195 = vadd.f32 %v4454, %v4973
      %v5196 = vadd.f32 %v4455, %v4976
      %v5197 = vadd.f32 %v4456, %v4981
      %v5198 = vadd.f32 %v4457, %v4984
      %v5199 = vadd.f32 %v4458, %v4989
      %v5200 = vadd.f32 %v4459, %v4992
      %v5201 = vadd.f32 %v4460, %v4997
      %v5202 = vadd.f32 %v4461, %v5000
      %v5203 = vadd.f32 %v4462, %v5005
      %v5204 = vadd.f32 %v4463, %v5008
      %v5205 = vadd.f32 %v4464, %v5013
      %v5206 = vadd.f32 %v4465, %v5016
      %v5207 = vadd.f32 %v4466, %v5021
      %v5208 = vadd.f32 %v4467, %v5024
      %v5209 = vadd.f32 %v4468, %v5029
      %v5210 = vadd.f32 %v4469, %v5032
      %v5211 = vadd.f32 %v4470, %v5037
      %v5212 = vadd.f32 %v4471, %v5040
      %v5213 = vadd.f32 %v4472, %v5045
      %v5214 = vadd.f32 %v4473, %v5048
      %v5215 = vadd.f32 %v4474, %v5053
      %v5216 = vadd.f32 %v4475, %v5056
      %v5217 = vadd.f32 %v4476, %v5061
      %v5218 = vadd.f32 %v4477, %v5064
      %v5219 = vadd.f32 %v4478, %v5069
      %v5220 = vadd.f32 %v4479, %v5072
      %v5221 = vadd.f32 %v4480, %v5077
      %v5222 = vadd.f32 %v4481, %v5080
      %v5223 = vadd.f32 %v4482, %v5085
      %v5224 = vadd.f32 %v4483, %v5088
      %v5225 = vadd.f32 %v4484, %v5093
      %v5226 = vadd.f32 %v4485, %v5096
      %vm5227 = vcmp.ge.f32.partialorder %v5099, 0.0
      %vm5228 = vcmp.ge.f32.partialorder %v5100, 0.0
      %vm5229 = vcmp.ge.f32.partialorder %v5101, 0.0
      %vm5230 = vcmp.ge.f32.partialorder %v5102, 0.0
      %vm5231 = vcmp.ge.f32.partialorder %v5103, 0.0
      %vm5232 = vcmp.ge.f32.partialorder %v5104, 0.0
      %vm5233 = vcmp.ge.f32.partialorder %v5105, 0.0
      %vm5234 = vcmp.ge.f32.partialorder %v5106, 0.0
      %vm5235 = vcmp.ge.f32.partialorder %v5107, 0.0
      %vm5236 = vcmp.ge.f32.partialorder %v5108, 0.0
      %vm5237 = vcmp.ge.f32.partialorder %v5109, 0.0
      %vm5238 = vcmp.ge.f32.partialorder %v5110, 0.0
      %vm5239 = vcmp.ge.f32.partialorder %v5111, 0.0
      %vm5240 = vcmp.ge.f32.partialorder %v5112, 0.0
      %vm5241 = vcmp.ge.f32.partialorder %v5113, 0.0
      %vm5242 = vcmp.ge.f32.partialorder %v5114, 0.0
      %vm5243 = vcmp.ge.f32.partialorder %v5115, 0.0
      %vm5244 = vcmp.ge.f32.partialorder %v5116, 0.0
      %vm5245 = vcmp.ge.f32.partialorder %v5117, 0.0
      %vm5246 = vcmp.ge.f32.partialorder %v5118, 0.0
      %vm5247 = vcmp.ge.f32.partialorder %v5119, 0.0
      %vm5248 = vcmp.ge.f32.partialorder %v5120, 0.0
      %vm5249 = vcmp.ge.f32.partialorder %v5121, 0.0
      %vm5250 = vcmp.ge.f32.partialorder %v5122, 0.0
      %vm5251 = vcmp.ge.f32.partialorder %v5123, 0.0
      %vm5252 = vcmp.ge.f32.partialorder %v5124, 0.0
      %vm5253 = vcmp.ge.f32.partialorder %v5125, 0.0
      %vm5254 = vcmp.ge.f32.partialorder %v5126, 0.0
      %vm5255 = vcmp.ge.f32.partialorder %v5127, 0.0
      %vm5256 = vcmp.ge.f32.partialorder %v5128, 0.0
      %vm5257 = vcmp.ge.f32.partialorder %v5129, 0.0
      %vm5258 = vcmp.ge.f32.partialorder %v5130, 0.0
      %vm5259 = vcmp.ge.f32.partialorder %v5131, 0.0
      %vm5260 = vcmp.ge.f32.partialorder %v5132, 0.0
      %vm5261 = vcmp.ge.f32.partialorder %v5133, 0.0
      %vm5262 = vcmp.ge.f32.partialorder %v5134, 0.0
      %vm5263 = vcmp.ge.f32.partialorder %v5135, 0.0
      %vm5264 = vcmp.ge.f32.partialorder %v5136, 0.0
      %vm5265 = vcmp.ge.f32.partialorder %v5137, 0.0
      %vm5266 = vcmp.ge.f32.partialorder %v5138, 0.0
      %vm5267 = vcmp.ge.f32.partialorder %v5139, 0.0
      %vm5268 = vcmp.ge.f32.partialorder %v5140, 0.0
      %vm5269 = vcmp.ge.f32.partialorder %v5141, 0.0
      %vm5270 = vcmp.ge.f32.partialorder %v5142, 0.0
      %vm5271 = vcmp.ge.f32.partialorder %v5143, 0.0
      %vm5272 = vcmp.ge.f32.partialorder %v5144, 0.0
      %vm5273 = vcmp.ge.f32.partialorder %v5145, 0.0
      %vm5274 = vcmp.ge.f32.partialorder %v5146, 0.0
      %vm5275 = vcmp.ge.f32.partialorder %v5147, 0.0
      %vm5276 = vcmp.ge.f32.partialorder %v5148, 0.0
      %vm5277 = vcmp.ge.f32.partialorder %v5149, 0.0
      %vm5278 = vcmp.ge.f32.partialorder %v5150, 0.0
      %vm5279 = vcmp.ge.f32.partialorder %v5151, 0.0
      %vm5280 = vcmp.ge.f32.partialorder %v5152, 0.0
      %vm5281 = vcmp.ge.f32.partialorder %v5153, 0.0
      %vm5282 = vcmp.ge.f32.partialorder %v5154, 0.0
      %vm5283 = vcmp.ge.f32.partialorder %v5155, 0.0
      %vm5284 = vcmp.ge.f32.partialorder %v5156, 0.0
      %vm5285 = vcmp.ge.f32.partialorder %v5157, 0.0
      %vm5286 = vcmp.ge.f32.partialorder %v5158, 0.0
      %vm5287 = vcmp.ge.f32.partialorder %v5159, 0.0
      %vm5288 = vcmp.ge.f32.partialorder %v5160, 0.0
      %vm5289 = vcmp.ge.f32.partialorder %v5161, 0.0
      %vm5290 = vcmp.ge.f32.partialorder %v5162, 0.0
      %vm5291 = vcmp.ge.f32.partialorder %v5163, 0.0
      %vm5292 = vcmp.ge.f32.partialorder %v5164, 0.0
      %vm5293 = vcmp.ge.f32.partialorder %v5165, 0.0
      %vm5294 = vcmp.ge.f32.partialorder %v5166, 0.0
      %vm5295 = vcmp.ge.f32.partialorder %v5167, 0.0
      %vm5296 = vcmp.ge.f32.partialorder %v5168, 0.0
      %vm5297 = vcmp.ge.f32.partialorder %v5169, 0.0
      %vm5298 = vcmp.ge.f32.partialorder %v5170, 0.0
      %vm5299 = vcmp.ge.f32.partialorder %v5171, 0.0
      %vm5300 = vcmp.ge.f32.partialorder %v5172, 0.0
      %vm5301 = vcmp.ge.f32.partialorder %v5173, 0.0
      %vm5302 = vcmp.ge.f32.partialorder %v5174, 0.0
      %vm5303 = vcmp.ge.f32.partialorder %v5175, 0.0
      %vm5304 = vcmp.ge.f32.partialorder %v5176, 0.0
      %vm5305 = vcmp.ge.f32.partialorder %v5177, 0.0
      %vm5306 = vcmp.ge.f32.partialorder %v5178, 0.0
      %vm5307 = vcmp.ge.f32.partialorder %v5179, 0.0
      %vm5308 = vcmp.ge.f32.partialorder %v5180, 0.0
      %vm5309 = vcmp.ge.f32.partialorder %v5181, 0.0
      %vm5310 = vcmp.ge.f32.partialorder %v5182, 0.0
      %vm5311 = vcmp.ge.f32.partialorder %v5183, 0.0
      %vm5312 = vcmp.ge.f32.partialorder %v5184, 0.0
      %vm5313 = vcmp.ge.f32.partialorder %v5185, 0.0
      %vm5314 = vcmp.ge.f32.partialorder %v5186, 0.0
      %vm5315 = vcmp.ge.f32.partialorder %v5187, 0.0
      %vm5316 = vcmp.ge.f32.partialorder %v5188, 0.0
      %vm5317 = vcmp.ge.f32.partialorder %v5189, 0.0
      %vm5318 = vcmp.ge.f32.partialorder %v5190, 0.0
      %vm5319 = vcmp.ge.f32.partialorder %v5191, 0.0
      %vm5320 = vcmp.ge.f32.partialorder %v5192, 0.0
      %vm5321 = vcmp.ge.f32.partialorder %v5193, 0.0
      %vm5322 = vcmp.ge.f32.partialorder %v5194, 0.0
      %vm5323 = vcmp.ge.f32.partialorder %v5195, 0.0
      %vm5324 = vcmp.ge.f32.partialorder %v5196, 0.0
      %vm5325 = vcmp.ge.f32.partialorder %v5197, 0.0
      %vm5326 = vcmp.ge.f32.partialorder %v5198, 0.0
      %vm5327 = vcmp.ge.f32.partialorder %v5199, 0.0
      %vm5328 = vcmp.ge.f32.partialorder %v5200, 0.0
      %vm5329 = vcmp.ge.f32.partialorder %v5201, 0.0
      %vm5330 = vcmp.ge.f32.partialorder %v5202, 0.0
      %vm5331 = vcmp.ge.f32.partialorder %v5203, 0.0
      %vm5332 = vcmp.ge.f32.partialorder %v5204, 0.0
      %vm5333 = vcmp.ge.f32.partialorder %v5205, 0.0
      %vm5334 = vcmp.ge.f32.partialorder %v5206, 0.0
      %vm5335 = vcmp.ge.f32.partialorder %v5207, 0.0
      %vm5336 = vcmp.ge.f32.partialorder %v5208, 0.0
      %vm5337 = vcmp.ge.f32.partialorder %v5209, 0.0
      %vm5338 = vcmp.ge.f32.partialorder %v5210, 0.0
      %vm5339 = vcmp.ge.f32.partialorder %v5211, 0.0
      %vm5340 = vcmp.ge.f32.partialorder %v5212, 0.0
      %vm5341 = vcmp.ge.f32.partialorder %v5213, 0.0
      %vm5342 = vcmp.ge.f32.partialorder %v5214, 0.0
      %vm5343 = vcmp.ge.f32.partialorder %v5215, 0.0
      %vm5344 = vcmp.ge.f32.partialorder %v5216, 0.0
      %vm5345 = vcmp.ge.f32.partialorder %v5217, 0.0
      %vm5346 = vcmp.ge.f32.partialorder %v5218, 0.0
      %vm5347 = vcmp.ge.f32.partialorder %v5219, 0.0
      %vm5348 = vcmp.ge.f32.partialorder %v5220, 0.0
      %vm5349 = vcmp.ge.f32.partialorder %v5221, 0.0
      %vm5350 = vcmp.ge.f32.partialorder %v5222, 0.0
      %vm5351 = vcmp.ge.f32.partialorder %v5223, 0.0
      %vm5352 = vcmp.ge.f32.partialorder %v5224, 0.0
      %vm5353 = vcmp.ge.f32.partialorder %v5225, 0.0
      %vm5354 = vcmp.ge.f32.partialorder %v5226, 0.0
      %v5355 = vmul.f32 %v5099, 0.2
      %v5356 = vmul.f32 %v5100, 0.2
      %v5357 = vmul.f32 %v5101, 0.2
      %v5358 = vmul.f32 %v5102, 0.2
      %v5359 = vmul.f32 %v5103, 0.2
      %v5360 = vmul.f32 %v5104, 0.2
      %v5361 = vmul.f32 %v5105, 0.2
      %v5362 = vmul.f32 %v5106, 0.2
      %v5363 = vmul.f32 %v5107, 0.2
      %v5364 = vmul.f32 %v5108, 0.2
      %v5365 = vmul.f32 %v5109, 0.2
      %v5366 = vmul.f32 %v5110, 0.2
      %v5367 = vmul.f32 %v5111, 0.2
      %v5368 = vmul.f32 %v5112, 0.2
      %v5369 = vmul.f32 %v5113, 0.2
      %v5370 = vmul.f32 %v5114, 0.2
      %v5371 = vmul.f32 %v5115, 0.2
      %v5372 = vmul.f32 %v5116, 0.2
      %v5373 = vmul.f32 %v5117, 0.2
      %v5374 = vmul.f32 %v5118, 0.2
      %v5375 = vmul.f32 %v5119, 0.2
      %v5376 = vmul.f32 %v5120, 0.2
      %v5377 = vmul.f32 %v5121, 0.2
      %v5378 = vmul.f32 %v5122, 0.2
      %v5379 = vmul.f32 %v5123, 0.2
      %v5380 = vmul.f32 %v5124, 0.2
      %v5381 = vmul.f32 %v5125, 0.2
      %v5382 = vmul.f32 %v5126, 0.2
      %v5383 = vmul.f32 %v5127, 0.2
      %v5384 = vmul.f32 %v5128, 0.2
      %v5385 = vmul.f32 %v5129, 0.2
      %v5386 = vmul.f32 %v5130, 0.2
      %v5387 = vmul.f32 %v5131, 0.2
      %v5388 = vmul.f32 %v5132, 0.2
      %v5389 = vmul.f32 %v5133, 0.2
      %v5390 = vmul.f32 %v5134, 0.2
      %v5391 = vmul.f32 %v5135, 0.2
      %v5392 = vmul.f32 %v5136, 0.2
      %v5393 = vmul.f32 %v5137, 0.2
      %v5394 = vmul.f32 %v5138, 0.2
      %v5395 = vmul.f32 %v5139, 0.2
      %v5396 = vmul.f32 %v5140, 0.2
      %v5397 = vmul.f32 %v5141, 0.2
      %v5398 = vmul.f32 %v5142, 0.2
      %v5399 = vmul.f32 %v5143, 0.2
      %v5400 = vmul.f32 %v5144, 0.2
      %v5401 = vmul.f32 %v5145, 0.2
      %v5402 = vmul.f32 %v5146, 0.2
      %v5403 = vmul.f32 %v5147, 0.2
      %v5404 = vmul.f32 %v5148, 0.2
      %v5405 = vmul.f32 %v5149, 0.2
      %v5406 = vmul.f32 %v5150, 0.2
      %v5407 = vmul.f32 %v5151, 0.2
      %v5408 = vmul.f32 %v5152, 0.2
      %v5409 = vmul.f32 %v5153, 0.2
      %v5410 = vmul.f32 %v5154, 0.2
      %v5411 = vmul.f32 %v5155, 0.2
      %v5412 = vmul.f32 %v5156, 0.2
      %v5413 = vmul.f32 %v5157, 0.2
      %v5414 = vmul.f32 %v5158, 0.2
      %v5415 = vmul.f32 %v5159, 0.2
      %v5416 = vmul.f32 %v5160, 0.2
      %v5417 = vmul.f32 %v5161, 0.2
      %v5418 = vmul.f32 %v5162, 0.2
      %v5419 = vmul.f32 %v5163, 0.2
      %v5420 = vmul.f32 %v5164, 0.2
      %v5421 = vmul.f32 %v5165, 0.2
      %v5422 = vmul.f32 %v5166, 0.2
      %v5423 = vmul.f32 %v5167, 0.2
      %v5424 = vmul.f32 %v5168, 0.2
      %v5425 = vmul.f32 %v5169, 0.2
      %v5426 = vmul.f32 %v5170, 0.2
      %v5427 = vmul.f32 %v5171, 0.2
      %v5428 = vmul.f32 %v5172, 0.2
      %v5429 = vmul.f32 %v5173, 0.2
      %v5430 = vmul.f32 %v5174, 0.2
      %v5431 = vmul.f32 %v5175, 0.2
      %v5432 = vmul.f32 %v5176, 0.2
      %v5433 = vmul.f32 %v5177, 0.2
      %v5434 = vmul.f32 %v5178, 0.2
      %v5435 = vmul.f32 %v5179, 0.2
      %v5436 = vmul.f32 %v5180, 0.2
      %v5437 = vmul.f32 %v5181, 0.2
      %v5438 = vmul.f32 %v5182, 0.2
      %v5439 = vmul.f32 %v5183, 0.2
      %v5440 = vmul.f32 %v5184, 0.2
      %v5441 = vmul.f32 %v5185, 0.2
      %v5442 = vmul.f32 %v5186, 0.2
      %v5443 = vmul.f32 %v5187, 0.2
      %v5444 = vmul.f32 %v5188, 0.2
      %v5445 = vmul.f32 %v5189, 0.2
      %v5446 = vmul.f32 %v5190, 0.2
      %v5447 = vmul.f32 %v5191, 0.2
      %v5448 = vmul.f32 %v5192, 0.2
      %v5449 = vmul.f32 %v5193, 0.2
      %v5450 = vmul.f32 %v5194, 0.2
      %v5451 = vmul.f32 %v5195, 0.2
      %v5452 = vmul.f32 %v5196, 0.2
      %v5453 = vmul.f32 %v5197, 0.2
      %v5454 = vmul.f32 %v5198, 0.2
      %v5455 = vmul.f32 %v5199, 0.2
      %v5456 = vmul.f32 %v5200, 0.2
      %v5457 = vmul.f32 %v5201, 0.2
      %v5458 = vmul.f32 %v5202, 0.2
      %v5459 = vmul.f32 %v5203, 0.2
      %v5460 = vmul.f32 %v5204, 0.2
      %v5461 = vmul.f32 %v5205, 0.2
      %v5462 = vmul.f32 %v5206, 0.2
      %v5463 = vmul.f32 %v5207, 0.2
      %v5464 = vmul.f32 %v5208, 0.2
      %v5465 = vmul.f32 %v5209, 0.2
      %v5466 = vmul.f32 %v5210, 0.2
      %v5467 = vmul.f32 %v5211, 0.2
      %v5468 = vmul.f32 %v5212, 0.2
      %v5469 = vmul.f32 %v5213, 0.2
      %v5470 = vmul.f32 %v5214, 0.2
      %v5471 = vmul.f32 %v5215, 0.2
      %v5472 = vmul.f32 %v5216, 0.2
      %v5473 = vmul.f32 %v5217, 0.2
      %v5474 = vmul.f32 %v5218, 0.2
      %v5475 = vmul.f32 %v5219, 0.2
      %v5476 = vmul.f32 %v5220, 0.2
      %v5477 = vmul.f32 %v5221, 0.2
      %v5478 = vmul.f32 %v5222, 0.2
      %v5479 = vmul.f32 %v5223, 0.2
      %v5480 = vmul.f32 %v5224, 0.2
      %v5481 = vmul.f32 %v5225, 0.2
      %v5482 = vmul.f32 %v5226, 0.2
      %v5483 = vsel %vm5227, %v5099, %v5355
      %v5484 = vsel %vm5228, %v5100, %v5356
      %v5485 = vsel %vm5229, %v5101, %v5357
      %v5486 = vsel %vm5230, %v5102, %v5358
      %v5487 = vsel %vm5231, %v5103, %v5359
      %v5488 = vsel %vm5232, %v5104, %v5360
      %v5489 = vsel %vm5233, %v5105, %v5361
      %v5490 = vsel %vm5234, %v5106, %v5362
      %v5491 = vsel %vm5235, %v5107, %v5363
      %v5492 = vsel %vm5236, %v5108, %v5364
      %v5493 = vsel %vm5237, %v5109, %v5365
      %v5494 = vsel %vm5238, %v5110, %v5366
      %v5495 = vsel %vm5239, %v5111, %v5367
      %v5496 = vsel %vm5240, %v5112, %v5368
      %v5497 = vsel %vm5241, %v5113, %v5369
      %v5498 = vsel %vm5242, %v5114, %v5370
      %v5499 = vsel %vm5243, %v5115, %v5371
      %v5500 = vsel %vm5244, %v5116, %v5372
      %v5501 = vsel %vm5245, %v5117, %v5373
      %v5502 = vsel %vm5246, %v5118, %v5374
      %v5503 = vsel %vm5247, %v5119, %v5375
      %v5504 = vsel %vm5248, %v5120, %v5376
      %v5505 = vsel %vm5249, %v5121, %v5377
      %v5506 = vsel %vm5250, %v5122, %v5378
      %v5507 = vsel %vm5251, %v5123, %v5379
      %v5508 = vsel %vm5252, %v5124, %v5380
      %v5509 = vsel %vm5253, %v5125, %v5381
      %v5510 = vsel %vm5254, %v5126, %v5382
      %v5511 = vsel %vm5255, %v5127, %v5383
      %v5512 = vsel %vm5256, %v5128, %v5384
      %v5513 = vsel %vm5257, %v5129, %v5385
      %v5514 = vsel %vm5258, %v5130, %v5386
      %v5515 = vsel %vm5259, %v5131, %v5387
      %v5516 = vsel %vm5260, %v5132, %v5388
      %v5517 = vsel %vm5261, %v5133, %v5389
      %v5518 = vsel %vm5262, %v5134, %v5390
      %v5519 = vsel %vm5263, %v5135, %v5391
      %v5520 = vsel %vm5264, %v5136, %v5392
      %v5521 = vsel %vm5265, %v5137, %v5393
      %v5522 = vsel %vm5266, %v5138, %v5394
      %v5523 = vsel %vm5267, %v5139, %v5395
      %v5524 = vsel %vm5268, %v5140, %v5396
      %v5525 = vsel %vm5269, %v5141, %v5397
      %v5526 = vsel %vm5270, %v5142, %v5398
      %v5527 = vsel %vm5271, %v5143, %v5399
      %v5528 = vsel %vm5272, %v5144, %v5400
      %v5529 = vsel %vm5273, %v5145, %v5401
      %v5530 = vsel %vm5274, %v5146, %v5402
      %v5531 = vsel %vm5275, %v5147, %v5403
      %v5532 = vsel %vm5276, %v5148, %v5404
      %v5533 = vsel %vm5277, %v5149, %v5405
      %v5534 = vsel %vm5278, %v5150, %v5406
      %v5535 = vsel %vm5279, %v5151, %v5407
      %v5536 = vsel %vm5280, %v5152, %v5408
      %v5537 = vsel %vm5281, %v5153, %v5409
      %v5538 = vsel %vm5282, %v5154, %v5410
      %v5539 = vsel %vm5283, %v5155, %v5411
      %v5540 = vsel %vm5284, %v5156, %v5412
      %v5541 = vsel %vm5285, %v5157, %v5413
      %v5542 = vsel %vm5286, %v5158, %v5414
      %v5543 = vsel %vm5287, %v5159, %v5415
      %v5544 = vsel %vm5288, %v5160, %v5416
      %v5545 = vsel %vm5289, %v5161, %v5417
      %v5546 = vsel %vm5290, %v5162, %v5418
      %v5547 = vsel %vm5291, %v5163, %v5419
      %v5548 = vsel %vm5292, %v5164, %v5420
      %v5549 = vsel %vm5293, %v5165, %v5421
      %v5550 = vsel %vm5294, %v5166, %v5422
      %v5551 = vsel %vm5295, %v5167, %v5423
      %v5552 = vsel %vm5296, %v5168, %v5424
      %v5553 = vsel %vm5297, %v5169, %v5425
      %v5554 = vsel %vm5298, %v5170, %v5426
      %v5555 = vsel %vm5299, %v5171, %v5427
      %v5556 = vsel %vm5300, %v5172, %v5428
      %v5557 = vsel %vm5301, %v5173, %v5429
      %v5558 = vsel %vm5302, %v5174, %v5430
      %v5559 = vsel %vm5303, %v5175, %v5431
      %v5560 = vsel %vm5304, %v5176, %v5432
      %v5561 = vsel %vm5305, %v5177, %v5433
      %v5562 = vsel %vm5306, %v5178, %v5434
      %v5563 = vsel %vm5307, %v5179, %v5435
      %v5564 = vsel %vm5308, %v5180, %v5436
      %v5565 = vsel %vm5309, %v5181, %v5437
      %v5566 = vsel %vm5310, %v5182, %v5438
      %v5567 = vsel %vm5311, %v5183, %v5439
      %v5568 = vsel %vm5312, %v5184, %v5440
      %v5569 = vsel %vm5313, %v5185, %v5441
      %v5570 = vsel %vm5314, %v5186, %v5442
      %v5571 = vsel %vm5315, %v5187, %v5443
      %v5572 = vsel %vm5316, %v5188, %v5444
      %v5573 = vsel %vm5317, %v5189, %v5445
      %v5574 = vsel %vm5318, %v5190, %v5446
      %v5575 = vsel %vm5319, %v5191, %v5447
      %v5576 = vsel %vm5320, %v5192, %v5448
      %v5577 = vsel %vm5321, %v5193, %v5449
      %v5578 = vsel %vm5322, %v5194, %v5450
      %v5579 = vsel %vm5323, %v5195, %v5451
      %v5580 = vsel %vm5324, %v5196, %v5452
      %v5581 = vsel %vm5325, %v5197, %v5453
      %v5582 = vsel %vm5326, %v5198, %v5454
      %v5583 = vsel %vm5327, %v5199, %v5455
      %v5584 = vsel %vm5328, %v5200, %v5456
      %v5585 = vsel %vm5329, %v5201, %v5457
      %v5586 = vsel %vm5330, %v5202, %v5458
      %v5587 = vsel %vm5331, %v5203, %v5459
      %v5588 = vsel %vm5332, %v5204, %v5460
      %v5589 = vsel %vm5333, %v5205, %v5461
      %v5590 = vsel %vm5334, %v5206, %v5462
      %v5591 = vsel %vm5335, %v5207, %v5463
      %v5592 = vsel %vm5336, %v5208, %v5464
      %v5593 = vsel %vm5337, %v5209, %v5465
      %v5594 = vsel %vm5338, %v5210, %v5466
      %v5595 = vsel %vm5339, %v5211, %v5467
      %v5596 = vsel %vm5340, %v5212, %v5468
      %v5597 = vsel %vm5341, %v5213, %v5469
      %v5598 = vsel %vm5342, %v5214, %v5470
      %v5599 = vsel %vm5343, %v5215, %v5471
      %v5600 = vsel %vm5344, %v5216, %v5472
      %v5601 = vsel %vm5345, %v5217, %v5473
      %v5602 = vsel %vm5346, %v5218, %v5474
      %v5603 = vsel %vm5347, %v5219, %v5475
      %v5604 = vsel %vm5348, %v5220, %v5476
      %v5605 = vsel %vm5349, %v5221, %v5477
      %v5606 = vsel %vm5350, %v5222, %v5478
      %v5607 = vsel %vm5351, %v5223, %v5479
      %v5608 = vsel %vm5352, %v5224, %v5480
      %v5609 = vsel %vm5353, %v5225, %v5481
      %v5610 = vsel %vm5354, %v5226, %v5482
      %v5611 = vpack.c.bf16 %v5484, %v5483
      %v5612 = vpack.c.bf16 %v5486, %v5485
      %v5613 = vpack.c.bf16 %v5488, %v5487
      %v5614 = vpack.c.bf16 %v5490, %v5489
      %v5615 = vpack.c.bf16 %v5492, %v5491
      %v5616 = vpack.c.bf16 %v5494, %v5493
      %v5617 = vpack.c.bf16 %v5496, %v5495
      %v5618 = vpack.c.bf16 %v5498, %v5497
      %v5619 = vpack.c.bf16 %v5500, %v5499
      %v5620 = vpack.c.bf16 %v5502, %v5501
      %v5621 = vpack.c.bf16 %v5504, %v5503
      %v5622 = vpack.c.bf16 %v5506, %v5505
      %v5623 = vpack.c.bf16 %v5508, %v5507
      %v5624 = vpack.c.bf16 %v5510, %v5509
      %v5625 = vpack.c.bf16 %v5512, %v5511
      %v5626 = vpack.c.bf16 %v5514, %v5513
      %v5627 = vpack.c.bf16 %v5516, %v5515
      %v5628 = vpack.c.bf16 %v5518, %v5517
      %v5629 = vpack.c.bf16 %v5520, %v5519
      %v5630 = vpack.c.bf16 %v5522, %v5521
      %v5631 = vpack.c.bf16 %v5524, %v5523
      %v5632 = vpack.c.bf16 %v5526, %v5525
      %v5633 = vpack.c.bf16 %v5528, %v5527
      %v5634 = vpack.c.bf16 %v5530, %v5529
      %v5635 = vpack.c.bf16 %v5532, %v5531
      %v5636 = vpack.c.bf16 %v5534, %v5533
      %v5637 = vpack.c.bf16 %v5536, %v5535
      %v5638 = vpack.c.bf16 %v5538, %v5537
      %v5639 = vpack.c.bf16 %v5540, %v5539
      %v5640 = vpack.c.bf16 %v5542, %v5541
      %v5641 = vpack.c.bf16 %v5544, %v5543
      %v5642 = vpack.c.bf16 %v5546, %v5545
      %v5643 = vpack.c.bf16 %v5548, %v5547
      %v5644 = vpack.c.bf16 %v5550, %v5549
      %v5645 = vpack.c.bf16 %v5552, %v5551
      %v5646 = vpack.c.bf16 %v5554, %v5553
      %v5647 = vpack.c.bf16 %v5556, %v5555
      %v5648 = vpack.c.bf16 %v5558, %v5557
      %v5649 = vpack.c.bf16 %v5560, %v5559
      %v5650 = vpack.c.bf16 %v5562, %v5561
      %v5651 = vpack.c.bf16 %v5564, %v5563
      %v5652 = vpack.c.bf16 %v5566, %v5565
      %v5653 = vpack.c.bf16 %v5568, %v5567
      %v5654 = vpack.c.bf16 %v5570, %v5569
      %v5655 = vpack.c.bf16 %v5572, %v5571
      %v5656 = vpack.c.bf16 %v5574, %v5573
      %v5657 = vpack.c.bf16 %v5576, %v5575
      %v5658 = vpack.c.bf16 %v5578, %v5577
      %v5659 = vpack.c.bf16 %v5580, %v5579
      %v5660 = vpack.c.bf16 %v5582, %v5581
      %v5661 = vpack.c.bf16 %v5584, %v5583
      %v5662 = vpack.c.bf16 %v5586, %v5585
      %v5663 = vpack.c.bf16 %v5588, %v5587
      %v5664 = vpack.c.bf16 %v5590, %v5589
      %v5665 = vpack.c.bf16 %v5592, %v5591
      %v5666 = vpack.c.bf16 %v5594, %v5593
      %v5667 = vpack.c.bf16 %v5596, %v5595
      %v5668 = vpack.c.bf16 %v5598, %v5597
      %v5669 = vpack.c.bf16 %v5600, %v5599
      %v5670 = vpack.c.bf16 %v5602, %v5601
      %v5671 = vpack.c.bf16 %v5604, %v5603
      %v5672 = vpack.c.bf16 %v5606, %v5605
      %v5673 = vpack.c.bf16 %v5608, %v5607
      %v5674 = vpack.c.bf16 %v5610, %v5609
      %v5739 = vunpack.c.l.b16 %v5611
      %v5740 = vunpack.c.h.b16 %v5611
      %v5741 = vunpack.c.l.b16 %v5612
      %v5742 = vunpack.c.h.b16 %v5612
      %v5743 = vunpack.c.l.b16 %v5613
      %v5744 = vunpack.c.h.b16 %v5613
      %v5745 = vunpack.c.l.b16 %v5614
      %v5746 = vunpack.c.h.b16 %v5614
      %v5747 = vunpack.c.l.b16 %v5615
      %v5748 = vunpack.c.h.b16 %v5615
      %v5749 = vunpack.c.l.b16 %v5616
      %v5750 = vunpack.c.h.b16 %v5616
      %v5751 = vunpack.c.l.b16 %v5617
      %v5752 = vunpack.c.h.b16 %v5617
      %v5753 = vunpack.c.l.b16 %v5618
      %v5754 = vunpack.c.h.b16 %v5618
      %v5755 = vunpack.c.l.b16 %v5619
      %v5756 = vunpack.c.h.b16 %v5619
      %v5757 = vunpack.c.l.b16 %v5620
      %v5758 = vunpack.c.h.b16 %v5620
      %v5759 = vunpack.c.l.b16 %v5621
      %v5760 = vunpack.c.h.b16 %v5621
      %v5761 = vunpack.c.l.b16 %v5622
      %v5762 = vunpack.c.h.b16 %v5622
      %v5763 = vunpack.c.l.b16 %v5623
      %v5764 = vunpack.c.h.b16 %v5623
      %v5765 = vunpack.c.l.b16 %v5624
      %v5766 = vunpack.c.h.b16 %v5624
      %v5767 = vunpack.c.l.b16 %v5625
      %v5768 = vunpack.c.h.b16 %v5625
      %v5769 = vunpack.c.l.b16 %v5626
      %v5770 = vunpack.c.h.b16 %v5626
      %v5771 = vunpack.c.l.b16 %v5627
      %v5772 = vunpack.c.h.b16 %v5627
      %v5773 = vunpack.c.l.b16 %v5628
      %v5774 = vunpack.c.h.b16 %v5628
      %v5775 = vunpack.c.l.b16 %v5629
      %v5776 = vunpack.c.h.b16 %v5629
      %v5777 = vunpack.c.l.b16 %v5630
      %v5778 = vunpack.c.h.b16 %v5630
      %v5779 = vunpack.c.l.b16 %v5631
      %v5780 = vunpack.c.h.b16 %v5631
      %v5781 = vunpack.c.l.b16 %v5632
      %v5782 = vunpack.c.h.b16 %v5632
      %v5783 = vunpack.c.l.b16 %v5633
      %v5784 = vunpack.c.h.b16 %v5633
      %v5785 = vunpack.c.l.b16 %v5634
      %v5786 = vunpack.c.h.b16 %v5634
      %v5787 = vunpack.c.l.b16 %v5635
      %v5788 = vunpack.c.h.b16 %v5635
      %v5789 = vunpack.c.l.b16 %v5636
      %v5790 = vunpack.c.h.b16 %v5636
      %v5791 = vunpack.c.l.b16 %v5637
      %v5792 = vunpack.c.h.b16 %v5637
      %v5793 = vunpack.c.l.b16 %v5638
      %v5794 = vunpack.c.h.b16 %v5638
      %v5795 = vunpack.c.l.b16 %v5639
      %v5796 = vunpack.c.h.b16 %v5639
      %v5797 = vunpack.c.l.b16 %v5640
      %v5798 = vunpack.c.h.b16 %v5640
      %v5799 = vunpack.c.l.b16 %v5641
      %v5800 = vunpack.c.h.b16 %v5641
      %v5801 = vunpack.c.l.b16 %v5642
      %v5802 = vunpack.c.h.b16 %v5642
      %v5803 = vunpack.c.l.b16 %v5643
      %v5804 = vunpack.c.h.b16 %v5643
      %v5805 = vunpack.c.l.b16 %v5644
      %v5806 = vunpack.c.h.b16 %v5644
      %v5807 = vunpack.c.l.b16 %v5645
      %v5808 = vunpack.c.h.b16 %v5645
      %v5809 = vunpack.c.l.b16 %v5646
      %v5810 = vunpack.c.h.b16 %v5646
      %v5811 = vunpack.c.l.b16 %v5647
      %v5812 = vunpack.c.h.b16 %v5647
      %v5813 = vunpack.c.l.b16 %v5648
      %v5814 = vunpack.c.h.b16 %v5648
      %v5815 = vunpack.c.l.b16 %v5649
      %v5816 = vunpack.c.h.b16 %v5649
      %v5817 = vunpack.c.l.b16 %v5650
      %v5818 = vunpack.c.h.b16 %v5650
      %v5819 = vunpack.c.l.b16 %v5651
      %v5820 = vunpack.c.h.b16 %v5651
      %v5821 = vunpack.c.l.b16 %v5652
      %v5822 = vunpack.c.h.b16 %v5652
      %v5823 = vunpack.c.l.b16 %v5653
      %v5824 = vunpack.c.h.b16 %v5653
      %v5825 = vunpack.c.l.b16 %v5654
      %v5826 = vunpack.c.h.b16 %v5654
      %v5827 = vunpack.c.l.b16 %v5655
      %v5828 = vunpack.c.h.b16 %v5655
      %v5829 = vunpack.c.l.b16 %v5656
      %v5830 = vunpack.c.h.b16 %v5656
      %v5831 = vunpack.c.l.b16 %v5657
      %v5832 = vunpack.c.h.b16 %v5657
      %v5833 = vunpack.c.l.b16 %v5658
      %v5834 = vunpack.c.h.b16 %v5658
      %v5835 = vunpack.c.l.b16 %v5659
      %v5836 = vunpack.c.h.b16 %v5659
      %v5837 = vunpack.c.l.b16 %v5660
      %v5838 = vunpack.c.h.b16 %v5660
      %v5839 = vunpack.c.l.b16 %v5661
      %v5840 = vunpack.c.h.b16 %v5661
      %v5841 = vunpack.c.l.b16 %v5662
      %v5842 = vunpack.c.h.b16 %v5662
      %v5843 = vunpack.c.l.b16 %v5663
      %v5844 = vunpack.c.h.b16 %v5663
      %v5845 = vunpack.c.l.b16 %v5664
      %v5846 = vunpack.c.h.b16 %v5664
      %v5847 = vunpack.c.l.b16 %v5665
      %v5848 = vunpack.c.h.b16 %v5665
      %v5849 = vunpack.c.l.b16 %v5666
      %v5850 = vunpack.c.h.b16 %v5666
      %v5851 = vunpack.c.l.b16 %v5667
      %v5852 = vunpack.c.h.b16 %v5667
      %v5853 = vunpack.c.l.b16 %v5668
      %v5854 = vunpack.c.h.b16 %v5668
      %v5855 = vunpack.c.l.b16 %v5669
      %v5856 = vunpack.c.h.b16 %v5669
      %v5857 = vunpack.c.l.b16 %v5670
      %v5858 = vunpack.c.h.b16 %v5670
      %v5859 = vunpack.c.l.b16 %v5671
      %v5860 = vunpack.c.h.b16 %v5671
      %v5861 = vunpack.c.l.b16 %v5672
      %v5862 = vunpack.c.h.b16 %v5672
      %v5863 = vunpack.c.l.b16 %v5673
      %v5864 = vunpack.c.h.b16 %v5673
      %v5865 = vunpack.c.l.b16 %v5674
      %v5866 = vunpack.c.h.b16 %v5674
      %v5867 = vpack.c.b16 %v5739, %v5739
      %v5868 = vpack.c.b16 %v5740, %v5740
      %v5869 = vpack.c.b16 %v5741, %v5741
      %v5870 = vpack.c.b16 %v5742, %v5742
      %v5871 = vpack.c.b16 %v5743, %v5743
      %v5872 = vpack.c.b16 %v5744, %v5744
      %v5873 = vpack.c.b16 %v5745, %v5745
      %v5874 = vpack.c.b16 %v5746, %v5746
      %v5875 = vpack.c.b16 %v5747, %v5747
      %v5876 = vpack.c.b16 %v5748, %v5748
      %v5877 = vpack.c.b16 %v5749, %v5749
      %v5878 = vpack.c.b16 %v5750, %v5750
      %v5879 = vpack.c.b16 %v5751, %v5751
      %v5880 = vpack.c.b16 %v5752, %v5752
      %v5881 = vpack.c.b16 %v5753, %v5753
      %v5882 = vpack.c.b16 %v5754, %v5754
      %v5883 = vpack.c.b16 %v5755, %v5755
      %v5884 = vpack.c.b16 %v5756, %v5756
      %v5885 = vpack.c.b16 %v5757, %v5757
      %v5886 = vpack.c.b16 %v5758, %v5758
      %v5887 = vpack.c.b16 %v5759, %v5759
      %v5888 = vpack.c.b16 %v5760, %v5760
      %v5889 = vpack.c.b16 %v5761, %v5761
      %v5890 = vpack.c.b16 %v5762, %v5762
      %v5891 = vpack.c.b16 %v5763, %v5763
      %v5892 = vpack.c.b16 %v5764, %v5764
      %v5893 = vpack.c.b16 %v5765, %v5765
      %v5894 = vpack.c.b16 %v5766, %v5766
      %v5895 = vpack.c.b16 %v5767, %v5767
      %v5896 = vpack.c.b16 %v5768, %v5768
      %v5897 = vpack.c.b16 %v5769, %v5769
      %v5898 = vpack.c.b16 %v5770, %v5770
      %v5899 = vpack.c.b16 %v5771, %v5771
      %v5900 = vpack.c.b16 %v5772, %v5772
      %v5901 = vpack.c.b16 %v5773, %v5773
      %v5902 = vpack.c.b16 %v5774, %v5774
      %v5903 = vpack.c.b16 %v5775, %v5775
      %v5904 = vpack.c.b16 %v5776, %v5776
      %v5905 = vpack.c.b16 %v5777, %v5777
      %v5906 = vpack.c.b16 %v5778, %v5778
      %v5907 = vpack.c.b16 %v5779, %v5779
      %v5908 = vpack.c.b16 %v5780, %v5780
      %v5909 = vpack.c.b16 %v5781, %v5781
      %v5910 = vpack.c.b16 %v5782, %v5782
      %v5911 = vpack.c.b16 %v5783, %v5783
      %v5912 = vpack.c.b16 %v5784, %v5784
      %v5913 = vpack.c.b16 %v5785, %v5785
      %v5914 = vpack.c.b16 %v5786, %v5786
      %v5915 = vpack.c.b16 %v5787, %v5787
      %v5916 = vpack.c.b16 %v5788, %v5788
      %v5917 = vpack.c.b16 %v5789, %v5789
      %v5918 = vpack.c.b16 %v5790, %v5790
      %v5919 = vpack.c.b16 %v5791, %v5791
      %v5920 = vpack.c.b16 %v5792, %v5792
      %v5921 = vpack.c.b16 %v5793, %v5793
      %v5922 = vpack.c.b16 %v5794, %v5794
      %v5923 = vpack.c.b16 %v5795, %v5795
      %v5924 = vpack.c.b16 %v5796, %v5796
      %v5925 = vpack.c.b16 %v5797, %v5797
      %v5926 = vpack.c.b16 %v5798, %v5798
      %v5927 = vpack.c.b16 %v5799, %v5799
      %v5928 = vpack.c.b16 %v5800, %v5800
      %v5929 = vpack.c.b16 %v5801, %v5801
      %v5930 = vpack.c.b16 %v5802, %v5802
      %v5931 = vpack.c.b16 %v5803, %v5803
      %v5932 = vpack.c.b16 %v5804, %v5804
      %v5933 = vpack.c.b16 %v5805, %v5805
      %v5934 = vpack.c.b16 %v5806, %v5806
      %v5935 = vpack.c.b16 %v5807, %v5807
      %v5936 = vpack.c.b16 %v5808, %v5808
      %v5937 = vpack.c.b16 %v5809, %v5809
      %v5938 = vpack.c.b16 %v5810, %v5810
      %v5939 = vpack.c.b16 %v5811, %v5811
      %v5940 = vpack.c.b16 %v5812, %v5812
      %v5941 = vpack.c.b16 %v5813, %v5813
      %v5942 = vpack.c.b16 %v5814, %v5814
      %v5943 = vpack.c.b16 %v5815, %v5815
      %v5944 = vpack.c.b16 %v5816, %v5816
      %v5945 = vpack.c.b16 %v5817, %v5817
      %v5946 = vpack.c.b16 %v5818, %v5818
      %v5947 = vpack.c.b16 %v5819, %v5819
      %v5948 = vpack.c.b16 %v5820, %v5820
      %v5949 = vpack.c.b16 %v5821, %v5821
      %v5950 = vpack.c.b16 %v5822, %v5822
      %v5951 = vpack.c.b16 %v5823, %v5823
      %v5952 = vpack.c.b16 %v5824, %v5824
      %v5953 = vpack.c.b16 %v5825, %v5825
      %v5954 = vpack.c.b16 %v5826, %v5826
      %v5955 = vpack.c.b16 %v5827, %v5827
      %v5956 = vpack.c.b16 %v5828, %v5828
      %v5957 = vpack.c.b16 %v5829, %v5829
      %v5958 = vpack.c.b16 %v5830, %v5830
      %v5959 = vpack.c.b16 %v5831, %v5831
      %v5960 = vpack.c.b16 %v5832, %v5832
      %v5961 = vpack.c.b16 %v5833, %v5833
      %v5962 = vpack.c.b16 %v5834, %v5834
      %v5963 = vpack.c.b16 %v5835, %v5835
      %v5964 = vpack.c.b16 %v5836, %v5836
      %v5965 = vpack.c.b16 %v5837, %v5837
      %v5966 = vpack.c.b16 %v5838, %v5838
      %v5967 = vpack.c.b16 %v5839, %v5839
      %v5968 = vpack.c.b16 %v5840, %v5840
      %v5969 = vpack.c.b16 %v5841, %v5841
      %v5970 = vpack.c.b16 %v5842, %v5842
      %v5971 = vpack.c.b16 %v5843, %v5843
      %v5972 = vpack.c.b16 %v5844, %v5844
      %v5973 = vpack.c.b16 %v5845, %v5845
      %v5974 = vpack.c.b16 %v5846, %v5846
      %v5975 = vpack.c.b16 %v5847, %v5847
      %v5976 = vpack.c.b16 %v5848, %v5848
      %v5977 = vpack.c.b16 %v5849, %v5849
      %v5978 = vpack.c.b16 %v5850, %v5850
      %v5979 = vpack.c.b16 %v5851, %v5851
      %v5980 = vpack.c.b16 %v5852, %v5852
      %v5981 = vpack.c.b16 %v5853, %v5853
      %v5982 = vpack.c.b16 %v5854, %v5854
      %v5983 = vpack.c.b16 %v5855, %v5855
      %v5984 = vpack.c.b16 %v5856, %v5856
      %v5985 = vpack.c.b16 %v5857, %v5857
      %v5986 = vpack.c.b16 %v5858, %v5858
      %v5987 = vpack.c.b16 %v5859, %v5859
      %v5988 = vpack.c.b16 %v5860, %v5860
      %v5989 = vpack.c.b16 %v5861, %v5861
      %v5990 = vpack.c.b16 %v5862, %v5862
      %v5991 = vpack.c.b16 %v5863, %v5863
      %v5992 = vpack.c.b16 %v5864, %v5864
      %v5993 = vpack.c.b16 %v5865, %v5865
      %v5994 = vpack.c.b16 %v5866, %v5866
      %vm6123 = vcmask 60416
      %6124 = vst.msk [vmem:[%s180] sm:$0xf] %vm6123, %v5867
      %6125 = vst.msk [vmem:[%s180 + $0x4] sm:$0xf] %vm6123, %v5868
      %6126 = vst.msk [vmem:[%s180 + $0x8] sm:$0xf] %vm6123, %v5869
      %6127 = vst.msk [vmem:[%s180 + $0xc] sm:$0xf] %vm6123, %v5870
      %6128 = vst.msk [vmem:[%s180 + $0x10] sm:$0xf] %vm6123, %v5871
      %6129 = vst.msk [vmem:[%s180 + $0x14] sm:$0xf] %vm6123, %v5872
      %6130 = vst.msk [vmem:[%s180 + $0x18] sm:$0xf] %vm6123, %v5873
      %6131 = vst.msk [vmem:[%s180 + $0x1c] sm:$0xf] %vm6123, %v5874
      %6132 = vst.msk [vmem:[%s180 + $0x20] sm:$0xf] %vm6123, %v5875
      %6133 = vst.msk [vmem:[%s180 + $0x24] sm:$0xf] %vm6123, %v5876
      %6134 = vst.msk [vmem:[%s180 + $0x28] sm:$0xf] %vm6123, %v5877
      %6135 = vst.msk [vmem:[%s180 + $0x2c] sm:$0xf] %vm6123, %v5878
      %6136 = vst.msk [vmem:[%s180 + $0x30] sm:$0xf] %vm6123, %v5879
      %6137 = vst.msk [vmem:[%s180 + $0x34] sm:$0xf] %vm6123, %v5880
      %6138 = vst.msk [vmem:[%s180 + $0x38] sm:$0xf] %vm6123, %v5881
      %6139 = vst.msk [vmem:[%s180 + $0x3c] sm:$0xf] %vm6123, %v5882
      %6140 = vst.msk [vmem:[%s180 + $0x40] sm:$0xf] %vm6123, %v5883
      %6141 = vst.msk [vmem:[%s180 + $0x44] sm:$0xf] %vm6123, %v5884
      %6142 = vst.msk [vmem:[%s180 + $0x48] sm:$0xf] %vm6123, %v5885
      %6143 = vst.msk [vmem:[%s180 + $0x4c] sm:$0xf] %vm6123, %v5886
      %6144 = vst.msk [vmem:[%s180 + $0x50] sm:$0xf] %vm6123, %v5887
      %6145 = vst.msk [vmem:[%s180 + $0x54] sm:$0xf] %vm6123, %v5888
      %6146 = vst.msk [vmem:[%s180 + $0x58] sm:$0xf] %vm6123, %v5889
      %6147 = vst.msk [vmem:[%s180 + $0x5c] sm:$0xf] %vm6123, %v5890
      %6148 = vst.msk [vmem:[%s180 + $0x60] sm:$0xf] %vm6123, %v5891
      %6149 = vst.msk [vmem:[%s180 + $0x64] sm:$0xf] %vm6123, %v5892
      %6150 = vst.msk [vmem:[%s180 + $0x68] sm:$0xf] %vm6123, %v5893
      %6151 = vst.msk [vmem:[%s180 + $0x6c] sm:$0xf] %vm6123, %v5894
      %6152 = vst.msk [vmem:[%s180 + $0x70] sm:$0xf] %vm6123, %v5895
      %6153 = vst.msk [vmem:[%s180 + $0x74] sm:$0xf] %vm6123, %v5896
      %6154 = vst.msk [vmem:[%s180 + $0x78] sm:$0xf] %vm6123, %v5897
      %6155 = vst.msk [vmem:[%s180 + $0x7c] sm:$0xf] %vm6123, %v5898
      %6156 = vst.msk [vmem:[%s180 + $0x80] sm:$0xf] %vm6123, %v5899
      %6157 = vst.msk [vmem:[%s180 + $0x84] sm:$0xf] %vm6123, %v5900
      %6158 = vst.msk [vmem:[%s180 + $0x88] sm:$0xf] %vm6123, %v5901
      %6159 = vst.msk [vmem:[%s180 + $0x8c] sm:$0xf] %vm6123, %v5902
      %6160 = vst.msk [vmem:[%s180 + $0x90] sm:$0xf] %vm6123, %v5903
      %6161 = vst.msk [vmem:[%s180 + $0x94] sm:$0xf] %vm6123, %v5904
      %6162 = vst.msk [vmem:[%s180 + $0x98] sm:$0xf] %vm6123, %v5905
      %6163 = vst.msk [vmem:[%s180 + $0x9c] sm:$0xf] %vm6123, %v5906
      %6164 = vst.msk [vmem:[%s180 + $0xa0] sm:$0xf] %vm6123, %v5907
      %6165 = vst.msk [vmem:[%s180 + $0xa4] sm:$0xf] %vm6123, %v5908
      %6166 = vst.msk [vmem:[%s180 + $0xa8] sm:$0xf] %vm6123, %v5909
      %6167 = vst.msk [vmem:[%s180 + $0xac] sm:$0xf] %vm6123, %v5910
      %6168 = vst.msk [vmem:[%s180 + $0xb0] sm:$0xf] %vm6123, %v5911
      %6169 = vst.msk [vmem:[%s180 + $0xb4] sm:$0xf] %vm6123, %v5912
      %6170 = vst.msk [vmem:[%s180 + $0xb8] sm:$0xf] %vm6123, %v5913
      %6171 = vst.msk [vmem:[%s180 + $0xbc] sm:$0xf] %vm6123, %v5914
      %6172 = vst.msk [vmem:[%s180 + $0xc0] sm:$0xf] %vm6123, %v5915
      %6173 = vst.msk [vmem:[%s180 + $0xc4] sm:$0xf] %vm6123, %v5916
      %6174 = vst.msk [vmem:[%s180 + $0xc8] sm:$0xf] %vm6123, %v5917
      %6175 = vst.msk [vmem:[%s180 + $0xcc] sm:$0xf] %vm6123, %v5918
      %6176 = vst.msk [vmem:[%s180 + $0xd0] sm:$0xf] %vm6123, %v5919
      %6177 = vst.msk [vmem:[%s180 + $0xd4] sm:$0xf] %vm6123, %v5920
      %6178 = vst.msk [vmem:[%s180 + $0xd8] sm:$0xf] %vm6123, %v5921
      %6179 = vst.msk [vmem:[%s180 + $0xdc] sm:$0xf] %vm6123, %v5922
      %6180 = vst.msk [vmem:[%s180 + $0xe0] sm:$0xf] %vm6123, %v5923
      %6181 = vst.msk [vmem:[%s180 + $0xe4] sm:$0xf] %vm6123, %v5924
      %6182 = vst.msk [vmem:[%s180 + $0xe8] sm:$0xf] %vm6123, %v5925
      %6183 = vst.msk [vmem:[%s180 + $0xec] sm:$0xf] %vm6123, %v5926
      %6184 = vst.msk [vmem:[%s180 + $0xf0] sm:$0xf] %vm6123, %v5927
      %6185 = vst.msk [vmem:[%s180 + $0xf4] sm:$0xf] %vm6123, %v5928
      %6186 = vst.msk [vmem:[%s180 + $0xf8] sm:$0xf] %vm6123, %v5929
      %6187 = vst.msk [vmem:[%s180 + $0xfc] sm:$0xf] %vm6123, %v5930
      %6188 = vst.msk [vmem:[%s180 + $0x100] sm:$0xf] %vm6123, %v5931
      %6189 = vst.msk [vmem:[%s180 + $0x104] sm:$0xf] %vm6123, %v5932
      %6190 = vst.msk [vmem:[%s180 + $0x108] sm:$0xf] %vm6123, %v5933
      %6191 = vst.msk [vmem:[%s180 + $0x10c] sm:$0xf] %vm6123, %v5934
      %6192 = vst.msk [vmem:[%s180 + $0x110] sm:$0xf] %vm6123, %v5935
      %6193 = vst.msk [vmem:[%s180 + $0x114] sm:$0xf] %vm6123, %v5936
      %6194 = vst.msk [vmem:[%s180 + $0x118] sm:$0xf] %vm6123, %v5937
      %6195 = vst.msk [vmem:[%s180 + $0x11c] sm:$0xf] %vm6123, %v5938
      %6196 = vst.msk [vmem:[%s180 + $0x120] sm:$0xf] %vm6123, %v5939
      %6197 = vst.msk [vmem:[%s180 + $0x124] sm:$0xf] %vm6123, %v5940
      %6198 = vst.msk [vmem:[%s180 + $0x128] sm:$0xf] %vm6123, %v5941
      %6199 = vst.msk [vmem:[%s180 + $0x12c] sm:$0xf] %vm6123, %v5942
      %6200 = vst.msk [vmem:[%s180 + $0x130] sm:$0xf] %vm6123, %v5943
      %6201 = vst.msk [vmem:[%s180 + $0x134] sm:$0xf] %vm6123, %v5944
      %6202 = vst.msk [vmem:[%s180 + $0x138] sm:$0xf] %vm6123, %v5945
      %6203 = vst.msk [vmem:[%s180 + $0x13c] sm:$0xf] %vm6123, %v5946
      %6204 = vst.msk [vmem:[%s180 + $0x140] sm:$0xf] %vm6123, %v5947
      %6205 = vst.msk [vmem:[%s180 + $0x144] sm:$0xf] %vm6123, %v5948
      %6206 = vst.msk [vmem:[%s180 + $0x148] sm:$0xf] %vm6123, %v5949
      %6207 = vst.msk [vmem:[%s180 + $0x14c] sm:$0xf] %vm6123, %v5950
      %6208 = vst.msk [vmem:[%s180 + $0x150] sm:$0xf] %vm6123, %v5951
      %6209 = vst.msk [vmem:[%s180 + $0x154] sm:$0xf] %vm6123, %v5952
      %6210 = vst.msk [vmem:[%s180 + $0x158] sm:$0xf] %vm6123, %v5953
      %6211 = vst.msk [vmem:[%s180 + $0x15c] sm:$0xf] %vm6123, %v5954
      %6212 = vst.msk [vmem:[%s180 + $0x160] sm:$0xf] %vm6123, %v5955
      %6213 = vst.msk [vmem:[%s180 + $0x164] sm:$0xf] %vm6123, %v5956
      %6214 = vst.msk [vmem:[%s180 + $0x168] sm:$0xf] %vm6123, %v5957
      %6215 = vst.msk [vmem:[%s180 + $0x16c] sm:$0xf] %vm6123, %v5958
      %6216 = vst.msk [vmem:[%s180 + $0x170] sm:$0xf] %vm6123, %v5959
      %6217 = vst.msk [vmem:[%s180 + $0x174] sm:$0xf] %vm6123, %v5960
      %6218 = vst.msk [vmem:[%s180 + $0x178] sm:$0xf] %vm6123, %v5961
      %6219 = vst.msk [vmem:[%s180 + $0x17c] sm:$0xf] %vm6123, %v5962
      %6220 = vst.msk [vmem:[%s180 + $0x180] sm:$0xf] %vm6123, %v5963
      %6221 = vst.msk [vmem:[%s180 + $0x184] sm:$0xf] %vm6123, %v5964
      %6222 = vst.msk [vmem:[%s180 + $0x188] sm:$0xf] %vm6123, %v5965
      %6223 = vst.msk [vmem:[%s180 + $0x18c] sm:$0xf] %vm6123, %v5966
      %6224 = vst.msk [vmem:[%s180 + $0x190] sm:$0xf] %vm6123, %v5967
      %6225 = vst.msk [vmem:[%s180 + $0x194] sm:$0xf] %vm6123, %v5968
      %6226 = vst.msk [vmem:[%s180 + $0x198] sm:$0xf] %vm6123, %v5969
      %6227 = vst.msk [vmem:[%s180 + $0x19c] sm:$0xf] %vm6123, %v5970
      %6228 = vst.msk [vmem:[%s180 + $0x1a0] sm:$0xf] %vm6123, %v5971
      %6229 = vst.msk [vmem:[%s180 + $0x1a4] sm:$0xf] %vm6123, %v5972
      %6230 = vst.msk [vmem:[%s180 + $0x1a8] sm:$0xf] %vm6123, %v5973
      %6231 = vst.msk [vmem:[%s180 + $0x1ac] sm:$0xf] %vm6123, %v5974
      %6232 = vst.msk [vmem:[%s180 + $0x1b0] sm:$0xf] %vm6123, %v5975
      %6233 = vst.msk [vmem:[%s180 + $0x1b4] sm:$0xf] %vm6123, %v5976
      %6234 = vst.msk [vmem:[%s180 + $0x1b8] sm:$0xf] %vm6123, %v5977
      %6235 = vst.msk [vmem:[%s180 + $0x1bc] sm:$0xf] %vm6123, %v5978
      %6236 = vst.msk [vmem:[%s180 + $0x1c0] sm:$0xf] %vm6123, %v5979
      %6237 = vst.msk [vmem:[%s180 + $0x1c4] sm:$0xf] %vm6123, %v5980
      %6238 = vst.msk [vmem:[%s180 + $0x1c8] sm:$0xf] %vm6123, %v5981
      %6239 = vst.msk [vmem:[%s180 + $0x1cc] sm:$0xf] %vm6123, %v5982
      %6240 = vst.msk [vmem:[%s180 + $0x1d0] sm:$0xf] %vm6123, %v5983
      %6241 = vst.msk [vmem:[%s180 + $0x1d4] sm:$0xf] %vm6123, %v5984
      %6242 = vst.msk [vmem:[%s180 + $0x1d8] sm:$0xf] %vm6123, %v5985
      %6243 = vst.msk [vmem:[%s180 + $0x1dc] sm:$0xf] %vm6123, %v5986
      %6244 = vst.msk [vmem:[%s180 + $0x1e0] sm:$0xf] %vm6123, %v5987
      %6245 = vst.msk [vmem:[%s180 + $0x1e4] sm:$0xf] %vm6123, %v5988
      %6246 = vst.msk [vmem:[%s180 + $0x1e8] sm:$0xf] %vm6123, %v5989
      %6247 = vst.msk [vmem:[%s180 + $0x1ec] sm:$0xf] %vm6123, %v5990
      %6248 = vst.msk [vmem:[%s180 + $0x1f0] sm:$0xf] %vm6123, %v5991
      %6249 = vst.msk [vmem:[%s180 + $0x1f4] sm:$0xf] %vm6123, %v5992
      %6250 = vst.msk [vmem:[%s180 + $0x1f8] sm:$0xf] %vm6123, %v5993
      %6251 = vst.msk [vmem:[%s180 + $0x1fc] sm:$0xf] %vm6123, %v5994
      %p6252 = scmp.lt.s32.totalorder %s17, 1
      %s6253 = scalar_select %p6252, %s17, 1
      %p6254 = scmp.lt.s32.totalorder %s18, 0
      %s6255 = scalar_select %p6254, %s18, 0
      %s6256 = smul.addr %s6253, 128
      %s6257 = sadd.s32 %s6255, %s6256
      %s6258 = smul.addr %s6257, 4
      %s6259 = scalar_lea.vmem %s2, %s6258
      // Predicated region
      $region29: #{a_call__.4} parent=27 // pred_check
        %p6260 = pneg %p97
      $region30: #{a_call__.4} parent=27 // pred_check_branch
        %6262 = sbr.rel (%p6260) target = $region32
      $region31: #{a_call__.4} parent=27 // pred_region
        _
      $region32: #{a_call__.4} parent=27 // pred_fallthru
        _
    $region28: #{a_call__.4} parent=5 // pred_fallthru
      _
    %p6263 = scmp.le.s32.totalorder 2, %s8
    // Predicated region
    $region33: #{a_call__.4} parent=5 // pred_check
      %p6264 = pneg %p6263
    $region34: #{a_call__.4} parent=5 // pred_check_branch
      %6266 = sbr.rel (%p6264) target = $region36
    $region35: #{a_call__.4} parent=5 // pred_region
      %s6267 = ssub.s32 %s8, 2
      // Predicated region
      $region37: #{a_call__.4} parent=35 // pred_check
        %p6268 = pneg %p103
      $region38: #{a_call__.4} parent=35 // pred_check_branch
        %6270 = sbr.rel (%p6268) target = $region40
      $region39: #{a_call__.4} parent=35 // pred_region
        %p6271 = scmp.lt.s32.totalorder %s19, 1
        %s6272 = scalar_select %p6271, %s19, 1
        %p6273 = scmp.lt.s32.totalorder %s20, 0
        %s6274 = scalar_select %p6273, %s20, 0
        %s6275 = smul.addr %s6272, 128
        %s6276 = sadd.s32 %s6274, %s6275
        %s6277 = smul.addr %s6276, 4
        %s6278 = scalar_lea.vmem %s2, %s6277
      $region40: #{a_call__.4} parent=35 // pred_fallthru
        _
    $region36: #{a_call__.4} parent=5 // pred_fallthru
      _
  $region6: #{a_call__.4} parent=0 // loop_footer
    %s12 = sadd.s32 1, %s8
  $region7: #{a_call__.4} parent=0 // loop_footer_branch
    %7 = sbr.rel target = $region3
  $region8: #{a_call__.4} parent=0 // loop_exit
    _

// kernel: a_call__.5
$region0: #{a_call__.5}
  #allocation0 [shape = 'u32[]', space=smem, size = 0x4, offset = 0x4, fixed_abs, tag = 'smem constant byte address 0x4 - core index']
  #allocation1 [shape = 'u32[144,128]{1,0:T(1,128)}', space=vmem, size = 0x12000, scoped, tag = 'internal scratch']
  %s0 = inlined_call_operand.vmem [shape: bf16[2,17,17,32], index: 0, kind: input, shape index: {}]
  %s1 = inlined_call_operand.vmem [shape: bf16[128,16], index: 1, kind: input, shape index: {}]
  %s2 = inlined_call_operand.vmem [shape: bf16[2,256,16], index: 2, kind: output, shape index: {}]
  %s3 = sld [smem:[#allocation0]]
  $region41: #{a_call__.5} parent=0
    _
  %s5 = ssub.s32 1, %s3
  %s6 = scalar_select 0, %s5, %s3
  loop: start=0, step=1, limit=4
  $region2: #{a_call__.5} parent=0 // loop_pre_header
    _
  $region3: #{a_call__.5} parent=0 // loop_header
    %s8 = sphi 0, %s12
    %p9 = scmp.ge.s32.totalorder %s8, 4
    %s15 = sphi 0, %s27
    %s16 = sphi 0, %s23
    %s17 = sphi 0, %s15
    %s18 = sphi 0, %s16
    %s19 = sphi 0, %s17
    %s20 = sphi 0, %s18
    %s30 = sphi 0, %s32
    %s33 = sphi 0, %s30
    %s34 = sphi 0, %s33
    %s50 = sphi 0, %s34
    %s56 = sphi 0, %s58
    %s59 = sphi 0, %s56
    %s60 = sphi 0, %s59
    %s76 = sphi 0, %s60
    %s84 = sphi 0, %s86
    %s87 = sphi 0, %s84
    %s88 = sphi 0, %s87
    %s104 = sphi 0, %s88
  $region4: #{a_call__.5} parent=0 // loop_header_branch
    %11 = sbr.rel (%p9) target = $region8
  $region5: #{a_call__.5} parent=0 // loop_body
    %s13 = ssub.s32 %s8, 1
    %s14 = ssub.s32 %s8, 2
    %s21 = sadd.s32 1, %s16
    %p22 = scmp.ge.s32.totalorder %s21, 1
    %s23 = scalar_select %p22, 0, %s21
    %s24 = sadd.s32 1, %s15
    %s25 = scalar_select %p22, %s24, %s15
    %p26 = scmp.ge.s32.totalorder %s25, 2
    %s27 = scalar_select %p26, 0, %s25
    %s28 = ssub.s32 %s15, %s27
    %p29 = scmp.eq.s32.totalorder %s28, 0
    %s31 = sadd.s32 %s30, 1
    %s32 = scalar_select %p29, %s30, %s31
    %p35 = pneg %p29
    %p36 = scmp.eq.s32.totalorder %s8, 1
    %p37 = por %p35, %p36
    %p38 = scmp.ne.s32.totalorder %s30, %s33
    %p39 = scmp.eq.s32.totalorder %s8, 0
    %p40 = por %p38, %p39
    %p41 = scmp.ne.s32.totalorder %s30, %s33
    %p42 = scmp.eq.s32.totalorder %s13, 1
    %p43 = por %p41, %p42
    %p44 = scmp.ne.s32.totalorder %s33, %s34
    %p45 = scmp.eq.s32.totalorder %s13, 0
    %p46 = por %p44, %p45
    %p47 = scmp.ne.s32.totalorder %s33, %s34
    %p48 = scmp.eq.s32.totalorder %s14, 1
    %p49 = por %p47, %p48
    %p51 = scmp.ne.s32.totalorder %s34, %s50
    %p52 = scmp.eq.s32.totalorder %s14, 0
    %p53 = por %p51, %p52
    %s54 = ssub.s32 %s16, %s23
    %p55 = scmp.eq.s32.totalorder %s54, 0
    %s57 = sadd.s32 %s56, 1
    %s58 = scalar_select %p55, %s56, %s57
    %p61 = pneg %p55
    %p62 = scmp.eq.s32.totalorder %s8, 1
    %p63 = por %p61, %p62
    %p64 = scmp.ne.s32.totalorder %s56, %s59
    %p65 = scmp.eq.s32.totalorder %s8, 0
    %p66 = por %p64, %p65
    %p67 = scmp.ne.s32.totalorder %s56, %s59
    %p68 = scmp.eq.s32.totalorder %s13, 1
    %p69 = por %p67, %p68
    %p70 = scmp.ne.s32.totalorder %s59, %s60
    %p71 = scmp.eq.s32.totalorder %s13, 0
    %p72 = por %p70, %p71
    %p73 = scmp.ne.s32.totalorder %s59, %s60
    %p74 = scmp.eq.s32.totalorder %s14, 1
    %p75 = por %p73, %p74
    %p77 = scmp.ne.s32.totalorder %s60, %s76
    %p78 = scmp.eq.s32.totalorder %s14, 0
    %p79 = por %p77, %p78
    %s80 = ssub.s32 %s15, %s27
    %s81 = ssub.s32 %s16, %s23
    %s82 = sor.u32 %s80, %s81
    %p83 = scmp.eq.s32.totalorder %s82, 0
    %s85 = sadd.s32 %s84, 1
    %s86 = scalar_select %p83, %s84, %s85
    %p89 = pneg %p83
    %p90 = scmp.eq.s32.totalorder %s8, 1
    %p91 = por %p89, %p90
    %p92 = scmp.ne.s32.totalorder %s84, %s87
    %p93 = scmp.eq.s32.totalorder %s8, 0
    %p94 = por %p92, %p93
    %p95 = scmp.ne.s32.totalorder %s84, %s87
    %p96 = scmp.eq.s32.totalorder %s13, 1
    %p97 = por %p95, %p96
    %p98 = scmp.ne.s32.totalorder %s87, %s88
    %p99 = scmp.eq.s32.totalorder %s13, 0
    %p100 = por %p98, %p99
    %p101 = scmp.ne.s32.totalorder %s87, %s88
    %p102 = scmp.eq.s32.totalorder %s14, 1
    %p103 = por %p101, %p102
    %p105 = scmp.ne.s32.totalorder %s88, %s104
    %p106 = scmp.eq.s32.totalorder %s14, 0
    %p107 = por %p105, %p106
    %p108 = scmp.le.s32.totalorder 1, %s8
    %p109 = scmp.lt.s32.totalorder %s8, 3
    %p110 = pnand %p108, %p109
    %p111 = pneg %p110
    // Predicated region
    $region9: #{a_call__.5} parent=5 // pred_check
      _
    $region10: #{a_call__.5} parent=5 // pred_check_branch
      %113 = sbr.rel (%p110) target = $region12
    $region11: #{a_call__.5} parent=5 // pred_region
      %s114 = ssub.s32 %s8, 1
      // Predicated region
      $region13: #{a_call__.5} parent=11 // pred_check
        %p115 = pneg %p72
      $region14: #{a_call__.5} parent=11 // pred_check_branch
        %117 = sbr.rel (%p115) target = $region16
      $region15: #{a_call__.5} parent=11 // pred_region
        %p118 = scmp.lt.s32.totalorder %s18, 0
        %s119 = scalar_select %p118, %s18, 0
        %s120 = smul.addr %s119, 4
        %s121 = scalar_lea.vmem %s1, %s120
      $region16: #{a_call__.5} parent=11 // pred_fallthru
        _
    $region12: #{a_call__.5} parent=5 // pred_fallthru
      _
    %p122 = scmp.lt.s32.totalorder %s8, 2
    // Predicated region
    $region17: #{a_call__.5} parent=5 // pred_check
      %p123 = pneg %p122
    $region18: #{a_call__.5} parent=5 // pred_check_branch
      %125 = sbr.rel (%p123) target = $region20
    $region19: #{a_call__.5} parent=5 // pred_region
      // Predicated region
      $region21: #{a_call__.5} parent=19 // pred_check
        %p126 = pneg %p40
      $region22: #{a_call__.5} parent=19 // pred_check_branch
        %128 = sbr.rel (%p126) target = $region24
      $region23: #{a_call__.5} parent=19 // pred_region
        %p129 = scmp.lt.s32.totalorder %s15, 1
        %s130 = scalar_select %p129, %s15, 1
        %s131 = smul.addr %s130, 51
        %s132 = smul.addr %s131, 4
        %s133 = scalar_lea.vmem %s0, %s132
      $region24: #{a_call__.5} parent=19 // pred_fallthru
        _
    $region20: #{a_call__.5} parent=5 // pred_fallthru
      _
    %p134 = scmp.le.s32.totalorder 1, %s8
    %p135 = scmp.lt.s32.totalorder %s8, 3
    %p136 = pnand %p134, %p135
    %p137 = pneg %p136
    // Predicated region
    $region25: #{a_call__.5} parent=5 // pred_check
      _
    $region26: #{a_call__.5} parent=5 // pred_check_branch
      %139 = sbr.rel (%p136) target = $region28
    $region27: #{a_call__.5} parent=5 // pred_region
      %s140 = ssub.s32 %s8, 1
      %p141 = scmp.lt.s32.totalorder %s17, 1
      %s142 = scalar_select %p141, %s17, 1
      %s143 = smul.addr %s142, 51
      %s144 = smul.addr %s143, 4
      %s145 = scalar_lea.vmem %s0, %s144
      %p146 = pneg %p46
      %p147 = pneg %p43
      %p148 = scmp.lt.s32.totalorder %s18, 0
      %s149 = scalar_select %p148, %s18, 0
      %s150 = smul.addr %s149, 4
      %s151 = scalar_lea.vmem %s1, %s150
      %p152 = pneg %p72
      %p153 = pneg %p69
      %p154 = pneg %p100
      %p155 = pneg %p97
      %p156 = scmp.lt.s32.totalorder %s17, 1
      %s157 = scalar_select %p156, %s17, 1
      %p158 = scmp.lt.s32.totalorder %s18, 0
      %s159 = scalar_select %p158, %s18, 0
      %s160 = smul.addr %s157, 32
      %s161 = sadd.s32 %s159, %s160
      %s162 = smul.addr %s161, 4
      %s163 = scalar_lea.vmem %s2, %s162
      %p164 = scmp.lt.s32.totalorder %s17, 1
      %s165 = scalar_select %p164, %s17, 1
      %s166 = smul.addr %s165, 51
      %s167 = smul.addr %s166, 4
      %s168 = scalar_lea.vmem %s0, %s167
      %p169 = scmp.lt.s32.totalorder %s18, 0
      %s170 = scalar_select %p169, %s18, 0
      %s171 = smul.addr %s170, 4
      %s172 = scalar_lea.vmem %s1, %s171
      %p173 = scmp.lt.s32.totalorder %s17, 1
      %s174 = scalar_select %p173, %s17, 1
      %p175 = scmp.lt.s32.totalorder %s18, 0
      %s176 = scalar_select %p175, %s18, 0
      %s177 = smul.addr %s174, 32
      %s178 = sadd.s32 %s176, %s177
      %s179 = smul.addr %s178, 4
      %s180 = scalar_lea.vmem %s2, %s179
      %v182 = vld [vmem:[%s168] sm:$0xf]
      %v183 = vld [vmem:[%s168 + $0x4] sm:$0xf]
      %v184 = vld [vmem:[%s168 + $0x8] sm:$0x1]
      %v185 = vld [vmem:[%s168 + $0xc] sm:$0xf]
      %v186 = vld [vmem:[%s168 + $0x10] sm:$0xf]
      %v187 = vld [vmem:[%s168 + $0x14] sm:$0x1]
      %v188 = vld [vmem:[%s168 + $0x18] sm:$0xf]
      %v189 = vld [vmem:[%s168 + $0x1c] sm:$0xf]
      %v190 = vld [vmem:[%s168 + $0x20] sm:$0x1]
      %v191 = vld [vmem:[%s168 + $0x24] sm:$0xf]
      %v192 = vld [vmem:[%s168 + $0x28] sm:$0xf]
      %v193 = vld [vmem:[%s168 + $0x2c] sm:$0x1]
      %v194 = vld [vmem:[%s168 + $0x30] sm:$0xf]
      %v195 = vld [vmem:[%s168 + $0x34] sm:$0xf]
      %v196 = vld [vmem:[%s168 + $0x38] sm:$0x1]
      %v197 = vld [vmem:[%s168 + $0x3c] sm:$0xf]
      %v198 = vld [vmem:[%s168 + $0x40] sm:$0xf]
      %v199 = vld [vmem:[%s168 + $0x44] sm:$0x1]
      %v200 = vld [vmem:[%s168 + $0x48] sm:$0xf]
      %v201 = vld [vmem:[%s168 + $0x4c] sm:$0xf]
      %v202 = vld [vmem:[%s168 + $0x50] sm:$0x1]
      %v203 = vld [vmem:[%s168 + $0x54] sm:$0xf]
      %v204 = vld [vmem:[%s168 + $0x58] sm:$0xf]
      %v205 = vld [vmem:[%s168 + $0x5c] sm:$0x1]
      %v206 = vld [vmem:[%s168 + $0x60] sm:$0xf]
      %v207 = vld [vmem:[%s168 + $0x64] sm:$0xf]
      %v208 = vld [vmem:[%s168 + $0x68] sm:$0x1]
      %v209 = vld [vmem:[%s168 + $0x6c] sm:$0xf]
      %v210 = vld [vmem:[%s168 + $0x70] sm:$0xf]
      %v211 = vld [vmem:[%s168 + $0x74] sm:$0x1]
      %v212 = vld [vmem:[%s168 + $0x78] sm:$0xf]
      %v213 = vld [vmem:[%s168 + $0x7c] sm:$0xf]
      %v214 = vld [vmem:[%s168 + $0x80] sm:$0x1]
      %v215 = vld [vmem:[%s168 + $0x84] sm:$0xf]
      %v216 = vld [vmem:[%s168 + $0x88] sm:$0xf]
      %v217 = vld [vmem:[%s168 + $0x8c] sm:$0x1]
      %v218 = vld [vmem:[%s168 + $0x90] sm:$0xf]
      %v219 = vld [vmem:[%s168 + $0x94] sm:$0xf]
      %v220 = vld [vmem:[%s168 + $0x98] sm:$0x1]
      %v221 = vld [vmem:[%s168 + $0x9c] sm:$0xf]
      %v222 = vld [vmem:[%s168 + $0xa0] sm:$0xf]
      %v223 = vld [vmem:[%s168 + $0xa4] sm:$0x1]
      %v224 = vld [vmem:[%s168 + $0xa8] sm:$0xf]
      %v225 = vld [vmem:[%s168 + $0xac] sm:$0xf]
      %v226 = vld [vmem:[%s168 + $0xb0] sm:$0x1]
      %v227 = vld [vmem:[%s168 + $0xb4] sm:$0xf]
      %v228 = vld [vmem:[%s168 + $0xb8] sm:$0xf]
      %v229 = vld [vmem:[%s168 + $0xbc] sm:$0x1]
      %v230 = vld [vmem:[%s168 + $0xc0] sm:$0xf]
      %v231 = vld [vmem:[%s168 + $0xc4] sm:$0xf]
      %v232 = vld [vmem:[%s168 + $0xc8] sm:$0x1]
      %v233 = vld [vmem:[%s172] sm:$0xf]
      %v234 = vld [vmem:[%s172 + $0x4] sm:$0xf]
      %v235 = vld [vmem:[%s172 + $0x8] sm:$0xf]
      %v236 = vld [vmem:[%s172 + $0xc] sm:$0xf]
      %v237 = vld [vmem:[%s172 + $0x10] sm:$0xf]
      %v238 = vld [vmem:[%s172 + $0x14] sm:$0xf]
      %v239 = vld [vmem:[%s172 + $0x18] sm:$0xf]
      %v240 = vld [vmem:[%s172 + $0x1c] sm:$0xf]
      %v241 = vld [vmem:[%s172 + $0x20] sm:$0xf]
      %v242 = vld [vmem:[%s172 + $0x24] sm:$0xf]
      %v243 = vld [vmem:[%s172 + $0x28] sm:$0xf]
      %v244 = vld [vmem:[%s172 + $0x2c] sm:$0xf]
      %v245 = vld [vmem:[%s172 + $0x30] sm:$0xf]
      %v246 = vld [vmem:[%s172 + $0x34] sm:$0xf]
      %v247 = vld [vmem:[%s172 + $0x38] sm:$0xf]
      %v248 = vld [vmem:[%s172 + $0x3c] sm:$0xf]
      %vm249 = vsmask.f32 3328
      %vm250 = vsmask.f32 7440
      %vm251 = vmor %vm249, %vm250
      %v253 = vshrl.u32 %v182, 16
      %v255 = vrot.slane %v253, 4
      %v256 = vshll.u32 %v182, 16
      %v258 = vrot.slane %v256, 5
      %v259 = vor.u32 %v255, %v258
      %v260 = vrot.slane %v259, 4
      %v262 = vshll.u32 %v183, 16
      %v264 = vrot.slane %v262, 5
      %v265 = vsel %vm251, %v260, %v264
      %v266 = vshrl.u32 %v183, 16
      %v268 = vrot.slane %v266, 4
      %v269 = vor.u32 %v268, %v264
      %v270 = vrot.slane %v269, 4
      %v272 = vshll.u32 %v184, 16
      %v274 = vrot.slane %v272, 5
      %v275 = vsel %vm251, %v270, %v274
      %v277 = vshrl.u32 %v185, 16
      %v279 = vrot.slane %v277, 4
      %v280 = vshll.u32 %v185, 16
      %v282 = vrot.slane %v280, 5
      %v283 = vor.u32 %v279, %v282
      %v284 = vrot.slane %v283, 4
      %v286 = vshll.u32 %v186, 16
      %v288 = vrot.slane %v286, 5
      %v289 = vsel %vm251, %v284, %v288
      %v290 = vshrl.u32 %v186, 16
      %v292 = vrot.slane %v290, 4
      %v293 = vor.u32 %v292, %v288
      %v294 = vrot.slane %v293, 4
      %v296 = vshll.u32 %v187, 16
      %v298 = vrot.slane %v296, 5
      %v299 = vsel %vm251, %v294, %v298
      %v301 = vshrl.u32 %v188, 16
      %v303 = vrot.slane %v301, 4
      %v304 = vshll.u32 %v188, 16
      %v306 = vrot.slane %v304, 5
      %v307 = vor.u32 %v303, %v306
      %v308 = vrot.slane %v307, 4
      %v310 = vshll.u32 %v189, 16
      %v312 = vrot.slane %v310, 5
      %v313 = vsel %vm251, %v308, %v312
      %v314 = vshrl.u32 %v189, 16
      %v316 = vrot.slane %v314, 4
      %v317 = vor.u32 %v316, %v312
      %v318 = vrot.slane %v317, 4
      %v320 = vshll.u32 %v190, 16
      %v322 = vrot.slane %v320, 5
      %v323 = vsel %vm251, %v318, %v322
      %v325 = vshrl.u32 %v191, 16
      %v327 = vrot.slane %v325, 4
      %v328 = vshll.u32 %v191, 16
      %v330 = vrot.slane %v328, 5
      %v331 = vor.u32 %v327, %v330
      %v332 = vrot.slane %v331, 4
      %v334 = vshll.u32 %v192, 16
      %v336 = vrot.slane %v334, 5
      %v337 = vsel %vm251, %v332, %v336
      %v338 = vshrl.u32 %v192, 16
      %v340 = vrot.slane %v338, 4
      %v341 = vor.u32 %v340, %v336
      %v342 = vrot.slane %v341, 4
      %v344 = vshll.u32 %v193, 16
      %v346 = vrot.slane %v344, 5
      %v347 = vsel %vm251, %v342, %v346
      %v349 = vshrl.u32 %v194, 16
      %v351 = vrot.slane %v349, 4
      %v352 = vshll.u32 %v194, 16
      %v354 = vrot.slane %v352, 5
      %v355 = vor.u32 %v351, %v354
      %v356 = vrot.slane %v355, 4
      %v358 = vshll.u32 %v195, 16
      %v360 = vrot.slane %v358, 5
      %v361 = vsel %vm251, %v356, %v360
      %v362 = vshrl.u32 %v195, 16
      %v364 = vrot.slane %v362, 4
      %v365 = vor.u32 %v364, %v360
      %v366 = vrot.slane %v365, 4
      %v368 = vshll.u32 %v196, 16
      %v370 = vrot.slane %v368, 5
      %v371 = vsel %vm251, %v366, %v370
      %v373 = vshrl.u32 %v197, 16
      %v375 = vrot.slane %v373, 4
      %v376 = vshll.u32 %v197, 16
      %v378 = vrot.slane %v376, 5
      %v379 = vor.u32 %v375, %v378
      %v380 = vrot.slane %v379, 4
      %v382 = vshll.u32 %v198, 16
      %v384 = vrot.slane %v382, 5
      %v385 = vsel %vm251, %v380, %v384
      %v386 = vshrl.u32 %v198, 16
      %v388 = vrot.slane %v386, 4
      %v389 = vor.u32 %v388, %v384
      %v390 = vrot.slane %v389, 4
      %v392 = vshll.u32 %v199, 16
      %v394 = vrot.slane %v392, 5
      %v395 = vsel %vm251, %v390, %v394
      %v397 = vshrl.u32 %v200, 16
      %v399 = vrot.slane %v397, 4
      %v400 = vshll.u32 %v200, 16
      %v402 = vrot.slane %v400, 5
      %v403 = vor.u32 %v399, %v402
      %v404 = vrot.slane %v403, 4
      %v406 = vshll.u32 %v201, 16
      %v408 = vrot.slane %v406, 5
      %v409 = vsel %vm251, %v404, %v408
      %v410 = vshrl.u32 %v201, 16
      %v412 = vrot.slane %v410, 4
      %v413 = vor.u32 %v412, %v408
      %v414 = vrot.slane %v413, 4
      %v416 = vshll.u32 %v202, 16
      %v418 = vrot.slane %v416, 5
      %v419 = vsel %vm251, %v414, %v418
      %v421 = vshrl.u32 %v203, 16
      %v423 = vrot.slane %v421, 4
      %v424 = vshll.u32 %v203, 16
      %v426 = vrot.slane %v424, 5
      %v427 = vor.u32 %v423, %v426
      %v428 = vrot.slane %v427, 4
      %v430 = vshll.u32 %v204, 16
      %v432 = vrot.slane %v430, 5
      %v433 = vsel %vm251, %v428, %v432
      %v434 = vshrl.u32 %v204, 16
      %v436 = vrot.slane %v434, 4
      %v437 = vor.u32 %v436, %v432
      %v438 = vrot.slane %v437, 4
      %v440 = vshll.u32 %v205, 16
      %v442 = vrot.slane %v440, 5
      %v443 = vsel %vm251, %v438, %v442
      %v445 = vshrl.u32 %v206, 16
      %v447 = vrot.slane %v445, 4
      %v448 = vshll.u32 %v206, 16
      %v450 = vrot.slane %v448, 5
      %v451 = vor.u32 %v447, %v450
      %v452 = vrot.slane %v451, 4
      %v454 = vshll.u32 %v207, 16
      %v456 = vrot.slane %v454, 5
      %v457 = vsel %vm251, %v452, %v456
      %v458 = vshrl.u32 %v207, 16
      %v460 = vrot.slane %v458, 4
      %v461 = vor.u32 %v460, %v456
      %v462 = vrot.slane %v461, 4
      %v464 = vshll.u32 %v208, 16
      %v466 = vrot.slane %v464, 5
      %v467 = vsel %vm251, %v462, %v466
      %v469 = vshrl.u32 %v209, 16
      %v471 = vrot.slane %v469, 4
      %v472 = vshll.u32 %v209, 16
      %v474 = vrot.slane %v472, 5
      %v475 = vor.u32 %v471, %v474
      %v476 = vrot.slane %v475, 4
      %v478 = vshll.u32 %v210, 16
      %v480 = vrot.slane %v478, 5
      %v481 = vsel %vm251, %v476, %v480
      %v482 = vshrl.u32 %v210, 16
      %v484 = vrot.slane %v482, 4
      %v485 = vor.u32 %v484, %v480
      %v486 = vrot.slane %v485, 4
      %v488 = vshll.u32 %v211, 16
      %v490 = vrot.slane %v488, 5
      %v491 = vsel %vm251, %v486, %v490
      %v493 = vshrl.u32 %v212, 16
      %v495 = vrot.slane %v493, 4
      %v496 = vshll.u32 %v212, 16
      %v498 = vrot.slane %v496, 5
      %v499 = vor.u32 %v495, %v498
      %v500 = vrot.slane %v499, 4
      %v502 = vshll.u32 %v213, 16
      %v504 = vrot.slane %v502, 5
      %v505 = vsel %vm251, %v500, %v504
      %v506 = vshrl.u32 %v213, 16
      %v508 = vrot.slane %v506, 4
      %v509 = vor.u32 %v508, %v504
      %v510 = vrot.slane %v509, 4
      %v512 = vshll.u32 %v214, 16
      %v514 = vrot.slane %v512, 5
      %v515 = vsel %vm251, %v510, %v514
      %v517 = vshrl.u32 %v215, 16
      %v519 = vrot.slane %v517, 4
      %v520 = vshll.u32 %v215, 16
      %v522 = vrot.slane %v520, 5
      %v523 = vor.u32 %v519, %v522
      %v524 = vrot.slane %v523, 4
      %v526 = vshll.u32 %v216, 16
      %v528 = vrot.slane %v526, 5
      %v529 = vsel %vm251, %v524, %v528
      %v530 = vshrl.u32 %v216, 16
      %v532 = vrot.slane %v530, 4
      %v533 = vor.u32 %v532, %v528
      %v534 = vrot.slane %v533, 4
      %v536 = vshll.u32 %v217, 16
      %v538 = vrot.slane %v536, 5
      %v539 = vsel %vm251, %v534, %v538
      %v541 = vshrl.u32 %v218, 16
      %v543 = vrot.slane %v541, 4
      %v544 = vshll.u32 %v218, 16
      %v546 = vrot.slane %v544, 5
      %v547 = vor.u32 %v543, %v546
      %v548 = vrot.slane %v547, 4
      %v550 = vshll.u32 %v219, 16
      %v552 = vrot.slane %v550, 5
      %v553 = vsel %vm251, %v548, %v552
      %v554 = vshrl.u32 %v219, 16
      %v556 = vrot.slane %v554, 4
      %v557 = vor.u32 %v556, %v552
      %v558 = vrot.slane %v557, 4
      %v560 = vshll.u32 %v220, 16
      %v562 = vrot.slane %v560, 5
      %v563 = vsel %vm251, %v558, %v562
      %v565 = vshrl.u32 %v221, 16
      %v567 = vrot.slane %v565, 4
      %v568 = vshll.u32 %v221, 16
      %v570 = vrot.slane %v568, 5
      %v571 = vor.u32 %v567, %v570
      %v572 = vrot.slane %v571, 4
      %v574 = vshll.u32 %v222, 16
      %v576 = vrot.slane %v574, 5
      %v577 = vsel %vm251, %v572, %v576
      %v578 = vshrl.u32 %v222, 16
      %v580 = vrot.slane %v578, 4
      %v581 = vor.u32 %v580, %v576
      %v582 = vrot.slane %v581, 4
      %v584 = vshll.u32 %v223, 16
      %v586 = vrot.slane %v584, 5
      %v587 = vsel %vm251, %v582, %v586
      %v589 = vshrl.u32 %v224, 16
      %v591 = vrot.slane %v589, 4
      %v592 = vshll.u32 %v224, 16
      %v594 = vrot.slane %v592, 5
      %v595 = vor.u32 %v591, %v594
      %v596 = vrot.slane %v595, 4
      %v598 = vshll.u32 %v225, 16
      %v600 = vrot.slane %v598, 5
      %v601 = vsel %vm251, %v596, %v600
      %v602 = vshrl.u32 %v225, 16
      %v604 = vrot.slane %v602, 4
      %v605 = vor.u32 %v604, %v600
      %v606 = vrot.slane %v605, 4
      %v608 = vshll.u32 %v226, 16
      %v610 = vrot.slane %v608, 5
      %v611 = vsel %vm251, %v606, %v610
      %v613 = vshrl.u32 %v227, 16
      %v615 = vrot.slane %v613, 4
      %v616 = vshll.u32 %v227, 16
      %v618 = vrot.slane %v616, 5
      %v619 = vor.u32 %v615, %v618
      %v620 = vrot.slane %v619, 4
      %v622 = vshll.u32 %v228, 16
      %v624 = vrot.slane %v622, 5
      %v625 = vsel %vm251, %v620, %v624
      %v626 = vshrl.u32 %v228, 16
      %v628 = vrot.slane %v626, 4
      %v629 = vor.u32 %v628, %v624
      %v630 = vrot.slane %v629, 4
      %v632 = vshll.u32 %v229, 16
      %v634 = vrot.slane %v632, 5
      %v635 = vsel %vm251, %v630, %v634
      %v636 = vunpack.c.l.b16 %v265
      %v637 = vunpack.c.l.b16 %v275
      %v638 = vunpack.c.l.b16 %v289
      %v639 = vunpack.c.l.b16 %v299
      %v640 = vunpack.c.l.b16 %v313
      %v641 = vunpack.c.l.b16 %v323
      %v642 = vunpack.c.l.b16 %v337
      %v643 = vunpack.c.l.b16 %v347
      %v644 = vunpack.c.l.b16 %v361
      %v645 = vunpack.c.l.b16 %v371
      %v646 = vunpack.c.l.b16 %v385
      %v647 = vunpack.c.l.b16 %v395
      %v648 = vunpack.c.l.b16 %v409
      %v649 = vunpack.c.l.b16 %v419
      %v650 = vunpack.c.l.b16 %v433
      %v651 = vunpack.c.l.b16 %v443
      %v652 = vunpack.c.l.b16 %v457
      %v653 = vunpack.c.l.b16 %v467
      %v654 = vunpack.c.l.b16 %v481
      %v655 = vunpack.c.l.b16 %v491
      %v656 = vunpack.c.l.b16 %v505
      %v657 = vunpack.c.l.b16 %v515
      %v658 = vunpack.c.l.b16 %v529
      %v659 = vunpack.c.l.b16 %v539
      %v660 = vunpack.c.l.b16 %v553
      %v661 = vunpack.c.l.b16 %v563
      %v662 = vunpack.c.l.b16 %v577
      %v663 = vunpack.c.l.b16 %v587
      %v664 = vunpack.c.l.b16 %v601
      %v665 = vunpack.c.l.b16 %v611
      %v666 = vunpack.c.l.b16 %v625
      %v667 = vunpack.c.l.b16 %v635
      %v668 = vpack.c.b16 %v637, %v636
      %v669 = vpack.c.b16 %v639, %v638
      %v670 = vpack.c.b16 %v641, %v640
      %v671 = vpack.c.b16 %v643, %v642
      %v672 = vpack.c.b16 %v645, %v644
      %v673 = vpack.c.b16 %v647, %v646
      %v674 = vpack.c.b16 %v649, %v648
      %v675 = vpack.c.b16 %v651, %v650
      %v676 = vpack.c.b16 %v653, %v652
      %v677 = vpack.c.b16 %v655, %v654
      %v678 = vpack.c.b16 %v657, %v656
      %v679 = vpack.c.b16 %v659, %v658
      %v680 = vpack.c.b16 %v661, %v660
      %v681 = vpack.c.b16 %v663, %v662
      %v682 = vpack.c.b16 %v665, %v664
      %v683 = vpack.c.b16 %v667, %v666
      %v688 = vunpack.c.l.b16 %v237
      %v689 = vunpack.c.l.b16 %v238
      %v690 = vunpack.c.l.b16 %v239
      %v691 = vunpack.c.l.b16 %v240
      %v692 = vpack.c.b16 %v689, %v688
      %v693 = vpack.c.b16 %v691, %v690
      %vm696 = vcmask 261120
      %v698 = vsel %vm696, %v668, 0
      %v701 = vsel %vm696, %v669, 0
      %v704 = vsel %vm696, %v670, 0
      %v707 = vsel %vm696, %v671, 0
      %v710 = vsel %vm696, %v672, 0
      %v713 = vsel %vm696, %v673, 0
      %v716 = vsel %vm696, %v674, 0
      %v719 = vsel %vm696, %v675, 0
      %v722 = vsel %vm696, %v676, 0
      %v725 = vsel %vm696, %v677, 0
      %v728 = vsel %vm696, %v678, 0
      %v731 = vsel %vm696, %v679, 0
      %v734 = vsel %vm696, %v680, 0
      %v737 = vsel %vm696, %v681, 0
      %v740 = vsel %vm696, %v682, 0
      %v743 = vsel %vm696, %v683, 0
      %745 = vmatprep.subr.bf16.mxu0 0
      %746 = vmatpush1.bf16.msra.mxu0 0
      %747 = vmatprep.subr.bf16.mxu0 0
      %748 = vmatpush1.bf16.msra.mxu0 0
      %749 = vmatprep.subr.bf16.mxu0 0
      %750 = vmatpush1.bf16.msra.mxu0 0
      %751 = vmatprep.subr.bf16.mxu0 0
      %752 = vmatpush1.bf16.msra.mxu0 0
      %753 = vmatprep.subr.bf16.mxu0 0
      %754 = vmatpush1.bf16.msra.mxu0 0
      %755 = vmatprep.subr.bf16.mxu0 0
      %756 = vmatpush1.bf16.msra.mxu0 0
      %757 = vmatprep.subr.bf16.mxu0 0
      %758 = vmatpush1.bf16.msra.mxu0 %v693
      %759 = vmatprep.subr.bf16.mxu0 0
      %760 = vmatpush1.bf16.msra.mxu0 %v692
      %761 = vmatprep.subr.bf16.mxu0 0
      %762 = vmatpush2.bf16.msra.mxu0 0
      %763 = vmatprep.subr.bf16.mxu0 0
      %764 = vmatpush2.bf16.msra.mxu0 0
      %765 = vmatprep.subr.bf16.mxu0 0
      %766 = vmatpush2.bf16.msra.mxu0 0
      %767 = vmatprep.subr.bf16.mxu0 0
      %768 = vmatpush2.bf16.msra.mxu0 0
      %769 = vmatprep.subr.bf16.mxu0 0
      %770 = vmatpush2.bf16.msra.mxu0 0
      %771 = vmatprep.subr.bf16.mxu0 0
      %772 = vmatpush2.bf16.msra.mxu0 0
      %773 = vmatprep.subr.bf16.mxu0 0
      %774 = vmatpush2.bf16.msra.mxu0 0
      %775 = vmatprep.subr.bf16.mxu0 0
      %776 = vmatpush2.bf16.msra.mxu0 0
      %777 = vmatprep.mubr.bf16.mxu0 0
      %778 = vmatmul.mubr.bf16.gmra.mxu0 %v698
      %v779 = vpop.f32.mrf.mxu0
      %v780 = vadd.f32 0.0, %v779
      %v781 = vpop.f32.mrf.mxu0
      %v782 = vpop.f32.mrf.mxu0
      %v783 = vadd.f32 0.0, %v782
      %v784 = vpop.f32.mrf.mxu0
      %785 = vmatprep.mubr.bf16.mxu0 0
      %786 = vmatmul.mubr.bf16.gmra.mxu0 %v701
      %v787 = vpop.f32.mrf.mxu0
      %v788 = vadd.f32 0.0, %v787
      %v789 = vpop.f32.mrf.mxu0
      %v790 = vpop.f32.mrf.mxu0
      %v791 = vadd.f32 0.0, %v790
      %v792 = vpop.f32.mrf.mxu0
      %793 = vmatprep.mubr.bf16.mxu0 0
      %794 = vmatmul.mubr.bf16.gmra.mxu0 %v704
      %v795 = vpop.f32.mrf.mxu0
      %v796 = vadd.f32 0.0, %v795
      %v797 = vpop.f32.mrf.mxu0
      %v798 = vpop.f32.mrf.mxu0
      %v799 = vadd.f32 0.0, %v798
      %v800 = vpop.f32.mrf.mxu0
      %801 = vmatprep.mubr.bf16.mxu0 0
      %802 = vmatmul.mubr.bf16.gmra.mxu0 %v707
      %v803 = vpop.f32.mrf.mxu0
      %v804 = vadd.f32 0.0, %v803
      %v805 = vpop.f32.mrf.mxu0
      %v806 = vpop.f32.mrf.mxu0
      %v807 = vadd.f32 0.0, %v806
      %v808 = vpop.f32.mrf.mxu0
      %809 = vmatprep.mubr.bf16.mxu0 0
      %810 = vmatmul.mubr.bf16.gmra.mxu0 %v710
      %v811 = vpop.f32.mrf.mxu0
      %v812 = vadd.f32 0.0, %v811
      %v813 = vpop.f32.mrf.mxu0
      %v814 = vpop.f32.mrf.mxu0
      %v815 = vadd.f32 0.0, %v814
      %v816 = vpop.f32.mrf.mxu0
      %817 = vmatprep.mubr.bf16.mxu0 0
      %818 = vmatmul.mubr.bf16.gmra.mxu0 %v713
      %v819 = vpop.f32.mrf.mxu0
      %v820 = vadd.f32 0.0, %v819
      %v821 = vpop.f32.mrf.mxu0
      %v822 = vpop.f32.mrf.mxu0
      %v823 = vadd.f32 0.0, %v822
      %v824 = vpop.f32.mrf.mxu0
      %825 = vmatprep.mubr.bf16.mxu0 0
      %826 = vmatmul.mubr.bf16.gmra.mxu0 %v716
      %v827 = vpop.f32.mrf.mxu0
      %v828 = vadd.f32 0.0, %v827
      %v829 = vpop.f32.mrf.mxu0
      %v830 = vpop.f32.mrf.mxu0
      %v831 = vadd.f32 0.0, %v830
      %v832 = vpop.f32.mrf.mxu0
      %833 = vmatprep.mubr.bf16.mxu0 0
      %834 = vmatmul.mubr.bf16.gmra.mxu0 %v719
      %v835 = vpop.f32.mrf.mxu0
      %v836 = vadd.f32 0.0, %v835
      %v837 = vpop.f32.mrf.mxu0
      %v838 = vpop.f32.mrf.mxu0
      %v839 = vadd.f32 0.0, %v838
      %v840 = vpop.f32.mrf.mxu0
      %841 = vmatprep.mubr.bf16.mxu0 0
      %842 = vmatmul.mubr.bf16.gmra.mxu0 %v722
      %v843 = vpop.f32.mrf.mxu0
      %v844 = vadd.f32 0.0, %v843
      %v845 = vpop.f32.mrf.mxu0
      %v846 = vpop.f32.mrf.mxu0
      %v847 = vadd.f32 0.0, %v846
      %v848 = vpop.f32.mrf.mxu0
      %849 = vmatprep.mubr.bf16.mxu0 0
      %850 = vmatmul.mubr.bf16.gmra.mxu0 %v725
      %v851 = vpop.f32.mrf.mxu0
      %v852 = vadd.f32 0.0, %v851
      %v853 = vpop.f32.mrf.mxu0
      %v854 = vpop.f32.mrf.mxu0
      %v855 = vadd.f32 0.0, %v854
      %v856 = vpop.f32.mrf.mxu0
      %857 = vmatprep.mubr.bf16.mxu0 0
      %858 = vmatmul.mubr.bf16.gmra.mxu0 %v728
      %v859 = vpop.f32.mrf.mxu0
      %v860 = vadd.f32 0.0, %v859
      %v861 = vpop.f32.mrf.mxu0
      %v862 = vpop.f32.mrf.mxu0
      %v863 = vadd.f32 0.0, %v862
      %v864 = vpop.f32.mrf.mxu0
      %865 = vmatprep.mubr.bf16.mxu0 0
      %866 = vmatmul.mubr.bf16.gmra.mxu0 %v731
      %v867 = vpop.f32.mrf.mxu0
      %v868 = vadd.f32 0.0, %v867
      %v869 = vpop.f32.mrf.mxu0
      %v870 = vpop.f32.mrf.mxu0
      %v871 = vadd.f32 0.0, %v870
      %v872 = vpop.f32.mrf.mxu0
      %873 = vmatprep.mubr.bf16.mxu0 0
      %874 = vmatmul.mubr.bf16.gmra.mxu0 %v734
      %v875 = vpop.f32.mrf.mxu0
      %v876 = vadd.f32 0.0, %v875
      %v877 = vpop.f32.mrf.mxu0
      %v878 = vpop.f32.mrf.mxu0
      %v879 = vadd.f32 0.0, %v878
      %v880 = vpop.f32.mrf.mxu0
      %881 = vmatprep.mubr.bf16.mxu0 0
      %882 = vmatmul.mubr.bf16.gmra.mxu0 %v737
      %v883 = vpop.f32.mrf.mxu0
      %v884 = vadd.f32 0.0, %v883
      %v885 = vpop.f32.mrf.mxu0
      %v886 = vpop.f32.mrf.mxu0
      %v887 = vadd.f32 0.0, %v886
      %v888 = vpop.f32.mrf.mxu0
      %889 = vmatprep.mubr.bf16.mxu0 0
      %890 = vmatmul.mubr.bf16.gmra.mxu0 %v740
      %v891 = vpop.f32.mrf.mxu0
      %v892 = vadd.f32 0.0, %v891
      %v893 = vpop.f32.mrf.mxu0
      %v894 = vpop.f32.mrf.mxu0
      %v895 = vadd.f32 0.0, %v894
      %v896 = vpop.f32.mrf.mxu0
      %897 = vmatprep.mubr.bf16.mxu0 0
      %898 = vmatmul.mubr.bf16.gmra.mxu0 %v743
      %v899 = vpop.f32.mrf.mxu0
      %v900 = vadd.f32 0.0, %v899
      %v901 = vpop.f32.mrf.mxu0
      %v902 = vpop.f32.mrf.mxu0
      %v903 = vadd.f32 0.0, %v902
      %v904 = vpop.f32.mrf.mxu0
      %905 = vdwg.mxu0
      %v938 = vunpack.c.l.b16 %v182
      %v939 = vunpack.c.l.b16 %v183
      %v940 = vunpack.c.l.b16 %v185
      %v941 = vunpack.c.l.b16 %v186
      %v942 = vunpack.c.l.b16 %v188
      %v943 = vunpack.c.l.b16 %v189
      %v944 = vunpack.c.l.b16 %v191
      %v945 = vunpack.c.l.b16 %v192
      %v946 = vunpack.c.l.b16 %v194
      %v947 = vunpack.c.l.b16 %v195
      %v948 = vunpack.c.l.b16 %v197
      %v949 = vunpack.c.l.b16 %v198
      %v950 = vunpack.c.l.b16 %v200
      %v951 = vunpack.c.l.b16 %v201
      %v952 = vunpack.c.l.b16 %v203
      %v953 = vunpack.c.l.b16 %v204
      %v954 = vunpack.c.l.b16 %v206
      %v955 = vunpack.c.l.b16 %v207
      %v956 = vunpack.c.l.b16 %v209
      %v957 = vunpack.c.l.b16 %v210
      %v958 = vunpack.c.l.b16 %v212
      %v959 = vunpack.c.l.b16 %v213
      %v960 = vunpack.c.l.b16 %v215
      %v961 = vunpack.c.l.b16 %v216
      %v962 = vunpack.c.l.b16 %v218
      %v963 = vunpack.c.l.b16 %v219
      %v964 = vunpack.c.l.b16 %v221
      %v965 = vunpack.c.l.b16 %v222
      %v966 = vunpack.c.l.b16 %v224
      %v967 = vunpack.c.l.b16 %v225
      %v968 = vunpack.c.l.b16 %v227
      %v969 = vunpack.c.l.b16 %v228
      %v970 = vpack.c.b16 %v939, %v938
      %v971 = vpack.c.b16 %v941, %v940
      %v972 = vpack.c.b16 %v943, %v942
      %v973 = vpack.c.b16 %v945, %v944
      %v974 = vpack.c.b16 %v947, %v946
      %v975 = vpack.c.b16 %v949, %v948
      %v976 = vpack.c.b16 %v951, %v950
      %v977 = vpack.c.b16 %v953, %v952
      %v978 = vpack.c.b16 %v955, %v954
      %v979 = vpack.c.b16 %v957, %v956
      %v980 = vpack.c.b16 %v959, %v958
      %v981 = vpack.c.b16 %v961, %v960
      %v982 = vpack.c.b16 %v963, %v962
      %v983 = vpack.c.b16 %v965, %v964
      %v984 = vpack.c.b16 %v967, %v966
      %v985 = vpack.c.b16 %v969, %v968
      %v990 = vunpack.c.l.b16 %v233
      %v991 = vunpack.c.l.b16 %v234
      %v992 = vunpack.c.l.b16 %v235
      %v993 = vunpack.c.l.b16 %v236
      %v994 = vpack.c.b16 %v991, %v990
      %v995 = vpack.c.b16 %v993, %v992
      %v999 = vsel %vm696, %v970, 0
      %v1002 = vsel %vm696, %v971, 0
      %v1005 = vsel %vm696, %v972, 0
      %v1008 = vsel %vm696, %v973, 0
      %v1011 = vsel %vm696, %v974, 0
      %v1014 = vsel %vm696, %v975, 0
      %v1017 = vsel %vm696, %v976, 0
      %v1020 = vsel %vm696, %v977, 0
      %v1023 = vsel %vm696, %v978, 0
      %v1026 = vsel %vm696, %v979, 0
      %v1029 = vsel %vm696, %v980, 0
      %v1032 = vsel %vm696, %v981, 0
      %v1035 = vsel %vm696, %v982, 0
      %v1038 = vsel %vm696, %v983, 0
      %v1041 = vsel %vm696, %v984, 0
      %v1044 = vsel %vm696, %v985, 0
      %1046 = vmatprep.subr.bf16.mxu0 0
      %1047 = vmatpush1.bf16.msra.mxu0 0
      %1048 = vmatprep.subr.bf16.mxu0 0
      %1049 = vmatpush1.bf16.msra.mxu0 0
      %1050 = vmatprep.subr.bf16.mxu0 0
      %1051 = vmatpush1.bf16.msra.mxu0 0
      %1052 = vmatprep.subr.bf16.mxu0 0
      %1053 = vmatpush1.bf16.msra.mxu0 0
      %1054 = vmatprep.subr.bf16.mxu0 0
      %1055 = vmatpush1.bf16.msra.mxu0 0
      %1056 = vmatprep.subr.bf16.mxu0 0
      %1057 = vmatpush1.bf16.msra.mxu0 0
      %1058 = vmatprep.subr.bf16.mxu0 0
      %1059 = vmatpush1.bf16.msra.mxu0 %v995
      %1060 = vmatprep.subr.bf16.mxu0 0
      %1061 = vmatpush1.bf16.msra.mxu0 %v994
      %1062 = vmatprep.subr.bf16.mxu0 0
      %1063 = vmatpush2.bf16.msra.mxu0 0
      %1064 = vmatprep.subr.bf16.mxu0 0
      %1065 = vmatpush2.bf16.msra.mxu0 0
      %1066 = vmatprep.subr.bf16.mxu0 0
      %1067 = vmatpush2.bf16.msra.mxu0 0
      %1068 = vmatprep.subr.bf16.mxu0 0
      %1069 = vmatpush2.bf16.msra.mxu0 0
      %1070 = vmatprep.subr.bf16.mxu0 0
      %1071 = vmatpush2.bf16.msra.mxu0 0
      %1072 = vmatprep.subr.bf16.mxu0 0
      %1073 = vmatpush2.bf16.msra.mxu0 0
      %1074 = vmatprep.subr.bf16.mxu0 0
      %1075 = vmatpush2.bf16.msra.mxu0 0
      %1076 = vmatprep.subr.bf16.mxu0 0
      %1077 = vmatpush2.bf16.msra.mxu0 0
      %1078 = vmatprep.mubr.bf16.mxu0 0
      %1079 = vmatmul.mubr.bf16.gmra.mxu0 %v999
      %v1080 = vpop.f32.mrf.mxu0
      %v1081 = vadd.f32 %v780, %v1080
      %v1082 = vpop.f32.mrf.mxu0
      %v1083 = vpop.f32.mrf.mxu0
      %v1084 = vadd.f32 %v783, %v1083
      %v1085 = vpop.f32.mrf.mxu0
      %1086 = vmatprep.mubr.bf16.mxu0 0
      %1087 = vmatmul.mubr.bf16.gmra.mxu0 %v1002
      %v1088 = vpop.f32.mrf.mxu0
      %v1089 = vadd.f32 %v788, %v1088
      %v1090 = vpop.f32.mrf.mxu0
      %v1091 = vpop.f32.mrf.mxu0
      %v1092 = vadd.f32 %v791, %v1091
      %v1093 = vpop.f32.mrf.mxu0
      %1094 = vmatprep.mubr.bf16.mxu0 0
      %1095 = vmatmul.mubr.bf16.gmra.mxu0 %v1005
      %v1096 = vpop.f32.mrf.mxu0
      %v1097 = vadd.f32 %v796, %v1096
      %v1098 = vpop.f32.mrf.mxu0
      %v1099 = vpop.f32.mrf.mxu0
      %v1100 = vadd.f32 %v799, %v1099
      %v1101 = vpop.f32.mrf.mxu0
      %1102 = vmatprep.mubr.bf16.mxu0 0
      %1103 = vmatmul.mubr.bf16.gmra.mxu0 %v1008
      %v1104 = vpop.f32.mrf.mxu0
      %v1105 = vadd.f32 %v804, %v1104
      %v1106 = vpop.f32.mrf.mxu0
      %v1107 = vpop.f32.mrf.mxu0
      %v1108 = vadd.f32 %v807, %v1107
      %v1109 = vpop.f32.mrf.mxu0
      %1110 = vmatprep.mubr.bf16.mxu0 0
      %1111 = vmatmul.mubr.bf16.gmra.mxu0 %v1011
      %v1112 = vpop.f32.mrf.mxu0
      %v1113 = vadd.f32 %v812, %v1112
      %v1114 = vpop.f32.mrf.mxu0
      %v1115 = vpop.f32.mrf.mxu0
      %v1116 = vadd.f32 %v815, %v1115
      %v1117 = vpop.f32.mrf.mxu0
      %1118 = vmatprep.mubr.bf16.mxu0 0
      %1119 = vmatmul.mubr.bf16.gmra.mxu0 %v1014
      %v1120 = vpop.f32.mrf.mxu0
      %v1121 = vadd.f32 %v820, %v1120
      %v1122 = vpop.f32.mrf.mxu0
      %v1123 = vpop.f32.mrf.mxu0
      %v1124 = vadd.f32 %v823, %v1123
      %v1125 = vpop.f32.mrf.mxu0
      %1126 = vmatprep.mubr.bf16.mxu0 0
      %1127 = vmatmul.mubr.bf16.gmra.mxu0 %v1017
      %v1128 = vpop.f32.mrf.mxu0
      %v1129 = vadd.f32 %v828, %v1128
      %v1130 = vpop.f32.mrf.mxu0
      %v1131 = vpop.f32.mrf.mxu0
      %v1132 = vadd.f32 %v831, %v1131
      %v1133 = vpop.f32.mrf.mxu0
      %1134 = vmatprep.mubr.bf16.mxu0 0
      %1135 = vmatmul.mubr.bf16.gmra.mxu0 %v1020
      %v1136 = vpop.f32.mrf.mxu0
      %v1137 = vadd.f32 %v836, %v1136
      %v1138 = vpop.f32.mrf.mxu0
      %v1139 = vpop.f32.mrf.mxu0
      %v1140 = vadd.f32 %v839, %v1139
      %v1141 = vpop.f32.mrf.mxu0
      %1142 = vmatprep.mubr.bf16.mxu0 0
      %1143 = vmatmul.mubr.bf16.gmra.mxu0 %v1023
      %v1144 = vpop.f32.mrf.mxu0
      %v1145 = vadd.f32 %v844, %v1144
      %v1146 = vpop.f32.mrf.mxu0
      %v1147 = vpop.f32.mrf.mxu0
      %v1148 = vadd.f32 %v847, %v1147
      %v1149 = vpop.f32.mrf.mxu0
      %1150 = vmatprep.mubr.bf16.mxu0 0
      %1151 = vmatmul.mubr.bf16.gmra.mxu0 %v1026
      %v1152 = vpop.f32.mrf.mxu0
      %v1153 = vadd.f32 %v852, %v1152
      %v1154 = vpop.f32.mrf.mxu0
      %v1155 = vpop.f32.mrf.mxu0
      %v1156 = vadd.f32 %v855, %v1155
      %v1157 = vpop.f32.mrf.mxu0
      %1158 = vmatprep.mubr.bf16.mxu0 0
      %1159 = vmatmul.mubr.bf16.gmra.mxu0 %v1029
      %v1160 = vpop.f32.mrf.mxu0
      %v1161 = vadd.f32 %v860, %v1160
      %v1162 = vpop.f32.mrf.mxu0
      %v1163 = vpop.f32.mrf.mxu0
      %v1164 = vadd.f32 %v863, %v1163
      %v1165 = vpop.f32.mrf.mxu0
      %1166 = vmatprep.mubr.bf16.mxu0 0
      %1167 = vmatmul.mubr.bf16.gmra.mxu0 %v1032
      %v1168 = vpop.f32.mrf.mxu0
      %v1169 = vadd.f32 %v868, %v1168
      %v1170 = vpop.f32.mrf.mxu0
      %v1171 = vpop.f32.mrf.mxu0
      %v1172 = vadd.f32 %v871, %v1171
      %v1173 = vpop.f32.mrf.mxu0
      %1174 = vmatprep.mubr.bf16.mxu0 0
      %1175 = vmatmul.mubr.bf16.gmra.mxu0 %v1035
      %v1176 = vpop.f32.mrf.mxu0
      %v1177 = vadd.f32 %v876, %v1176
      %v1178 = vpop.f32.mrf.mxu0
      %v1179 = vpop.f32.mrf.mxu0
      %v1180 = vadd.f32 %v879, %v1179
      %v1181 = vpop.f32.mrf.mxu0
      %1182 = vmatprep.mubr.bf16.mxu0 0
      %1183 = vmatmul.mubr.bf16.gmra.mxu0 %v1038
      %v1184 = vpop.f32.mrf.mxu0
      %v1185 = vadd.f32 %v884, %v1184
      %v1186 = vpop.f32.mrf.mxu0
      %v1187 = vpop.f32.mrf.mxu0
      %v1188 = vadd.f32 %v887, %v1187
      %v1189 = vpop.f32.mrf.mxu0
      %1190 = vmatprep.mubr.bf16.mxu0 0
      %1191 = vmatmul.mubr.bf16.gmra.mxu0 %v1041
      %v1192 = vpop.f32.mrf.mxu0
      %v1193 = vadd.f32 %v892, %v1192
      %v1194 = vpop.f32.mrf.mxu0
      %v1195 = vpop.f32.mrf.mxu0
      %v1196 = vadd.f32 %v895, %v1195
      %v1197 = vpop.f32.mrf.mxu0
      %1198 = vmatprep.mubr.bf16.mxu0 0
      %1199 = vmatmul.mubr.bf16.gmra.mxu0 %v1044
      %v1200 = vpop.f32.mrf.mxu0
      %v1201 = vadd.f32 %v900, %v1200
      %v1202 = vpop.f32.mrf.mxu0
      %v1203 = vpop.f32.mrf.mxu0
      %v1204 = vadd.f32 %v903, %v1203
      %v1205 = vpop.f32.mrf.mxu0
      %1206 = vdwg.mxu0
      %v1209 = vunpack.c.l.b16 %v230
      %v1210 = vunpack.c.l.b16 %v231
      %v1211 = vpack.c.b16 %v1210, %v1209
      %v1216 = vunpack.c.l.b16 %v241
      %v1217 = vunpack.c.l.b16 %v242
      %v1218 = vunpack.c.l.b16 %v243
      %v1219 = vunpack.c.l.b16 %v244
      %v1220 = vpack.c.b16 %v1217, %v1216
      %v1221 = vpack.c.b16 %v1219, %v1218
      %v1225 = vsel %vm696, %v1211, 0
      %1227 = vmatprep.subr.bf16.mxu0 0
      %1228 = vmatpush1.bf16.msra.mxu0 0
      %1229 = vmatprep.subr.bf16.mxu0 0
      %1230 = vmatpush1.bf16.msra.mxu0 0
      %1231 = vmatprep.subr.bf16.mxu0 0
      %1232 = vmatpush1.bf16.msra.mxu0 0
      %1233 = vmatprep.subr.bf16.mxu0 0
      %1234 = vmatpush1.bf16.msra.mxu0 0
      %1235 = vmatprep.subr.bf16.mxu0 0
      %1236 = vmatpush1.bf16.msra.mxu0 0
      %1237 = vmatprep.subr.bf16.mxu0 0
      %1238 = vmatpush1.bf16.msra.mxu0 0
      %1239 = vmatprep.subr.bf16.mxu0 0
      %1240 = vmatpush1.bf16.msra.mxu0 %v1221
      %1241 = vmatprep.subr.bf16.mxu0 0
      %1242 = vmatpush1.bf16.msra.mxu0 %v1220
      %1243 = vmatprep.subr.bf16.mxu0 0
      %1244 = vmatpush2.bf16.msra.mxu0 0
      %1245 = vmatprep.subr.bf16.mxu0 0
      %1246 = vmatpush2.bf16.msra.mxu0 0
      %1247 = vmatprep.subr.bf16.mxu0 0
      %1248 = vmatpush2.bf16.msra.mxu0 0
      %1249 = vmatprep.subr.bf16.mxu0 0
      %1250 = vmatpush2.bf16.msra.mxu0 0
      %1251 = vmatprep.subr.bf16.mxu0 0
      %1252 = vmatpush2.bf16.msra.mxu0 0
      %1253 = vmatprep.subr.bf16.mxu0 0
      %1254 = vmatpush2.bf16.msra.mxu0 0
      %1255 = vmatprep.subr.bf16.mxu0 0
      %1256 = vmatpush2.bf16.msra.mxu0 0
      %1257 = vmatprep.subr.bf16.mxu0 0
      %1258 = vmatpush2.bf16.msra.mxu0 0
      %1259 = vmatprep.mubr.bf16.mxu0 0
      %1260 = vmatmul.mubr.bf16.gmra.mxu0 %v1002
      %v1261 = vpop.f32.mrf.mxu0
      %v1262 = vadd.f32 0.0, %v1261
      %v1263 = vpop.f32.mrf.mxu0
      %v1264 = vpop.f32.mrf.mxu0
      %v1265 = vadd.f32 0.0, %v1264
      %v1266 = vpop.f32.mrf.mxu0
      %1267 = vmatprep.mubr.bf16.mxu0 0
      %1268 = vmatmul.mubr.bf16.gmra.mxu0 %v1005
      %v1269 = vpop.f32.mrf.mxu0
      %v1270 = vadd.f32 0.0, %v1269
      %v1271 = vpop.f32.mrf.mxu0
      %v1272 = vpop.f32.mrf.mxu0
      %v1273 = vadd.f32 0.0, %v1272
      %v1274 = vpop.f32.mrf.mxu0
      %1275 = vmatprep.mubr.bf16.mxu0 0
      %1276 = vmatmul.mubr.bf16.gmra.mxu0 %v1008
      %v1277 = vpop.f32.mrf.mxu0
      %v1278 = vadd.f32 0.0, %v1277
      %v1279 = vpop.f32.mrf.mxu0
      %v1280 = vpop.f32.mrf.mxu0
      %v1281 = vadd.f32 0.0, %v1280
      %v1282 = vpop.f32.mrf.mxu0
      %1283 = vmatprep.mubr.bf16.mxu0 0
      %1284 = vmatmul.mubr.bf16.gmra.mxu0 %v1011
      %v1285 = vpop.f32.mrf.mxu0
      %v1286 = vadd.f32 0.0, %v1285
      %v1287 = vpop.f32.mrf.mxu0
      %v1288 = vpop.f32.mrf.mxu0
      %v1289 = vadd.f32 0.0, %v1288
      %v1290 = vpop.f32.mrf.mxu0
      %1291 = vmatprep.mubr.bf16.mxu0 0
      %1292 = vmatmul.mubr.bf16.gmra.mxu0 %v1014
      %v1293 = vpop.f32.mrf.mxu0
      %v1294 = vadd.f32 0.0, %v1293
      %v1295 = vpop.f32.mrf.mxu0
      %v1296 = vpop.f32.mrf.mxu0
      %v1297 = vadd.f32 0.0, %v1296
      %v1298 = vpop.f32.mrf.mxu0
      %1299 = vmatprep.mubr.bf16.mxu0 0
      %1300 = vmatmul.mubr.bf16.gmra.mxu0 %v1017
      %v1301 = vpop.f32.mrf.mxu0
      %v1302 = vadd.f32 0.0, %v1301
      %v1303 = vpop.f32.mrf.mxu0
      %v1304 = vpop.f32.mrf.mxu0
      %v1305 = vadd.f32 0.0, %v1304
      %v1306 = vpop.f32.mrf.mxu0
      %1307 = vmatprep.mubr.bf16.mxu0 0
      %1308 = vmatmul.mubr.bf16.gmra.mxu0 %v1020
      %v1309 = vpop.f32.mrf.mxu0
      %v1310 = vadd.f32 0.0, %v1309
      %v1311 = vpop.f32.mrf.mxu0
      %v1312 = vpop.f32.mrf.mxu0
      %v1313 = vadd.f32 0.0, %v1312
      %v1314 = vpop.f32.mrf.mxu0
      %1315 = vmatprep.mubr.bf16.mxu0 0
      %1316 = vmatmul.mubr.bf16.gmra.mxu0 %v1023
      %v1317 = vpop.f32.mrf.mxu0
      %v1318 = vadd.f32 0.0, %v1317
      %v1319 = vpop.f32.mrf.mxu0
      %v1320 = vpop.f32.mrf.mxu0
      %v1321 = vadd.f32 0.0, %v1320
      %v1322 = vpop.f32.mrf.mxu0
      %1323 = vmatprep.mubr.bf16.mxu0 0
      %1324 = vmatmul.mubr.bf16.gmra.mxu0 %v1026
      %v1325 = vpop.f32.mrf.mxu0
      %v1326 = vadd.f32 0.0, %v1325
      %v1327 = vpop.f32.mrf.mxu0
      %v1328 = vpop.f32.mrf.mxu0
      %v1329 = vadd.f32 0.0, %v1328
      %v1330 = vpop.f32.mrf.mxu0
      %1331 = vmatprep.mubr.bf16.mxu0 0
      %1332 = vmatmul.mubr.bf16.gmra.mxu0 %v1029
      %v1333 = vpop.f32.mrf.mxu0
      %v1334 = vadd.f32 0.0, %v1333
      %v1335 = vpop.f32.mrf.mxu0
      %v1336 = vpop.f32.mrf.mxu0
      %v1337 = vadd.f32 0.0, %v1336
      %v1338 = vpop.f32.mrf.mxu0
      %1339 = vmatprep.mubr.bf16.mxu0 0
      %1340 = vmatmul.mubr.bf16.gmra.mxu0 %v1032
      %v1341 = vpop.f32.mrf.mxu0
      %v1342 = vadd.f32 0.0, %v1341
      %v1343 = vpop.f32.mrf.mxu0
      %v1344 = vpop.f32.mrf.mxu0
      %v1345 = vadd.f32 0.0, %v1344
      %v1346 = vpop.f32.mrf.mxu0
      %1347 = vmatprep.mubr.bf16.mxu0 0
      %1348 = vmatmul.mubr.bf16.gmra.mxu0 %v1035
      %v1349 = vpop.f32.mrf.mxu0
      %v1350 = vadd.f32 0.0, %v1349
      %v1351 = vpop.f32.mrf.mxu0
      %v1352 = vpop.f32.mrf.mxu0
      %v1353 = vadd.f32 0.0, %v1352
      %v1354 = vpop.f32.mrf.mxu0
      %1355 = vmatprep.mubr.bf16.mxu0 0
      %1356 = vmatmul.mubr.bf16.gmra.mxu0 %v1038
      %v1357 = vpop.f32.mrf.mxu0
      %v1358 = vadd.f32 0.0, %v1357
      %v1359 = vpop.f32.mrf.mxu0
      %v1360 = vpop.f32.mrf.mxu0
      %v1361 = vadd.f32 0.0, %v1360
      %v1362 = vpop.f32.mrf.mxu0
      %1363 = vmatprep.mubr.bf16.mxu0 0
      %1364 = vmatmul.mubr.bf16.gmra.mxu0 %v1041
      %v1365 = vpop.f32.mrf.mxu0
      %v1366 = vadd.f32 0.0, %v1365
      %v1367 = vpop.f32.mrf.mxu0
      %v1368 = vpop.f32.mrf.mxu0
      %v1369 = vadd.f32 0.0, %v1368
      %v1370 = vpop.f32.mrf.mxu0
      %1371 = vmatprep.mubr.bf16.mxu0 0
      %1372 = vmatmul.mubr.bf16.gmra.mxu0 %v1044
      %v1373 = vpop.f32.mrf.mxu0
      %v1374 = vadd.f32 0.0, %v1373
      %v1375 = vpop.f32.mrf.mxu0
      %v1376 = vpop.f32.mrf.mxu0
      %v1377 = vadd.f32 0.0, %v1376
      %v1378 = vpop.f32.mrf.mxu0
      %1379 = vmatprep.mubr.bf16.mxu0 0
      %1380 = vmatmul.mubr.bf16.gmra.mxu0 %v1225
      %v1381 = vpop.f32.mrf.mxu0
      %v1382 = vadd.f32 0.0, %v1381
      %v1383 = vpop.f32.mrf.mxu0
      %v1384 = vpop.f32.mrf.mxu0
      %v1385 = vadd.f32 0.0, %v1384
      %v1386 = vpop.f32.mrf.mxu0
      %1387 = vdwg.mxu0
      %v1388 = vadd.f32 %v1081, %v1262
      %v1389 = vadd.f32 %v1084, %v1265
      %v1390 = vadd.f32 %v1089, %v1270
      %v1391 = vadd.f32 %v1092, %v1273
      %v1392 = vadd.f32 %v1097, %v1278
      %v1393 = vadd.f32 %v1100, %v1281
      %v1394 = vadd.f32 %v1105, %v1286
      %v1395 = vadd.f32 %v1108, %v1289
      %v1396 = vadd.f32 %v1113, %v1294
      %v1397 = vadd.f32 %v1116, %v1297
      %v1398 = vadd.f32 %v1121, %v1302
      %v1399 = vadd.f32 %v1124, %v1305
      %v1400 = vadd.f32 %v1129, %v1310
      %v1401 = vadd.f32 %v1132, %v1313
      %v1402 = vadd.f32 %v1137, %v1318
      %v1403 = vadd.f32 %v1140, %v1321
      %v1404 = vadd.f32 %v1145, %v1326
      %v1405 = vadd.f32 %v1148, %v1329
      %v1406 = vadd.f32 %v1153, %v1334
      %v1407 = vadd.f32 %v1156, %v1337
      %v1408 = vadd.f32 %v1161, %v1342
      %v1409 = vadd.f32 %v1164, %v1345
      %v1410 = vadd.f32 %v1169, %v1350
      %v1411 = vadd.f32 %v1172, %v1353
      %v1412 = vadd.f32 %v1177, %v1358
      %v1413 = vadd.f32 %v1180, %v1361
      %v1414 = vadd.f32 %v1185, %v1366
      %v1415 = vadd.f32 %v1188, %v1369
      %v1416 = vadd.f32 %v1193, %v1374
      %v1417 = vadd.f32 %v1196, %v1377
      %v1418 = vadd.f32 %v1201, %v1382
      %v1419 = vadd.f32 %v1204, %v1385
      %v1421 = vshrl.u32 %v230, 16
      %v1423 = vrot.slane %v1421, 4
      %v1424 = vshll.u32 %v230, 16
      %v1426 = vrot.slane %v1424, 5
      %v1427 = vor.u32 %v1423, %v1426
      %v1428 = vrot.slane %v1427, 4
      %v1430 = vshll.u32 %v231, 16
      %v1432 = vrot.slane %v1430, 5
      %v1433 = vsel %vm251, %v1428, %v1432
      %v1434 = vshrl.u32 %v231, 16
      %v1436 = vrot.slane %v1434, 4
      %v1437 = vor.u32 %v1436, %v1432
      %v1438 = vrot.slane %v1437, 4
      %v1440 = vshll.u32 %v232, 16
      %v1442 = vrot.slane %v1440, 5
      %v1443 = vsel %vm251, %v1438, %v1442
      %v1444 = vunpack.c.l.b16 %v1433
      %v1445 = vunpack.c.l.b16 %v1443
      %v1446 = vpack.c.b16 %v1445, %v1444
      %v1451 = vunpack.c.l.b16 %v245
      %v1452 = vunpack.c.l.b16 %v246
      %v1453 = vunpack.c.l.b16 %v247
      %v1454 = vunpack.c.l.b16 %v248
      %v1455 = vpack.c.b16 %v1452, %v1451
      %v1456 = vpack.c.b16 %v1454, %v1453
      %v1460 = vsel %vm696, %v1446, 0
      %1462 = vmatprep.subr.bf16.mxu0 0
      %1463 = vmatpush1.bf16.msra.mxu0 0
      %1464 = vmatprep.subr.bf16.mxu0 0
      %1465 = vmatpush1.bf16.msra.mxu0 0
      %1466 = vmatprep.subr.bf16.mxu0 0
      %1467 = vmatpush1.bf16.msra.mxu0 0
      %1468 = vmatprep.subr.bf16.mxu0 0
      %1469 = vmatpush1.bf16.msra.mxu0 0
      %1470 = vmatprep.subr.bf16.mxu0 0
      %1471 = vmatpush1.bf16.msra.mxu0 0
      %1472 = vmatprep.subr.bf16.mxu0 0
      %1473 = vmatpush1.bf16.msra.mxu0 0
      %1474 = vmatprep.subr.bf16.mxu0 0
      %1475 = vmatpush1.bf16.msra.mxu0 %v1456
      %1476 = vmatprep.subr.bf16.mxu0 0
      %1477 = vmatpush1.bf16.msra.mxu0 %v1455
      %1478 = vmatprep.subr.bf16.mxu0 0
      %1479 = vmatpush2.bf16.msra.mxu0 0
      %1480 = vmatprep.subr.bf16.mxu0 0
      %1481 = vmatpush2.bf16.msra.mxu0 0
      %1482 = vmatprep.subr.bf16.mxu0 0
      %1483 = vmatpush2.bf16.msra.mxu0 0
      %1484 = vmatprep.subr.bf16.mxu0 0
      %1485 = vmatpush2.bf16.msra.mxu0 0
      %1486 = vmatprep.subr.bf16.mxu0 0
      %1487 = vmatpush2.bf16.msra.mxu0 0
      %1488 = vmatprep.subr.bf16.mxu0 0
      %1489 = vmatpush2.bf16.msra.mxu0 0
      %1490 = vmatprep.subr.bf16.mxu0 0
      %1491 = vmatpush2.bf16.msra.mxu0 0
      %1492 = vmatprep.subr.bf16.mxu0 0
      %1493 = vmatpush2.bf16.msra.mxu0 0
      %1494 = vmatprep.mubr.bf16.mxu0 0
      %1495 = vmatmul.mubr.bf16.gmra.mxu0 %v701
      %v1496 = vpop.f32.mrf.mxu0
      %v1497 = vadd.f32 0.0, %v1496
      %v1498 = vpop.f32.mrf.mxu0
      %v1499 = vpop.f32.mrf.mxu0
      %v1500 = vadd.f32 0.0, %v1499
      %v1501 = vpop.f32.mrf.mxu0
      %1502 = vmatprep.mubr.bf16.mxu0 0
      %1503 = vmatmul.mubr.bf16.gmra.mxu0 %v704
      %v1504 = vpop.f32.mrf.mxu0
      %v1505 = vadd.f32 0.0, %v1504
      %v1506 = vpop.f32.mrf.mxu0
      %v1507 = vpop.f32.mrf.mxu0
      %v1508 = vadd.f32 0.0, %v1507
      %v1509 = vpop.f32.mrf.mxu0
      %1510 = vmatprep.mubr.bf16.mxu0 0
      %1511 = vmatmul.mubr.bf16.gmra.mxu0 %v707
      %v1512 = vpop.f32.mrf.mxu0
      %v1513 = vadd.f32 0.0, %v1512
      %v1514 = vpop.f32.mrf.mxu0
      %v1515 = vpop.f32.mrf.mxu0
      %v1516 = vadd.f32 0.0, %v1515
      %v1517 = vpop.f32.mrf.mxu0
      %1518 = vmatprep.mubr.bf16.mxu0 0
      %1519 = vmatmul.mubr.bf16.gmra.mxu0 %v710
      %v1520 = vpop.f32.mrf.mxu0
      %v1521 = vadd.f32 0.0, %v1520
      %v1522 = vpop.f32.mrf.mxu0
      %v1523 = vpop.f32.mrf.mxu0
      %v1524 = vadd.f32 0.0, %v1523
      %v1525 = vpop.f32.mrf.mxu0
      %1526 = vmatprep.mubr.bf16.mxu0 0
      %1527 = vmatmul.mubr.bf16.gmra.mxu0 %v713
      %v1528 = vpop.f32.mrf.mxu0
      %v1529 = vadd.f32 0.0, %v1528
      %v1530 = vpop.f32.mrf.mxu0
      %v1531 = vpop.f32.mrf.mxu0
      %v1532 = vadd.f32 0.0, %v1531
      %v1533 = vpop.f32.mrf.mxu0
      %1534 = vmatprep.mubr.bf16.mxu0 0
      %1535 = vmatmul.mubr.bf16.gmra.mxu0 %v716
      %v1536 = vpop.f32.mrf.mxu0
      %v1537 = vadd.f32 0.0, %v1536
      %v1538 = vpop.f32.mrf.mxu0
      %v1539 = vpop.f32.mrf.mxu0
      %v1540 = vadd.f32 0.0, %v1539
      %v1541 = vpop.f32.mrf.mxu0
      %1542 = vmatprep.mubr.bf16.mxu0 0
      %1543 = vmatmul.mubr.bf16.gmra.mxu0 %v719
      %v1544 = vpop.f32.mrf.mxu0
      %v1545 = vadd.f32 0.0, %v1544
      %v1546 = vpop.f32.mrf.mxu0
      %v1547 = vpop.f32.mrf.mxu0
      %v1548 = vadd.f32 0.0, %v1547
      %v1549 = vpop.f32.mrf.mxu0
      %1550 = vmatprep.mubr.bf16.mxu0 0
      %1551 = vmatmul.mubr.bf16.gmra.mxu0 %v722
      %v1552 = vpop.f32.mrf.mxu0
      %v1553 = vadd.f32 0.0, %v1552
      %v1554 = vpop.f32.mrf.mxu0
      %v1555 = vpop.f32.mrf.mxu0
      %v1556 = vadd.f32 0.0, %v1555
      %v1557 = vpop.f32.mrf.mxu0
      %1558 = vmatprep.mubr.bf16.mxu0 0
      %1559 = vmatmul.mubr.bf16.gmra.mxu0 %v725
      %v1560 = vpop.f32.mrf.mxu0
      %v1561 = vadd.f32 0.0, %v1560
      %v1562 = vpop.f32.mrf.mxu0
      %v1563 = vpop.f32.mrf.mxu0
      %v1564 = vadd.f32 0.0, %v1563
      %v1565 = vpop.f32.mrf.mxu0
      %1566 = vmatprep.mubr.bf16.mxu0 0
      %1567 = vmatmul.mubr.bf16.gmra.mxu0 %v728
      %v1568 = vpop.f32.mrf.mxu0
      %v1569 = vadd.f32 0.0, %v1568
      %v1570 = vpop.f32.mrf.mxu0
      %v1571 = vpop.f32.mrf.mxu0
      %v1572 = vadd.f32 0.0, %v1571
      %v1573 = vpop.f32.mrf.mxu0
      %1574 = vmatprep.mubr.bf16.mxu0 0
      %1575 = vmatmul.mubr.bf16.gmra.mxu0 %v731
      %v1576 = vpop.f32.mrf.mxu0
      %v1577 = vadd.f32 0.0, %v1576
      %v1578 = vpop.f32.mrf.mxu0
      %v1579 = vpop.f32.mrf.mxu0
      %v1580 = vadd.f32 0.0, %v1579
      %v1581 = vpop.f32.mrf.mxu0
      %1582 = vmatprep.mubr.bf16.mxu0 0
      %1583 = vmatmul.mubr.bf16.gmra.mxu0 %v734
      %v1584 = vpop.f32.mrf.mxu0
      %v1585 = vadd.f32 0.0, %v1584
      %v1586 = vpop.f32.mrf.mxu0
      %v1587 = vpop.f32.mrf.mxu0
      %v1588 = vadd.f32 0.0, %v1587
      %v1589 = vpop.f32.mrf.mxu0
      %1590 = vmatprep.mubr.bf16.mxu0 0
      %1591 = vmatmul.mubr.bf16.gmra.mxu0 %v737
      %v1592 = vpop.f32.mrf.mxu0
      %v1593 = vadd.f32 0.0, %v1592
      %v1594 = vpop.f32.mrf.mxu0
      %v1595 = vpop.f32.mrf.mxu0
      %v1596 = vadd.f32 0.0, %v1595
      %v1597 = vpop.f32.mrf.mxu0
      %1598 = vmatprep.mubr.bf16.mxu0 0
      %1599 = vmatmul.mubr.bf16.gmra.mxu0 %v740
      %v1600 = vpop.f32.mrf.mxu0
      %v1601 = vadd.f32 0.0, %v1600
      %v1602 = vpop.f32.mrf.mxu0
      %v1603 = vpop.f32.mrf.mxu0
      %v1604 = vadd.f32 0.0, %v1603
      %v1605 = vpop.f32.mrf.mxu0
      %1606 = vmatprep.mubr.bf16.mxu0 0
      %1607 = vmatmul.mubr.bf16.gmra.mxu0 %v743
      %v1608 = vpop.f32.mrf.mxu0
      %v1609 = vadd.f32 0.0, %v1608
      %v1610 = vpop.f32.mrf.mxu0
      %v1611 = vpop.f32.mrf.mxu0
      %v1612 = vadd.f32 0.0, %v1611
      %v1613 = vpop.f32.mrf.mxu0
      %1614 = vmatprep.mubr.bf16.mxu0 0
      %1615 = vmatmul.mubr.bf16.gmra.mxu0 %v1460
      %v1616 = vpop.f32.mrf.mxu0
      %v1617 = vadd.f32 0.0, %v1616
      %v1618 = vpop.f32.mrf.mxu0
      %v1619 = vpop.f32.mrf.mxu0
      %v1620 = vadd.f32 0.0, %v1619
      %v1621 = vpop.f32.mrf.mxu0
      %1622 = vdwg.mxu0
      %v1623 = vadd.f32 %v1388, %v1497
      %v1624 = vadd.f32 %v1389, %v1500
      %v1625 = vadd.f32 %v1390, %v1505
      %v1626 = vadd.f32 %v1391, %v1508
      %v1627 = vadd.f32 %v1392, %v1513
      %v1628 = vadd.f32 %v1393, %v1516
      %v1629 = vadd.f32 %v1394, %v1521
      %v1630 = vadd.f32 %v1395, %v1524
      %v1631 = vadd.f32 %v1396, %v1529
      %v1632 = vadd.f32 %v1397, %v1532
      %v1633 = vadd.f32 %v1398, %v1537
      %v1634 = vadd.f32 %v1399, %v1540
      %v1635 = vadd.f32 %v1400, %v1545
      %v1636 = vadd.f32 %v1401, %v1548
      %v1637 = vadd.f32 %v1402, %v1553
      %v1638 = vadd.f32 %v1403, %v1556
      %v1639 = vadd.f32 %v1404, %v1561
      %v1640 = vadd.f32 %v1405, %v1564
      %v1641 = vadd.f32 %v1406, %v1569
      %v1642 = vadd.f32 %v1407, %v1572
      %v1643 = vadd.f32 %v1408, %v1577
      %v1644 = vadd.f32 %v1409, %v1580
      %v1645 = vadd.f32 %v1410, %v1585
      %v1646 = vadd.f32 %v1411, %v1588
      %v1647 = vadd.f32 %v1412, %v1593
      %v1648 = vadd.f32 %v1413, %v1596
      %v1649 = vadd.f32 %v1414, %v1601
      %v1650 = vadd.f32 %v1415, %v1604
      %v1651 = vadd.f32 %v1416, %v1609
      %v1652 = vadd.f32 %v1417, %v1612
      %v1653 = vadd.f32 %v1418, %v1617
      %v1654 = vadd.f32 %v1419, %v1620
      %vm1655 = vcmp.ge.f32.partialorder %v1623, 0.0
      %vm1656 = vcmp.ge.f32.partialorder %v1624, 0.0
      %vm1657 = vcmp.ge.f32.partialorder %v1625, 0.0
      %vm1658 = vcmp.ge.f32.partialorder %v1626, 0.0
      %vm1659 = vcmp.ge.f32.partialorder %v1627, 0.0
      %vm1660 = vcmp.ge.f32.partialorder %v1628, 0.0
      %vm1661 = vcmp.ge.f32.partialorder %v1629, 0.0
      %vm1662 = vcmp.ge.f32.partialorder %v1630, 0.0
      %vm1663 = vcmp.ge.f32.partialorder %v1631, 0.0
      %vm1664 = vcmp.ge.f32.partialorder %v1632, 0.0
      %vm1665 = vcmp.ge.f32.partialorder %v1633, 0.0
      %vm1666 = vcmp.ge.f32.partialorder %v1634, 0.0
      %vm1667 = vcmp.ge.f32.partialorder %v1635, 0.0
      %vm1668 = vcmp.ge.f32.partialorder %v1636, 0.0
      %vm1669 = vcmp.ge.f32.partialorder %v1637, 0.0
      %vm1670 = vcmp.ge.f32.partialorder %v1638, 0.0
      %vm1671 = vcmp.ge.f32.partialorder %v1639, 0.0
      %vm1672 = vcmp.ge.f32.partialorder %v1640, 0.0
      %vm1673 = vcmp.ge.f32.partialorder %v1641, 0.0
      %vm1674 = vcmp.ge.f32.partialorder %v1642, 0.0
      %vm1675 = vcmp.ge.f32.partialorder %v1643, 0.0
      %vm1676 = vcmp.ge.f32.partialorder %v1644, 0.0
      %vm1677 = vcmp.ge.f32.partialorder %v1645, 0.0
      %vm1678 = vcmp.ge.f32.partialorder %v1646, 0.0
      %vm1679 = vcmp.ge.f32.partialorder %v1647, 0.0
      %vm1680 = vcmp.ge.f32.partialorder %v1648, 0.0
      %vm1681 = vcmp.ge.f32.partialorder %v1649, 0.0
      %vm1682 = vcmp.ge.f32.partialorder %v1650, 0.0
      %vm1683 = vcmp.ge.f32.partialorder %v1651, 0.0
      %vm1684 = vcmp.ge.f32.partialorder %v1652, 0.0
      %vm1685 = vcmp.ge.f32.partialorder %v1653, 0.0
      %vm1686 = vcmp.ge.f32.partialorder %v1654, 0.0
      %v1687 = vmul.f32 %v1623, 0.2
      %v1688 = vmul.f32 %v1624, 0.2
      %v1689 = vmul.f32 %v1625, 0.2
      %v1690 = vmul.f32 %v1626, 0.2
      %v1691 = vmul.f32 %v1627, 0.2
      %v1692 = vmul.f32 %v1628, 0.2
      %v1693 = vmul.f32 %v1629, 0.2
      %v1694 = vmul.f32 %v1630, 0.2
      %v1695 = vmul.f32 %v1631, 0.2
      %v1696 = vmul.f32 %v1632, 0.2
      %v1697 = vmul.f32 %v1633, 0.2
      %v1698 = vmul.f32 %v1634, 0.2
      %v1699 = vmul.f32 %v1635, 0.2
      %v1700 = vmul.f32 %v1636, 0.2
      %v1701 = vmul.f32 %v1637, 0.2
      %v1702 = vmul.f32 %v1638, 0.2
      %v1703 = vmul.f32 %v1639, 0.2
      %v1704 = vmul.f32 %v1640, 0.2
      %v1705 = vmul.f32 %v1641, 0.2
      %v1706 = vmul.f32 %v1642, 0.2
      %v1707 = vmul.f32 %v1643, 0.2
      %v1708 = vmul.f32 %v1644, 0.2
      %v1709 = vmul.f32 %v1645, 0.2
      %v1710 = vmul.f32 %v1646, 0.2
      %v1711 = vmul.f32 %v1647, 0.2
      %v1712 = vmul.f32 %v1648, 0.2
      %v1713 = vmul.f32 %v1649, 0.2
      %v1714 = vmul.f32 %v1650, 0.2
      %v1715 = vmul.f32 %v1651, 0.2
      %v1716 = vmul.f32 %v1652, 0.2
      %v1717 = vmul.f32 %v1653, 0.2
      %v1718 = vmul.f32 %v1654, 0.2
      %v1719 = vsel %vm1655, %v1623, %v1687
      %v1720 = vsel %vm1656, %v1624, %v1688
      %v1721 = vsel %vm1657, %v1625, %v1689
      %v1722 = vsel %vm1658, %v1626, %v1690
      %v1723 = vsel %vm1659, %v1627, %v1691
      %v1724 = vsel %vm1660, %v1628, %v1692
      %v1725 = vsel %vm1661, %v1629, %v1693
      %v1726 = vsel %vm1662, %v1630, %v1694
      %v1727 = vsel %vm1663, %v1631, %v1695
      %v1728 = vsel %vm1664, %v1632, %v1696
      %v1729 = vsel %vm1665, %v1633, %v1697
      %v1730 = vsel %vm1666, %v1634, %v1698
      %v1731 = vsel %vm1667, %v1635, %v1699
      %v1732 = vsel %vm1668, %v1636, %v1700
      %v1733 = vsel %vm1669, %v1637, %v1701
      %v1734 = vsel %vm1670, %v1638, %v1702
      %v1735 = vsel %vm1671, %v1639, %v1703
      %v1736 = vsel %vm1672, %v1640, %v1704
      %v1737 = vsel %vm1673, %v1641, %v1705
      %v1738 = vsel %vm1674, %v1642, %v1706
      %v1739 = vsel %vm1675, %v1643, %v1707
      %v1740 = vsel %vm1676, %v1644, %v1708
      %v1741 = vsel %vm1677, %v1645, %v1709
      %v1742 = vsel %vm1678, %v1646, %v1710
      %v1743 = vsel %vm1679, %v1647, %v1711
      %v1744 = vsel %vm1680, %v1648, %v1712
      %v1745 = vsel %vm1681, %v1649, %v1713
      %v1746 = vsel %vm1682, %v1650, %v1714
      %v1747 = vsel %vm1683, %v1651, %v1715
      %v1748 = vsel %vm1684, %v1652, %v1716
      %v1749 = vsel %vm1685, %v1653, %v1717
      %v1750 = vsel %vm1686, %v1654, %v1718
      %v1751 = vpack.c.bf16 %v1720, %v1719
      %v1752 = vpack.c.bf16 %v1722, %v1721
      %v1753 = vpack.c.bf16 %v1724, %v1723
      %v1754 = vpack.c.bf16 %v1726, %v1725
      %v1755 = vpack.c.bf16 %v1728, %v1727
      %v1756 = vpack.c.bf16 %v1730, %v1729
      %v1757 = vpack.c.bf16 %v1732, %v1731
      %v1758 = vpack.c.bf16 %v1734, %v1733
      %v1759 = vpack.c.bf16 %v1736, %v1735
      %v1760 = vpack.c.bf16 %v1738, %v1737
      %v1761 = vpack.c.bf16 %v1740, %v1739
      %v1762 = vpack.c.bf16 %v1742, %v1741
      %v1763 = vpack.c.bf16 %v1744, %v1743
      %v1764 = vpack.c.bf16 %v1746, %v1745
      %v1765 = vpack.c.bf16 %v1748, %v1747
      %v1766 = vpack.c.bf16 %v1750, %v1749
      %v1783 = vunpack.c.l.b16 %v1751
      %v1784 = vunpack.c.h.b16 %v1751
      %v1785 = vunpack.c.l.b16 %v1752
      %v1786 = vunpack.c.h.b16 %v1752
      %v1787 = vunpack.c.l.b16 %v1753
      %v1788 = vunpack.c.h.b16 %v1753
      %v1789 = vunpack.c.l.b16 %v1754
      %v1790 = vunpack.c.h.b16 %v1754
      %v1791 = vunpack.c.l.b16 %v1755
      %v1792 = vunpack.c.h.b16 %v1755
      %v1793 = vunpack.c.l.b16 %v1756
      %v1794 = vunpack.c.h.b16 %v1756
      %v1795 = vunpack.c.l.b16 %v1757
      %v1796 = vunpack.c.h.b16 %v1757
      %v1797 = vunpack.c.l.b16 %v1758
      %v1798 = vunpack.c.h.b16 %v1758
      %v1799 = vunpack.c.l.b16 %v1759
      %v1800 = vunpack.c.h.b16 %v1759
      %v1801 = vunpack.c.l.b16 %v1760
      %v1802 = vunpack.c.h.b16 %v1760
      %v1803 = vunpack.c.l.b16 %v1761
      %v1804 = vunpack.c.h.b16 %v1761
      %v1805 = vunpack.c.l.b16 %v1762
      %v1806 = vunpack.c.h.b16 %v1762
      %v1807 = vunpack.c.l.b16 %v1763
      %v1808 = vunpack.c.h.b16 %v1763
      %v1809 = vunpack.c.l.b16 %v1764
      %v1810 = vunpack.c.h.b16 %v1764
      %v1811 = vunpack.c.l.b16 %v1765
      %v1812 = vunpack.c.h.b16 %v1765
      %v1813 = vunpack.c.l.b16 %v1766
      %v1814 = vunpack.c.h.b16 %v1766
      %v1815 = vpack.c.b16 %v1783, %v1783
      %v1816 = vpack.c.b16 %v1784, %v1784
      %v1817 = vpack.c.b16 %v1785, %v1785
      %v1818 = vpack.c.b16 %v1786, %v1786
      %v1819 = vpack.c.b16 %v1787, %v1787
      %v1820 = vpack.c.b16 %v1788, %v1788
      %v1821 = vpack.c.b16 %v1789, %v1789
      %v1822 = vpack.c.b16 %v1790, %v1790
      %v1823 = vpack.c.b16 %v1791, %v1791
      %v1824 = vpack.c.b16 %v1792, %v1792
      %v1825 = vpack.c.b16 %v1793, %v1793
      %v1826 = vpack.c.b16 %v1794, %v1794
      %v1827 = vpack.c.b16 %v1795, %v1795
      %v1828 = vpack.c.b16 %v1796, %v1796
      %v1829 = vpack.c.b16 %v1797, %v1797
      %v1830 = vpack.c.b16 %v1798, %v1798
      %v1831 = vpack.c.b16 %v1799, %v1799
      %v1832 = vpack.c.b16 %v1800, %v1800
      %v1833 = vpack.c.b16 %v1801, %v1801
      %v1834 = vpack.c.b16 %v1802, %v1802
      %v1835 = vpack.c.b16 %v1803, %v1803
      %v1836 = vpack.c.b16 %v1804, %v1804
      %v1837 = vpack.c.b16 %v1805, %v1805
      %v1838 = vpack.c.b16 %v1806, %v1806
      %v1839 = vpack.c.b16 %v1807, %v1807
      %v1840 = vpack.c.b16 %v1808, %v1808
      %v1841 = vpack.c.b16 %v1809, %v1809
      %v1842 = vpack.c.b16 %v1810, %v1810
      %v1843 = vpack.c.b16 %v1811, %v1811
      %v1844 = vpack.c.b16 %v1812, %v1812
      %v1845 = vpack.c.b16 %v1813, %v1813
      %v1846 = vpack.c.b16 %v1814, %v1814
      %vm1879 = vcmask 125952
      %1880 = vst.msk [vmem:[%s180] sm:$0xf] %vm1879, %v1815
      %1881 = vst.msk [vmem:[%s180 + $0x4] sm:$0xf] %vm1879, %v1816
      %1882 = vst.msk [vmem:[%s180 + $0x8] sm:$0xf] %vm1879, %v1817
      %1883 = vst.msk [vmem:[%s180 + $0xc] sm:$0xf] %vm1879, %v1818
      %1884 = vst.msk [vmem:[%s180 + $0x10] sm:$0xf] %vm1879, %v1819
      %1885 = vst.msk [vmem:[%s180 + $0x14] sm:$0xf] %vm1879, %v1820
      %1886 = vst.msk [vmem:[%s180 + $0x18] sm:$0xf] %vm1879, %v1821
      %1887 = vst.msk [vmem:[%s180 + $0x1c] sm:$0xf] %vm1879, %v1822
      %1888 = vst.msk [vmem:[%s180 + $0x20] sm:$0xf] %vm1879, %v1823
      %1889 = vst.msk [vmem:[%s180 + $0x24] sm:$0xf] %vm1879, %v1824
      %1890 = vst.msk [vmem:[%s180 + $0x28] sm:$0xf] %vm1879, %v1825
      %1891 = vst.msk [vmem:[%s180 + $0x2c] sm:$0xf] %vm1879, %v1826
      %1892 = vst.msk [vmem:[%s180 + $0x30] sm:$0xf] %vm1879, %v1827
      %1893 = vst.msk [vmem:[%s180 + $0x34] sm:$0xf] %vm1879, %v1828
      %1894 = vst.msk [vmem:[%s180 + $0x38] sm:$0xf] %vm1879, %v1829
      %1895 = vst.msk [vmem:[%s180 + $0x3c] sm:$0xf] %vm1879, %v1830
      %1896 = vst.msk [vmem:[%s180 + $0x40] sm:$0xf] %vm1879, %v1831
      %1897 = vst.msk [vmem:[%s180 + $0x44] sm:$0xf] %vm1879, %v1832
      %1898 = vst.msk [vmem:[%s180 + $0x48] sm:$0xf] %vm1879, %v1833
      %1899 = vst.msk [vmem:[%s180 + $0x4c] sm:$0xf] %vm1879, %v1834
      %1900 = vst.msk [vmem:[%s180 + $0x50] sm:$0xf] %vm1879, %v1835
      %1901 = vst.msk [vmem:[%s180 + $0x54] sm:$0xf] %vm1879, %v1836
      %1902 = vst.msk [vmem:[%s180 + $0x58] sm:$0xf] %vm1879, %v1837
      %1903 = vst.msk [vmem:[%s180 + $0x5c] sm:$0xf] %vm1879, %v1838
      %1904 = vst.msk [vmem:[%s180 + $0x60] sm:$0xf] %vm1879, %v1839
      %1905 = vst.msk [vmem:[%s180 + $0x64] sm:$0xf] %vm1879, %v1840
      %1906 = vst.msk [vmem:[%s180 + $0x68] sm:$0xf] %vm1879, %v1841
      %1907 = vst.msk [vmem:[%s180 + $0x6c] sm:$0xf] %vm1879, %v1842
      %1908 = vst.msk [vmem:[%s180 + $0x70] sm:$0xf] %vm1879, %v1843
      %1909 = vst.msk [vmem:[%s180 + $0x74] sm:$0xf] %vm1879, %v1844
      %1910 = vst.msk [vmem:[%s180 + $0x78] sm:$0xf] %vm1879, %v1845
      %1911 = vst.msk [vmem:[%s180 + $0x7c] sm:$0xf] %vm1879, %v1846
      %p1912 = scmp.lt.s32.totalorder %s17, 1
      %s1913 = scalar_select %p1912, %s17, 1
      %p1914 = scmp.lt.s32.totalorder %s18, 0
      %s1915 = scalar_select %p1914, %s18, 0
      %s1916 = smul.addr %s1913, 32
      %s1917 = sadd.s32 %s1915, %s1916
      %s1918 = smul.addr %s1917, 4
      %s1919 = scalar_lea.vmem %s2, %s1918
      // Predicated region
      $region29: #{a_call__.5} parent=27 // pred_check
        %p1920 = pneg %p97
      $region30: #{a_call__.5} parent=27 // pred_check_branch
        %1922 = sbr.rel (%p1920) target = $region32
      $region31: #{a_call__.5} parent=27 // pred_region
        _
      $region32: #{a_call__.5} parent=27 // pred_fallthru
        _
    $region28: #{a_call__.5} parent=5 // pred_fallthru
      _
    %p1923 = scmp.le.s32.totalorder 2, %s8
    // Predicated region
    $region33: #{a_call__.5} parent=5 // pred_check
      %p1924 = pneg %p1923
    $region34: #{a_call__.5} parent=5 // pred_check_branch
      %1926 = sbr.rel (%p1924) target = $region36
    $region35: #{a_call__.5} parent=5 // pred_region
      %s1927 = ssub.s32 %s8, 2
      // Predicated region
      $region37: #{a_call__.5} parent=35 // pred_check
        %p1928 = pneg %p103
      $region38: #{a_call__.5} parent=35 // pred_check_branch
        %1930 = sbr.rel (%p1928) target = $region40
      $region39: #{a_call__.5} parent=35 // pred_region
        %p1931 = scmp.lt.s32.totalorder %s19, 1
        %s1932 = scalar_select %p1931, %s19, 1
        %p1933 = scmp.lt.s32.totalorder %s20, 0
        %s1934 = scalar_select %p1933, %s20, 0
        %s1935 = smul.addr %s1932, 32
        %s1936 = sadd.s32 %s1934, %s1935
        %s1937 = smul.addr %s1936, 4
        %s1938 = scalar_lea.vmem %s2, %s1937
      $region40: #{a_call__.5} parent=35 // pred_fallthru
        _
    $region36: #{a_call__.5} parent=5 // pred_fallthru
      _
  $region6: #{a_call__.5} parent=0 // loop_footer
    %s12 = sadd.s32 1, %s8
  $region7: #{a_call__.5} parent=0 // loop_footer_branch
    %7 = sbr.rel target = $region3
  $region8: #{a_call__.5} parent=0 // loop_exit
    _

// kernel: a_call__.6
$region0: #{a_call__.6}
  #allocation0 [shape = 'u32[]', space=smem, size = 0x4, offset = 0x4, fixed_abs, tag = 'smem constant byte address 0x4 - core index']
  #allocation1 [shape = 'u32[144,128]{1,0:T(1,128)}', space=vmem, size = 0x12000, scoped, tag = 'internal scratch']
  %s0 = inlined_call_operand.vmem [shape: bf16[2,9,9,64], index: 0, kind: input, shape index: {}]
  %s1 = inlined_call_operand.vmem [shape: bf16[256,32], index: 1, kind: input, shape index: {}]
  %s2 = inlined_call_operand.vmem [shape: bf16[2,64,32], index: 2, kind: output, shape index: {}]
  %s3 = sld [smem:[#allocation0]]
  $region41: #{a_call__.6} parent=0
    _
  %s5 = ssub.s32 1, %s3
  %s6 = scalar_select 0, %s5, %s3
  loop: start=0, step=1, limit=4
  $region2: #{a_call__.6} parent=0 // loop_pre_header
    _
  $region3: #{a_call__.6} parent=0 // loop_header
    %s8 = sphi 0, %s12
    %p9 = scmp.ge.s32.totalorder %s8, 4
    %s15 = sphi 0, %s27
    %s16 = sphi 0, %s23
    %s17 = sphi 0, %s15
    %s18 = sphi 0, %s16
    %s19 = sphi 0, %s17
    %s20 = sphi 0, %s18
    %s30 = sphi 0, %s32
    %s33 = sphi 0, %s30
    %s34 = sphi 0, %s33
    %s50 = sphi 0, %s34
    %s56 = sphi 0, %s58
    %s59 = sphi 0, %s56
    %s60 = sphi 0, %s59
    %s76 = sphi 0, %s60
    %s84 = sphi 0, %s86
    %s87 = sphi 0, %s84
    %s88 = sphi 0, %s87
    %s104 = sphi 0, %s88
  $region4: #{a_call__.6} parent=0 // loop_header_branch
    %11 = sbr.rel (%p9) target = $region8
  $region5: #{a_call__.6} parent=0 // loop_body
    %s13 = ssub.s32 %s8, 1
    %s14 = ssub.s32 %s8, 2
    %s21 = sadd.s32 1, %s16
    %p22 = scmp.ge.s32.totalorder %s21, 1
    %s23 = scalar_select %p22, 0, %s21
    %s24 = sadd.s32 1, %s15
    %s25 = scalar_select %p22, %s24, %s15
    %p26 = scmp.ge.s32.totalorder %s25, 2
    %s27 = scalar_select %p26, 0, %s25
    %s28 = ssub.s32 %s15, %s27
    %p29 = scmp.eq.s32.totalorder %s28, 0
    %s31 = sadd.s32 %s30, 1
    %s32 = scalar_select %p29, %s30, %s31
    %p35 = pneg %p29
    %p36 = scmp.eq.s32.totalorder %s8, 1
    %p37 = por %p35, %p36
    %p38 = scmp.ne.s32.totalorder %s30, %s33
    %p39 = scmp.eq.s32.totalorder %s8, 0
    %p40 = por %p38, %p39
    %p41 = scmp.ne.s32.totalorder %s30, %s33
    %p42 = scmp.eq.s32.totalorder %s13, 1
    %p43 = por %p41, %p42
    %p44 = scmp.ne.s32.totalorder %s33, %s34
    %p45 = scmp.eq.s32.totalorder %s13, 0
    %p46 = por %p44, %p45
    %p47 = scmp.ne.s32.totalorder %s33, %s34
    %p48 = scmp.eq.s32.totalorder %s14, 1
    %p49 = por %p47, %p48
    %p51 = scmp.ne.s32.totalorder %s34, %s50
    %p52 = scmp.eq.s32.totalorder %s14, 0
    %p53 = por %p51, %p52
    %s54 = ssub.s32 %s16, %s23
    %p55 = scmp.eq.s32.totalorder %s54, 0
    %s57 = sadd.s32 %s56, 1
    %s58 = scalar_select %p55, %s56, %s57
    %p61 = pneg %p55
    %p62 = scmp.eq.s32.totalorder %s8, 1
    %p63 = por %p61, %p62
    %p64 = scmp.ne.s32.totalorder %s56, %s59
    %p65 = scmp.eq.s32.totalorder %s8, 0
    %p66 = por %p64, %p65
    %p67 = scmp.ne.s32.totalorder %s56, %s59
    %p68 = scmp.eq.s32.totalorder %s13, 1
    %p69 = por %p67, %p68
    %p70 = scmp.ne.s32.totalorder %s59, %s60
    %p71 = scmp.eq.s32.totalorder %s13, 0
    %p72 = por %p70, %p71
    %p73 = scmp.ne.s32.totalorder %s59, %s60
    %p74 = scmp.eq.s32.totalorder %s14, 1
    %p75 = por %p73, %p74
    %p77 = scmp.ne.s32.totalorder %s60, %s76
    %p78 = scmp.eq.s32.totalorder %s14, 0
    %p79 = por %p77, %p78
    %s80 = ssub.s32 %s15, %s27
    %s81 = ssub.s32 %s16, %s23
    %s82 = sor.u32 %s80, %s81
    %p83 = scmp.eq.s32.totalorder %s82, 0
    %s85 = sadd.s32 %s84, 1
    %s86 = scalar_select %p83, %s84, %s85
    %p89 = pneg %p83
    %p90 = scmp.eq.s32.totalorder %s8, 1
    %p91 = por %p89, %p90
    %p92 = scmp.ne.s32.totalorder %s84, %s87
    %p93 = scmp.eq.s32.totalorder %s8, 0
    %p94 = por %p92, %p93
    %p95 = scmp.ne.s32.totalorder %s84, %s87
    %p96 = scmp.eq.s32.totalorder %s13, 1
    %p97 = por %p95, %p96
    %p98 = scmp.ne.s32.totalorder %s87, %s88
    %p99 = scmp.eq.s32.totalorder %s13, 0
    %p100 = por %p98, %p99
    %p101 = scmp.ne.s32.totalorder %s87, %s88
    %p102 = scmp.eq.s32.totalorder %s14, 1
    %p103 = por %p101, %p102
    %p105 = scmp.ne.s32.totalorder %s88, %s104
    %p106 = scmp.eq.s32.totalorder %s14, 0
    %p107 = por %p105, %p106
    %p108 = scmp.le.s32.totalorder 1, %s8
    %p109 = scmp.lt.s32.totalorder %s8, 3
    %p110 = pnand %p108, %p109
    %p111 = pneg %p110
    // Predicated region
    $region9: #{a_call__.6} parent=5 // pred_check
      _
    $region10: #{a_call__.6} parent=5 // pred_check_branch
      %113 = sbr.rel (%p110) target = $region12
    $region11: #{a_call__.6} parent=5 // pred_region
      %s114 = ssub.s32 %s8, 1
      // Predicated region
      $region13: #{a_call__.6} parent=11 // pred_check
        %p115 = pneg %p72
      $region14: #{a_call__.6} parent=11 // pred_check_branch
        %117 = sbr.rel (%p115) target = $region16
      $region15: #{a_call__.6} parent=11 // pred_region
        %p118 = scmp.lt.s32.totalorder %s18, 0
        %s119 = scalar_select %p118, %s18, 0
        %s120 = smul.addr %s119, 4
        %s121 = scalar_lea.vmem %s1, %s120
      $region16: #{a_call__.6} parent=11 // pred_fallthru
        _
    $region12: #{a_call__.6} parent=5 // pred_fallthru
      _
    %p122 = scmp.lt.s32.totalorder %s8, 2
    // Predicated region
    $region17: #{a_call__.6} parent=5 // pred_check
      %p123 = pneg %p122
    $region18: #{a_call__.6} parent=5 // pred_check_branch
      %125 = sbr.rel (%p123) target = $region20
    $region19: #{a_call__.6} parent=5 // pred_region
      // Predicated region
      $region21: #{a_call__.6} parent=19 // pred_check
        %p126 = pneg %p40
      $region22: #{a_call__.6} parent=19 // pred_check_branch
        %128 = sbr.rel (%p126) target = $region24
      $region23: #{a_call__.6} parent=19 // pred_region
        %p129 = scmp.lt.s32.totalorder %s15, 1
        %s130 = scalar_select %p129, %s15, 1
        %s131 = smul.addr %s130, 18
        %s132 = smul.addr %s131, 4
        %s133 = scalar_lea.vmem %s0, %s132
      $region24: #{a_call__.6} parent=19 // pred_fallthru
        _
    $region20: #{a_call__.6} parent=5 // pred_fallthru
      _
    %p134 = scmp.le.s32.totalorder 1, %s8
    %p135 = scmp.lt.s32.totalorder %s8, 3
    %p136 = pnand %p134, %p135
    %p137 = pneg %p136
    // Predicated region
    $region25: #{a_call__.6} parent=5 // pred_check
      _
    $region26: #{a_call__.6} parent=5 // pred_check_branch
      %139 = sbr.rel (%p136) target = $region28
    $region27: #{a_call__.6} parent=5 // pred_region
      %s140 = ssub.s32 %s8, 1
      %p141 = scmp.lt.s32.totalorder %s17, 1
      %s142 = scalar_select %p141, %s17, 1
      %s143 = smul.addr %s142, 18
      %s144 = smul.addr %s143, 4
      %s145 = scalar_lea.vmem %s0, %s144
      %p146 = pneg %p46
      %p147 = pneg %p43
      %p148 = scmp.lt.s32.totalorder %s18, 0
      %s149 = scalar_select %p148, %s18, 0
      %s150 = smul.addr %s149, 4
      %s151 = scalar_lea.vmem %s1, %s150
      %p152 = pneg %p72
      %p153 = pneg %p69
      %p154 = pneg %p100
      %p155 = pneg %p97
      %p156 = scmp.lt.s32.totalorder %s17, 1
      %s157 = scalar_select %p156, %s17, 1
      %p158 = scmp.lt.s32.totalorder %s18, 0
      %s159 = scalar_select %p158, %s18, 0
      %s160 = smul.addr %s157, 8
      %s161 = sadd.s32 %s159, %s160
      %s162 = smul.addr %s161, 4
      %s163 = scalar_lea.vmem %s2, %s162
      %p164 = scmp.lt.s32.totalorder %s17, 1
      %s165 = scalar_select %p164, %s17, 1
      %s166 = smul.addr %s165, 18
      %s167 = smul.addr %s166, 4
      %s168 = scalar_lea.vmem %s0, %s167
      %p169 = scmp.lt.s32.totalorder %s18, 0
      %s170 = scalar_select %p169, %s18, 0
      %s171 = smul.addr %s170, 4
      %s172 = scalar_lea.vmem %s1, %s171
      %p173 = scmp.lt.s32.totalorder %s17, 1
      %s174 = scalar_select %p173, %s17, 1
      %p175 = scmp.lt.s32.totalorder %s18, 0
      %s176 = scalar_select %p175, %s18, 0
      %s177 = smul.addr %s174, 8
      %s178 = sadd.s32 %s176, %s177
      %s179 = smul.addr %s178, 4
      %s180 = scalar_lea.vmem %s2, %s179
      %v182 = vld [vmem:[%s168] sm:$0xf]
      %v183 = vld [vmem:[%s168 + $0x4] sm:$0x1]
      %v184 = vld [vmem:[%s168 + $0x8] sm:$0xf]
      %v185 = vld [vmem:[%s168 + $0xc] sm:$0x1]
      %v186 = vld [vmem:[%s168 + $0x10] sm:$0xf]
      %v187 = vld [vmem:[%s168 + $0x14] sm:$0x1]
      %v188 = vld [vmem:[%s168 + $0x18] sm:$0xf]
      %v189 = vld [vmem:[%s168 + $0x1c] sm:$0x1]
      %v190 = vld [vmem:[%s168 + $0x20] sm:$0xf]
      %v191 = vld [vmem:[%s168 + $0x24] sm:$0x1]
      %v192 = vld [vmem:[%s168 + $0x28] sm:$0xf]
      %v193 = vld [vmem:[%s168 + $0x2c] sm:$0x1]
      %v194 = vld [vmem:[%s168 + $0x30] sm:$0xf]
      %v195 = vld [vmem:[%s168 + $0x34] sm:$0x1]
      %v196 = vld [vmem:[%s168 + $0x38] sm:$0xf]
      %v197 = vld [vmem:[%s168 + $0x3c] sm:$0x1]
      %v198 = vld [vmem:[%s168 + $0x40] sm:$0xf]
      %v199 = vld [vmem:[%s168 + $0x44] sm:$0x1]
      %v200 = vld [vmem:[%s172] sm:$0xf]
      %v201 = vld [vmem:[%s172 + $0x4] sm:$0xf]
      %v202 = vld [vmem:[%s172 + $0x8] sm:$0xf]
      %v203 = vld [vmem:[%s172 + $0xc] sm:$0xf]
      %v204 = vld [vmem:[%s172 + $0x10] sm:$0xf]
      %v205 = vld [vmem:[%s172 + $0x14] sm:$0xf]
      %v206 = vld [vmem:[%s172 + $0x18] sm:$0xf]
      %v207 = vld [vmem:[%s172 + $0x1c] sm:$0xf]
      %v208 = vld [vmem:[%s172 + $0x20] sm:$0xf]
      %v209 = vld [vmem:[%s172 + $0x24] sm:$0xf]
      %v210 = vld [vmem:[%s172 + $0x28] sm:$0xf]
      %v211 = vld [vmem:[%s172 + $0x2c] sm:$0xf]
      %v212 = vld [vmem:[%s172 + $0x30] sm:$0xf]
      %v213 = vld [vmem:[%s172 + $0x34] sm:$0xf]
      %v214 = vld [vmem:[%s172 + $0x38] sm:$0xf]
      %v215 = vld [vmem:[%s172 + $0x3c] sm:$0xf]
      %v216 = vld [vmem:[%s172 + $0x40] sm:$0xf]
      %v217 = vld [vmem:[%s172 + $0x44] sm:$0xf]
      %v218 = vld [vmem:[%s172 + $0x48] sm:$0xf]
      %v219 = vld [vmem:[%s172 + $0x4c] sm:$0xf]
      %v220 = vld [vmem:[%s172 + $0x50] sm:$0xf]
      %v221 = vld [vmem:[%s172 + $0x54] sm:$0xf]
      %v222 = vld [vmem:[%s172 + $0x58] sm:$0xf]
      %v223 = vld [vmem:[%s172 + $0x5c] sm:$0xf]
      %v224 = vld [vmem:[%s172 + $0x60] sm:$0xf]
      %v225 = vld [vmem:[%s172 + $0x64] sm:$0xf]
      %v226 = vld [vmem:[%s172 + $0x68] sm:$0xf]
      %v227 = vld [vmem:[%s172 + $0x6c] sm:$0xf]
      %v228 = vld [vmem:[%s172 + $0x70] sm:$0xf]
      %v229 = vld [vmem:[%s172 + $0x74] sm:$0xf]
      %v230 = vld [vmem:[%s172 + $0x78] sm:$0xf]
      %v231 = vld [vmem:[%s172 + $0x7c] sm:$0xf]
      %vm232 = vsmask.f32 3328
      %vm233 = vsmask.f32 7440
      %vm234 = vmor %vm232, %vm233
      %v236 = vshrl.u32 %v182, 16
      %v238 = vrot.slane %v236, 4
      %v239 = vshll.u32 %v182, 16
      %v241 = vrot.slane %v239, 5
      %v242 = vor.u32 %v238, %v241
      %v243 = vrot.slane %v242, 4
      %v245 = vshll.u32 %v183, 16
      %v247 = vrot.slane %v245, 5
      %v248 = vsel %vm234, %v243, %v247
      %v250 = vshrl.u32 %v184, 16
      %v252 = vrot.slane %v250, 4
      %v253 = vshll.u32 %v184, 16
      %v255 = vrot.slane %v253, 5
      %v256 = vor.u32 %v252, %v255
      %v257 = vrot.slane %v256, 4
      %v259 = vshll.u32 %v185, 16
      %v261 = vrot.slane %v259, 5
      %v262 = vsel %vm234, %v257, %v261
      %v264 = vshrl.u32 %v186, 16
      %v266 = vrot.slane %v264, 4
      %v267 = vshll.u32 %v186, 16
      %v269 = vrot.slane %v267, 5
      %v270 = vor.u32 %v266, %v269
      %v271 = vrot.slane %v270, 4
      %v273 = vshll.u32 %v187, 16
      %v275 = vrot.slane %v273, 5
      %v276 = vsel %vm234, %v271, %v275
      %v278 = vshrl.u32 %v188, 16
      %v280 = vrot.slane %v278, 4
      %v281 = vshll.u32 %v188, 16
      %v283 = vrot.slane %v281, 5
      %v284 = vor.u32 %v280, %v283
      %v285 = vrot.slane %v284, 4
      %v287 = vshll.u32 %v189, 16
      %v289 = vrot.slane %v287, 5
      %v290 = vsel %vm234, %v285, %v289
      %v292 = vshrl.u32 %v190, 16
      %v294 = vrot.slane %v292, 4
      %v295 = vshll.u32 %v190, 16
      %v297 = vrot.slane %v295, 5
      %v298 = vor.u32 %v294, %v297
      %v299 = vrot.slane %v298, 4
      %v301 = vshll.u32 %v191, 16
      %v303 = vrot.slane %v301, 5
      %v304 = vsel %vm234, %v299, %v303
      %v306 = vshrl.u32 %v192, 16
      %v308 = vrot.slane %v306, 4
      %v309 = vshll.u32 %v192, 16
      %v311 = vrot.slane %v309, 5
      %v312 = vor.u32 %v308, %v311
      %v313 = vrot.slane %v312, 4
      %v315 = vshll.u32 %v193, 16
      %v317 = vrot.slane %v315, 5
      %v318 = vsel %vm234, %v313, %v317
      %v320 = vshrl.u32 %v194, 16
      %v322 = vrot.slane %v320, 4
      %v323 = vshll.u32 %v194, 16
      %v325 = vrot.slane %v323, 5
      %v326 = vor.u32 %v322, %v325
      %v327 = vrot.slane %v326, 4
      %v329 = vshll.u32 %v195, 16
      %v331 = vrot.slane %v329, 5
      %v332 = vsel %vm234, %v327, %v331
      %v334 = vshrl.u32 %v196, 16
      %v336 = vrot.slane %v334, 4
      %v337 = vshll.u32 %v196, 16
      %v339 = vrot.slane %v337, 5
      %v340 = vor.u32 %v336, %v339
      %v341 = vrot.slane %v340, 4
      %v343 = vshll.u32 %v197, 16
      %v345 = vrot.slane %v343, 5
      %v346 = vsel %vm234, %v341, %v345
      %v347 = vunpack.c.l.b16 %v248
      %v348 = vunpack.c.l.b16 %v262
      %v349 = vunpack.c.l.b16 %v276
      %v350 = vunpack.c.l.b16 %v290
      %v351 = vunpack.c.l.b16 %v304
      %v352 = vunpack.c.l.b16 %v318
      %v353 = vunpack.c.l.b16 %v332
      %v354 = vunpack.c.l.b16 %v346
      %v355 = vpack.c.b16 %v348, %v347
      %v356 = vpack.c.b16 %v350, %v349
      %v357 = vpack.c.b16 %v352, %v351
      %v358 = vpack.c.b16 %v354, %v353
      %v367 = vunpack.c.l.b16 %v208
      %v368 = vunpack.c.l.b16 %v209
      %v369 = vunpack.c.l.b16 %v210
      %v370 = vunpack.c.l.b16 %v211
      %v371 = vunpack.c.l.b16 %v212
      %v372 = vunpack.c.l.b16 %v213
      %v373 = vunpack.c.l.b16 %v214
      %v374 = vunpack.c.l.b16 %v215
      %v375 = vpack.c.b16 %v368, %v367
      %v376 = vpack.c.b16 %v370, %v369
      %v377 = vpack.c.b16 %v372, %v371
      %v378 = vpack.c.b16 %v374, %v373
      %vm383 = vcmask 523264
      %v385 = vsel %vm383, %v355, 0
      %v388 = vsel %vm383, %v356, 0
      %v391 = vsel %vm383, %v357, 0
      %v394 = vsel %vm383, %v358, 0
      %396 = vmatprep.subr.bf16.mxu0 0
      %397 = vmatpush1.bf16.msra.mxu0 0
      %398 = vmatprep.subr.bf16.mxu0 0
      %399 = vmatpush1.bf16.msra.mxu0 0
      %400 = vmatprep.subr.bf16.mxu0 0
      %401 = vmatpush1.bf16.msra.mxu0 0
      %402 = vmatprep.subr.bf16.mxu0 0
      %403 = vmatpush1.bf16.msra.mxu0 0
      %404 = vmatprep.subr.bf16.mxu0 0
      %405 = vmatpush1.bf16.msra.mxu0 %v378
      %406 = vmatprep.subr.bf16.mxu0 0
      %407 = vmatpush1.bf16.msra.mxu0 %v377
      %408 = vmatprep.subr.bf16.mxu0 0
      %409 = vmatpush1.bf16.msra.mxu0 %v376
      %410 = vmatprep.subr.bf16.mxu0 0
      %411 = vmatpush1.bf16.msra.mxu0 %v375
      %412 = vmatprep.subr.bf16.mxu0 0
      %413 = vmatpush2.bf16.msra.mxu0 0
      %414 = vmatprep.subr.bf16.mxu0 0
      %415 = vmatpush2.bf16.msra.mxu0 0
      %416 = vmatprep.subr.bf16.mxu0 0
      %417 = vmatpush2.bf16.msra.mxu0 0
      %418 = vmatprep.subr.bf16.mxu0 0
      %419 = vmatpush2.bf16.msra.mxu0 0
      %420 = vmatprep.subr.bf16.mxu0 0
      %421 = vmatpush2.bf16.msra.mxu0 0
      %422 = vmatprep.subr.bf16.mxu0 0
      %423 = vmatpush2.bf16.msra.mxu0 0
      %424 = vmatprep.subr.bf16.mxu0 0
      %425 = vmatpush2.bf16.msra.mxu0 0
      %426 = vmatprep.subr.bf16.mxu0 0
      %427 = vmatpush2.bf16.msra.mxu0 0
      %428 = vmatprep.mubr.bf16.mxu0 0
      %429 = vmatmul.mubr.bf16.gmra.mxu0 %v385
      %v430 = vpop.f32.mrf.mxu0
      %v431 = vadd.f32 0.0, %v430
      %v432 = vpop.f32.mrf.mxu0
      %v433 = vpop.f32.mrf.mxu0
      %v434 = vadd.f32 0.0, %v433
      %v435 = vpop.f32.mrf.mxu0
      %436 = vmatprep.mubr.bf16.mxu0 0
      %437 = vmatmul.mubr.bf16.gmra.mxu0 %v388
      %v438 = vpop.f32.mrf.mxu0
      %v439 = vadd.f32 0.0, %v438
      %v440 = vpop.f32.mrf.mxu0
      %v441 = vpop.f32.mrf.mxu0
      %v442 = vadd.f32 0.0, %v441
      %v443 = vpop.f32.mrf.mxu0
      %444 = vmatprep.mubr.bf16.mxu0 0
      %445 = vmatmul.mubr.bf16.gmra.mxu0 %v391
      %v446 = vpop.f32.mrf.mxu0
      %v447 = vadd.f32 0.0, %v446
      %v448 = vpop.f32.mrf.mxu0
      %v449 = vpop.f32.mrf.mxu0
      %v450 = vadd.f32 0.0, %v449
      %v451 = vpop.f32.mrf.mxu0
      %452 = vmatprep.mubr.bf16.mxu0 0
      %453 = vmatmul.mubr.bf16.gmra.mxu0 %v394
      %v454 = vpop.f32.mrf.mxu0
      %v455 = vadd.f32 0.0, %v454
      %v456 = vpop.f32.mrf.mxu0
      %v457 = vpop.f32.mrf.mxu0
      %v458 = vadd.f32 0.0, %v457
      %v459 = vpop.f32.mrf.mxu0
      %460 = vdwg.mxu0
      %v469 = vunpack.c.l.b16 %v182
      %v470 = vunpack.c.l.b16 %v184
      %v471 = vunpack.c.l.b16 %v186
      %v472 = vunpack.c.l.b16 %v188
      %v473 = vunpack.c.l.b16 %v190
      %v474 = vunpack.c.l.b16 %v192
      %v475 = vunpack.c.l.b16 %v194
      %v476 = vunpack.c.l.b16 %v196
      %v477 = vpack.c.b16 %v470, %v469
      %v478 = vpack.c.b16 %v472, %v471
      %v479 = vpack.c.b16 %v474, %v473
      %v480 = vpack.c.b16 %v476, %v475
      %v489 = vunpack.c.l.b16 %v200
      %v490 = vunpack.c.l.b16 %v201
      %v491 = vunpack.c.l.b16 %v202
      %v492 = vunpack.c.l.b16 %v203
      %v493 = vunpack.c.l.b16 %v204
      %v494 = vunpack.c.l.b16 %v205
      %v495 = vunpack.c.l.b16 %v206
      %v496 = vunpack.c.l.b16 %v207
      %v497 = vpack.c.b16 %v490, %v489
      %v498 = vpack.c.b16 %v492, %v491
      %v499 = vpack.c.b16 %v494, %v493
      %v500 = vpack.c.b16 %v496, %v495
      %v506 = vsel %vm383, %v477, 0
      %v509 = vsel %vm383, %v478, 0
      %v512 = vsel %vm383, %v479, 0
      %v515 = vsel %vm383, %v480, 0
      %517 = vmatprep.subr.bf16.mxu0 0
      %518 = vmatpush1.bf16.msra.mxu0 0
      %519 = vmatprep.subr.bf16.mxu0 0
      %520 = vmatpush1.bf16.msra.mxu0 0
      %521 = vmatprep.subr.bf16.mxu0 0
      %522 = vmatpush1.bf16.msra.mxu0 0
      %523 = vmatprep.subr.bf16.mxu0 0
      %524 = vmatpush1.bf16.msra.mxu0 0
      %525 = vmatprep.subr.bf16.mxu0 0
      %526 = vmatpush1.bf16.msra.mxu0 %v500
      %527 = vmatprep.subr.bf16.mxu0 0
      %528 = vmatpush1.bf16.msra.mxu0 %v499
      %529 = vmatprep.subr.bf16.mxu0 0
      %530 = vmatpush1.bf16.msra.mxu0 %v498
      %531 = vmatprep.subr.bf16.mxu0 0
      %532 = vmatpush1.bf16.msra.mxu0 %v497
      %533 = vmatprep.subr.bf16.mxu0 0
      %534 = vmatpush2.bf16.msra.mxu0 0
      %535 = vmatprep.subr.bf16.mxu0 0
      %536 = vmatpush2.bf16.msra.mxu0 0
      %537 = vmatprep.subr.bf16.mxu0 0
      %538 = vmatpush2.bf16.msra.mxu0 0
      %539 = vmatprep.subr.bf16.mxu0 0
      %540 = vmatpush2.bf16.msra.mxu0 0
      %541 = vmatprep.subr.bf16.mxu0 0
      %542 = vmatpush2.bf16.msra.mxu0 0
      %543 = vmatprep.subr.bf16.mxu0 0
      %544 = vmatpush2.bf16.msra.mxu0 0
      %545 = vmatprep.subr.bf16.mxu0 0
      %546 = vmatpush2.bf16.msra.mxu0 0
      %547 = vmatprep.subr.bf16.mxu0 0
      %548 = vmatpush2.bf16.msra.mxu0 0
      %549 = vmatprep.mubr.bf16.mxu0 0
      %550 = vmatmul.mubr.bf16.gmra.mxu0 %v506
      %v551 = vpop.f32.mrf.mxu0
      %v552 = vadd.f32 %v431, %v551
      %v553 = vpop.f32.mrf.mxu0
      %v554 = vpop.f32.mrf.mxu0
      %v555 = vadd.f32 %v434, %v554
      %v556 = vpop.f32.mrf.mxu0
      %557 = vmatprep.mubr.bf16.mxu0 0
      %558 = vmatmul.mubr.bf16.gmra.mxu0 %v509
      %v559 = vpop.f32.mrf.mxu0
      %v560 = vadd.f32 %v439, %v559
      %v561 = vpop.f32.mrf.mxu0
      %v562 = vpop.f32.mrf.mxu0
      %v563 = vadd.f32 %v442, %v562
      %v564 = vpop.f32.mrf.mxu0
      %565 = vmatprep.mubr.bf16.mxu0 0
      %566 = vmatmul.mubr.bf16.gmra.mxu0 %v512
      %v567 = vpop.f32.mrf.mxu0
      %v568 = vadd.f32 %v447, %v567
      %v569 = vpop.f32.mrf.mxu0
      %v570 = vpop.f32.mrf.mxu0
      %v571 = vadd.f32 %v450, %v570
      %v572 = vpop.f32.mrf.mxu0
      %573 = vmatprep.mubr.bf16.mxu0 0
      %574 = vmatmul.mubr.bf16.gmra.mxu0 %v515
      %v575 = vpop.f32.mrf.mxu0
      %v576 = vadd.f32 %v455, %v575
      %v577 = vpop.f32.mrf.mxu0
      %v578 = vpop.f32.mrf.mxu0
      %v579 = vadd.f32 %v458, %v578
      %v580 = vpop.f32.mrf.mxu0
      %581 = vdwg.mxu0
      %v583 = vunpack.c.l.b16 %v198
      %v584 = vpack.c.b16 %v471, %v470
      %v585 = vpack.c.b16 %v473, %v472
      %v586 = vpack.c.b16 %v475, %v474
      %v587 = vpack.c.b16 %v583, %v476
      %v596 = vunpack.c.l.b16 %v216
      %v597 = vunpack.c.l.b16 %v217
      %v598 = vunpack.c.l.b16 %v218
      %v599 = vunpack.c.l.b16 %v219
      %v600 = vunpack.c.l.b16 %v220
      %v601 = vunpack.c.l.b16 %v221
      %v602 = vunpack.c.l.b16 %v222
      %v603 = vunpack.c.l.b16 %v223
      %v604 = vpack.c.b16 %v597, %v596
      %v605 = vpack.c.b16 %v599, %v598
      %v606 = vpack.c.b16 %v601, %v600
      %v607 = vpack.c.b16 %v603, %v602
      %v613 = vsel %vm383, %v584, 0
      %v616 = vsel %vm383, %v585, 0
      %v619 = vsel %vm383, %v586, 0
      %v622 = vsel %vm383, %v587, 0
      %624 = vmatprep.subr.bf16.mxu0 0
      %625 = vmatpush1.bf16.msra.mxu0 0
      %626 = vmatprep.subr.bf16.mxu0 0
      %627 = vmatpush1.bf16.msra.mxu0 0
      %628 = vmatprep.subr.bf16.mxu0 0
      %629 = vmatpush1.bf16.msra.mxu0 0
      %630 = vmatprep.subr.bf16.mxu0 0
      %631 = vmatpush1.bf16.msra.mxu0 0
      %632 = vmatprep.subr.bf16.mxu0 0
      %633 = vmatpush1.bf16.msra.mxu0 %v607
      %634 = vmatprep.subr.bf16.mxu0 0
      %635 = vmatpush1.bf16.msra.mxu0 %v606
      %636 = vmatprep.subr.bf16.mxu0 0
      %637 = vmatpush1.bf16.msra.mxu0 %v605
      %638 = vmatprep.subr.bf16.mxu0 0
      %639 = vmatpush1.bf16.msra.mxu0 %v604
      %640 = vmatprep.subr.bf16.mxu0 0
      %641 = vmatpush2.bf16.msra.mxu0 0
      %642 = vmatprep.subr.bf16.mxu0 0
      %643 = vmatpush2.bf16.msra.mxu0 0
      %644 = vmatprep.subr.bf16.mxu0 0
      %645 = vmatpush2.bf16.msra.mxu0 0
      %646 = vmatprep.subr.bf16.mxu0 0
      %647 = vmatpush2.bf16.msra.mxu0 0
      %648 = vmatprep.subr.bf16.mxu0 0
      %649 = vmatpush2.bf16.msra.mxu0 0
      %650 = vmatprep.subr.bf16.mxu0 0
      %651 = vmatpush2.bf16.msra.mxu0 0
      %652 = vmatprep.subr.bf16.mxu0 0
      %653 = vmatpush2.bf16.msra.mxu0 0
      %654 = vmatprep.subr.bf16.mxu0 0
      %655 = vmatpush2.bf16.msra.mxu0 0
      %656 = vmatprep.mubr.bf16.mxu0 0
      %657 = vmatmul.mubr.bf16.gmra.mxu0 %v613
      %v658 = vpop.f32.mrf.mxu0
      %v659 = vadd.f32 0.0, %v658
      %v660 = vpop.f32.mrf.mxu0
      %v661 = vpop.f32.mrf.mxu0
      %v662 = vadd.f32 0.0, %v661
      %v663 = vpop.f32.mrf.mxu0
      %664 = vmatprep.mubr.bf16.mxu0 0
      %665 = vmatmul.mubr.bf16.gmra.mxu0 %v616
      %v666 = vpop.f32.mrf.mxu0
      %v667 = vadd.f32 0.0, %v666
      %v668 = vpop.f32.mrf.mxu0
      %v669 = vpop.f32.mrf.mxu0
      %v670 = vadd.f32 0.0, %v669
      %v671 = vpop.f32.mrf.mxu0
      %672 = vmatprep.mubr.bf16.mxu0 0
      %673 = vmatmul.mubr.bf16.gmra.mxu0 %v619
      %v674 = vpop.f32.mrf.mxu0
      %v675 = vadd.f32 0.0, %v674
      %v676 = vpop.f32.mrf.mxu0
      %v677 = vpop.f32.mrf.mxu0
      %v678 = vadd.f32 0.0, %v677
      %v679 = vpop.f32.mrf.mxu0
      %680 = vmatprep.mubr.bf16.mxu0 0
      %681 = vmatmul.mubr.bf16.gmra.mxu0 %v622
      %v682 = vpop.f32.mrf.mxu0
      %v683 = vadd.f32 0.0, %v682
      %v684 = vpop.f32.mrf.mxu0
      %v685 = vpop.f32.mrf.mxu0
      %v686 = vadd.f32 0.0, %v685
      %v687 = vpop.f32.mrf.mxu0
      %688 = vdwg.mxu0
      %v689 = vadd.f32 %v552, %v659
      %v690 = vadd.f32 %v555, %v662
      %v691 = vadd.f32 %v560, %v667
      %v692 = vadd.f32 %v563, %v670
      %v693 = vadd.f32 %v568, %v675
      %v694 = vadd.f32 %v571, %v678
      %v695 = vadd.f32 %v576, %v683
      %v696 = vadd.f32 %v579, %v686
      %v698 = vshrl.u32 %v198, 16
      %v700 = vrot.slane %v698, 4
      %v701 = vshll.u32 %v198, 16
      %v703 = vrot.slane %v701, 5
      %v704 = vor.u32 %v700, %v703
      %v705 = vrot.slane %v704, 4
      %v707 = vshll.u32 %v199, 16
      %v709 = vrot.slane %v707, 5
      %v710 = vsel %vm234, %v705, %v709
      %v711 = vunpack.c.l.b16 %v710
      %v712 = vpack.c.b16 %v349, %v348
      %v713 = vpack.c.b16 %v351, %v350
      %v714 = vpack.c.b16 %v353, %v352
      %v715 = vpack.c.b16 %v711, %v354
      %v724 = vunpack.c.l.b16 %v224
      %v725 = vunpack.c.l.b16 %v225
      %v726 = vunpack.c.l.b16 %v226
      %v727 = vunpack.c.l.b16 %v227
      %v728 = vunpack.c.l.b16 %v228
      %v729 = vunpack.c.l.b16 %v229
      %v730 = vunpack.c.l.b16 %v230
      %v731 = vunpack.c.l.b16 %v231
      %v732 = vpack.c.b16 %v725, %v724
      %v733 = vpack.c.b16 %v727, %v726
      %v734 = vpack.c.b16 %v729, %v728
      %v735 = vpack.c.b16 %v731, %v730
      %v741 = vsel %vm383, %v712, 0
      %v744 = vsel %vm383, %v713, 0
      %v747 = vsel %vm383, %v714, 0
      %v750 = vsel %vm383, %v715, 0
      %752 = vmatprep.subr.bf16.mxu0 0
      %753 = vmatpush1.bf16.msra.mxu0 0
      %754 = vmatprep.subr.bf16.mxu0 0
      %755 = vmatpush1.bf16.msra.mxu0 0
      %756 = vmatprep.subr.bf16.mxu0 0
      %757 = vmatpush1.bf16.msra.mxu0 0
      %758 = vmatprep.subr.bf16.mxu0 0
      %759 = vmatpush1.bf16.msra.mxu0 0
      %760 = vmatprep.subr.bf16.mxu0 0
      %761 = vmatpush1.bf16.msra.mxu0 %v735
      %762 = vmatprep.subr.bf16.mxu0 0
      %763 = vmatpush1.bf16.msra.mxu0 %v734
      %764 = vmatprep.subr.bf16.mxu0 0
      %765 = vmatpush1.bf16.msra.mxu0 %v733
      %766 = vmatprep.subr.bf16.mxu0 0
      %767 = vmatpush1.bf16.msra.mxu0 %v732
      %768 = vmatprep.subr.bf16.mxu0 0
      %769 = vmatpush2.bf16.msra.mxu0 0
      %770 = vmatprep.subr.bf16.mxu0 0
      %771 = vmatpush2.bf16.msra.mxu0 0
      %772 = vmatprep.subr.bf16.mxu0 0
      %773 = vmatpush2.bf16.msra.mxu0 0
      %774 = vmatprep.subr.bf16.mxu0 0
      %775 = vmatpush2.bf16.msra.mxu0 0
      %776 = vmatprep.subr.bf16.mxu0 0
      %777 = vmatpush2.bf16.msra.mxu0 0
      %778 = vmatprep.subr.bf16.mxu0 0
      %779 = vmatpush2.bf16.msra.mxu0 0
      %780 = vmatprep.subr.bf16.mxu0 0
      %781 = vmatpush2.bf16.msra.mxu0 0
      %782 = vmatprep.subr.bf16.mxu0 0
      %783 = vmatpush2.bf16.msra.mxu0 0
      %784 = vmatprep.mubr.bf16.mxu0 0
      %785 = vmatmul.mubr.bf16.gmra.mxu0 %v741
      %v786 = vpop.f32.mrf.mxu0
      %v787 = vadd.f32 0.0, %v786
      %v788 = vpop.f32.mrf.mxu0
      %v789 = vpop.f32.mrf.mxu0
      %v790 = vadd.f32 0.0, %v789
      %v791 = vpop.f32.mrf.mxu0
      %792 = vmatprep.mubr.bf16.mxu0 0
      %793 = vmatmul.mubr.bf16.gmra.mxu0 %v744
      %v794 = vpop.f32.mrf.mxu0
      %v795 = vadd.f32 0.0, %v794
      %v796 = vpop.f32.mrf.mxu0
      %v797 = vpop.f32.mrf.mxu0
      %v798 = vadd.f32 0.0, %v797
      %v799 = vpop.f32.mrf.mxu0
      %800 = vmatprep.mubr.bf16.mxu0 0
      %801 = vmatmul.mubr.bf16.gmra.mxu0 %v747
      %v802 = vpop.f32.mrf.mxu0
      %v803 = vadd.f32 0.0, %v802
      %v804 = vpop.f32.mrf.mxu0
      %v805 = vpop.f32.mrf.mxu0
      %v806 = vadd.f32 0.0, %v805
      %v807 = vpop.f32.mrf.mxu0
      %808 = vmatprep.mubr.bf16.mxu0 0
      %809 = vmatmul.mubr.bf16.gmra.mxu0 %v750
      %v810 = vpop.f32.mrf.mxu0
      %v811 = vadd.f32 0.0, %v810
      %v812 = vpop.f32.mrf.mxu0
      %v813 = vpop.f32.mrf.mxu0
      %v814 = vadd.f32 0.0, %v813
      %v815 = vpop.f32.mrf.mxu0
      %816 = vdwg.mxu0
      %v817 = vadd.f32 %v689, %v787
      %v818 = vadd.f32 %v690, %v790
      %v819 = vadd.f32 %v691, %v795
      %v820 = vadd.f32 %v692, %v798
      %v821 = vadd.f32 %v693, %v803
      %v822 = vadd.f32 %v694, %v806
      %v823 = vadd.f32 %v695, %v811
      %v824 = vadd.f32 %v696, %v814
      %vm825 = vcmp.ge.f32.partialorder %v817, 0.0
      %vm826 = vcmp.ge.f32.partialorder %v818, 0.0
      %vm827 = vcmp.ge.f32.partialorder %v819, 0.0
      %vm828 = vcmp.ge.f32.partialorder %v820, 0.0
      %vm829 = vcmp.ge.f32.partialorder %v821, 0.0
      %vm830 = vcmp.ge.f32.partialorder %v822, 0.0
      %vm831 = vcmp.ge.f32.partialorder %v823, 0.0
      %vm832 = vcmp.ge.f32.partialorder %v824, 0.0
      %v833 = vmul.f32 %v817, 0.2
      %v834 = vmul.f32 %v818, 0.2
      %v835 = vmul.f32 %v819, 0.2
      %v836 = vmul.f32 %v820, 0.2
      %v837 = vmul.f32 %v821, 0.2
      %v838 = vmul.f32 %v822, 0.2
      %v839 = vmul.f32 %v823, 0.2
      %v840 = vmul.f32 %v824, 0.2
      %v841 = vsel %vm825, %v817, %v833
      %v842 = vsel %vm826, %v818, %v834
      %v843 = vsel %vm827, %v819, %v835
      %v844 = vsel %vm828, %v820, %v836
      %v845 = vsel %vm829, %v821, %v837
      %v846 = vsel %vm830, %v822, %v838
      %v847 = vsel %vm831, %v823, %v839
      %v848 = vsel %vm832, %v824, %v840
      %v849 = vpack.c.bf16 %v842, %v841
      %v850 = vpack.c.bf16 %v844, %v843
      %v851 = vpack.c.bf16 %v846, %v845
      %v852 = vpack.c.bf16 %v848, %v847
      %v857 = vunpack.c.l.b16 %v849
      %v858 = vunpack.c.h.b16 %v849
      %v859 = vunpack.c.l.b16 %v850
      %v860 = vunpack.c.h.b16 %v850
      %v861 = vunpack.c.l.b16 %v851
      %v862 = vunpack.c.h.b16 %v851
      %v863 = vunpack.c.l.b16 %v852
      %v864 = vunpack.c.h.b16 %v852
      %v865 = vpack.c.b16 %v857, %v857
      %v866 = vpack.c.b16 %v858, %v858
      %v867 = vpack.c.b16 %v859, %v859
      %v868 = vpack.c.b16 %v860, %v860
      %v869 = vpack.c.b16 %v861, %v861
      %v870 = vpack.c.b16 %v862, %v862
      %v871 = vpack.c.b16 %v863, %v863
      %v872 = vpack.c.b16 %v864, %v864
      %vm881 = vcmask 257024
      %882 = vst.msk [vmem:[%s180] sm:$0xf] %vm881, %v865
      %883 = vst.msk [vmem:[%s180 + $0x4] sm:$0xf] %vm881, %v866
      %884 = vst.msk [vmem:[%s180 + $0x8] sm:$0xf] %vm881, %v867
      %885 = vst.msk [vmem:[%s180 + $0xc] sm:$0xf] %vm881, %v868
      %886 = vst.msk [vmem:[%s180 + $0x10] sm:$0xf] %vm881, %v869
      %887 = vst.msk [vmem:[%s180 + $0x14] sm:$0xf] %vm881, %v870
      %888 = vst.msk [vmem:[%s180 + $0x18] sm:$0xf] %vm881, %v871
      %889 = vst.msk [vmem:[%s180 + $0x1c] sm:$0xf] %vm881, %v872
      %p890 = scmp.lt.s32.totalorder %s17, 1
      %s891 = scalar_select %p890, %s17, 1
      %p892 = scmp.lt.s32.totalorder %s18, 0
      %s893 = scalar_select %p892, %s18, 0
      %s894 = smul.addr %s891, 8
      %s895 = sadd.s32 %s893, %s894
      %s896 = smul.addr %s895, 4
      %s897 = scalar_lea.vmem %s2, %s896
      // Predicated region
      $region29: #{a_call__.6} parent=27 // pred_check
        %p898 = pneg %p97
      $region30: #{a_call__.6} parent=27 // pred_check_branch
        %900 = sbr.rel (%p898) target = $region32
      $region31: #{a_call__.6} parent=27 // pred_region
        _
      $region32: #{a_call__.6} parent=27 // pred_fallthru
        _
    $region28: #{a_call__.6} parent=5 // pred_fallthru
      _
    %p901 = scmp.le.s32.totalorder 2, %s8
    // Predicated region
    $region33: #{a_call__.6} parent=5 // pred_check
      %p902 = pneg %p901
    $region34: #{a_call__.6} parent=5 // pred_check_branch
      %904 = sbr.rel (%p902) target = $region36
    $region35: #{a_call__.6} parent=5 // pred_region
      %s905 = ssub.s32 %s8, 2
      // Predicated region
      $region37: #{a_call__.6} parent=35 // pred_check
        %p906 = pneg %p103
      $region38: #{a_call__.6} parent=35 // pred_check_branch
        %908 = sbr.rel (%p906) target = $region40
      $region39: #{a_call__.6} parent=35 // pred_region
        %p909 = scmp.lt.s32.totalorder %s19, 1
        %s910 = scalar_select %p909, %s19, 1
        %p911 = scmp.lt.s32.totalorder %s20, 0
        %s912 = scalar_select %p911, %s20, 0
        %s913 = smul.addr %s910, 8
        %s914 = sadd.s32 %s912, %s913
        %s915 = smul.addr %s914, 4
        %s916 = scalar_lea.vmem %s2, %s915
      $region40: #{a_call__.6} parent=35 // pred_fallthru
        _
    $region36: #{a_call__.6} parent=5 // pred_fallthru
      _
  $region6: #{a_call__.6} parent=0 // loop_footer
    %s12 = sadd.s32 1, %s8
  $region7: #{a_call__.6} parent=0 // loop_footer_branch
    %7 = sbr.rel target = $region3
  $region8: #{a_call__.6} parent=0 // loop_exit
    _

// kernel: a_call__.7
$region0: #{a_call__.7}
  #allocation0 [shape = 'u32[]', space=smem, size = 0x4, offset = 0x4, fixed_abs, tag = 'smem constant byte address 0x4 - core index']
  #allocation1 [shape = 'u32[144,128]{1,0:T(1,128)}', space=vmem, size = 0x12000, scoped, tag = 'internal scratch']
  %s0 = inlined_call_operand.vmem [shape: bf16[2,5,5,128], index: 0, kind: input, shape index: {}]
  %s1 = inlined_call_operand.vmem [shape: bf16[512,64], index: 1, kind: input, shape index: {}]
  %s2 = inlined_call_operand.vmem [shape: bf16[2,16,64], index: 2, kind: output, shape index: {}]
  %s3 = sld [smem:[#allocation0]]
  $region41: #{a_call__.7} parent=0
    _
  %s5 = ssub.s32 1, %s3
  %s6 = scalar_select 0, %s5, %s3
  loop: start=0, step=1, limit=4
  $region2: #{a_call__.7} parent=0 // loop_pre_header
    _
  $region3: #{a_call__.7} parent=0 // loop_header
    %s8 = sphi 0, %s12
    %p9 = scmp.ge.s32.totalorder %s8, 4
    %s15 = sphi 0, %s27
    %s16 = sphi 0, %s23
    %s17 = sphi 0, %s15
    %s18 = sphi 0, %s16
    %s19 = sphi 0, %s17
    %s20 = sphi 0, %s18
    %s30 = sphi 0, %s32
    %s33 = sphi 0, %s30
    %s34 = sphi 0, %s33
    %s50 = sphi 0, %s34
    %s56 = sphi 0, %s58
    %s59 = sphi 0, %s56
    %s60 = sphi 0, %s59
    %s76 = sphi 0, %s60
    %s84 = sphi 0, %s86
    %s87 = sphi 0, %s84
    %s88 = sphi 0, %s87
    %s104 = sphi 0, %s88
  $region4: #{a_call__.7} parent=0 // loop_header_branch
    %11 = sbr.rel (%p9) target = $region8
  $region5: #{a_call__.7} parent=0 // loop_body
    %s13 = ssub.s32 %s8, 1
    %s14 = ssub.s32 %s8, 2
    %s21 = sadd.s32 1, %s16
    %p22 = scmp.ge.s32.totalorder %s21, 1
    %s23 = scalar_select %p22, 0, %s21
    %s24 = sadd.s32 1, %s15
    %s25 = scalar_select %p22, %s24, %s15
    %p26 = scmp.ge.s32.totalorder %s25, 2
    %s27 = scalar_select %p26, 0, %s25
    %s28 = ssub.s32 %s15, %s27
    %p29 = scmp.eq.s32.totalorder %s28, 0
    %s31 = sadd.s32 %s30, 1
    %s32 = scalar_select %p29, %s30, %s31
    %p35 = pneg %p29
    %p36 = scmp.eq.s32.totalorder %s8, 1
    %p37 = por %p35, %p36
    %p38 = scmp.ne.s32.totalorder %s30, %s33
    %p39 = scmp.eq.s32.totalorder %s8, 0
    %p40 = por %p38, %p39
    %p41 = scmp.ne.s32.totalorder %s30, %s33
    %p42 = scmp.eq.s32.totalorder %s13, 1
    %p43 = por %p41, %p42
    %p44 = scmp.ne.s32.totalorder %s33, %s34
    %p45 = scmp.eq.s32.totalorder %s13, 0
    %p46 = por %p44, %p45
    %p47 = scmp.ne.s32.totalorder %s33, %s34
    %p48 = scmp.eq.s32.totalorder %s14, 1
    %p49 = por %p47, %p48
    %p51 = scmp.ne.s32.totalorder %s34, %s50
    %p52 = scmp.eq.s32.totalorder %s14, 0
    %p53 = por %p51, %p52
    %s54 = ssub.s32 %s16, %s23
    %p55 = scmp.eq.s32.totalorder %s54, 0
    %s57 = sadd.s32 %s56, 1
    %s58 = scalar_select %p55, %s56, %s57
    %p61 = pneg %p55
    %p62 = scmp.eq.s32.totalorder %s8, 1
    %p63 = por %p61, %p62
    %p64 = scmp.ne.s32.totalorder %s56, %s59
    %p65 = scmp.eq.s32.totalorder %s8, 0
    %p66 = por %p64, %p65
    %p67 = scmp.ne.s32.totalorder %s56, %s59
    %p68 = scmp.eq.s32.totalorder %s13, 1
    %p69 = por %p67, %p68
    %p70 = scmp.ne.s32.totalorder %s59, %s60
    %p71 = scmp.eq.s32.totalorder %s13, 0
    %p72 = por %p70, %p71
    %p73 = scmp.ne.s32.totalorder %s59, %s60
    %p74 = scmp.eq.s32.totalorder %s14, 1
    %p75 = por %p73, %p74
    %p77 = scmp.ne.s32.totalorder %s60, %s76
    %p78 = scmp.eq.s32.totalorder %s14, 0
    %p79 = por %p77, %p78
    %s80 = ssub.s32 %s15, %s27
    %s81 = ssub.s32 %s16, %s23
    %s82 = sor.u32 %s80, %s81
    %p83 = scmp.eq.s32.totalorder %s82, 0
    %s85 = sadd.s32 %s84, 1
    %s86 = scalar_select %p83, %s84, %s85
    %p89 = pneg %p83
    %p90 = scmp.eq.s32.totalorder %s8, 1
    %p91 = por %p89, %p90
    %p92 = scmp.ne.s32.totalorder %s84, %s87
    %p93 = scmp.eq.s32.totalorder %s8, 0
    %p94 = por %p92, %p93
    %p95 = scmp.ne.s32.totalorder %s84, %s87
    %p96 = scmp.eq.s32.totalorder %s13, 1
    %p97 = por %p95, %p96
    %p98 = scmp.ne.s32.totalorder %s87, %s88
    %p99 = scmp.eq.s32.totalorder %s13, 0
    %p100 = por %p98, %p99
    %p101 = scmp.ne.s32.totalorder %s87, %s88
    %p102 = scmp.eq.s32.totalorder %s14, 1
    %p103 = por %p101, %p102
    %p105 = scmp.ne.s32.totalorder %s88, %s104
    %p106 = scmp.eq.s32.totalorder %s14, 0
    %p107 = por %p105, %p106
    %p108 = scmp.le.s32.totalorder 1, %s8
    %p109 = scmp.lt.s32.totalorder %s8, 3
    %p110 = pnand %p108, %p109
    %p111 = pneg %p110
    // Predicated region
    $region9: #{a_call__.7} parent=5 // pred_check
      _
    $region10: #{a_call__.7} parent=5 // pred_check_branch
      %113 = sbr.rel (%p110) target = $region12
    $region11: #{a_call__.7} parent=5 // pred_region
      %s114 = ssub.s32 %s8, 1
      // Predicated region
      $region13: #{a_call__.7} parent=11 // pred_check
        %p115 = pneg %p72
      $region14: #{a_call__.7} parent=11 // pred_check_branch
        %117 = sbr.rel (%p115) target = $region16
      $region15: #{a_call__.7} parent=11 // pred_region
        %p118 = scmp.lt.s32.totalorder %s18, 0
        %s119 = scalar_select %p118, %s18, 0
        %s120 = smul.addr %s119, 4
        %s121 = scalar_lea.vmem %s1, %s120
      $region16: #{a_call__.7} parent=11 // pred_fallthru
        _
    $region12: #{a_call__.7} parent=5 // pred_fallthru
      _
    %p122 = scmp.lt.s32.totalorder %s8, 2
    // Predicated region
    $region17: #{a_call__.7} parent=5 // pred_check
      %p123 = pneg %p122
    $region18: #{a_call__.7} parent=5 // pred_check_branch
      %125 = sbr.rel (%p123) target = $region20
    $region19: #{a_call__.7} parent=5 // pred_region
      // Predicated region
      $region21: #{a_call__.7} parent=19 // pred_check
        %p126 = pneg %p40
      $region22: #{a_call__.7} parent=19 // pred_check_branch
        %128 = sbr.rel (%p126) target = $region24
      $region23: #{a_call__.7} parent=19 // pred_region
        %p129 = scmp.lt.s32.totalorder %s15, 1
        %s130 = scalar_select %p129, %s15, 1
        %s131 = smul.addr %s130, 5
        %s132 = smul.addr %s131, 4
        %s133 = scalar_lea.vmem %s0, %s132
      $region24: #{a_call__.7} parent=19 // pred_fallthru
        _
    $region20: #{a_call__.7} parent=5 // pred_fallthru
      _
    %p134 = scmp.le.s32.totalorder 1, %s8
    %p135 = scmp.lt.s32.totalorder %s8, 3
    %p136 = pnand %p134, %p135
    %p137 = pneg %p136
    // Predicated region
    $region25: #{a_call__.7} parent=5 // pred_check
      _
    $region26: #{a_call__.7} parent=5 // pred_check_branch
      %139 = sbr.rel (%p136) target = $region28
    $region27: #{a_call__.7} parent=5 // pred_region
      %s140 = ssub.s32 %s8, 1
      %p141 = scmp.lt.s32.totalorder %s17, 1
      %s142 = scalar_select %p141, %s17, 1
      %s143 = smul.addr %s142, 5
      %s144 = smul.addr %s143, 4
      %s145 = scalar_lea.vmem %s0, %s144
      %p146 = pneg %p46
      %p147 = pneg %p43
      %p148 = scmp.lt.s32.totalorder %s18, 0
      %s149 = scalar_select %p148, %s18, 0
      %s150 = smul.addr %s149, 4
      %s151 = scalar_lea.vmem %s1, %s150
      %p152 = pneg %p72
      %p153 = pneg %p69
      %p154 = pneg %p100
      %p155 = pneg %p97
      %p156 = scmp.lt.s32.totalorder %s17, 1
      %s157 = scalar_select %p156, %s17, 1
      %p158 = scmp.lt.s32.totalorder %s18, 0
      %s159 = scalar_select %p158, %s18, 0
      %s160 = smul.addr %s157, 2
      %s161 = sadd.s32 %s159, %s160
      %s162 = smul.addr %s161, 4
      %s163 = scalar_lea.vmem %s2, %s162
      %p164 = scmp.lt.s32.totalorder %s17, 1
      %s165 = scalar_select %p164, %s17, 1
      %s166 = smul.addr %s165, 5
      %s167 = smul.addr %s166, 4
      %s168 = scalar_lea.vmem %s0, %s167
      %p169 = scmp.lt.s32.totalorder %s18, 0
      %s170 = scalar_select %p169, %s18, 0
      %s171 = smul.addr %s170, 4
      %s172 = scalar_lea.vmem %s1, %s171
      %p173 = scmp.lt.s32.totalorder %s17, 1
      %s174 = scalar_select %p173, %s17, 1
      %p175 = scmp.lt.s32.totalorder %s18, 0
      %s176 = scalar_select %p175, %s18, 0
      %s177 = smul.addr %s174, 2
      %s178 = sadd.s32 %s176, %s177
      %s179 = smul.addr %s178, 4
      %s180 = scalar_lea.vmem %s2, %s179
      %v182 = vld [vmem:[%s168] sm:$0x7]
      %v183 = vld [vmem:[%s168 + $0x4] sm:$0x7]
      %v184 = vld [vmem:[%s168 + $0x8] sm:$0x7]
      %v185 = vld [vmem:[%s168 + $0xc] sm:$0x7]
      %v186 = vld [vmem:[%s168 + $0x10] sm:$0x7]
      %v187 = vld [vmem:[%s172] sm:$0xf]
      %v188 = vld [vmem:[%s172 + $0x4] sm:$0xf]
      %v189 = vld [vmem:[%s172 + $0x8] sm:$0xf]
      %v190 = vld [vmem:[%s172 + $0xc] sm:$0xf]
      %v191 = vld [vmem:[%s172 + $0x10] sm:$0xf]
      %v192 = vld [vmem:[%s172 + $0x14] sm:$0xf]
      %v193 = vld [vmem:[%s172 + $0x18] sm:$0xf]
      %v194 = vld [vmem:[%s172 + $0x1c] sm:$0xf]
      %v195 = vld [vmem:[%s172 + $0x20] sm:$0xf]
      %v196 = vld [vmem:[%s172 + $0x24] sm:$0xf]
      %v197 = vld [vmem:[%s172 + $0x28] sm:$0xf]
      %v198 = vld [vmem:[%s172 + $0x2c] sm:$0xf]
      %v199 = vld [vmem:[%s172 + $0x30] sm:$0xf]
      %v200 = vld [vmem:[%s172 + $0x34] sm:$0xf]
      %v201 = vld [vmem:[%s172 + $0x38] sm:$0xf]
      %v202 = vld [vmem:[%s172 + $0x3c] sm:$0xf]
      %v203 = vld [vmem:[%s172 + $0x40] sm:$0xf]
      %v204 = vld [vmem:[%s172 + $0x44] sm:$0xf]
      %v205 = vld [vmem:[%s172 + $0x48] sm:$0xf]
      %v206 = vld [vmem:[%s172 + $0x4c] sm:$0xf]
      %v207 = vld [vmem:[%s172 + $0x50] sm:$0xf]
      %v208 = vld [vmem:[%s172 + $0x54] sm:$0xf]
      %v209 = vld [vmem:[%s172 + $0x58] sm:$0xf]
      %v210 = vld [vmem:[%s172 + $0x5c] sm:$0xf]
      %v211 = vld [vmem:[%s172 + $0x60] sm:$0xf]
      %v212 = vld [vmem:[%s172 + $0x64] sm:$0xf]
      %v213 = vld [vmem:[%s172 + $0x68] sm:$0xf]
      %v214 = vld [vmem:[%s172 + $0x6c] sm:$0xf]
      %v215 = vld [vmem:[%s172 + $0x70] sm:$0xf]
      %v216 = vld [vmem:[%s172 + $0x74] sm:$0xf]
      %v217 = vld [vmem:[%s172 + $0x78] sm:$0xf]
      %v218 = vld [vmem:[%s172 + $0x7c] sm:$0xf]
      %v219 = vld [vmem:[%s172 + $0x80] sm:$0xf]
      %v220 = vld [vmem:[%s172 + $0x84] sm:$0xf]
      %v221 = vld [vmem:[%s172 + $0x88] sm:$0xf]
      %v222 = vld [vmem:[%s172 + $0x8c] sm:$0xf]
      %v223 = vld [vmem:[%s172 + $0x90] sm:$0xf]
      %v224 = vld [vmem:[%s172 + $0x94] sm:$0xf]
      %v225 = vld [vmem:[%s172 + $0x98] sm:$0xf]
      %v226 = vld [vmem:[%s172 + $0x9c] sm:$0xf]
      %v227 = vld [vmem:[%s172 + $0xa0] sm:$0xf]
      %v228 = vld [vmem:[%s172 + $0xa4] sm:$0xf]
      %v229 = vld [vmem:[%s172 + $0xa8] sm:$0xf]
      %v230 = vld [vmem:[%s172 + $0xac] sm:$0xf]
      %v231 = vld [vmem:[%s172 + $0xb0] sm:$0xf]
      %v232 = vld [vmem:[%s172 + $0xb4] sm:$0xf]
      %v233 = vld [vmem:[%s172 + $0xb8] sm:$0xf]
      %v234 = vld [vmem:[%s172 + $0xbc] sm:$0xf]
      %v235 = vld [vmem:[%s172 + $0xc0] sm:$0xf]
      %v236 = vld [vmem:[%s172 + $0xc4] sm:$0xf]
      %v237 = vld [vmem:[%s172 + $0xc8] sm:$0xf]
      %v238 = vld [vmem:[%s172 + $0xcc] sm:$0xf]
      %v239 = vld [vmem:[%s172 + $0xd0] sm:$0xf]
      %v240 = vld [vmem:[%s172 + $0xd4] sm:$0xf]
      %v241 = vld [vmem:[%s172 + $0xd8] sm:$0xf]
      %v242 = vld [vmem:[%s172 + $0xdc] sm:$0xf]
      %v243 = vld [vmem:[%s172 + $0xe0] sm:$0xf]
      %v244 = vld [vmem:[%s172 + $0xe4] sm:$0xf]
      %v245 = vld [vmem:[%s172 + $0xe8] sm:$0xf]
      %v246 = vld [vmem:[%s172 + $0xec] sm:$0xf]
      %v247 = vld [vmem:[%s172 + $0xf0] sm:$0xf]
      %v248 = vld [vmem:[%s172 + $0xf4] sm:$0xf]
      %v249 = vld [vmem:[%s172 + $0xf8] sm:$0xf]
      %v250 = vld [vmem:[%s172 + $0xfc] sm:$0xf]
      %v256 = vunpack.c.l.s4 1983009808
      %v257 = vunpack.c.0.s8 %v256
      %v258 = vlaneseq
      %v259 = vshrl.u32 %v258, 7
      %v260 = vsub.s32 %v257, %v259
      %v261 = vrot.slane %v182, %v260
      %v262 = vcombine.high %v261, %v261
      %v264 = vunpack.c.l.s4 1983009808
      %v265 = vunpack.c.0.s8 %v264
      %v266 = vlaneseq
      %v267 = vshrl.u32 %v266, 7
      %v268 = vsub.s32 %v265, %v267
      %v269 = vrot.slane %v183, %v268
      %v270 = vcombine.high %v269, %v269
      %v272 = vunpack.c.l.s4 1983009808
      %v273 = vunpack.c.0.s8 %v272
      %v274 = vlaneseq
      %v275 = vshrl.u32 %v274, 7
      %v276 = vsub.s32 %v273, %v275
      %v277 = vrot.slane %v184, %v276
      %v278 = vcombine.high %v277, %v277
      %v280 = vunpack.c.l.s4 1983009808
      %v281 = vunpack.c.0.s8 %v280
      %v282 = vlaneseq
      %v283 = vshrl.u32 %v282, 7
      %v284 = vsub.s32 %v281, %v283
      %v285 = vrot.slane %v185, %v284
      %v286 = vcombine.high %v285, %v285
      %vm287 = vsmask.f32 1280
      %vm288 = vsmask.f32 3336
      %vm289 = vmor %vm287, %vm288
      %vm290 = vsmask.f32 5392
      %vm291 = vmor %vm289, %vm290
      %vm292 = vsmask.f32 7448
      %vm293 = vmor %vm291, %vm292
      %v295 = vshrl.u32 %v261, 16
      %v297 = vrot.slane %v295, 6
      %v298 = vshll.u32 %v261, 16
      %v300 = vrot.slane %v298, 7
      %v301 = vor.u32 %v297, %v300
      %v302 = vrot.slane %v301, 2
      %v304 = vshll.u32 %v262, 16
      %v306 = vrot.slane %v304, 7
      %v307 = vsel %vm293, %v302, %v306
      %v309 = vshrl.u32 %v269, 16
      %v311 = vrot.slane %v309, 6
      %v312 = vshll.u32 %v269, 16
      %v314 = vrot.slane %v312, 7
      %v315 = vor.u32 %v311, %v314
      %v316 = vrot.slane %v315, 2
      %v318 = vshll.u32 %v270, 16
      %v320 = vrot.slane %v318, 7
      %v321 = vsel %vm293, %v316, %v320
      %v323 = vshrl.u32 %v277, 16
      %v325 = vrot.slane %v323, 6
      %v326 = vshll.u32 %v277, 16
      %v328 = vrot.slane %v326, 7
      %v329 = vor.u32 %v325, %v328
      %v330 = vrot.slane %v329, 2
      %v332 = vshll.u32 %v278, 16
      %v334 = vrot.slane %v332, 7
      %v335 = vsel %vm293, %v330, %v334
      %v337 = vshrl.u32 %v285, 16
      %v339 = vrot.slane %v337, 6
      %v340 = vshll.u32 %v285, 16
      %v342 = vrot.slane %v340, 7
      %v343 = vor.u32 %v339, %v342
      %v344 = vrot.slane %v343, 2
      %v346 = vshll.u32 %v286, 16
      %v348 = vrot.slane %v346, 7
      %v349 = vsel %vm293, %v344, %v348
      %v350 = vcombine.low %v307, %v321
      %v351 = vcombine.low %v335, %v349
      %v353 = vunpack.c.l.s4 1983009808
      %v354 = vunpack.c.0.s8 %v353
      %v355 = vlaneseq
      %v356 = vshrl.u32 %v355, 7
      %v357 = vsub.s32 %v354, %v356
      %v358 = vrot.slane %v350, %v357
      %v360 = vunpack.c.l.s4 1983009808
      %v361 = vunpack.c.0.s8 %v360
      %v362 = vlaneseq
      %v363 = vshrl.u32 %v362, 7
      %v364 = vsub.s32 %v361, %v363
      %v365 = vrot.slane %v351, %v364
      %v366 = vcombine.low %v358, %v365
      %v384 = vunpack.c.l.b16 %v203
      %v385 = vunpack.c.l.b16 %v204
      %v386 = vunpack.c.l.b16 %v205
      %v387 = vunpack.c.l.b16 %v206
      %v388 = vunpack.c.l.b16 %v207
      %v389 = vunpack.c.l.b16 %v208
      %v390 = vunpack.c.l.b16 %v209
      %v391 = vunpack.c.l.b16 %v210
      %v392 = vunpack.c.l.b16 %v211
      %v393 = vunpack.c.l.b16 %v212
      %v394 = vunpack.c.l.b16 %v213
      %v395 = vunpack.c.l.b16 %v214
      %v396 = vunpack.c.l.b16 %v215
      %v397 = vunpack.c.l.b16 %v216
      %v398 = vunpack.c.l.b16 %v217
      %v399 = vunpack.c.l.b16 %v218
      %v400 = vpack.c.b16 %v385, %v384
      %v401 = vpack.c.b16 %v387, %v386
      %v402 = vpack.c.b16 %v389, %v388
      %v403 = vpack.c.b16 %v391, %v390
      %v404 = vpack.c.b16 %v393, %v392
      %v405 = vpack.c.b16 %v395, %v394
      %v406 = vpack.c.b16 %v397, %v396
      %v407 = vpack.c.b16 %v399, %v398
      %416 = vmatprep.subr.bf16.mxu0 0
      %417 = vmatpush1.bf16.msra.mxu0 %v407
      %418 = vmatprep.subr.bf16.mxu0 0
      %419 = vmatpush1.bf16.msra.mxu0 %v406
      %420 = vmatprep.subr.bf16.mxu0 0
      %421 = vmatpush1.bf16.msra.mxu0 %v405
      %422 = vmatprep.subr.bf16.mxu0 0
      %423 = vmatpush1.bf16.msra.mxu0 %v404
      %424 = vmatprep.subr.bf16.mxu0 0
      %425 = vmatpush1.bf16.msra.mxu0 %v403
      %426 = vmatprep.subr.bf16.mxu0 0
      %427 = vmatpush1.bf16.msra.mxu0 %v402
      %428 = vmatprep.subr.bf16.mxu0 0
      %429 = vmatpush1.bf16.msra.mxu0 %v401
      %430 = vmatprep.subr.bf16.mxu0 0
      %431 = vmatpush1.bf16.msra.mxu0 %v400
      %432 = vmatprep.subr.bf16.mxu0 0
      %433 = vmatpush2.bf16.msra.mxu0 0
      %434 = vmatprep.subr.bf16.mxu0 0
      %435 = vmatpush2.bf16.msra.mxu0 0
      %436 = vmatprep.subr.bf16.mxu0 0
      %437 = vmatpush2.bf16.msra.mxu0 0
      %438 = vmatprep.subr.bf16.mxu0 0
      %439 = vmatpush2.bf16.msra.mxu0 0
      %440 = vmatprep.subr.bf16.mxu0 0
      %441 = vmatpush2.bf16.msra.mxu0 0
      %442 = vmatprep.subr.bf16.mxu0 0
      %443 = vmatpush2.bf16.msra.mxu0 0
      %444 = vmatprep.subr.bf16.mxu0 0
      %445 = vmatpush2.bf16.msra.mxu0 0
      %446 = vmatprep.subr.bf16.mxu0 0
      %447 = vmatpush2.bf16.msra.mxu0 0
      %448 = vmatprep.mubr.bf16.mxu0 0
      %449 = vmatmul.mubr.bf16.gmra.mxu0 %v366
      %v450 = vpop.f32.mrf.mxu0
      %v451 = vadd.f32 0.0, %v450
      %v452 = vpop.f32.mrf.mxu0
      %v453 = vpop.f32.mrf.mxu0
      %v454 = vadd.f32 0.0, %v453
      %v455 = vpop.f32.mrf.mxu0
      %456 = vdwg.mxu0
      %v457 = vcombine.low %v182, %v183
      %v458 = vcombine.low %v184, %v185
      %v460 = vunpack.c.l.s4 1983009808
      %v461 = vunpack.c.0.s8 %v460
      %v462 = vlaneseq
      %v463 = vshrl.u32 %v462, 7
      %v464 = vsub.s32 %v461, %v463
      %v465 = vrot.slane %v457, %v464
      %v467 = vunpack.c.l.s4 1983009808
      %v468 = vunpack.c.0.s8 %v467
      %v469 = vlaneseq
      %v470 = vshrl.u32 %v469, 7
      %v471 = vsub.s32 %v468, %v470
      %v472 = vrot.slane %v458, %v471
      %v473 = vcombine.low %v465, %v472
      %v491 = vunpack.c.l.b16 %v187
      %v492 = vunpack.c.l.b16 %v188
      %v493 = vunpack.c.l.b16 %v189
      %v494 = vunpack.c.l.b16 %v190
      %v495 = vunpack.c.l.b16 %v191
      %v496 = vunpack.c.l.b16 %v192
      %v497 = vunpack.c.l.b16 %v193
      %v498 = vunpack.c.l.b16 %v194
      %v499 = vunpack.c.l.b16 %v195
      %v500 = vunpack.c.l.b16 %v196
      %v501 = vunpack.c.l.b16 %v197
      %v502 = vunpack.c.l.b16 %v198
      %v503 = vunpack.c.l.b16 %v199
      %v504 = vunpack.c.l.b16 %v200
      %v505 = vunpack.c.l.b16 %v201
      %v506 = vunpack.c.l.b16 %v202
      %v507 = vpack.c.b16 %v492, %v491
      %v508 = vpack.c.b16 %v494, %v493
      %v509 = vpack.c.b16 %v496, %v495
      %v510 = vpack.c.b16 %v498, %v497
      %v511 = vpack.c.b16 %v500, %v499
      %v512 = vpack.c.b16 %v502, %v501
      %v513 = vpack.c.b16 %v504, %v503
      %v514 = vpack.c.b16 %v506, %v505
      %523 = vmatprep.subr.bf16.mxu0 0
      %524 = vmatpush1.bf16.msra.mxu0 %v514
      %525 = vmatprep.subr.bf16.mxu0 0
      %526 = vmatpush1.bf16.msra.mxu0 %v513
      %527 = vmatprep.subr.bf16.mxu0 0
      %528 = vmatpush1.bf16.msra.mxu0 %v512
      %529 = vmatprep.subr.bf16.mxu0 0
      %530 = vmatpush1.bf16.msra.mxu0 %v511
      %531 = vmatprep.subr.bf16.mxu0 0
      %532 = vmatpush1.bf16.msra.mxu0 %v510
      %533 = vmatprep.subr.bf16.mxu0 0
      %534 = vmatpush1.bf16.msra.mxu0 %v509
      %535 = vmatprep.subr.bf16.mxu0 0
      %536 = vmatpush1.bf16.msra.mxu0 %v508
      %537 = vmatprep.subr.bf16.mxu0 0
      %538 = vmatpush1.bf16.msra.mxu0 %v507
      %539 = vmatprep.subr.bf16.mxu0 0
      %540 = vmatpush2.bf16.msra.mxu0 0
      %541 = vmatprep.subr.bf16.mxu0 0
      %542 = vmatpush2.bf16.msra.mxu0 0
      %543 = vmatprep.subr.bf16.mxu0 0
      %544 = vmatpush2.bf16.msra.mxu0 0
      %545 = vmatprep.subr.bf16.mxu0 0
      %546 = vmatpush2.bf16.msra.mxu0 0
      %547 = vmatprep.subr.bf16.mxu0 0
      %548 = vmatpush2.bf16.msra.mxu0 0
      %549 = vmatprep.subr.bf16.mxu0 0
      %550 = vmatpush2.bf16.msra.mxu0 0
      %551 = vmatprep.subr.bf16.mxu0 0
      %552 = vmatpush2.bf16.msra.mxu0 0
      %553 = vmatprep.subr.bf16.mxu0 0
      %554 = vmatpush2.bf16.msra.mxu0 0
      %555 = vmatprep.mubr.bf16.mxu0 0
      %556 = vmatmul.mubr.bf16.gmra.mxu0 %v473
      %v557 = vpop.f32.mrf.mxu0
      %v558 = vadd.f32 %v451, %v557
      %v559 = vpop.f32.mrf.mxu0
      %v560 = vpop.f32.mrf.mxu0
      %v561 = vadd.f32 %v454, %v560
      %v562 = vpop.f32.mrf.mxu0
      %563 = vdwg.mxu0
      %v565 = vcombine.low %v183, %v184
      %v566 = vcombine.low %v185, %v186
      %v568 = vunpack.c.l.s4 1983009808
      %v569 = vunpack.c.0.s8 %v568
      %v570 = vlaneseq
      %v571 = vshrl.u32 %v570, 7
      %v572 = vsub.s32 %v569, %v571
      %v573 = vrot.slane %v565, %v572
      %v575 = vunpack.c.l.s4 1983009808
      %v576 = vunpack.c.0.s8 %v575
      %v577 = vlaneseq
      %v578 = vshrl.u32 %v577, 7
      %v579 = vsub.s32 %v576, %v578
      %v580 = vrot.slane %v566, %v579
      %v581 = vcombine.low %v573, %v580
      %v599 = vunpack.c.l.b16 %v219
      %v600 = vunpack.c.l.b16 %v220
      %v601 = vunpack.c.l.b16 %v221
      %v602 = vunpack.c.l.b16 %v222
      %v603 = vunpack.c.l.b16 %v223
      %v604 = vunpack.c.l.b16 %v224
      %v605 = vunpack.c.l.b16 %v225
      %v606 = vunpack.c.l.b16 %v226
      %v607 = vunpack.c.l.b16 %v227
      %v608 = vunpack.c.l.b16 %v228
      %v609 = vunpack.c.l.b16 %v229
      %v610 = vunpack.c.l.b16 %v230
      %v611 = vunpack.c.l.b16 %v231
      %v612 = vunpack.c.l.b16 %v232
      %v613 = vunpack.c.l.b16 %v233
      %v614 = vunpack.c.l.b16 %v234
      %v615 = vpack.c.b16 %v600, %v599
      %v616 = vpack.c.b16 %v602, %v601
      %v617 = vpack.c.b16 %v604, %v603
      %v618 = vpack.c.b16 %v606, %v605
      %v619 = vpack.c.b16 %v608, %v607
      %v620 = vpack.c.b16 %v610, %v609
      %v621 = vpack.c.b16 %v612, %v611
      %v622 = vpack.c.b16 %v614, %v613
      %631 = vmatprep.subr.bf16.mxu0 0
      %632 = vmatpush1.bf16.msra.mxu0 %v622
      %633 = vmatprep.subr.bf16.mxu0 0
      %634 = vmatpush1.bf16.msra.mxu0 %v621
      %635 = vmatprep.subr.bf16.mxu0 0
      %636 = vmatpush1.bf16.msra.mxu0 %v620
      %637 = vmatprep.subr.bf16.mxu0 0
      %638 = vmatpush1.bf16.msra.mxu0 %v619
      %639 = vmatprep.subr.bf16.mxu0 0
      %640 = vmatpush1.bf16.msra.mxu0 %v618
      %641 = vmatprep.subr.bf16.mxu0 0
      %642 = vmatpush1.bf16.msra.mxu0 %v617
      %643 = vmatprep.subr.bf16.mxu0 0
      %644 = vmatpush1.bf16.msra.mxu0 %v616
      %645 = vmatprep.subr.bf16.mxu0 0
      %646 = vmatpush1.bf16.msra.mxu0 %v615
      %647 = vmatprep.subr.bf16.mxu0 0
      %648 = vmatpush2.bf16.msra.mxu0 0
      %649 = vmatprep.subr.bf16.mxu0 0
      %650 = vmatpush2.bf16.msra.mxu0 0
      %651 = vmatprep.subr.bf16.mxu0 0
      %652 = vmatpush2.bf16.msra.mxu0 0
      %653 = vmatprep.subr.bf16.mxu0 0
      %654 = vmatpush2.bf16.msra.mxu0 0
      %655 = vmatprep.subr.bf16.mxu0 0
      %656 = vmatpush2.bf16.msra.mxu0 0
      %657 = vmatprep.subr.bf16.mxu0 0
      %658 = vmatpush2.bf16.msra.mxu0 0
      %659 = vmatprep.subr.bf16.mxu0 0
      %660 = vmatpush2.bf16.msra.mxu0 0
      %661 = vmatprep.subr.bf16.mxu0 0
      %662 = vmatpush2.bf16.msra.mxu0 0
      %663 = vmatprep.mubr.bf16.mxu0 0
      %664 = vmatmul.mubr.bf16.gmra.mxu0 %v581
      %v665 = vpop.f32.mrf.mxu0
      %v666 = vadd.f32 0.0, %v665
      %v667 = vpop.f32.mrf.mxu0
      %v668 = vpop.f32.mrf.mxu0
      %v669 = vadd.f32 0.0, %v668
      %v670 = vpop.f32.mrf.mxu0
      %671 = vdwg.mxu0
      %v672 = vadd.f32 %v558, %v666
      %v673 = vadd.f32 %v561, %v669
      %v675 = vunpack.c.l.s4 1983009808
      %v676 = vunpack.c.0.s8 %v675
      %v677 = vlaneseq
      %v678 = vshrl.u32 %v677, 7
      %v679 = vsub.s32 %v676, %v678
      %v680 = vrot.slane %v186, %v679
      %v681 = vcombine.high %v680, %v680
      %v683 = vshrl.u32 %v680, 16
      %v685 = vrot.slane %v683, 6
      %v686 = vshll.u32 %v680, 16
      %v688 = vrot.slane %v686, 7
      %v689 = vor.u32 %v685, %v688
      %v690 = vrot.slane %v689, 2
      %v692 = vshll.u32 %v681, 16
      %v694 = vrot.slane %v692, 7
      %v695 = vsel %vm293, %v690, %v694
      %v696 = vcombine.low %v321, %v335
      %v697 = vcombine.low %v349, %v695
      %v699 = vunpack.c.l.s4 1983009808
      %v700 = vunpack.c.0.s8 %v699
      %v701 = vlaneseq
      %v702 = vshrl.u32 %v701, 7
      %v703 = vsub.s32 %v700, %v702
      %v704 = vrot.slane %v696, %v703
      %v706 = vunpack.c.l.s4 1983009808
      %v707 = vunpack.c.0.s8 %v706
      %v708 = vlaneseq
      %v709 = vshrl.u32 %v708, 7
      %v710 = vsub.s32 %v707, %v709
      %v711 = vrot.slane %v697, %v710
      %v712 = vcombine.low %v704, %v711
      %v730 = vunpack.c.l.b16 %v235
      %v731 = vunpack.c.l.b16 %v236
      %v732 = vunpack.c.l.b16 %v237
      %v733 = vunpack.c.l.b16 %v238
      %v734 = vunpack.c.l.b16 %v239
      %v735 = vunpack.c.l.b16 %v240
      %v736 = vunpack.c.l.b16 %v241
      %v737 = vunpack.c.l.b16 %v242
      %v738 = vunpack.c.l.b16 %v243
      %v739 = vunpack.c.l.b16 %v244
      %v740 = vunpack.c.l.b16 %v245
      %v741 = vunpack.c.l.b16 %v246
      %v742 = vunpack.c.l.b16 %v247
      %v743 = vunpack.c.l.b16 %v248
      %v744 = vunpack.c.l.b16 %v249
      %v745 = vunpack.c.l.b16 %v250
      %v746 = vpack.c.b16 %v731, %v730
      %v747 = vpack.c.b16 %v733, %v732
      %v748 = vpack.c.b16 %v735, %v734
      %v749 = vpack.c.b16 %v737, %v736
      %v750 = vpack.c.b16 %v739, %v738
      %v751 = vpack.c.b16 %v741, %v740
      %v752 = vpack.c.b16 %v743, %v742
      %v753 = vpack.c.b16 %v745, %v744
      %762 = vmatprep.subr.bf16.mxu0 0
      %763 = vmatpush1.bf16.msra.mxu0 %v753
      %764 = vmatprep.subr.bf16.mxu0 0
      %765 = vmatpush1.bf16.msra.mxu0 %v752
      %766 = vmatprep.subr.bf16.mxu0 0
      %767 = vmatpush1.bf16.msra.mxu0 %v751
      %768 = vmatprep.subr.bf16.mxu0 0
      %769 = vmatpush1.bf16.msra.mxu0 %v750
      %770 = vmatprep.subr.bf16.mxu0 0
      %771 = vmatpush1.bf16.msra.mxu0 %v749
      %772 = vmatprep.subr.bf16.mxu0 0
      %773 = vmatpush1.bf16.msra.mxu0 %v748
      %774 = vmatprep.subr.bf16.mxu0 0
      %775 = vmatpush1.bf16.msra.mxu0 %v747
      %776 = vmatprep.subr.bf16.mxu0 0
      %777 = vmatpush1.bf16.msra.mxu0 %v746
      %778 = vmatprep.subr.bf16.mxu0 0
      %779 = vmatpush2.bf16.msra.mxu0 0
      %780 = vmatprep.subr.bf16.mxu0 0
      %781 = vmatpush2.bf16.msra.mxu0 0
      %782 = vmatprep.subr.bf16.mxu0 0
      %783 = vmatpush2.bf16.msra.mxu0 0
      %784 = vmatprep.subr.bf16.mxu0 0
      %785 = vmatpush2.bf16.msra.mxu0 0
      %786 = vmatprep.subr.bf16.mxu0 0
      %787 = vmatpush2.bf16.msra.mxu0 0
      %788 = vmatprep.subr.bf16.mxu0 0
      %789 = vmatpush2.bf16.msra.mxu0 0
      %790 = vmatprep.subr.bf16.mxu0 0
      %791 = vmatpush2.bf16.msra.mxu0 0
      %792 = vmatprep.subr.bf16.mxu0 0
      %793 = vmatpush2.bf16.msra.mxu0 0
      %794 = vmatprep.mubr.bf16.mxu0 0
      %795 = vmatmul.mubr.bf16.gmra.mxu0 %v712
      %v796 = vpop.f32.mrf.mxu0
      %v797 = vadd.f32 0.0, %v796
      %v798 = vpop.f32.mrf.mxu0
      %v799 = vpop.f32.mrf.mxu0
      %v800 = vadd.f32 0.0, %v799
      %v801 = vpop.f32.mrf.mxu0
      %802 = vdwg.mxu0
      %v803 = vadd.f32 %v672, %v797
      %v804 = vadd.f32 %v673, %v800
      %vm805 = vcmp.ge.f32.partialorder %v803, 0.0
      %vm806 = vcmp.ge.f32.partialorder %v804, 0.0
      %v807 = vmul.f32 %v803, 0.2
      %v808 = vmul.f32 %v804, 0.2
      %v809 = vsel %vm805, %v803, %v807
      %v810 = vsel %vm806, %v804, %v808
      %v811 = vpack.c.bf16 %v810, %v809
      %v813 = vunpack.c.l.b16 %v811
      %v814 = vunpack.c.h.b16 %v811
      %v815 = vpack.c.b16 %v813, %v813
      %v816 = vpack.c.b16 %v814, %v814
      %vm819 = vcmask 519168
      %820 = vst.msk [vmem:[%s180] sm:$0xf] %vm819, %v815
      %821 = vst.msk [vmem:[%s180 + $0x4] sm:$0xf] %vm819, %v816
      %p822 = scmp.lt.s32.totalorder %s17, 1
      %s823 = scalar_select %p822, %s17, 1
      %p824 = scmp.lt.s32.totalorder %s18, 0
      %s825 = scalar_select %p824, %s18, 0
      %s826 = smul.addr %s823, 2
      %s827 = sadd.s32 %s825, %s826
      %s828 = smul.addr %s827, 4
      %s829 = scalar_lea.vmem %s2, %s828
      // Predicated region
      $region29: #{a_call__.7} parent=27 // pred_check
        %p830 = pneg %p97
      $region30: #{a_call__.7} parent=27 // pred_check_branch
        %832 = sbr.rel (%p830) target = $region32
      $region31: #{a_call__.7} parent=27 // pred_region
        _
      $region32: #{a_call__.7} parent=27 // pred_fallthru
        _
    $region28: #{a_call__.7} parent=5 // pred_fallthru
      _
    %p833 = scmp.le.s32.totalorder 2, %s8
    // Predicated region
    $region33: #{a_call__.7} parent=5 // pred_check
      %p834 = pneg %p833
    $region34: #{a_call__.7} parent=5 // pred_check_branch
      %836 = sbr.rel (%p834) target = $region36
    $region35: #{a_call__.7} parent=5 // pred_region
      %s837 = ssub.s32 %s8, 2
      // Predicated region
      $region37: #{a_call__.7} parent=35 // pred_check
        %p838 = pneg %p103
      $region38: #{a_call__.7} parent=35 // pred_check_branch
        %840 = sbr.rel (%p838) target = $region40
      $region39: #{a_call__.7} parent=35 // pred_region
        %p841 = scmp.lt.s32.totalorder %s19, 1
        %s842 = scalar_select %p841, %s19, 1
        %p843 = scmp.lt.s32.totalorder %s20, 0
        %s844 = scalar_select %p843, %s20, 0
        %s845 = smul.addr %s842, 2
        %s846 = sadd.s32 %s844, %s845
        %s847 = smul.addr %s846, 4
        %s848 = scalar_lea.vmem %s2, %s847
      $region40: #{a_call__.7} parent=35 // pred_fallthru
        _
    $region36: #{a_call__.7} parent=5 // pred_fallthru
      _
  $region6: #{a_call__.7} parent=0 // loop_footer
    %s12 = sadd.s32 1, %s8
  $region7: #{a_call__.7} parent=0 // loop_footer_branch
    %7 = sbr.rel target = $region3
  $region8: #{a_call__.7} parent=0 // loop_exit
    _

</llo_original>
